<compile_context>
chip_gen: v6e
topology: v6e:2x2x1
jax: 0.10.0
libtpu: 0.0.40
codegen_flags: <defaults>
</compile_context>

<pallas_src>
import functools

import jax
import jax.numpy as jnp
from jax.experimental import pallas as pl
from jax.experimental.pallas import tpu as pltpu


# ----------------------------------------------------------------------------
# Pallas kernel: the whole cheb_conv forward for one batch tile = one GEMM + fused ReLU.
# ----------------------------------------------------------------------------
def _cheb_conv_kernel(x_ref, w_ref, out_ref, *, precision):
    """x_ref: (Bb, N*T*F)   w_ref: (N*T*F, N*T*O)   out_ref: (Bb, N*T*O) f32.

    Single MXU GEMM with f32 accumulation + fused ReLU.  No in-kernel reshapes,
    transposes, Python loops or accumulator scratch: batch rows are the MXU M dim,
    the contraction dim is N*T*F and the output is stored lane-dense (N*T*O lanes).
    """
    acc = jnp.dot(x_ref[...], w_ref[...],
                  precision=precision, preferred_element_type=jnp.float32)
    out_ref[...] = jnp.maximum(acc, 0.0).astype(out_ref.dtype)


# ----------------------------------------------------------------------------
# Batch-tile selection (perf review: big M, VMEM budget, >=2 grid steps, avoid padding).
# ----------------------------------------------------------------------------
def _auto_batch_tile(B, ntf, nto, in_itemsize, vmem_budget=40 << 20):
    row_bytes = 2 * (ntf * in_itemsize + nto * 4)   # double-buffered x row + f32 out row
    w_bytes = ntf * nto * in_itemsize               # weight (conservatively x2 buffered)
    avail = max(vmem_budget - 2 * w_bytes, 8 * row_bytes)
    max_rows = max(8, (avail // row_bytes) // 8 * 8)
    if B <= 8:
        return 8                                    # single aligned tile (pads B by < 8)
    cap = min(B, max_rows, 256)
    if B >= 16:
        cap = min(cap, B // 2)                      # keep >= 2 grid steps (v7x dual TC)
    cap = max(8, cap // 8 * 8)
    for bb in range(cap, 7, -8):                    # prefer a divisor of B -> no padding
        if B % bb == 0:
            return bb
    return 8                                        # fallback: pads B by < 8 rows only


# ----------------------------------------------------------------------------
# Wrapper: layout / weight fusion in plain JAX + pallas_call.
# ----------------------------------------------------------------------------
def cheb_conv_forward(x, cheb, theta, *, batch_tile=None, mxu_dtype=jnp.bfloat16):
    """x: (B, N, F_in, T) f32, cheb: (K, N, N), theta: (K, F_in, F_out)
    -> (B, N, F_out, T) f32 (matches the PyTorch module's forward)."""
    B, N, F, T = x.shape
    K, _, O = theta.shape
    assert cheb.shape == (K, N, N)
    NTF, NTO = N * T * F, N * T * O

    in_itemsize = jnp.dtype(mxu_dtype).itemsize
    w_bytes = NTF * NTO * in_itemsize
    if w_bytes > (12 << 20):
        # TODO(synk): fall back to the per-k block-diagonal kernel for large N*T instead
        # of materializing the fused Kronecker weight.
        raise NotImplementedError(
            f"fused Kronecker weight is {w_bytes / 2**20:.1f} MiB; too large for VMEM")

    # ---- one-time wrapper-side weight fusion (exact f32 elementwise ops, no matmuls) ---
    # ct[m, n, f, o] = sum_k T_k[m, n] * Theta_k[f, o]
    ct = (cheb.astype(jnp.float32)[:, :, :, None, None]
          * theta.astype(jnp.float32)[:, None, None, :, :]).sum(0)        # (N, N, F, O)
    ct = jnp.transpose(ct, (0, 2, 1, 3))                                  # (m, f, n, o)
    eye_t = jnp.eye(T, dtype=jnp.float32)
    # bigw[(m, t', f), (n, t, o)] = ct[m, f, n, o] * delta(t', t)
    bigw = (ct[:, None, :, :, None, :]
            * eye_t[None, :, None, None, :, None]).reshape(NTF, NTO)

    # x_flat[b, m*T*F + t*F + f] = x[b, m, f, t]
    x2 = jnp.transpose(x, (0, 1, 3, 2)).reshape(B, NTF)

    if mxu_dtype != jnp.float32:
        # bf16 (default): native MXU rate + half DMA bytes; accumulation stays f32.
        x2 = x2.astype(mxu_dtype)
        bigw = bigw.astype(mxu_dtype)
        precision = None
    else:
        # exact f32 path: pin precision locally (no global matmul-precision flag).
        precision = jax.lax.Precision.HIGHEST

    # ---- batch tiling (always a multiple of 8 rows -> clean (8,128) sublane tiling) ----
    if batch_tile is None:
        Bb = _auto_batch_tile(B, NTF, NTO, in_itemsize)
    else:
        Bb = max(1, int(batch_tile))
    Bb = ((Bb + 7) // 8) * 8
    Bb = min(Bb, ((B + 7) // 8) * 8)
    Bp = pl.cdiv(B, Bb) * Bb
    if Bp != B:
        # Only hit when B has no multiple-of-8 divisor tile; pads < Bb rows of zeros.
        x2 = jnp.pad(x2, ((0, Bp - B), (0, 0)))

    # ---- explicit VMEM budget (v7x-safe): double-buffered tiles + weight + headroom ----
    tile_bytes = 2 * Bb * (NTF * in_itemsize + NTO * 4)
    vmem_limit = int(min(48 << 20, max(tile_bytes + 2 * w_bytes + (8 << 20), 16 << 20)))

    out_flat = pl.pallas_call(
        functools.partial(_cheb_conv_kernel, precision=precision),
        out_shape=jax.ShapeDtypeStruct((Bp, NTO), jnp.float32),
        grid=(Bp // Bb,),
        in_specs=[
            pl.BlockSpec((Bb, NTF), lambda i: (i, 0)),      # batch tile of x
            pl.BlockSpec((NTF, NTO), lambda i: (0, 0)),     # fused weight (constant idx)
        ],
        out_specs=pl.BlockSpec((Bb, NTO), lambda i: (i, 0)),  # lane-dense output slab
        compiler_params=pltpu.CompilerParams(
            dimension_semantics=("parallel",),              # batch axis -> megacore/v7x
            vmem_limit_bytes=vmem_limit,
        ),
    )(x2, bigw)

    # back to the PyTorch convention (B, N, F_out, T)
    out = out_flat[:B].reshape(B, N, T, O)
    return jnp.transpose(out, (0, 1, 3, 2))


# ----------------------------------------------------------------------------
# Pure-JAX reference that mirrors the PyTorch forward exactly.
# ----------------------------------------------------------------------------
def cheb_conv_reference(x, cheb, theta):
    B, N, F, T = x.shape
    K, _, O = theta.shape
    hi = jax.lax.Precision.HIGHEST
    outs = []
    for t in range(T):
        gs = x[:, :, :, t]                                              # (B, N, F)
        acc = jnp.zeros((B, N, O), jnp.float32)
        for k in range(K):
            rhs = jnp.matmul(jnp.transpose(gs, (0, 2, 1)), cheb[k], precision=hi)
            rhs = jnp.transpose(rhs, (0, 2, 1))                         # (B, N, F)
            acc = acc + jnp.matmul(rhs, theta[k], precision=hi)         # (B, N, O)
        outs.append(acc[..., None])
    return jax.nn.relu(jnp.concatenate(outs, axis=-1))                  # (B, N, O, T)


# ----------------------------------------------------------------------------
if __name__ == "__main__":
    B, N, F_in, T = 2, 8, 4, 16
    K, F_out = 3, 8

    key = jax.random.PRNGKey(0)
    kx, ka, kt = jax.random.split(key, 3)
    x = jax.random.normal(kx, (B, N, F_in, T), dtype=jnp.float32)

    # Synthetic scaled Laplacian and its Chebyshev polynomials T_0..T_{K-1}.
    A = jax.random.normal(ka, (N, N), dtype=jnp.float32)
    L = 0.3 * (A + A.T) / 2.0
    polys = [jnp.eye(N, dtype=jnp.float32)]
    if K > 1:
        polys.append(L)
    for _ in range(2, K):
        polys.append(2.0 * L @ polys[-1] - polys[-2])
    cheb = jnp.stack(polys[:K])                                         # (K, N, N)

    theta = 0.1 * jax.random.normal(kt, (K, F_in, F_out), dtype=jnp.float32)

    ref = jax.block_until_ready(cheb_conv_reference(x, cheb, theta))

    # exact f32 MXU-operand path
    out_f32 = jax.block_until_ready(
        cheb_conv_forward(x, cheb, theta, mxu_dtype=jnp.float32))
    assert out_f32.shape == (B, N, F_out, T), out_f32.shape
    err_f32 = float(jnp.max(jnp.abs(out_f32 - ref)))
    assert err_f32 < 1e-3, f"f32 path max abs error vs reference: {err_f32}"

    # default bf16 MXU-operand path (f32 accumulation); looser but meaningful tolerance
    out_bf16 = jax.block_until_ready(cheb_conv_forward(x, cheb, theta))
    assert out_bf16.shape == (B, N, F_out, T), out_bf16.shape
    err_bf16 = float(jnp.max(jnp.abs(out_bf16 - ref)))
    assert err_bf16 < 3e-2, f"bf16 path max abs error vs reference: {err_bf16}"

    print("KERNEL_OK")
</pallas_src>

<mosaic_0001>
module attributes {stable_mosaic.version = 11 : i64} {
  func.func @_cheb_conv_kernel(%arg0: i32, %arg1: memref<8x512xf32, #tpu.memory_space<vmem>>, %arg2: memref<512x1024xf32, #tpu.memory_space<vmem>>, %arg3: memref<8x1024xf32, #tpu.memory_space<vmem>>) attributes {dimension_semantics = [#tpu.dimension_semantics<parallel>], iteration_bounds = array<i64: 1>, scalar_prefetch = 0 : i64, scratch_operands = 0 : i64, tpu.core_type = #tpu.core_type<tc>, window_params = [{transform_indices = @transform_0, window_bounds = array<i64: 8, 512>}, {pipeline_mode = #tpu.pipeline_mode<synchronous>, transform_indices = @transform_1, window_bounds = array<i64: 512, 1024>}, {transform_indices = @transform_2, window_bounds = array<i64: 8, 1024>}]} {
    %c0 = arith.constant 0 : index
    %c0_0 = arith.constant 0 : index
    %0 = vector.load %arg1[%c0, %c0_0] : memref<8x512xf32, #tpu.memory_space<vmem>>, vector<8x512xf32>
    %c0_1 = arith.constant 0 : index
    %c0_2 = arith.constant 0 : index
    %1 = vector.load %arg2[%c0_1, %c0_2] : memref<512x1024xf32, #tpu.memory_space<vmem>>, vector<512x1024xf32>
    %cst = arith.constant dense<0.000000e+00> : vector<8x1024xf32>
    %2 = tpu.matmul %0, %1, %cst {dimension_numbers = #tpu.dot_dimension_numbers<[1], [0], [0], [1], [0, 0, 1, 1], [], []>, precision = #tpu.contract_precision<fp32>} : vector<8x512xf32>, vector<512x1024xf32>, vector<8x1024xf32> -> vector<8x1024xf32>
    %cst_3 = arith.constant 0.000000e+00 : f32
    %3 = vector.broadcast %cst_3 : f32 to vector<8x1024xf32>
    %4 = arith.maximumf %2, %3 : vector<8x1024xf32>
    %c0_4 = arith.constant 0 : index
    %c0_5 = arith.constant 0 : index
    %5 = vector.load %arg3[%c0_4, %c0_5] : memref<8x1024xf32, #tpu.memory_space<vmem>>, vector<8x1024xf32>
    tpu.vector_store %arg3[%c0_4, %c0_5], %4 {strides = array<i32>} : memref<8x1024xf32, #tpu.memory_space<vmem>>, vector<8x1024xf32>,
    return
  }
  func.func @transform_0(%arg0: i32) -> (i32, i32) {
    %c0_i32 = arith.constant 0 : i32
    %c0_i32_0 = arith.constant 0 : i32
    return %arg0, %c0_i32 : i32, i32
  }
  func.func @transform_1(%arg0: i32) -> (i32, i32) {
    %c0_i32 = arith.constant 0 : i32
    %c0_i32_0 = arith.constant 0 : i32
    %c0_i32_1 = arith.constant 0 : i32
    return %c0_i32, %c0_i32_0 : i32, i32
  }
  func.func @transform_2(%arg0: i32) -> (i32, i32) {
    %c0_i32 = arith.constant 0 : i32
    %c0_i32_0 = arith.constant 0 : i32
    return %arg0, %c0_i32 : i32, i32
  }
}

</mosaic_0001>

<llo_original>
// kernel: tpu_custom_call.1
$region0: #{tpu_custom_call.1}
  #allocation0 [shape = 'u32[]', space=smem, size = 0x4, offset = 0x4, fixed_abs, tag = 'smem constant byte address 0x4 - core index']
  #allocation1 [shape = 'u32[144,128]{1,0:T(1,128)}', space=vmem, size = 0x12000, scoped, tag = 'internal scratch']
  %s0 = inlined_call_operand.hbm [shape: f32[8,512], index: 0, kind: input, shape index: {}]
  %s1 = inlined_call_operand.hbm [shape: f32[512,1024], index: 1, kind: input, shape index: {}]
  %s2 = inlined_call_operand.hbm [shape: f32[8,1024], index: 2, kind: output, shape index: {}]
  %s3 = sld [smem:[#allocation0]]
  $region26: #{tpu_custom_call.1} parent=0
    _
  %s5 = ssub.s32 1, %s3
  %s6 = scalar_select 0, %s5, %s3
  $region1: #{tpu_custom_call.1} parent=0
    #allocation2 [shape = 'u8[16384]{0}', space=vmem, size = 0x4000, scoped, tag = 'input window, operand 0, single buffered']
    #allocation3 [shape = 's32[1]{0}', space=sflag, size = 0x4, scoped, tag = 'scoped memory for tpu_custom_call.1']
    #allocation4 [shape = 's32[1]{0}', space=sflag, size = 0x4, scoped, tag = 'scoped memory for tpu_custom_call.1']
    #allocation5 [shape = 'u8[2097152]{0}', space=vmem, size = 0x200000, scoped, tag = 'input window, operand 1, single buffered']
    #allocation6 [shape = 's32[1]{0}', space=sflag, size = 0x4, scoped, tag = 'scoped memory for tpu_custom_call.1']
    #allocation7 [shape = 'u8[32768]{0}', space=vmem, size = 0x8000, scoped, tag = 'output window, operand 0, single buffered']
    %7 = vsyncpa [#allocation3], 0
    %8 = vsyncpa [#allocation6], 0
    %9 = vsyncpa [#allocation4], 0
    // Predicated region
    $region2: #{tpu_custom_call.1} parent=1 // pred_check
      _
    $region3: #{tpu_custom_call.1} parent=1 // pred_check_branch
      %11 = sbr.rel (0) target = $region5
    $region4: #{tpu_custom_call.1} parent=1 // pred_region
      %s13 = ssub.s32 512, 512
      %14 = vsyncadd [#allocation3], %s13
      %s16 = sshll.u32 [#allocation2], 4
      %s17 = int_to_ptr.vmem [resolvable:$true] %s16
      %19 = dma.hbm_to_vmem [thread:$0]  %s0, 512, %s17, [#allocation3]
    $region5: #{tpu_custom_call.1} parent=1 // pred_fallthru
      _
    // Predicated region
    $region6: #{tpu_custom_call.1} parent=1 // pred_check
      _
    $region7: #{tpu_custom_call.1} parent=1 // pred_check_branch
      %21 = sbr.rel (0) target = $region9
    $region8: #{tpu_custom_call.1} parent=1 // pred_region
      %s23 = ssub.s32 65536, 65536
      %24 = vsyncadd [#allocation6], %s23
      %s25 = sshll.u32 [#allocation5], 4
      %s26 = int_to_ptr.vmem [resolvable:$true] %s25
      %31 = dma.hbm_to_vmem [thread:$0]  %s1, 65536, %s26, [#allocation6], 1024, 1024, 64
    $region9: #{tpu_custom_call.1} parent=1 // pred_fallthru
      _
    // Predicated region
    $region10: #{tpu_custom_call.1} parent=1 // pred_check
      _
    $region11: #{tpu_custom_call.1} parent=1 // pred_check_branch
      %33 = sbr.rel (0) target = $region13
    $region12: #{tpu_custom_call.1} parent=1 // pred_region
      %34 = dma.done [#allocation3], 512
    $region13: #{tpu_custom_call.1} parent=1 // pred_fallthru
      _
    // Predicated region
    $region14: #{tpu_custom_call.1} parent=1 // pred_check
      _
    $region15: #{tpu_custom_call.1} parent=1 // pred_check_branch
      %36 = sbr.rel (0) target = $region17
    $region16: #{tpu_custom_call.1} parent=1 // pred_region
      %37 = dma.done [#allocation6], 65536
    $region17: #{tpu_custom_call.1} parent=1 // pred_fallthru
      _
    %v38 = vld [vmem:[#allocation2] sm:$0xff]
    %v39 = vld [vmem:[#allocation2 + $0x8] sm:$0xff]
    %v40 = vld [vmem:[#allocation2 + $0x10] sm:$0xff]
    %v41 = vld [vmem:[#allocation2 + $0x18] sm:$0xff]
    %v42 = vld [vmem:[#allocation5] sm:$0xff]
    %v43 = vld [vmem:[#allocation5 + $0x8] sm:$0xff]
    %v44 = vld [vmem:[#allocation5 + $0x10] sm:$0xff]
    %v45 = vld [vmem:[#allocation5 + $0x18] sm:$0xff]
    %v46 = vld [vmem:[#allocation5 + $0x20] sm:$0xff]
    %v47 = vld [vmem:[#allocation5 + $0x28] sm:$0xff]
    %v48 = vld [vmem:[#allocation5 + $0x30] sm:$0xff]
    %v49 = vld [vmem:[#allocation5 + $0x38] sm:$0xff]
    %v50 = vld [vmem:[#allocation5 + $0x40] sm:$0xff]
    %v51 = vld [vmem:[#allocation5 + $0x48] sm:$0xff]
    %v52 = vld [vmem:[#allocation5 + $0x50] sm:$0xff]
    %v53 = vld [vmem:[#allocation5 + $0x58] sm:$0xff]
    %v54 = vld [vmem:[#allocation5 + $0x60] sm:$0xff]
    %v55 = vld [vmem:[#allocation5 + $0x68] sm:$0xff]
    %v56 = vld [vmem:[#allocation5 + $0x70] sm:$0xff]
    %v57 = vld [vmem:[#allocation5 + $0x78] sm:$0xff]
    %v58 = vld [vmem:[#allocation5 + $0x80] sm:$0xff]
    %v59 = vld [vmem:[#allocation5 + $0x88] sm:$0xff]
    %v60 = vld [vmem:[#allocation5 + $0x90] sm:$0xff]
    %v61 = vld [vmem:[#allocation5 + $0x98] sm:$0xff]
    %v62 = vld [vmem:[#allocation5 + $0xa0] sm:$0xff]
    %v63 = vld [vmem:[#allocation5 + $0xa8] sm:$0xff]
    %v64 = vld [vmem:[#allocation5 + $0xb0] sm:$0xff]
    %v65 = vld [vmem:[#allocation5 + $0xb8] sm:$0xff]
    %v66 = vld [vmem:[#allocation5 + $0xc0] sm:$0xff]
    %v67 = vld [vmem:[#allocation5 + $0xc8] sm:$0xff]
    %v68 = vld [vmem:[#allocation5 + $0xd0] sm:$0xff]
    %v69 = vld [vmem:[#allocation5 + $0xd8] sm:$0xff]
    %v70 = vld [vmem:[#allocation5 + $0xe0] sm:$0xff]
    %v71 = vld [vmem:[#allocation5 + $0xe8] sm:$0xff]
    %v72 = vld [vmem:[#allocation5 + $0xf0] sm:$0xff]
    %v73 = vld [vmem:[#allocation5 + $0xf8] sm:$0xff]
    %v74 = vld [vmem:[#allocation5 + $0x100] sm:$0xff]
    %v75 = vld [vmem:[#allocation5 + $0x108] sm:$0xff]
    %v76 = vld [vmem:[#allocation5 + $0x110] sm:$0xff]
    %v77 = vld [vmem:[#allocation5 + $0x118] sm:$0xff]
    %v78 = vld [vmem:[#allocation5 + $0x120] sm:$0xff]
    %v79 = vld [vmem:[#allocation5 + $0x128] sm:$0xff]
    %v80 = vld [vmem:[#allocation5 + $0x130] sm:$0xff]
    %v81 = vld [vmem:[#allocation5 + $0x138] sm:$0xff]
    %v82 = vld [vmem:[#allocation5 + $0x140] sm:$0xff]
    %v83 = vld [vmem:[#allocation5 + $0x148] sm:$0xff]
    %v84 = vld [vmem:[#allocation5 + $0x150] sm:$0xff]
    %v85 = vld [vmem:[#allocation5 + $0x158] sm:$0xff]
    %v86 = vld [vmem:[#allocation5 + $0x160] sm:$0xff]
    %v87 = vld [vmem:[#allocation5 + $0x168] sm:$0xff]
    %v88 = vld [vmem:[#allocation5 + $0x170] sm:$0xff]
    %v89 = vld [vmem:[#allocation5 + $0x178] sm:$0xff]
    %v90 = vld [vmem:[#allocation5 + $0x180] sm:$0xff]
    %v91 = vld [vmem:[#allocation5 + $0x188] sm:$0xff]
    %v92 = vld [vmem:[#allocation5 + $0x190] sm:$0xff]
    %v93 = vld [vmem:[#allocation5 + $0x198] sm:$0xff]
    %v94 = vld [vmem:[#allocation5 + $0x1a0] sm:$0xff]
    %v95 = vld [vmem:[#allocation5 + $0x1a8] sm:$0xff]
    %v96 = vld [vmem:[#allocation5 + $0x1b0] sm:$0xff]
    %v97 = vld [vmem:[#allocation5 + $0x1b8] sm:$0xff]
    %v98 = vld [vmem:[#allocation5 + $0x1c0] sm:$0xff]
    %v99 = vld [vmem:[#allocation5 + $0x1c8] sm:$0xff]
    %v100 = vld [vmem:[#allocation5 + $0x1d0] sm:$0xff]
    %v101 = vld [vmem:[#allocation5 + $0x1d8] sm:$0xff]
    %v102 = vld [vmem:[#allocation5 + $0x1e0] sm:$0xff]
    %v103 = vld [vmem:[#allocation5 + $0x1e8] sm:$0xff]
    %v104 = vld [vmem:[#allocation5 + $0x1f0] sm:$0xff]
    %v105 = vld [vmem:[#allocation5 + $0x1f8] sm:$0xff]
    %v106 = vld [vmem:[#allocation5 + $0x200] sm:$0xff]
    %v107 = vld [vmem:[#allocation5 + $0x208] sm:$0xff]
    %v108 = vld [vmem:[#allocation5 + $0x210] sm:$0xff]
    %v109 = vld [vmem:[#allocation5 + $0x218] sm:$0xff]
    %v110 = vld [vmem:[#allocation5 + $0x220] sm:$0xff]
    %v111 = vld [vmem:[#allocation5 + $0x228] sm:$0xff]
    %v112 = vld [vmem:[#allocation5 + $0x230] sm:$0xff]
    %v113 = vld [vmem:[#allocation5 + $0x238] sm:$0xff]
    %v114 = vld [vmem:[#allocation5 + $0x240] sm:$0xff]
    %v115 = vld [vmem:[#allocation5 + $0x248] sm:$0xff]
    %v116 = vld [vmem:[#allocation5 + $0x250] sm:$0xff]
    %v117 = vld [vmem:[#allocation5 + $0x258] sm:$0xff]
    %v118 = vld [vmem:[#allocation5 + $0x260] sm:$0xff]
    %v119 = vld [vmem:[#allocation5 + $0x268] sm:$0xff]
    %v120 = vld [vmem:[#allocation5 + $0x270] sm:$0xff]
    %v121 = vld [vmem:[#allocation5 + $0x278] sm:$0xff]
    %v122 = vld [vmem:[#allocation5 + $0x280] sm:$0xff]
    %v123 = vld [vmem:[#allocation5 + $0x288] sm:$0xff]
    %v124 = vld [vmem:[#allocation5 + $0x290] sm:$0xff]
    %v125 = vld [vmem:[#allocation5 + $0x298] sm:$0xff]
    %v126 = vld [vmem:[#allocation5 + $0x2a0] sm:$0xff]
    %v127 = vld [vmem:[#allocation5 + $0x2a8] sm:$0xff]
    %v128 = vld [vmem:[#allocation5 + $0x2b0] sm:$0xff]
    %v129 = vld [vmem:[#allocation5 + $0x2b8] sm:$0xff]
    %v130 = vld [vmem:[#allocation5 + $0x2c0] sm:$0xff]
    %v131 = vld [vmem:[#allocation5 + $0x2c8] sm:$0xff]
    %v132 = vld [vmem:[#allocation5 + $0x2d0] sm:$0xff]
    %v133 = vld [vmem:[#allocation5 + $0x2d8] sm:$0xff]
    %v134 = vld [vmem:[#allocation5 + $0x2e0] sm:$0xff]
    %v135 = vld [vmem:[#allocation5 + $0x2e8] sm:$0xff]
    %v136 = vld [vmem:[#allocation5 + $0x2f0] sm:$0xff]
    %v137 = vld [vmem:[#allocation5 + $0x2f8] sm:$0xff]
    %v138 = vld [vmem:[#allocation5 + $0x300] sm:$0xff]
    %v139 = vld [vmem:[#allocation5 + $0x308] sm:$0xff]
    %v140 = vld [vmem:[#allocation5 + $0x310] sm:$0xff]
    %v141 = vld [vmem:[#allocation5 + $0x318] sm:$0xff]
    %v142 = vld [vmem:[#allocation5 + $0x320] sm:$0xff]
    %v143 = vld [vmem:[#allocation5 + $0x328] sm:$0xff]
    %v144 = vld [vmem:[#allocation5 + $0x330] sm:$0xff]
    %v145 = vld [vmem:[#allocation5 + $0x338] sm:$0xff]
    %v146 = vld [vmem:[#allocation5 + $0x340] sm:$0xff]
    %v147 = vld [vmem:[#allocation5 + $0x348] sm:$0xff]
    %v148 = vld [vmem:[#allocation5 + $0x350] sm:$0xff]
    %v149 = vld [vmem:[#allocation5 + $0x358] sm:$0xff]
    %v150 = vld [vmem:[#allocation5 + $0x360] sm:$0xff]
    %v151 = vld [vmem:[#allocation5 + $0x368] sm:$0xff]
    %v152 = vld [vmem:[#allocation5 + $0x370] sm:$0xff]
    %v153 = vld [vmem:[#allocation5 + $0x378] sm:$0xff]
    %v154 = vld [vmem:[#allocation5 + $0x380] sm:$0xff]
    %v155 = vld [vmem:[#allocation5 + $0x388] sm:$0xff]
    %v156 = vld [vmem:[#allocation5 + $0x390] sm:$0xff]
    %v157 = vld [vmem:[#allocation5 + $0x398] sm:$0xff]
    %v158 = vld [vmem:[#allocation5 + $0x3a0] sm:$0xff]
    %v159 = vld [vmem:[#allocation5 + $0x3a8] sm:$0xff]
    %v160 = vld [vmem:[#allocation5 + $0x3b0] sm:$0xff]
    %v161 = vld [vmem:[#allocation5 + $0x3b8] sm:$0xff]
    %v162 = vld [vmem:[#allocation5 + $0x3c0] sm:$0xff]
    %v163 = vld [vmem:[#allocation5 + $0x3c8] sm:$0xff]
    %v164 = vld [vmem:[#allocation5 + $0x3d0] sm:$0xff]
    %v165 = vld [vmem:[#allocation5 + $0x3d8] sm:$0xff]
    %v166 = vld [vmem:[#allocation5 + $0x3e0] sm:$0xff]
    %v167 = vld [vmem:[#allocation5 + $0x3e8] sm:$0xff]
    %v168 = vld [vmem:[#allocation5 + $0x3f0] sm:$0xff]
    %v169 = vld [vmem:[#allocation5 + $0x3f8] sm:$0xff]
    %v170 = vld [vmem:[#allocation5 + $0x400] sm:$0xff]
    %v171 = vld [vmem:[#allocation5 + $0x408] sm:$0xff]
    %v172 = vld [vmem:[#allocation5 + $0x410] sm:$0xff]
    %v173 = vld [vmem:[#allocation5 + $0x418] sm:$0xff]
    %v174 = vld [vmem:[#allocation5 + $0x420] sm:$0xff]
    %v175 = vld [vmem:[#allocation5 + $0x428] sm:$0xff]
    %v176 = vld [vmem:[#allocation5 + $0x430] sm:$0xff]
    %v177 = vld [vmem:[#allocation5 + $0x438] sm:$0xff]
    %v178 = vld [vmem:[#allocation5 + $0x440] sm:$0xff]
    %v179 = vld [vmem:[#allocation5 + $0x448] sm:$0xff]
    %v180 = vld [vmem:[#allocation5 + $0x450] sm:$0xff]
    %v181 = vld [vmem:[#allocation5 + $0x458] sm:$0xff]
    %v182 = vld [vmem:[#allocation5 + $0x460] sm:$0xff]
    %v183 = vld [vmem:[#allocation5 + $0x468] sm:$0xff]
    %v184 = vld [vmem:[#allocation5 + $0x470] sm:$0xff]
    %v185 = vld [vmem:[#allocation5 + $0x478] sm:$0xff]
    %v186 = vld [vmem:[#allocation5 + $0x480] sm:$0xff]
    %v187 = vld [vmem:[#allocation5 + $0x488] sm:$0xff]
    %v188 = vld [vmem:[#allocation5 + $0x490] sm:$0xff]
    %v189 = vld [vmem:[#allocation5 + $0x498] sm:$0xff]
    %v190 = vld [vmem:[#allocation5 + $0x4a0] sm:$0xff]
    %v191 = vld [vmem:[#allocation5 + $0x4a8] sm:$0xff]
    %v192 = vld [vmem:[#allocation5 + $0x4b0] sm:$0xff]
    %v193 = vld [vmem:[#allocation5 + $0x4b8] sm:$0xff]
    %v194 = vld [vmem:[#allocation5 + $0x4c0] sm:$0xff]
    %v195 = vld [vmem:[#allocation5 + $0x4c8] sm:$0xff]
    %v196 = vld [vmem:[#allocation5 + $0x4d0] sm:$0xff]
    %v197 = vld [vmem:[#allocation5 + $0x4d8] sm:$0xff]
    %v198 = vld [vmem:[#allocation5 + $0x4e0] sm:$0xff]
    %v199 = vld [vmem:[#allocation5 + $0x4e8] sm:$0xff]
    %v200 = vld [vmem:[#allocation5 + $0x4f0] sm:$0xff]
    %v201 = vld [vmem:[#allocation5 + $0x4f8] sm:$0xff]
    %v202 = vld [vmem:[#allocation5 + $0x500] sm:$0xff]
    %v203 = vld [vmem:[#allocation5 + $0x508] sm:$0xff]
    %v204 = vld [vmem:[#allocation5 + $0x510] sm:$0xff]
    %v205 = vld [vmem:[#allocation5 + $0x518] sm:$0xff]
    %v206 = vld [vmem:[#allocation5 + $0x520] sm:$0xff]
    %v207 = vld [vmem:[#allocation5 + $0x528] sm:$0xff]
    %v208 = vld [vmem:[#allocation5 + $0x530] sm:$0xff]
    %v209 = vld [vmem:[#allocation5 + $0x538] sm:$0xff]
    %v210 = vld [vmem:[#allocation5 + $0x540] sm:$0xff]
    %v211 = vld [vmem:[#allocation5 + $0x548] sm:$0xff]
    %v212 = vld [vmem:[#allocation5 + $0x550] sm:$0xff]
    %v213 = vld [vmem:[#allocation5 + $0x558] sm:$0xff]
    %v214 = vld [vmem:[#allocation5 + $0x560] sm:$0xff]
    %v215 = vld [vmem:[#allocation5 + $0x568] sm:$0xff]
    %v216 = vld [vmem:[#allocation5 + $0x570] sm:$0xff]
    %v217 = vld [vmem:[#allocation5 + $0x578] sm:$0xff]
    %v218 = vld [vmem:[#allocation5 + $0x580] sm:$0xff]
    %v219 = vld [vmem:[#allocation5 + $0x588] sm:$0xff]
    %v220 = vld [vmem:[#allocation5 + $0x590] sm:$0xff]
    %v221 = vld [vmem:[#allocation5 + $0x598] sm:$0xff]
    %v222 = vld [vmem:[#allocation5 + $0x5a0] sm:$0xff]
    %v223 = vld [vmem:[#allocation5 + $0x5a8] sm:$0xff]
    %v224 = vld [vmem:[#allocation5 + $0x5b0] sm:$0xff]
    %v225 = vld [vmem:[#allocation5 + $0x5b8] sm:$0xff]
    %v226 = vld [vmem:[#allocation5 + $0x5c0] sm:$0xff]
    %v227 = vld [vmem:[#allocation5 + $0x5c8] sm:$0xff]
    %v228 = vld [vmem:[#allocation5 + $0x5d0] sm:$0xff]
    %v229 = vld [vmem:[#allocation5 + $0x5d8] sm:$0xff]
    %v230 = vld [vmem:[#allocation5 + $0x5e0] sm:$0xff]
    %v231 = vld [vmem:[#allocation5 + $0x5e8] sm:$0xff]
    %v232 = vld [vmem:[#allocation5 + $0x5f0] sm:$0xff]
    %v233 = vld [vmem:[#allocation5 + $0x5f8] sm:$0xff]
    %v234 = vld [vmem:[#allocation5 + $0x600] sm:$0xff]
    %v235 = vld [vmem:[#allocation5 + $0x608] sm:$0xff]
    %v236 = vld [vmem:[#allocation5 + $0x610] sm:$0xff]
    %v237 = vld [vmem:[#allocation5 + $0x618] sm:$0xff]
    %v238 = vld [vmem:[#allocation5 + $0x620] sm:$0xff]
    %v239 = vld [vmem:[#allocation5 + $0x628] sm:$0xff]
    %v240 = vld [vmem:[#allocation5 + $0x630] sm:$0xff]
    %v241 = vld [vmem:[#allocation5 + $0x638] sm:$0xff]
    %v242 = vld [vmem:[#allocation5 + $0x640] sm:$0xff]
    %v243 = vld [vmem:[#allocation5 + $0x648] sm:$0xff]
    %v244 = vld [vmem:[#allocation5 + $0x650] sm:$0xff]
    %v245 = vld [vmem:[#allocation5 + $0x658] sm:$0xff]
    %v246 = vld [vmem:[#allocation5 + $0x660] sm:$0xff]
    %v247 = vld [vmem:[#allocation5 + $0x668] sm:$0xff]
    %v248 = vld [vmem:[#allocation5 + $0x670] sm:$0xff]
    %v249 = vld [vmem:[#allocation5 + $0x678] sm:$0xff]
    %v250 = vld [vmem:[#allocation5 + $0x680] sm:$0xff]
    %v251 = vld [vmem:[#allocation5 + $0x688] sm:$0xff]
    %v252 = vld [vmem:[#allocation5 + $0x690] sm:$0xff]
    %v253 = vld [vmem:[#allocation5 + $0x698] sm:$0xff]
    %v254 = vld [vmem:[#allocation5 + $0x6a0] sm:$0xff]
    %v255 = vld [vmem:[#allocation5 + $0x6a8] sm:$0xff]
    %v256 = vld [vmem:[#allocation5 + $0x6b0] sm:$0xff]
    %v257 = vld [vmem:[#allocation5 + $0x6b8] sm:$0xff]
    %v258 = vld [vmem:[#allocation5 + $0x6c0] sm:$0xff]
    %v259 = vld [vmem:[#allocation5 + $0x6c8] sm:$0xff]
    %v260 = vld [vmem:[#allocation5 + $0x6d0] sm:$0xff]
    %v261 = vld [vmem:[#allocation5 + $0x6d8] sm:$0xff]
    %v262 = vld [vmem:[#allocation5 + $0x6e0] sm:$0xff]
    %v263 = vld [vmem:[#allocation5 + $0x6e8] sm:$0xff]
    %v264 = vld [vmem:[#allocation5 + $0x6f0] sm:$0xff]
    %v265 = vld [vmem:[#allocation5 + $0x6f8] sm:$0xff]
    %v266 = vld [vmem:[#allocation5 + $0x700] sm:$0xff]
    %v267 = vld [vmem:[#allocation5 + $0x708] sm:$0xff]
    %v268 = vld [vmem:[#allocation5 + $0x710] sm:$0xff]
    %v269 = vld [vmem:[#allocation5 + $0x718] sm:$0xff]
    %v270 = vld [vmem:[#allocation5 + $0x720] sm:$0xff]
    %v271 = vld [vmem:[#allocation5 + $0x728] sm:$0xff]
    %v272 = vld [vmem:[#allocation5 + $0x730] sm:$0xff]
    %v273 = vld [vmem:[#allocation5 + $0x738] sm:$0xff]
    %v274 = vld [vmem:[#allocation5 + $0x740] sm:$0xff]
    %v275 = vld [vmem:[#allocation5 + $0x748] sm:$0xff]
    %v276 = vld [vmem:[#allocation5 + $0x750] sm:$0xff]
    %v277 = vld [vmem:[#allocation5 + $0x758] sm:$0xff]
    %v278 = vld [vmem:[#allocation5 + $0x760] sm:$0xff]
    %v279 = vld [vmem:[#allocation5 + $0x768] sm:$0xff]
    %v280 = vld [vmem:[#allocation5 + $0x770] sm:$0xff]
    %v281 = vld [vmem:[#allocation5 + $0x778] sm:$0xff]
    %v282 = vld [vmem:[#allocation5 + $0x780] sm:$0xff]
    %v283 = vld [vmem:[#allocation5 + $0x788] sm:$0xff]
    %v284 = vld [vmem:[#allocation5 + $0x790] sm:$0xff]
    %v285 = vld [vmem:[#allocation5 + $0x798] sm:$0xff]
    %v286 = vld [vmem:[#allocation5 + $0x7a0] sm:$0xff]
    %v287 = vld [vmem:[#allocation5 + $0x7a8] sm:$0xff]
    %v288 = vld [vmem:[#allocation5 + $0x7b0] sm:$0xff]
    %v289 = vld [vmem:[#allocation5 + $0x7b8] sm:$0xff]
    %v290 = vld [vmem:[#allocation5 + $0x7c0] sm:$0xff]
    %v291 = vld [vmem:[#allocation5 + $0x7c8] sm:$0xff]
    %v292 = vld [vmem:[#allocation5 + $0x7d0] sm:$0xff]
    %v293 = vld [vmem:[#allocation5 + $0x7d8] sm:$0xff]
    %v294 = vld [vmem:[#allocation5 + $0x7e0] sm:$0xff]
    %v295 = vld [vmem:[#allocation5 + $0x7e8] sm:$0xff]
    %v296 = vld [vmem:[#allocation5 + $0x7f0] sm:$0xff]
    %v297 = vld [vmem:[#allocation5 + $0x7f8] sm:$0xff]
    %v298 = vld [vmem:[#allocation5 + $0x800] sm:$0xff]
    %v299 = vld [vmem:[#allocation5 + $0x808] sm:$0xff]
    %v300 = vld [vmem:[#allocation5 + $0x810] sm:$0xff]
    %v301 = vld [vmem:[#allocation5 + $0x818] sm:$0xff]
    %v302 = vld [vmem:[#allocation5 + $0x820] sm:$0xff]
    %v303 = vld [vmem:[#allocation5 + $0x828] sm:$0xff]
    %v304 = vld [vmem:[#allocation5 + $0x830] sm:$0xff]
    %v305 = vld [vmem:[#allocation5 + $0x838] sm:$0xff]
    %v306 = vld [vmem:[#allocation5 + $0x840] sm:$0xff]
    %v307 = vld [vmem:[#allocation5 + $0x848] sm:$0xff]
    %v308 = vld [vmem:[#allocation5 + $0x850] sm:$0xff]
    %v309 = vld [vmem:[#allocation5 + $0x858] sm:$0xff]
    %v310 = vld [vmem:[#allocation5 + $0x860] sm:$0xff]
    %v311 = vld [vmem:[#allocation5 + $0x868] sm:$0xff]
    %v312 = vld [vmem:[#allocation5 + $0x870] sm:$0xff]
    %v313 = vld [vmem:[#allocation5 + $0x878] sm:$0xff]
    %v314 = vld [vmem:[#allocation5 + $0x880] sm:$0xff]
    %v315 = vld [vmem:[#allocation5 + $0x888] sm:$0xff]
    %v316 = vld [vmem:[#allocation5 + $0x890] sm:$0xff]
    %v317 = vld [vmem:[#allocation5 + $0x898] sm:$0xff]
    %v318 = vld [vmem:[#allocation5 + $0x8a0] sm:$0xff]
    %v319 = vld [vmem:[#allocation5 + $0x8a8] sm:$0xff]
    %v320 = vld [vmem:[#allocation5 + $0x8b0] sm:$0xff]
    %v321 = vld [vmem:[#allocation5 + $0x8b8] sm:$0xff]
    %v322 = vld [vmem:[#allocation5 + $0x8c0] sm:$0xff]
    %v323 = vld [vmem:[#allocation5 + $0x8c8] sm:$0xff]
    %v324 = vld [vmem:[#allocation5 + $0x8d0] sm:$0xff]
    %v325 = vld [vmem:[#allocation5 + $0x8d8] sm:$0xff]
    %v326 = vld [vmem:[#allocation5 + $0x8e0] sm:$0xff]
    %v327 = vld [vmem:[#allocation5 + $0x8e8] sm:$0xff]
    %v328 = vld [vmem:[#allocation5 + $0x8f0] sm:$0xff]
    %v329 = vld [vmem:[#allocation5 + $0x8f8] sm:$0xff]
    %v330 = vld [vmem:[#allocation5 + $0x900] sm:$0xff]
    %v331 = vld [vmem:[#allocation5 + $0x908] sm:$0xff]
    %v332 = vld [vmem:[#allocation5 + $0x910] sm:$0xff]
    %v333 = vld [vmem:[#allocation5 + $0x918] sm:$0xff]
    %v334 = vld [vmem:[#allocation5 + $0x920] sm:$0xff]
    %v335 = vld [vmem:[#allocation5 + $0x928] sm:$0xff]
    %v336 = vld [vmem:[#allocation5 + $0x930] sm:$0xff]
    %v337 = vld [vmem:[#allocation5 + $0x938] sm:$0xff]
    %v338 = vld [vmem:[#allocation5 + $0x940] sm:$0xff]
    %v339 = vld [vmem:[#allocation5 + $0x948] sm:$0xff]
    %v340 = vld [vmem:[#allocation5 + $0x950] sm:$0xff]
    %v341 = vld [vmem:[#allocation5 + $0x958] sm:$0xff]
    %v342 = vld [vmem:[#allocation5 + $0x960] sm:$0xff]
    %v343 = vld [vmem:[#allocation5 + $0x968] sm:$0xff]
    %v344 = vld [vmem:[#allocation5 + $0x970] sm:$0xff]
    %v345 = vld [vmem:[#allocation5 + $0x978] sm:$0xff]
    %v346 = vld [vmem:[#allocation5 + $0x980] sm:$0xff]
    %v347 = vld [vmem:[#allocation5 + $0x988] sm:$0xff]
    %v348 = vld [vmem:[#allocation5 + $0x990] sm:$0xff]
    %v349 = vld [vmem:[#allocation5 + $0x998] sm:$0xff]
    %v350 = vld [vmem:[#allocation5 + $0x9a0] sm:$0xff]
    %v351 = vld [vmem:[#allocation5 + $0x9a8] sm:$0xff]
    %v352 = vld [vmem:[#allocation5 + $0x9b0] sm:$0xff]
    %v353 = vld [vmem:[#allocation5 + $0x9b8] sm:$0xff]
    %v354 = vld [vmem:[#allocation5 + $0x9c0] sm:$0xff]
    %v355 = vld [vmem:[#allocation5 + $0x9c8] sm:$0xff]
    %v356 = vld [vmem:[#allocation5 + $0x9d0] sm:$0xff]
    %v357 = vld [vmem:[#allocation5 + $0x9d8] sm:$0xff]
    %v358 = vld [vmem:[#allocation5 + $0x9e0] sm:$0xff]
    %v359 = vld [vmem:[#allocation5 + $0x9e8] sm:$0xff]
    %v360 = vld [vmem:[#allocation5 + $0x9f0] sm:$0xff]
    %v361 = vld [vmem:[#allocation5 + $0x9f8] sm:$0xff]
    %v362 = vld [vmem:[#allocation5 + $0xa00] sm:$0xff]
    %v363 = vld [vmem:[#allocation5 + $0xa08] sm:$0xff]
    %v364 = vld [vmem:[#allocation5 + $0xa10] sm:$0xff]
    %v365 = vld [vmem:[#allocation5 + $0xa18] sm:$0xff]
    %v366 = vld [vmem:[#allocation5 + $0xa20] sm:$0xff]
    %v367 = vld [vmem:[#allocation5 + $0xa28] sm:$0xff]
    %v368 = vld [vmem:[#allocation5 + $0xa30] sm:$0xff]
    %v369 = vld [vmem:[#allocation5 + $0xa38] sm:$0xff]
    %v370 = vld [vmem:[#allocation5 + $0xa40] sm:$0xff]
    %v371 = vld [vmem:[#allocation5 + $0xa48] sm:$0xff]
    %v372 = vld [vmem:[#allocation5 + $0xa50] sm:$0xff]
    %v373 = vld [vmem:[#allocation5 + $0xa58] sm:$0xff]
    %v374 = vld [vmem:[#allocation5 + $0xa60] sm:$0xff]
    %v375 = vld [vmem:[#allocation5 + $0xa68] sm:$0xff]
    %v376 = vld [vmem:[#allocation5 + $0xa70] sm:$0xff]
    %v377 = vld [vmem:[#allocation5 + $0xa78] sm:$0xff]
    %v378 = vld [vmem:[#allocation5 + $0xa80] sm:$0xff]
    %v379 = vld [vmem:[#allocation5 + $0xa88] sm:$0xff]
    %v380 = vld [vmem:[#allocation5 + $0xa90] sm:$0xff]
    %v381 = vld [vmem:[#allocation5 + $0xa98] sm:$0xff]
    %v382 = vld [vmem:[#allocation5 + $0xaa0] sm:$0xff]
    %v383 = vld [vmem:[#allocation5 + $0xaa8] sm:$0xff]
    %v384 = vld [vmem:[#allocation5 + $0xab0] sm:$0xff]
    %v385 = vld [vmem:[#allocation5 + $0xab8] sm:$0xff]
    %v386 = vld [vmem:[#allocation5 + $0xac0] sm:$0xff]
    %v387 = vld [vmem:[#allocation5 + $0xac8] sm:$0xff]
    %v388 = vld [vmem:[#allocation5 + $0xad0] sm:$0xff]
    %v389 = vld [vmem:[#allocation5 + $0xad8] sm:$0xff]
    %v390 = vld [vmem:[#allocation5 + $0xae0] sm:$0xff]
    %v391 = vld [vmem:[#allocation5 + $0xae8] sm:$0xff]
    %v392 = vld [vmem:[#allocation5 + $0xaf0] sm:$0xff]
    %v393 = vld [vmem:[#allocation5 + $0xaf8] sm:$0xff]
    %v394 = vld [vmem:[#allocation5 + $0xb00] sm:$0xff]
    %v395 = vld [vmem:[#allocation5 + $0xb08] sm:$0xff]
    %v396 = vld [vmem:[#allocation5 + $0xb10] sm:$0xff]
    %v397 = vld [vmem:[#allocation5 + $0xb18] sm:$0xff]
    %v398 = vld [vmem:[#allocation5 + $0xb20] sm:$0xff]
    %v399 = vld [vmem:[#allocation5 + $0xb28] sm:$0xff]
    %v400 = vld [vmem:[#allocation5 + $0xb30] sm:$0xff]
    %v401 = vld [vmem:[#allocation5 + $0xb38] sm:$0xff]
    %v402 = vld [vmem:[#allocation5 + $0xb40] sm:$0xff]
    %v403 = vld [vmem:[#allocation5 + $0xb48] sm:$0xff]
    %v404 = vld [vmem:[#allocation5 + $0xb50] sm:$0xff]
    %v405 = vld [vmem:[#allocation5 + $0xb58] sm:$0xff]
    %v406 = vld [vmem:[#allocation5 + $0xb60] sm:$0xff]
    %v407 = vld [vmem:[#allocation5 + $0xb68] sm:$0xff]
    %v408 = vld [vmem:[#allocation5 + $0xb70] sm:$0xff]
    %v409 = vld [vmem:[#allocation5 + $0xb78] sm:$0xff]
    %v410 = vld [vmem:[#allocation5 + $0xb80] sm:$0xff]
    %v411 = vld [vmem:[#allocation5 + $0xb88] sm:$0xff]
    %v412 = vld [vmem:[#allocation5 + $0xb90] sm:$0xff]
    %v413 = vld [vmem:[#allocation5 + $0xb98] sm:$0xff]
    %v414 = vld [vmem:[#allocation5 + $0xba0] sm:$0xff]
    %v415 = vld [vmem:[#allocation5 + $0xba8] sm:$0xff]
    %v416 = vld [vmem:[#allocation5 + $0xbb0] sm:$0xff]
    %v417 = vld [vmem:[#allocation5 + $0xbb8] sm:$0xff]
    %v418 = vld [vmem:[#allocation5 + $0xbc0] sm:$0xff]
    %v419 = vld [vmem:[#allocation5 + $0xbc8] sm:$0xff]
    %v420 = vld [vmem:[#allocation5 + $0xbd0] sm:$0xff]
    %v421 = vld [vmem:[#allocation5 + $0xbd8] sm:$0xff]
    %v422 = vld [vmem:[#allocation5 + $0xbe0] sm:$0xff]
    %v423 = vld [vmem:[#allocation5 + $0xbe8] sm:$0xff]
    %v424 = vld [vmem:[#allocation5 + $0xbf0] sm:$0xff]
    %v425 = vld [vmem:[#allocation5 + $0xbf8] sm:$0xff]
    %v426 = vld [vmem:[#allocation5 + $0xc00] sm:$0xff]
    %v427 = vld [vmem:[#allocation5 + $0xc08] sm:$0xff]
    %v428 = vld [vmem:[#allocation5 + $0xc10] sm:$0xff]
    %v429 = vld [vmem:[#allocation5 + $0xc18] sm:$0xff]
    %v430 = vld [vmem:[#allocation5 + $0xc20] sm:$0xff]
    %v431 = vld [vmem:[#allocation5 + $0xc28] sm:$0xff]
    %v432 = vld [vmem:[#allocation5 + $0xc30] sm:$0xff]
    %v433 = vld [vmem:[#allocation5 + $0xc38] sm:$0xff]
    %v434 = vld [vmem:[#allocation5 + $0xc40] sm:$0xff]
    %v435 = vld [vmem:[#allocation5 + $0xc48] sm:$0xff]
    %v436 = vld [vmem:[#allocation5 + $0xc50] sm:$0xff]
    %v437 = vld [vmem:[#allocation5 + $0xc58] sm:$0xff]
    %v438 = vld [vmem:[#allocation5 + $0xc60] sm:$0xff]
    %v439 = vld [vmem:[#allocation5 + $0xc68] sm:$0xff]
    %v440 = vld [vmem:[#allocation5 + $0xc70] sm:$0xff]
    %v441 = vld [vmem:[#allocation5 + $0xc78] sm:$0xff]
    %v442 = vld [vmem:[#allocation5 + $0xc80] sm:$0xff]
    %v443 = vld [vmem:[#allocation5 + $0xc88] sm:$0xff]
    %v444 = vld [vmem:[#allocation5 + $0xc90] sm:$0xff]
    %v445 = vld [vmem:[#allocation5 + $0xc98] sm:$0xff]
    %v446 = vld [vmem:[#allocation5 + $0xca0] sm:$0xff]
    %v447 = vld [vmem:[#allocation5 + $0xca8] sm:$0xff]
    %v448 = vld [vmem:[#allocation5 + $0xcb0] sm:$0xff]
    %v449 = vld [vmem:[#allocation5 + $0xcb8] sm:$0xff]
    %v450 = vld [vmem:[#allocation5 + $0xcc0] sm:$0xff]
    %v451 = vld [vmem:[#allocation5 + $0xcc8] sm:$0xff]
    %v452 = vld [vmem:[#allocation5 + $0xcd0] sm:$0xff]
    %v453 = vld [vmem:[#allocation5 + $0xcd8] sm:$0xff]
    %v454 = vld [vmem:[#allocation5 + $0xce0] sm:$0xff]
    %v455 = vld [vmem:[#allocation5 + $0xce8] sm:$0xff]
    %v456 = vld [vmem:[#allocation5 + $0xcf0] sm:$0xff]
    %v457 = vld [vmem:[#allocation5 + $0xcf8] sm:$0xff]
    %v458 = vld [vmem:[#allocation5 + $0xd00] sm:$0xff]
    %v459 = vld [vmem:[#allocation5 + $0xd08] sm:$0xff]
    %v460 = vld [vmem:[#allocation5 + $0xd10] sm:$0xff]
    %v461 = vld [vmem:[#allocation5 + $0xd18] sm:$0xff]
    %v462 = vld [vmem:[#allocation5 + $0xd20] sm:$0xff]
    %v463 = vld [vmem:[#allocation5 + $0xd28] sm:$0xff]
    %v464 = vld [vmem:[#allocation5 + $0xd30] sm:$0xff]
    %v465 = vld [vmem:[#allocation5 + $0xd38] sm:$0xff]
    %v466 = vld [vmem:[#allocation5 + $0xd40] sm:$0xff]
    %v467 = vld [vmem:[#allocation5 + $0xd48] sm:$0xff]
    %v468 = vld [vmem:[#allocation5 + $0xd50] sm:$0xff]
    %v469 = vld [vmem:[#allocation5 + $0xd58] sm:$0xff]
    %v470 = vld [vmem:[#allocation5 + $0xd60] sm:$0xff]
    %v471 = vld [vmem:[#allocation5 + $0xd68] sm:$0xff]
    %v472 = vld [vmem:[#allocation5 + $0xd70] sm:$0xff]
    %v473 = vld [vmem:[#allocation5 + $0xd78] sm:$0xff]
    %v474 = vld [vmem:[#allocation5 + $0xd80] sm:$0xff]
    %v475 = vld [vmem:[#allocation5 + $0xd88] sm:$0xff]
    %v476 = vld [vmem:[#allocation5 + $0xd90] sm:$0xff]
    %v477 = vld [vmem:[#allocation5 + $0xd98] sm:$0xff]
    %v478 = vld [vmem:[#allocation5 + $0xda0] sm:$0xff]
    %v479 = vld [vmem:[#allocation5 + $0xda8] sm:$0xff]
    %v480 = vld [vmem:[#allocation5 + $0xdb0] sm:$0xff]
    %v481 = vld [vmem:[#allocation5 + $0xdb8] sm:$0xff]
    %v482 = vld [vmem:[#allocation5 + $0xdc0] sm:$0xff]
    %v483 = vld [vmem:[#allocation5 + $0xdc8] sm:$0xff]
    %v484 = vld [vmem:[#allocation5 + $0xdd0] sm:$0xff]
    %v485 = vld [vmem:[#allocation5 + $0xdd8] sm:$0xff]
    %v486 = vld [vmem:[#allocation5 + $0xde0] sm:$0xff]
    %v487 = vld [vmem:[#allocation5 + $0xde8] sm:$0xff]
    %v488 = vld [vmem:[#allocation5 + $0xdf0] sm:$0xff]
    %v489 = vld [vmem:[#allocation5 + $0xdf8] sm:$0xff]
    %v490 = vld [vmem:[#allocation5 + $0xe00] sm:$0xff]
    %v491 = vld [vmem:[#allocation5 + $0xe08] sm:$0xff]
    %v492 = vld [vmem:[#allocation5 + $0xe10] sm:$0xff]
    %v493 = vld [vmem:[#allocation5 + $0xe18] sm:$0xff]
    %v494 = vld [vmem:[#allocation5 + $0xe20] sm:$0xff]
    %v495 = vld [vmem:[#allocation5 + $0xe28] sm:$0xff]
    %v496 = vld [vmem:[#allocation5 + $0xe30] sm:$0xff]
    %v497 = vld [vmem:[#allocation5 + $0xe38] sm:$0xff]
    %v498 = vld [vmem:[#allocation5 + $0xe40] sm:$0xff]
    %v499 = vld [vmem:[#allocation5 + $0xe48] sm:$0xff]
    %v500 = vld [vmem:[#allocation5 + $0xe50] sm:$0xff]
    %v501 = vld [vmem:[#allocation5 + $0xe58] sm:$0xff]
    %v502 = vld [vmem:[#allocation5 + $0xe60] sm:$0xff]
    %v503 = vld [vmem:[#allocation5 + $0xe68] sm:$0xff]
    %v504 = vld [vmem:[#allocation5 + $0xe70] sm:$0xff]
    %v505 = vld [vmem:[#allocation5 + $0xe78] sm:$0xff]
    %v506 = vld [vmem:[#allocation5 + $0xe80] sm:$0xff]
    %v507 = vld [vmem:[#allocation5 + $0xe88] sm:$0xff]
    %v508 = vld [vmem:[#allocation5 + $0xe90] sm:$0xff]
    %v509 = vld [vmem:[#allocation5 + $0xe98] sm:$0xff]
    %v510 = vld [vmem:[#allocation5 + $0xea0] sm:$0xff]
    %v511 = vld [vmem:[#allocation5 + $0xea8] sm:$0xff]
    %v512 = vld [vmem:[#allocation5 + $0xeb0] sm:$0xff]
    %v513 = vld [vmem:[#allocation5 + $0xeb8] sm:$0xff]
    %v514 = vld [vmem:[#allocation5 + $0xec0] sm:$0xff]
    %v515 = vld [vmem:[#allocation5 + $0xec8] sm:$0xff]
    %v516 = vld [vmem:[#allocation5 + $0xed0] sm:$0xff]
    %v517 = vld [vmem:[#allocation5 + $0xed8] sm:$0xff]
    %v518 = vld [vmem:[#allocation5 + $0xee0] sm:$0xff]
    %v519 = vld [vmem:[#allocation5 + $0xee8] sm:$0xff]
    %v520 = vld [vmem:[#allocation5 + $0xef0] sm:$0xff]
    %v521 = vld [vmem:[#allocation5 + $0xef8] sm:$0xff]
    %v522 = vld [vmem:[#allocation5 + $0xf00] sm:$0xff]
    %v523 = vld [vmem:[#allocation5 + $0xf08] sm:$0xff]
    %v524 = vld [vmem:[#allocation5 + $0xf10] sm:$0xff]
    %v525 = vld [vmem:[#allocation5 + $0xf18] sm:$0xff]
    %v526 = vld [vmem:[#allocation5 + $0xf20] sm:$0xff]
    %v527 = vld [vmem:[#allocation5 + $0xf28] sm:$0xff]
    %v528 = vld [vmem:[#allocation5 + $0xf30] sm:$0xff]
    %v529 = vld [vmem:[#allocation5 + $0xf38] sm:$0xff]
    %v530 = vld [vmem:[#allocation5 + $0xf40] sm:$0xff]
    %v531 = vld [vmem:[#allocation5 + $0xf48] sm:$0xff]
    %v532 = vld [vmem:[#allocation5 + $0xf50] sm:$0xff]
    %v533 = vld [vmem:[#allocation5 + $0xf58] sm:$0xff]
    %v534 = vld [vmem:[#allocation5 + $0xf60] sm:$0xff]
    %v535 = vld [vmem:[#allocation5 + $0xf68] sm:$0xff]
    %v536 = vld [vmem:[#allocation5 + $0xf70] sm:$0xff]
    %v537 = vld [vmem:[#allocation5 + $0xf78] sm:$0xff]
    %v538 = vld [vmem:[#allocation5 + $0xf80] sm:$0xff]
    %v539 = vld [vmem:[#allocation5 + $0xf88] sm:$0xff]
    %v540 = vld [vmem:[#allocation5 + $0xf90] sm:$0xff]
    %v541 = vld [vmem:[#allocation5 + $0xf98] sm:$0xff]
    %v542 = vld [vmem:[#allocation5 + $0xfa0] sm:$0xff]
    %v543 = vld [vmem:[#allocation5 + $0xfa8] sm:$0xff]
    %v544 = vld [vmem:[#allocation5 + $0xfb0] sm:$0xff]
    %v545 = vld [vmem:[#allocation5 + $0xfb8] sm:$0xff]
    %v546 = vld [vmem:[#allocation5 + $0xfc0] sm:$0xff]
    %v547 = vld [vmem:[#allocation5 + $0xfc8] sm:$0xff]
    %v548 = vld [vmem:[#allocation5 + $0xfd0] sm:$0xff]
    %v549 = vld [vmem:[#allocation5 + $0xfd8] sm:$0xff]
    %v550 = vld [vmem:[#allocation5 + $0xfe0] sm:$0xff]
    %v551 = vld [vmem:[#allocation5 + $0xfe8] sm:$0xff]
    %v552 = vld [vmem:[#allocation5 + $0xff0] sm:$0xff]
    %v553 = vld [vmem:[#allocation5 + $0xff8] sm:$0xff]
    %v554 = vand.u32 %v163, 4294901760
    %555 = vmatprep.subr.mxu0 %v554
    %v556 = vand.u32 %v162, 4294901760
    %557 = vmatpush1.msra.mxu0 %v556
    %v558 = vand.u32 %v155, 4294901760
    %559 = vmatprep.subr.mxu0 %v558
    %v560 = vand.u32 %v154, 4294901760
    %561 = vmatpush1.msra.mxu0 %v560
    %v562 = vand.u32 %v147, 4294901760
    %563 = vmatprep.subr.mxu0 %v562
    %v564 = vand.u32 %v146, 4294901760
    %565 = vmatpush1.msra.mxu0 %v564
    %v566 = vand.u32 %v139, 4294901760
    %567 = vmatprep.subr.mxu0 %v566
    %v568 = vand.u32 %v138, 4294901760
    %569 = vmatpush1.msra.mxu0 %v568
    %v570 = vand.u32 %v131, 4294901760
    %571 = vmatprep.subr.mxu0 %v570
    %v572 = vand.u32 %v130, 4294901760
    %573 = vmatpush1.msra.mxu0 %v572
    %v574 = vand.u32 %v123, 4294901760
    %575 = vmatprep.subr.mxu0 %v574
    %v576 = vand.u32 %v122, 4294901760
    %577 = vmatpush1.msra.mxu0 %v576
    %v578 = vand.u32 %v115, 4294901760
    %579 = vmatprep.subr.mxu0 %v578
    %v580 = vand.u32 %v114, 4294901760
    %581 = vmatpush1.msra.mxu0 %v580
    %v582 = vand.u32 %v107, 4294901760
    %583 = vmatprep.subr.mxu0 %v582
    %v584 = vand.u32 %v106, 4294901760
    %585 = vmatpush1.msra.mxu0 %v584
    %v586 = vand.u32 %v99, 4294901760
    %587 = vmatprep.subr.mxu0 %v586
    %v588 = vand.u32 %v98, 4294901760
    %589 = vmatpush1.msra.mxu0 %v588
    %v590 = vand.u32 %v91, 4294901760
    %591 = vmatprep.subr.mxu0 %v590
    %v592 = vand.u32 %v90, 4294901760
    %593 = vmatpush1.msra.mxu0 %v592
    %v594 = vand.u32 %v83, 4294901760
    %595 = vmatprep.subr.mxu0 %v594
    %v596 = vand.u32 %v82, 4294901760
    %597 = vmatpush1.msra.mxu0 %v596
    %v598 = vand.u32 %v75, 4294901760
    %599 = vmatprep.subr.mxu0 %v598
    %v600 = vand.u32 %v74, 4294901760
    %601 = vmatpush1.msra.mxu0 %v600
    %v602 = vand.u32 %v67, 4294901760
    %603 = vmatprep.subr.mxu0 %v602
    %v604 = vand.u32 %v66, 4294901760
    %605 = vmatpush1.msra.mxu0 %v604
    %v606 = vand.u32 %v59, 4294901760
    %607 = vmatprep.subr.mxu0 %v606
    %v608 = vand.u32 %v58, 4294901760
    %609 = vmatpush1.msra.mxu0 %v608
    %v610 = vand.u32 %v51, 4294901760
    %611 = vmatprep.subr.mxu0 %v610
    %v612 = vand.u32 %v50, 4294901760
    %613 = vmatpush1.msra.mxu0 %v612
    %v614 = vand.u32 %v43, 4294901760
    %615 = vmatprep.subr.mxu0 %v614
    %v616 = vand.u32 %v42, 4294901760
    %617 = vmatpush1.msra.mxu0 %v616
    %v618 = vand.u32 %v291, 4294901760
    %619 = vmatprep.subr.mxu0 %v618
    %v620 = vand.u32 %v290, 4294901760
    %621 = vmatpush2.msra.mxu0 %v620
    %v622 = vand.u32 %v283, 4294901760
    %623 = vmatprep.subr.mxu0 %v622
    %v624 = vand.u32 %v282, 4294901760
    %625 = vmatpush2.msra.mxu0 %v624
    %v626 = vand.u32 %v275, 4294901760
    %627 = vmatprep.subr.mxu0 %v626
    %v628 = vand.u32 %v274, 4294901760
    %629 = vmatpush2.msra.mxu0 %v628
    %v630 = vand.u32 %v267, 4294901760
    %631 = vmatprep.subr.mxu0 %v630
    %v632 = vand.u32 %v266, 4294901760
    %633 = vmatpush2.msra.mxu0 %v632
    %v634 = vand.u32 %v259, 4294901760
    %635 = vmatprep.subr.mxu0 %v634
    %v636 = vand.u32 %v258, 4294901760
    %637 = vmatpush2.msra.mxu0 %v636
    %v638 = vand.u32 %v251, 4294901760
    %639 = vmatprep.subr.mxu0 %v638
    %v640 = vand.u32 %v250, 4294901760
    %641 = vmatpush2.msra.mxu0 %v640
    %v642 = vand.u32 %v243, 4294901760
    %643 = vmatprep.subr.mxu0 %v642
    %v644 = vand.u32 %v242, 4294901760
    %645 = vmatpush2.msra.mxu0 %v644
    %v646 = vand.u32 %v235, 4294901760
    %647 = vmatprep.subr.mxu0 %v646
    %v648 = vand.u32 %v234, 4294901760
    %649 = vmatpush2.msra.mxu0 %v648
    %v650 = vand.u32 %v227, 4294901760
    %651 = vmatprep.subr.mxu0 %v650
    %v652 = vand.u32 %v226, 4294901760
    %653 = vmatpush2.msra.mxu0 %v652
    %v654 = vand.u32 %v219, 4294901760
    %655 = vmatprep.subr.mxu0 %v654
    %v656 = vand.u32 %v218, 4294901760
    %657 = vmatpush2.msra.mxu0 %v656
    %v658 = vand.u32 %v211, 4294901760
    %659 = vmatprep.subr.mxu0 %v658
    %v660 = vand.u32 %v210, 4294901760
    %661 = vmatpush2.msra.mxu0 %v660
    %v662 = vand.u32 %v203, 4294901760
    %663 = vmatprep.subr.mxu0 %v662
    %v664 = vand.u32 %v202, 4294901760
    %665 = vmatpush2.msra.mxu0 %v664
    %v666 = vand.u32 %v195, 4294901760
    %667 = vmatprep.subr.mxu0 %v666
    %v668 = vand.u32 %v194, 4294901760
    %669 = vmatpush2.msra.mxu0 %v668
    %v670 = vand.u32 %v187, 4294901760
    %671 = vmatprep.subr.mxu0 %v670
    %v672 = vand.u32 %v186, 4294901760
    %673 = vmatpush2.msra.mxu0 %v672
    %v674 = vand.u32 %v179, 4294901760
    %675 = vmatprep.subr.mxu0 %v674
    %v676 = vand.u32 %v178, 4294901760
    %677 = vmatpush2.msra.mxu0 %v676
    %v678 = vand.u32 %v171, 4294901760
    %679 = vmatprep.subr.mxu0 %v678
    %v680 = vand.u32 %v170, 4294901760
    %681 = vmatpush2.msra.mxu0 %v680
    %v682 = vand.u32 %v39, 4294901760
    %v683 = vsub.f32 %v39, %v682
    %v684 = vand.u32 %v683, 4294901760
    %v685 = vsub.f32 %v683, %v684
    %v686 = vand.u32 %v685, 4294901760
    %687 = vmatprep.mubr.f32.mxu0 %v686
    %v688 = vand.u32 %v38, 4294901760
    %v689 = vsub.f32 %v38, %v688
    %v690 = vand.u32 %v689, 4294901760
    %v691 = vsub.f32 %v689, %v690
    %v692 = vand.u32 %v691, 4294901760
    %693 = vmatmul.mubr.f32.gmra.mxu0 %v692
    %v694 = vpop.f32.mrf.mxu0
    %v695 = vadd.f32 0.0, %v694
    %v696 = vpop.f32.mrf.mxu0
    %v697 = vadd.f32 0.0, %v696
    %698 = vdwg.mxu0
    %v699 = vand.u32 %v163, 4294901760
    %v700 = vsub.f32 %v163, %v699
    %v701 = vand.u32 %v700, 4294901760
    %v702 = vsub.f32 %v700, %v701
    %v703 = vand.u32 %v702, 4294901760
    %704 = vmatprep.subr.mxu0 %v703
    %v705 = vand.u32 %v162, 4294901760
    %v706 = vsub.f32 %v162, %v705
    %v707 = vand.u32 %v706, 4294901760
    %v708 = vsub.f32 %v706, %v707
    %v709 = vand.u32 %v708, 4294901760
    %710 = vmatpush1.msra.mxu0 %v709
    %v711 = vand.u32 %v155, 4294901760
    %v712 = vsub.f32 %v155, %v711
    %v713 = vand.u32 %v712, 4294901760
    %v714 = vsub.f32 %v712, %v713
    %v715 = vand.u32 %v714, 4294901760
    %716 = vmatprep.subr.mxu0 %v715
    %v717 = vand.u32 %v154, 4294901760
    %v718 = vsub.f32 %v154, %v717
    %v719 = vand.u32 %v718, 4294901760
    %v720 = vsub.f32 %v718, %v719
    %v721 = vand.u32 %v720, 4294901760
    %722 = vmatpush1.msra.mxu0 %v721
    %v723 = vand.u32 %v147, 4294901760
    %v724 = vsub.f32 %v147, %v723
    %v725 = vand.u32 %v724, 4294901760
    %v726 = vsub.f32 %v724, %v725
    %v727 = vand.u32 %v726, 4294901760
    %728 = vmatprep.subr.mxu0 %v727
    %v729 = vand.u32 %v146, 4294901760
    %v730 = vsub.f32 %v146, %v729
    %v731 = vand.u32 %v730, 4294901760
    %v732 = vsub.f32 %v730, %v731
    %v733 = vand.u32 %v732, 4294901760
    %734 = vmatpush1.msra.mxu0 %v733
    %v735 = vand.u32 %v139, 4294901760
    %v736 = vsub.f32 %v139, %v735
    %v737 = vand.u32 %v736, 4294901760
    %v738 = vsub.f32 %v736, %v737
    %v739 = vand.u32 %v738, 4294901760
    %740 = vmatprep.subr.mxu0 %v739
    %v741 = vand.u32 %v138, 4294901760
    %v742 = vsub.f32 %v138, %v741
    %v743 = vand.u32 %v742, 4294901760
    %v744 = vsub.f32 %v742, %v743
    %v745 = vand.u32 %v744, 4294901760
    %746 = vmatpush1.msra.mxu0 %v745
    %v747 = vand.u32 %v131, 4294901760
    %v748 = vsub.f32 %v131, %v747
    %v749 = vand.u32 %v748, 4294901760
    %v750 = vsub.f32 %v748, %v749
    %v751 = vand.u32 %v750, 4294901760
    %752 = vmatprep.subr.mxu0 %v751
    %v753 = vand.u32 %v130, 4294901760
    %v754 = vsub.f32 %v130, %v753
    %v755 = vand.u32 %v754, 4294901760
    %v756 = vsub.f32 %v754, %v755
    %v757 = vand.u32 %v756, 4294901760
    %758 = vmatpush1.msra.mxu0 %v757
    %v759 = vand.u32 %v123, 4294901760
    %v760 = vsub.f32 %v123, %v759
    %v761 = vand.u32 %v760, 4294901760
    %v762 = vsub.f32 %v760, %v761
    %v763 = vand.u32 %v762, 4294901760
    %764 = vmatprep.subr.mxu0 %v763
    %v765 = vand.u32 %v122, 4294901760
    %v766 = vsub.f32 %v122, %v765
    %v767 = vand.u32 %v766, 4294901760
    %v768 = vsub.f32 %v766, %v767
    %v769 = vand.u32 %v768, 4294901760
    %770 = vmatpush1.msra.mxu0 %v769
    %v771 = vand.u32 %v115, 4294901760
    %v772 = vsub.f32 %v115, %v771
    %v773 = vand.u32 %v772, 4294901760
    %v774 = vsub.f32 %v772, %v773
    %v775 = vand.u32 %v774, 4294901760
    %776 = vmatprep.subr.mxu0 %v775
    %v777 = vand.u32 %v114, 4294901760
    %v778 = vsub.f32 %v114, %v777
    %v779 = vand.u32 %v778, 4294901760
    %v780 = vsub.f32 %v778, %v779
    %v781 = vand.u32 %v780, 4294901760
    %782 = vmatpush1.msra.mxu0 %v781
    %v783 = vand.u32 %v107, 4294901760
    %v784 = vsub.f32 %v107, %v783
    %v785 = vand.u32 %v784, 4294901760
    %v786 = vsub.f32 %v784, %v785
    %v787 = vand.u32 %v786, 4294901760
    %788 = vmatprep.subr.mxu0 %v787
    %v789 = vand.u32 %v106, 4294901760
    %v790 = vsub.f32 %v106, %v789
    %v791 = vand.u32 %v790, 4294901760
    %v792 = vsub.f32 %v790, %v791
    %v793 = vand.u32 %v792, 4294901760
    %794 = vmatpush1.msra.mxu0 %v793
    %v795 = vand.u32 %v99, 4294901760
    %v796 = vsub.f32 %v99, %v795
    %v797 = vand.u32 %v796, 4294901760
    %v798 = vsub.f32 %v796, %v797
    %v799 = vand.u32 %v798, 4294901760
    %800 = vmatprep.subr.mxu0 %v799
    %v801 = vand.u32 %v98, 4294901760
    %v802 = vsub.f32 %v98, %v801
    %v803 = vand.u32 %v802, 4294901760
    %v804 = vsub.f32 %v802, %v803
    %v805 = vand.u32 %v804, 4294901760
    %806 = vmatpush1.msra.mxu0 %v805
    %v807 = vand.u32 %v91, 4294901760
    %v808 = vsub.f32 %v91, %v807
    %v809 = vand.u32 %v808, 4294901760
    %v810 = vsub.f32 %v808, %v809
    %v811 = vand.u32 %v810, 4294901760
    %812 = vmatprep.subr.mxu0 %v811
    %v813 = vand.u32 %v90, 4294901760
    %v814 = vsub.f32 %v90, %v813
    %v815 = vand.u32 %v814, 4294901760
    %v816 = vsub.f32 %v814, %v815
    %v817 = vand.u32 %v816, 4294901760
    %818 = vmatpush1.msra.mxu0 %v817
    %v819 = vand.u32 %v83, 4294901760
    %v820 = vsub.f32 %v83, %v819
    %v821 = vand.u32 %v820, 4294901760
    %v822 = vsub.f32 %v820, %v821
    %v823 = vand.u32 %v822, 4294901760
    %824 = vmatprep.subr.mxu0 %v823
    %v825 = vand.u32 %v82, 4294901760
    %v826 = vsub.f32 %v82, %v825
    %v827 = vand.u32 %v826, 4294901760
    %v828 = vsub.f32 %v826, %v827
    %v829 = vand.u32 %v828, 4294901760
    %830 = vmatpush1.msra.mxu0 %v829
    %v831 = vand.u32 %v75, 4294901760
    %v832 = vsub.f32 %v75, %v831
    %v833 = vand.u32 %v832, 4294901760
    %v834 = vsub.f32 %v832, %v833
    %v835 = vand.u32 %v834, 4294901760
    %836 = vmatprep.subr.mxu0 %v835
    %v837 = vand.u32 %v74, 4294901760
    %v838 = vsub.f32 %v74, %v837
    %v839 = vand.u32 %v838, 4294901760
    %v840 = vsub.f32 %v838, %v839
    %v841 = vand.u32 %v840, 4294901760
    %842 = vmatpush1.msra.mxu0 %v841
    %v843 = vand.u32 %v67, 4294901760
    %v844 = vsub.f32 %v67, %v843
    %v845 = vand.u32 %v844, 4294901760
    %v846 = vsub.f32 %v844, %v845
    %v847 = vand.u32 %v846, 4294901760
    %848 = vmatprep.subr.mxu0 %v847
    %v849 = vand.u32 %v66, 4294901760
    %v850 = vsub.f32 %v66, %v849
    %v851 = vand.u32 %v850, 4294901760
    %v852 = vsub.f32 %v850, %v851
    %v853 = vand.u32 %v852, 4294901760
    %854 = vmatpush1.msra.mxu0 %v853
    %v855 = vand.u32 %v59, 4294901760
    %v856 = vsub.f32 %v59, %v855
    %v857 = vand.u32 %v856, 4294901760
    %v858 = vsub.f32 %v856, %v857
    %v859 = vand.u32 %v858, 4294901760
    %860 = vmatprep.subr.mxu0 %v859
    %v861 = vand.u32 %v58, 4294901760
    %v862 = vsub.f32 %v58, %v861
    %v863 = vand.u32 %v862, 4294901760
    %v864 = vsub.f32 %v862, %v863
    %v865 = vand.u32 %v864, 4294901760
    %866 = vmatpush1.msra.mxu0 %v865
    %v867 = vand.u32 %v51, 4294901760
    %v868 = vsub.f32 %v51, %v867
    %v869 = vand.u32 %v868, 4294901760
    %v870 = vsub.f32 %v868, %v869
    %v871 = vand.u32 %v870, 4294901760
    %872 = vmatprep.subr.mxu0 %v871
    %v873 = vand.u32 %v50, 4294901760
    %v874 = vsub.f32 %v50, %v873
    %v875 = vand.u32 %v874, 4294901760
    %v876 = vsub.f32 %v874, %v875
    %v877 = vand.u32 %v876, 4294901760
    %878 = vmatpush1.msra.mxu0 %v877
    %v879 = vand.u32 %v43, 4294901760
    %v880 = vsub.f32 %v43, %v879
    %v881 = vand.u32 %v880, 4294901760
    %v882 = vsub.f32 %v880, %v881
    %v883 = vand.u32 %v882, 4294901760
    %884 = vmatprep.subr.mxu0 %v883
    %v885 = vand.u32 %v42, 4294901760
    %v886 = vsub.f32 %v42, %v885
    %v887 = vand.u32 %v886, 4294901760
    %v888 = vsub.f32 %v886, %v887
    %v889 = vand.u32 %v888, 4294901760
    %890 = vmatpush1.msra.mxu0 %v889
    %v891 = vand.u32 %v291, 4294901760
    %v892 = vsub.f32 %v291, %v891
    %v893 = vand.u32 %v892, 4294901760
    %v894 = vsub.f32 %v892, %v893
    %v895 = vand.u32 %v894, 4294901760
    %896 = vmatprep.subr.mxu0 %v895
    %v897 = vand.u32 %v290, 4294901760
    %v898 = vsub.f32 %v290, %v897
    %v899 = vand.u32 %v898, 4294901760
    %v900 = vsub.f32 %v898, %v899
    %v901 = vand.u32 %v900, 4294901760
    %902 = vmatpush2.msra.mxu0 %v901
    %v903 = vand.u32 %v283, 4294901760
    %v904 = vsub.f32 %v283, %v903
    %v905 = vand.u32 %v904, 4294901760
    %v906 = vsub.f32 %v904, %v905
    %v907 = vand.u32 %v906, 4294901760
    %908 = vmatprep.subr.mxu0 %v907
    %v909 = vand.u32 %v282, 4294901760
    %v910 = vsub.f32 %v282, %v909
    %v911 = vand.u32 %v910, 4294901760
    %v912 = vsub.f32 %v910, %v911
    %v913 = vand.u32 %v912, 4294901760
    %914 = vmatpush2.msra.mxu0 %v913
    %v915 = vand.u32 %v275, 4294901760
    %v916 = vsub.f32 %v275, %v915
    %v917 = vand.u32 %v916, 4294901760
    %v918 = vsub.f32 %v916, %v917
    %v919 = vand.u32 %v918, 4294901760
    %920 = vmatprep.subr.mxu0 %v919
    %v921 = vand.u32 %v274, 4294901760
    %v922 = vsub.f32 %v274, %v921
    %v923 = vand.u32 %v922, 4294901760
    %v924 = vsub.f32 %v922, %v923
    %v925 = vand.u32 %v924, 4294901760
    %926 = vmatpush2.msra.mxu0 %v925
    %v927 = vand.u32 %v267, 4294901760
    %v928 = vsub.f32 %v267, %v927
    %v929 = vand.u32 %v928, 4294901760
    %v930 = vsub.f32 %v928, %v929
    %v931 = vand.u32 %v930, 4294901760
    %932 = vmatprep.subr.mxu0 %v931
    %v933 = vand.u32 %v266, 4294901760
    %v934 = vsub.f32 %v266, %v933
    %v935 = vand.u32 %v934, 4294901760
    %v936 = vsub.f32 %v934, %v935
    %v937 = vand.u32 %v936, 4294901760
    %938 = vmatpush2.msra.mxu0 %v937
    %v939 = vand.u32 %v259, 4294901760
    %v940 = vsub.f32 %v259, %v939
    %v941 = vand.u32 %v940, 4294901760
    %v942 = vsub.f32 %v940, %v941
    %v943 = vand.u32 %v942, 4294901760
    %944 = vmatprep.subr.mxu0 %v943
    %v945 = vand.u32 %v258, 4294901760
    %v946 = vsub.f32 %v258, %v945
    %v947 = vand.u32 %v946, 4294901760
    %v948 = vsub.f32 %v946, %v947
    %v949 = vand.u32 %v948, 4294901760
    %950 = vmatpush2.msra.mxu0 %v949
    %v951 = vand.u32 %v251, 4294901760
    %v952 = vsub.f32 %v251, %v951
    %v953 = vand.u32 %v952, 4294901760
    %v954 = vsub.f32 %v952, %v953
    %v955 = vand.u32 %v954, 4294901760
    %956 = vmatprep.subr.mxu0 %v955
    %v957 = vand.u32 %v250, 4294901760
    %v958 = vsub.f32 %v250, %v957
    %v959 = vand.u32 %v958, 4294901760
    %v960 = vsub.f32 %v958, %v959
    %v961 = vand.u32 %v960, 4294901760
    %962 = vmatpush2.msra.mxu0 %v961
    %v963 = vand.u32 %v243, 4294901760
    %v964 = vsub.f32 %v243, %v963
    %v965 = vand.u32 %v964, 4294901760
    %v966 = vsub.f32 %v964, %v965
    %v967 = vand.u32 %v966, 4294901760
    %968 = vmatprep.subr.mxu0 %v967
    %v969 = vand.u32 %v242, 4294901760
    %v970 = vsub.f32 %v242, %v969
    %v971 = vand.u32 %v970, 4294901760
    %v972 = vsub.f32 %v970, %v971
    %v973 = vand.u32 %v972, 4294901760
    %974 = vmatpush2.msra.mxu0 %v973
    %v975 = vand.u32 %v235, 4294901760
    %v976 = vsub.f32 %v235, %v975
    %v977 = vand.u32 %v976, 4294901760
    %v978 = vsub.f32 %v976, %v977
    %v979 = vand.u32 %v978, 4294901760
    %980 = vmatprep.subr.mxu0 %v979
    %v981 = vand.u32 %v234, 4294901760
    %v982 = vsub.f32 %v234, %v981
    %v983 = vand.u32 %v982, 4294901760
    %v984 = vsub.f32 %v982, %v983
    %v985 = vand.u32 %v984, 4294901760
    %986 = vmatpush2.msra.mxu0 %v985
    %v987 = vand.u32 %v227, 4294901760
    %v988 = vsub.f32 %v227, %v987
    %v989 = vand.u32 %v988, 4294901760
    %v990 = vsub.f32 %v988, %v989
    %v991 = vand.u32 %v990, 4294901760
    %992 = vmatprep.subr.mxu0 %v991
    %v993 = vand.u32 %v226, 4294901760
    %v994 = vsub.f32 %v226, %v993
    %v995 = vand.u32 %v994, 4294901760
    %v996 = vsub.f32 %v994, %v995
    %v997 = vand.u32 %v996, 4294901760
    %998 = vmatpush2.msra.mxu0 %v997
    %v999 = vand.u32 %v219, 4294901760
    %v1000 = vsub.f32 %v219, %v999
    %v1001 = vand.u32 %v1000, 4294901760
    %v1002 = vsub.f32 %v1000, %v1001
    %v1003 = vand.u32 %v1002, 4294901760
    %1004 = vmatprep.subr.mxu0 %v1003
    %v1005 = vand.u32 %v218, 4294901760
    %v1006 = vsub.f32 %v218, %v1005
    %v1007 = vand.u32 %v1006, 4294901760
    %v1008 = vsub.f32 %v1006, %v1007
    %v1009 = vand.u32 %v1008, 4294901760
    %1010 = vmatpush2.msra.mxu0 %v1009
    %v1011 = vand.u32 %v211, 4294901760
    %v1012 = vsub.f32 %v211, %v1011
    %v1013 = vand.u32 %v1012, 4294901760
    %v1014 = vsub.f32 %v1012, %v1013
    %v1015 = vand.u32 %v1014, 4294901760
    %1016 = vmatprep.subr.mxu0 %v1015
    %v1017 = vand.u32 %v210, 4294901760
    %v1018 = vsub.f32 %v210, %v1017
    %v1019 = vand.u32 %v1018, 4294901760
    %v1020 = vsub.f32 %v1018, %v1019
    %v1021 = vand.u32 %v1020, 4294901760
    %1022 = vmatpush2.msra.mxu0 %v1021
    %v1023 = vand.u32 %v203, 4294901760
    %v1024 = vsub.f32 %v203, %v1023
    %v1025 = vand.u32 %v1024, 4294901760
    %v1026 = vsub.f32 %v1024, %v1025
    %v1027 = vand.u32 %v1026, 4294901760
    %1028 = vmatprep.subr.mxu0 %v1027
    %v1029 = vand.u32 %v202, 4294901760
    %v1030 = vsub.f32 %v202, %v1029
    %v1031 = vand.u32 %v1030, 4294901760
    %v1032 = vsub.f32 %v1030, %v1031
    %v1033 = vand.u32 %v1032, 4294901760
    %1034 = vmatpush2.msra.mxu0 %v1033
    %v1035 = vand.u32 %v195, 4294901760
    %v1036 = vsub.f32 %v195, %v1035
    %v1037 = vand.u32 %v1036, 4294901760
    %v1038 = vsub.f32 %v1036, %v1037
    %v1039 = vand.u32 %v1038, 4294901760
    %1040 = vmatprep.subr.mxu0 %v1039
    %v1041 = vand.u32 %v194, 4294901760
    %v1042 = vsub.f32 %v194, %v1041
    %v1043 = vand.u32 %v1042, 4294901760
    %v1044 = vsub.f32 %v1042, %v1043
    %v1045 = vand.u32 %v1044, 4294901760
    %1046 = vmatpush2.msra.mxu0 %v1045
    %v1047 = vand.u32 %v187, 4294901760
    %v1048 = vsub.f32 %v187, %v1047
    %v1049 = vand.u32 %v1048, 4294901760
    %v1050 = vsub.f32 %v1048, %v1049
    %v1051 = vand.u32 %v1050, 4294901760
    %1052 = vmatprep.subr.mxu0 %v1051
    %v1053 = vand.u32 %v186, 4294901760
    %v1054 = vsub.f32 %v186, %v1053
    %v1055 = vand.u32 %v1054, 4294901760
    %v1056 = vsub.f32 %v1054, %v1055
    %v1057 = vand.u32 %v1056, 4294901760
    %1058 = vmatpush2.msra.mxu0 %v1057
    %v1059 = vand.u32 %v179, 4294901760
    %v1060 = vsub.f32 %v179, %v1059
    %v1061 = vand.u32 %v1060, 4294901760
    %v1062 = vsub.f32 %v1060, %v1061
    %v1063 = vand.u32 %v1062, 4294901760
    %1064 = vmatprep.subr.mxu0 %v1063
    %v1065 = vand.u32 %v178, 4294901760
    %v1066 = vsub.f32 %v178, %v1065
    %v1067 = vand.u32 %v1066, 4294901760
    %v1068 = vsub.f32 %v1066, %v1067
    %v1069 = vand.u32 %v1068, 4294901760
    %1070 = vmatpush2.msra.mxu0 %v1069
    %v1071 = vand.u32 %v171, 4294901760
    %v1072 = vsub.f32 %v171, %v1071
    %v1073 = vand.u32 %v1072, 4294901760
    %v1074 = vsub.f32 %v1072, %v1073
    %v1075 = vand.u32 %v1074, 4294901760
    %1076 = vmatprep.subr.mxu0 %v1075
    %v1077 = vand.u32 %v170, 4294901760
    %v1078 = vsub.f32 %v170, %v1077
    %v1079 = vand.u32 %v1078, 4294901760
    %v1080 = vsub.f32 %v1078, %v1079
    %v1081 = vand.u32 %v1080, 4294901760
    %1082 = vmatpush2.msra.mxu0 %v1081
    %v1083 = vand.u32 %v39, 4294901760
    %1084 = vmatprep.mubr.f32.mxu0 %v1083
    %v1085 = vand.u32 %v38, 4294901760
    %1086 = vmatmul.mubr.f32.gmra.mxu0 %v1085
    %v1087 = vpop.f32.mrf.mxu0
    %v1088 = vadd.f32 %v695, %v1087
    %v1089 = vpop.f32.mrf.mxu0
    %v1090 = vadd.f32 %v697, %v1089
    %1091 = vdwg.mxu0
    %v1092 = vand.u32 %v163, 4294901760
    %v1093 = vsub.f32 %v163, %v1092
    %1094 = vmatprep.subr.mxu0 %v1093
    %v1095 = vand.u32 %v162, 4294901760
    %v1096 = vsub.f32 %v162, %v1095
    %1097 = vmatpush1.msra.mxu0 %v1096
    %v1098 = vand.u32 %v155, 4294901760
    %v1099 = vsub.f32 %v155, %v1098
    %1100 = vmatprep.subr.mxu0 %v1099
    %v1101 = vand.u32 %v154, 4294901760
    %v1102 = vsub.f32 %v154, %v1101
    %1103 = vmatpush1.msra.mxu0 %v1102
    %v1104 = vand.u32 %v147, 4294901760
    %v1105 = vsub.f32 %v147, %v1104
    %1106 = vmatprep.subr.mxu0 %v1105
    %v1107 = vand.u32 %v146, 4294901760
    %v1108 = vsub.f32 %v146, %v1107
    %1109 = vmatpush1.msra.mxu0 %v1108
    %v1110 = vand.u32 %v139, 4294901760
    %v1111 = vsub.f32 %v139, %v1110
    %1112 = vmatprep.subr.mxu0 %v1111
    %v1113 = vand.u32 %v138, 4294901760
    %v1114 = vsub.f32 %v138, %v1113
    %1115 = vmatpush1.msra.mxu0 %v1114
    %v1116 = vand.u32 %v131, 4294901760
    %v1117 = vsub.f32 %v131, %v1116
    %1118 = vmatprep.subr.mxu0 %v1117
    %v1119 = vand.u32 %v130, 4294901760
    %v1120 = vsub.f32 %v130, %v1119
    %1121 = vmatpush1.msra.mxu0 %v1120
    %v1122 = vand.u32 %v123, 4294901760
    %v1123 = vsub.f32 %v123, %v1122
    %1124 = vmatprep.subr.mxu0 %v1123
    %v1125 = vand.u32 %v122, 4294901760
    %v1126 = vsub.f32 %v122, %v1125
    %1127 = vmatpush1.msra.mxu0 %v1126
    %v1128 = vand.u32 %v115, 4294901760
    %v1129 = vsub.f32 %v115, %v1128
    %1130 = vmatprep.subr.mxu0 %v1129
    %v1131 = vand.u32 %v114, 4294901760
    %v1132 = vsub.f32 %v114, %v1131
    %1133 = vmatpush1.msra.mxu0 %v1132
    %v1134 = vand.u32 %v107, 4294901760
    %v1135 = vsub.f32 %v107, %v1134
    %1136 = vmatprep.subr.mxu0 %v1135
    %v1137 = vand.u32 %v106, 4294901760
    %v1138 = vsub.f32 %v106, %v1137
    %1139 = vmatpush1.msra.mxu0 %v1138
    %v1140 = vand.u32 %v99, 4294901760
    %v1141 = vsub.f32 %v99, %v1140
    %1142 = vmatprep.subr.mxu0 %v1141
    %v1143 = vand.u32 %v98, 4294901760
    %v1144 = vsub.f32 %v98, %v1143
    %1145 = vmatpush1.msra.mxu0 %v1144
    %v1146 = vand.u32 %v91, 4294901760
    %v1147 = vsub.f32 %v91, %v1146
    %1148 = vmatprep.subr.mxu0 %v1147
    %v1149 = vand.u32 %v90, 4294901760
    %v1150 = vsub.f32 %v90, %v1149
    %1151 = vmatpush1.msra.mxu0 %v1150
    %v1152 = vand.u32 %v83, 4294901760
    %v1153 = vsub.f32 %v83, %v1152
    %1154 = vmatprep.subr.mxu0 %v1153
    %v1155 = vand.u32 %v82, 4294901760
    %v1156 = vsub.f32 %v82, %v1155
    %1157 = vmatpush1.msra.mxu0 %v1156
    %v1158 = vand.u32 %v75, 4294901760
    %v1159 = vsub.f32 %v75, %v1158
    %1160 = vmatprep.subr.mxu0 %v1159
    %v1161 = vand.u32 %v74, 4294901760
    %v1162 = vsub.f32 %v74, %v1161
    %1163 = vmatpush1.msra.mxu0 %v1162
    %v1164 = vand.u32 %v67, 4294901760
    %v1165 = vsub.f32 %v67, %v1164
    %1166 = vmatprep.subr.mxu0 %v1165
    %v1167 = vand.u32 %v66, 4294901760
    %v1168 = vsub.f32 %v66, %v1167
    %1169 = vmatpush1.msra.mxu0 %v1168
    %v1170 = vand.u32 %v59, 4294901760
    %v1171 = vsub.f32 %v59, %v1170
    %1172 = vmatprep.subr.mxu0 %v1171
    %v1173 = vand.u32 %v58, 4294901760
    %v1174 = vsub.f32 %v58, %v1173
    %1175 = vmatpush1.msra.mxu0 %v1174
    %v1176 = vand.u32 %v51, 4294901760
    %v1177 = vsub.f32 %v51, %v1176
    %1178 = vmatprep.subr.mxu0 %v1177
    %v1179 = vand.u32 %v50, 4294901760
    %v1180 = vsub.f32 %v50, %v1179
    %1181 = vmatpush1.msra.mxu0 %v1180
    %v1182 = vand.u32 %v43, 4294901760
    %v1183 = vsub.f32 %v43, %v1182
    %1184 = vmatprep.subr.mxu0 %v1183
    %v1185 = vand.u32 %v42, 4294901760
    %v1186 = vsub.f32 %v42, %v1185
    %1187 = vmatpush1.msra.mxu0 %v1186
    %v1188 = vand.u32 %v291, 4294901760
    %v1189 = vsub.f32 %v291, %v1188
    %1190 = vmatprep.subr.mxu0 %v1189
    %v1191 = vand.u32 %v290, 4294901760
    %v1192 = vsub.f32 %v290, %v1191
    %1193 = vmatpush2.msra.mxu0 %v1192
    %v1194 = vand.u32 %v283, 4294901760
    %v1195 = vsub.f32 %v283, %v1194
    %1196 = vmatprep.subr.mxu0 %v1195
    %v1197 = vand.u32 %v282, 4294901760
    %v1198 = vsub.f32 %v282, %v1197
    %1199 = vmatpush2.msra.mxu0 %v1198
    %v1200 = vand.u32 %v275, 4294901760
    %v1201 = vsub.f32 %v275, %v1200
    %1202 = vmatprep.subr.mxu0 %v1201
    %v1203 = vand.u32 %v274, 4294901760
    %v1204 = vsub.f32 %v274, %v1203
    %1205 = vmatpush2.msra.mxu0 %v1204
    %v1206 = vand.u32 %v267, 4294901760
    %v1207 = vsub.f32 %v267, %v1206
    %1208 = vmatprep.subr.mxu0 %v1207
    %v1209 = vand.u32 %v266, 4294901760
    %v1210 = vsub.f32 %v266, %v1209
    %1211 = vmatpush2.msra.mxu0 %v1210
    %v1212 = vand.u32 %v259, 4294901760
    %v1213 = vsub.f32 %v259, %v1212
    %1214 = vmatprep.subr.mxu0 %v1213
    %v1215 = vand.u32 %v258, 4294901760
    %v1216 = vsub.f32 %v258, %v1215
    %1217 = vmatpush2.msra.mxu0 %v1216
    %v1218 = vand.u32 %v251, 4294901760
    %v1219 = vsub.f32 %v251, %v1218
    %1220 = vmatprep.subr.mxu0 %v1219
    %v1221 = vand.u32 %v250, 4294901760
    %v1222 = vsub.f32 %v250, %v1221
    %1223 = vmatpush2.msra.mxu0 %v1222
    %v1224 = vand.u32 %v243, 4294901760
    %v1225 = vsub.f32 %v243, %v1224
    %1226 = vmatprep.subr.mxu0 %v1225
    %v1227 = vand.u32 %v242, 4294901760
    %v1228 = vsub.f32 %v242, %v1227
    %1229 = vmatpush2.msra.mxu0 %v1228
    %v1230 = vand.u32 %v235, 4294901760
    %v1231 = vsub.f32 %v235, %v1230
    %1232 = vmatprep.subr.mxu0 %v1231
    %v1233 = vand.u32 %v234, 4294901760
    %v1234 = vsub.f32 %v234, %v1233
    %1235 = vmatpush2.msra.mxu0 %v1234
    %v1236 = vand.u32 %v227, 4294901760
    %v1237 = vsub.f32 %v227, %v1236
    %1238 = vmatprep.subr.mxu0 %v1237
    %v1239 = vand.u32 %v226, 4294901760
    %v1240 = vsub.f32 %v226, %v1239
    %1241 = vmatpush2.msra.mxu0 %v1240
    %v1242 = vand.u32 %v219, 4294901760
    %v1243 = vsub.f32 %v219, %v1242
    %1244 = vmatprep.subr.mxu0 %v1243
    %v1245 = vand.u32 %v218, 4294901760
    %v1246 = vsub.f32 %v218, %v1245
    %1247 = vmatpush2.msra.mxu0 %v1246
    %v1248 = vand.u32 %v211, 4294901760
    %v1249 = vsub.f32 %v211, %v1248
    %1250 = vmatprep.subr.mxu0 %v1249
    %v1251 = vand.u32 %v210, 4294901760
    %v1252 = vsub.f32 %v210, %v1251
    %1253 = vmatpush2.msra.mxu0 %v1252
    %v1254 = vand.u32 %v203, 4294901760
    %v1255 = vsub.f32 %v203, %v1254
    %1256 = vmatprep.subr.mxu0 %v1255
    %v1257 = vand.u32 %v202, 4294901760
    %v1258 = vsub.f32 %v202, %v1257
    %1259 = vmatpush2.msra.mxu0 %v1258
    %v1260 = vand.u32 %v195, 4294901760
    %v1261 = vsub.f32 %v195, %v1260
    %1262 = vmatprep.subr.mxu0 %v1261
    %v1263 = vand.u32 %v194, 4294901760
    %v1264 = vsub.f32 %v194, %v1263
    %1265 = vmatpush2.msra.mxu0 %v1264
    %v1266 = vand.u32 %v187, 4294901760
    %v1267 = vsub.f32 %v187, %v1266
    %1268 = vmatprep.subr.mxu0 %v1267
    %v1269 = vand.u32 %v186, 4294901760
    %v1270 = vsub.f32 %v186, %v1269
    %1271 = vmatpush2.msra.mxu0 %v1270
    %v1272 = vand.u32 %v179, 4294901760
    %v1273 = vsub.f32 %v179, %v1272
    %1274 = vmatprep.subr.mxu0 %v1273
    %v1275 = vand.u32 %v178, 4294901760
    %v1276 = vsub.f32 %v178, %v1275
    %1277 = vmatpush2.msra.mxu0 %v1276
    %v1278 = vand.u32 %v171, 4294901760
    %v1279 = vsub.f32 %v171, %v1278
    %1280 = vmatprep.subr.mxu0 %v1279
    %v1281 = vand.u32 %v170, 4294901760
    %v1282 = vsub.f32 %v170, %v1281
    %1283 = vmatpush2.msra.mxu0 %v1282
    %v1284 = vand.u32 %v39, 4294901760
    %v1285 = vsub.f32 %v39, %v1284
    %1286 = vmatprep.mubr.f32.mxu0 %v1285
    %v1287 = vand.u32 %v38, 4294901760
    %v1288 = vsub.f32 %v38, %v1287
    %1289 = vmatmul.mubr.f32.gmra.mxu0 %v1288
    %v1290 = vpop.f32.mrf.mxu0
    %v1291 = vadd.f32 %v1088, %v1290
    %v1292 = vpop.f32.mrf.mxu0
    %v1293 = vadd.f32 %v1090, %v1292
    %1294 = vdwg.mxu0
    %v1295 = vand.u32 %v163, 4294901760
    %1296 = vmatprep.subr.mxu0 %v1295
    %v1297 = vand.u32 %v162, 4294901760
    %1298 = vmatpush1.msra.mxu0 %v1297
    %v1299 = vand.u32 %v155, 4294901760
    %1300 = vmatprep.subr.mxu0 %v1299
    %v1301 = vand.u32 %v154, 4294901760
    %1302 = vmatpush1.msra.mxu0 %v1301
    %v1303 = vand.u32 %v147, 4294901760
    %1304 = vmatprep.subr.mxu0 %v1303
    %v1305 = vand.u32 %v146, 4294901760
    %1306 = vmatpush1.msra.mxu0 %v1305
    %v1307 = vand.u32 %v139, 4294901760
    %1308 = vmatprep.subr.mxu0 %v1307
    %v1309 = vand.u32 %v138, 4294901760
    %1310 = vmatpush1.msra.mxu0 %v1309
    %v1311 = vand.u32 %v131, 4294901760
    %1312 = vmatprep.subr.mxu0 %v1311
    %v1313 = vand.u32 %v130, 4294901760
    %1314 = vmatpush1.msra.mxu0 %v1313
    %v1315 = vand.u32 %v123, 4294901760
    %1316 = vmatprep.subr.mxu0 %v1315
    %v1317 = vand.u32 %v122, 4294901760
    %1318 = vmatpush1.msra.mxu0 %v1317
    %v1319 = vand.u32 %v115, 4294901760
    %1320 = vmatprep.subr.mxu0 %v1319
    %v1321 = vand.u32 %v114, 4294901760
    %1322 = vmatpush1.msra.mxu0 %v1321
    %v1323 = vand.u32 %v107, 4294901760
    %1324 = vmatprep.subr.mxu0 %v1323
    %v1325 = vand.u32 %v106, 4294901760
    %1326 = vmatpush1.msra.mxu0 %v1325
    %v1327 = vand.u32 %v99, 4294901760
    %1328 = vmatprep.subr.mxu0 %v1327
    %v1329 = vand.u32 %v98, 4294901760
    %1330 = vmatpush1.msra.mxu0 %v1329
    %v1331 = vand.u32 %v91, 4294901760
    %1332 = vmatprep.subr.mxu0 %v1331
    %v1333 = vand.u32 %v90, 4294901760
    %1334 = vmatpush1.msra.mxu0 %v1333
    %v1335 = vand.u32 %v83, 4294901760
    %1336 = vmatprep.subr.mxu0 %v1335
    %v1337 = vand.u32 %v82, 4294901760
    %1338 = vmatpush1.msra.mxu0 %v1337
    %v1339 = vand.u32 %v75, 4294901760
    %1340 = vmatprep.subr.mxu0 %v1339
    %v1341 = vand.u32 %v74, 4294901760
    %1342 = vmatpush1.msra.mxu0 %v1341
    %v1343 = vand.u32 %v67, 4294901760
    %1344 = vmatprep.subr.mxu0 %v1343
    %v1345 = vand.u32 %v66, 4294901760
    %1346 = vmatpush1.msra.mxu0 %v1345
    %v1347 = vand.u32 %v59, 4294901760
    %1348 = vmatprep.subr.mxu0 %v1347
    %v1349 = vand.u32 %v58, 4294901760
    %1350 = vmatpush1.msra.mxu0 %v1349
    %v1351 = vand.u32 %v51, 4294901760
    %1352 = vmatprep.subr.mxu0 %v1351
    %v1353 = vand.u32 %v50, 4294901760
    %1354 = vmatpush1.msra.mxu0 %v1353
    %v1355 = vand.u32 %v43, 4294901760
    %1356 = vmatprep.subr.mxu0 %v1355
    %v1357 = vand.u32 %v42, 4294901760
    %1358 = vmatpush1.msra.mxu0 %v1357
    %v1359 = vand.u32 %v291, 4294901760
    %1360 = vmatprep.subr.mxu0 %v1359
    %v1361 = vand.u32 %v290, 4294901760
    %1362 = vmatpush2.msra.mxu0 %v1361
    %v1363 = vand.u32 %v283, 4294901760
    %1364 = vmatprep.subr.mxu0 %v1363
    %v1365 = vand.u32 %v282, 4294901760
    %1366 = vmatpush2.msra.mxu0 %v1365
    %v1367 = vand.u32 %v275, 4294901760
    %1368 = vmatprep.subr.mxu0 %v1367
    %v1369 = vand.u32 %v274, 4294901760
    %1370 = vmatpush2.msra.mxu0 %v1369
    %v1371 = vand.u32 %v267, 4294901760
    %1372 = vmatprep.subr.mxu0 %v1371
    %v1373 = vand.u32 %v266, 4294901760
    %1374 = vmatpush2.msra.mxu0 %v1373
    %v1375 = vand.u32 %v259, 4294901760
    %1376 = vmatprep.subr.mxu0 %v1375
    %v1377 = vand.u32 %v258, 4294901760
    %1378 = vmatpush2.msra.mxu0 %v1377
    %v1379 = vand.u32 %v251, 4294901760
    %1380 = vmatprep.subr.mxu0 %v1379
    %v1381 = vand.u32 %v250, 4294901760
    %1382 = vmatpush2.msra.mxu0 %v1381
    %v1383 = vand.u32 %v243, 4294901760
    %1384 = vmatprep.subr.mxu0 %v1383
    %v1385 = vand.u32 %v242, 4294901760
    %1386 = vmatpush2.msra.mxu0 %v1385
    %v1387 = vand.u32 %v235, 4294901760
    %1388 = vmatprep.subr.mxu0 %v1387
    %v1389 = vand.u32 %v234, 4294901760
    %1390 = vmatpush2.msra.mxu0 %v1389
    %v1391 = vand.u32 %v227, 4294901760
    %1392 = vmatprep.subr.mxu0 %v1391
    %v1393 = vand.u32 %v226, 4294901760
    %1394 = vmatpush2.msra.mxu0 %v1393
    %v1395 = vand.u32 %v219, 4294901760
    %1396 = vmatprep.subr.mxu0 %v1395
    %v1397 = vand.u32 %v218, 4294901760
    %1398 = vmatpush2.msra.mxu0 %v1397
    %v1399 = vand.u32 %v211, 4294901760
    %1400 = vmatprep.subr.mxu0 %v1399
    %v1401 = vand.u32 %v210, 4294901760
    %1402 = vmatpush2.msra.mxu0 %v1401
    %v1403 = vand.u32 %v203, 4294901760
    %1404 = vmatprep.subr.mxu0 %v1403
    %v1405 = vand.u32 %v202, 4294901760
    %1406 = vmatpush2.msra.mxu0 %v1405
    %v1407 = vand.u32 %v195, 4294901760
    %1408 = vmatprep.subr.mxu0 %v1407
    %v1409 = vand.u32 %v194, 4294901760
    %1410 = vmatpush2.msra.mxu0 %v1409
    %v1411 = vand.u32 %v187, 4294901760
    %1412 = vmatprep.subr.mxu0 %v1411
    %v1413 = vand.u32 %v186, 4294901760
    %1414 = vmatpush2.msra.mxu0 %v1413
    %v1415 = vand.u32 %v179, 4294901760
    %1416 = vmatprep.subr.mxu0 %v1415
    %v1417 = vand.u32 %v178, 4294901760
    %1418 = vmatpush2.msra.mxu0 %v1417
    %v1419 = vand.u32 %v171, 4294901760
    %1420 = vmatprep.subr.mxu0 %v1419
    %v1421 = vand.u32 %v170, 4294901760
    %1422 = vmatpush2.msra.mxu0 %v1421
    %v1423 = vand.u32 %v39, 4294901760
    %v1424 = vsub.f32 %v39, %v1423
    %v1425 = vand.u32 %v1424, 4294901760
    %1426 = vmatprep.mubr.f32.mxu0 %v1425
    %v1427 = vand.u32 %v38, 4294901760
    %v1428 = vsub.f32 %v38, %v1427
    %v1429 = vand.u32 %v1428, 4294901760
    %1430 = vmatmul.mubr.f32.gmra.mxu0 %v1429
    %v1431 = vpop.f32.mrf.mxu0
    %v1432 = vadd.f32 %v1291, %v1431
    %v1433 = vpop.f32.mrf.mxu0
    %v1434 = vadd.f32 %v1293, %v1433
    %1435 = vdwg.mxu0
    %v1436 = vand.u32 %v163, 4294901760
    %v1437 = vsub.f32 %v163, %v1436
    %v1438 = vand.u32 %v1437, 4294901760
    %1439 = vmatprep.subr.mxu0 %v1438
    %v1440 = vand.u32 %v162, 4294901760
    %v1441 = vsub.f32 %v162, %v1440
    %v1442 = vand.u32 %v1441, 4294901760
    %1443 = vmatpush1.msra.mxu0 %v1442
    %v1444 = vand.u32 %v155, 4294901760
    %v1445 = vsub.f32 %v155, %v1444
    %v1446 = vand.u32 %v1445, 4294901760
    %1447 = vmatprep.subr.mxu0 %v1446
    %v1448 = vand.u32 %v154, 4294901760
    %v1449 = vsub.f32 %v154, %v1448
    %v1450 = vand.u32 %v1449, 4294901760
    %1451 = vmatpush1.msra.mxu0 %v1450
    %v1452 = vand.u32 %v147, 4294901760
    %v1453 = vsub.f32 %v147, %v1452
    %v1454 = vand.u32 %v1453, 4294901760
    %1455 = vmatprep.subr.mxu0 %v1454
    %v1456 = vand.u32 %v146, 4294901760
    %v1457 = vsub.f32 %v146, %v1456
    %v1458 = vand.u32 %v1457, 4294901760
    %1459 = vmatpush1.msra.mxu0 %v1458
    %v1460 = vand.u32 %v139, 4294901760
    %v1461 = vsub.f32 %v139, %v1460
    %v1462 = vand.u32 %v1461, 4294901760
    %1463 = vmatprep.subr.mxu0 %v1462
    %v1464 = vand.u32 %v138, 4294901760
    %v1465 = vsub.f32 %v138, %v1464
    %v1466 = vand.u32 %v1465, 4294901760
    %1467 = vmatpush1.msra.mxu0 %v1466
    %v1468 = vand.u32 %v131, 4294901760
    %v1469 = vsub.f32 %v131, %v1468
    %v1470 = vand.u32 %v1469, 4294901760
    %1471 = vmatprep.subr.mxu0 %v1470
    %v1472 = vand.u32 %v130, 4294901760
    %v1473 = vsub.f32 %v130, %v1472
    %v1474 = vand.u32 %v1473, 4294901760
    %1475 = vmatpush1.msra.mxu0 %v1474
    %v1476 = vand.u32 %v123, 4294901760
    %v1477 = vsub.f32 %v123, %v1476
    %v1478 = vand.u32 %v1477, 4294901760
    %1479 = vmatprep.subr.mxu0 %v1478
    %v1480 = vand.u32 %v122, 4294901760
    %v1481 = vsub.f32 %v122, %v1480
    %v1482 = vand.u32 %v1481, 4294901760
    %1483 = vmatpush1.msra.mxu0 %v1482
    %v1484 = vand.u32 %v115, 4294901760
    %v1485 = vsub.f32 %v115, %v1484
    %v1486 = vand.u32 %v1485, 4294901760
    %1487 = vmatprep.subr.mxu0 %v1486
    %v1488 = vand.u32 %v114, 4294901760
    %v1489 = vsub.f32 %v114, %v1488
    %v1490 = vand.u32 %v1489, 4294901760
    %1491 = vmatpush1.msra.mxu0 %v1490
    %v1492 = vand.u32 %v107, 4294901760
    %v1493 = vsub.f32 %v107, %v1492
    %v1494 = vand.u32 %v1493, 4294901760
    %1495 = vmatprep.subr.mxu0 %v1494
    %v1496 = vand.u32 %v106, 4294901760
    %v1497 = vsub.f32 %v106, %v1496
    %v1498 = vand.u32 %v1497, 4294901760
    %1499 = vmatpush1.msra.mxu0 %v1498
    %v1500 = vand.u32 %v99, 4294901760
    %v1501 = vsub.f32 %v99, %v1500
    %v1502 = vand.u32 %v1501, 4294901760
    %1503 = vmatprep.subr.mxu0 %v1502
    %v1504 = vand.u32 %v98, 4294901760
    %v1505 = vsub.f32 %v98, %v1504
    %v1506 = vand.u32 %v1505, 4294901760
    %1507 = vmatpush1.msra.mxu0 %v1506
    %v1508 = vand.u32 %v91, 4294901760
    %v1509 = vsub.f32 %v91, %v1508
    %v1510 = vand.u32 %v1509, 4294901760
    %1511 = vmatprep.subr.mxu0 %v1510
    %v1512 = vand.u32 %v90, 4294901760
    %v1513 = vsub.f32 %v90, %v1512
    %v1514 = vand.u32 %v1513, 4294901760
    %1515 = vmatpush1.msra.mxu0 %v1514
    %v1516 = vand.u32 %v83, 4294901760
    %v1517 = vsub.f32 %v83, %v1516
    %v1518 = vand.u32 %v1517, 4294901760
    %1519 = vmatprep.subr.mxu0 %v1518
    %v1520 = vand.u32 %v82, 4294901760
    %v1521 = vsub.f32 %v82, %v1520
    %v1522 = vand.u32 %v1521, 4294901760
    %1523 = vmatpush1.msra.mxu0 %v1522
    %v1524 = vand.u32 %v75, 4294901760
    %v1525 = vsub.f32 %v75, %v1524
    %v1526 = vand.u32 %v1525, 4294901760
    %1527 = vmatprep.subr.mxu0 %v1526
    %v1528 = vand.u32 %v74, 4294901760
    %v1529 = vsub.f32 %v74, %v1528
    %v1530 = vand.u32 %v1529, 4294901760
    %1531 = vmatpush1.msra.mxu0 %v1530
    %v1532 = vand.u32 %v67, 4294901760
    %v1533 = vsub.f32 %v67, %v1532
    %v1534 = vand.u32 %v1533, 4294901760
    %1535 = vmatprep.subr.mxu0 %v1534
    %v1536 = vand.u32 %v66, 4294901760
    %v1537 = vsub.f32 %v66, %v1536
    %v1538 = vand.u32 %v1537, 4294901760
    %1539 = vmatpush1.msra.mxu0 %v1538
    %v1540 = vand.u32 %v59, 4294901760
    %v1541 = vsub.f32 %v59, %v1540
    %v1542 = vand.u32 %v1541, 4294901760
    %1543 = vmatprep.subr.mxu0 %v1542
    %v1544 = vand.u32 %v58, 4294901760
    %v1545 = vsub.f32 %v58, %v1544
    %v1546 = vand.u32 %v1545, 4294901760
    %1547 = vmatpush1.msra.mxu0 %v1546
    %v1548 = vand.u32 %v51, 4294901760
    %v1549 = vsub.f32 %v51, %v1548
    %v1550 = vand.u32 %v1549, 4294901760
    %1551 = vmatprep.subr.mxu0 %v1550
    %v1552 = vand.u32 %v50, 4294901760
    %v1553 = vsub.f32 %v50, %v1552
    %v1554 = vand.u32 %v1553, 4294901760
    %1555 = vmatpush1.msra.mxu0 %v1554
    %v1556 = vand.u32 %v43, 4294901760
    %v1557 = vsub.f32 %v43, %v1556
    %v1558 = vand.u32 %v1557, 4294901760
    %1559 = vmatprep.subr.mxu0 %v1558
    %v1560 = vand.u32 %v42, 4294901760
    %v1561 = vsub.f32 %v42, %v1560
    %v1562 = vand.u32 %v1561, 4294901760
    %1563 = vmatpush1.msra.mxu0 %v1562
    %v1564 = vand.u32 %v291, 4294901760
    %v1565 = vsub.f32 %v291, %v1564
    %v1566 = vand.u32 %v1565, 4294901760
    %1567 = vmatprep.subr.mxu0 %v1566
    %v1568 = vand.u32 %v290, 4294901760
    %v1569 = vsub.f32 %v290, %v1568
    %v1570 = vand.u32 %v1569, 4294901760
    %1571 = vmatpush2.msra.mxu0 %v1570
    %v1572 = vand.u32 %v283, 4294901760
    %v1573 = vsub.f32 %v283, %v1572
    %v1574 = vand.u32 %v1573, 4294901760
    %1575 = vmatprep.subr.mxu0 %v1574
    %v1576 = vand.u32 %v282, 4294901760
    %v1577 = vsub.f32 %v282, %v1576
    %v1578 = vand.u32 %v1577, 4294901760
    %1579 = vmatpush2.msra.mxu0 %v1578
    %v1580 = vand.u32 %v275, 4294901760
    %v1581 = vsub.f32 %v275, %v1580
    %v1582 = vand.u32 %v1581, 4294901760
    %1583 = vmatprep.subr.mxu0 %v1582
    %v1584 = vand.u32 %v274, 4294901760
    %v1585 = vsub.f32 %v274, %v1584
    %v1586 = vand.u32 %v1585, 4294901760
    %1587 = vmatpush2.msra.mxu0 %v1586
    %v1588 = vand.u32 %v267, 4294901760
    %v1589 = vsub.f32 %v267, %v1588
    %v1590 = vand.u32 %v1589, 4294901760
    %1591 = vmatprep.subr.mxu0 %v1590
    %v1592 = vand.u32 %v266, 4294901760
    %v1593 = vsub.f32 %v266, %v1592
    %v1594 = vand.u32 %v1593, 4294901760
    %1595 = vmatpush2.msra.mxu0 %v1594
    %v1596 = vand.u32 %v259, 4294901760
    %v1597 = vsub.f32 %v259, %v1596
    %v1598 = vand.u32 %v1597, 4294901760
    %1599 = vmatprep.subr.mxu0 %v1598
    %v1600 = vand.u32 %v258, 4294901760
    %v1601 = vsub.f32 %v258, %v1600
    %v1602 = vand.u32 %v1601, 4294901760
    %1603 = vmatpush2.msra.mxu0 %v1602
    %v1604 = vand.u32 %v251, 4294901760
    %v1605 = vsub.f32 %v251, %v1604
    %v1606 = vand.u32 %v1605, 4294901760
    %1607 = vmatprep.subr.mxu0 %v1606
    %v1608 = vand.u32 %v250, 4294901760
    %v1609 = vsub.f32 %v250, %v1608
    %v1610 = vand.u32 %v1609, 4294901760
    %1611 = vmatpush2.msra.mxu0 %v1610
    %v1612 = vand.u32 %v243, 4294901760
    %v1613 = vsub.f32 %v243, %v1612
    %v1614 = vand.u32 %v1613, 4294901760
    %1615 = vmatprep.subr.mxu0 %v1614
    %v1616 = vand.u32 %v242, 4294901760
    %v1617 = vsub.f32 %v242, %v1616
    %v1618 = vand.u32 %v1617, 4294901760
    %1619 = vmatpush2.msra.mxu0 %v1618
    %v1620 = vand.u32 %v235, 4294901760
    %v1621 = vsub.f32 %v235, %v1620
    %v1622 = vand.u32 %v1621, 4294901760
    %1623 = vmatprep.subr.mxu0 %v1622
    %v1624 = vand.u32 %v234, 4294901760
    %v1625 = vsub.f32 %v234, %v1624
    %v1626 = vand.u32 %v1625, 4294901760
    %1627 = vmatpush2.msra.mxu0 %v1626
    %v1628 = vand.u32 %v227, 4294901760
    %v1629 = vsub.f32 %v227, %v1628
    %v1630 = vand.u32 %v1629, 4294901760
    %1631 = vmatprep.subr.mxu0 %v1630
    %v1632 = vand.u32 %v226, 4294901760
    %v1633 = vsub.f32 %v226, %v1632
    %v1634 = vand.u32 %v1633, 4294901760
    %1635 = vmatpush2.msra.mxu0 %v1634
    %v1636 = vand.u32 %v219, 4294901760
    %v1637 = vsub.f32 %v219, %v1636
    %v1638 = vand.u32 %v1637, 4294901760
    %1639 = vmatprep.subr.mxu0 %v1638
    %v1640 = vand.u32 %v218, 4294901760
    %v1641 = vsub.f32 %v218, %v1640
    %v1642 = vand.u32 %v1641, 4294901760
    %1643 = vmatpush2.msra.mxu0 %v1642
    %v1644 = vand.u32 %v211, 4294901760
    %v1645 = vsub.f32 %v211, %v1644
    %v1646 = vand.u32 %v1645, 4294901760
    %1647 = vmatprep.subr.mxu0 %v1646
    %v1648 = vand.u32 %v210, 4294901760
    %v1649 = vsub.f32 %v210, %v1648
    %v1650 = vand.u32 %v1649, 4294901760
    %1651 = vmatpush2.msra.mxu0 %v1650
    %v1652 = vand.u32 %v203, 4294901760
    %v1653 = vsub.f32 %v203, %v1652
    %v1654 = vand.u32 %v1653, 4294901760
    %1655 = vmatprep.subr.mxu0 %v1654
    %v1656 = vand.u32 %v202, 4294901760
    %v1657 = vsub.f32 %v202, %v1656
    %v1658 = vand.u32 %v1657, 4294901760
    %1659 = vmatpush2.msra.mxu0 %v1658
    %v1660 = vand.u32 %v195, 4294901760
    %v1661 = vsub.f32 %v195, %v1660
    %v1662 = vand.u32 %v1661, 4294901760
    %1663 = vmatprep.subr.mxu0 %v1662
    %v1664 = vand.u32 %v194, 4294901760
    %v1665 = vsub.f32 %v194, %v1664
    %v1666 = vand.u32 %v1665, 4294901760
    %1667 = vmatpush2.msra.mxu0 %v1666
    %v1668 = vand.u32 %v187, 4294901760
    %v1669 = vsub.f32 %v187, %v1668
    %v1670 = vand.u32 %v1669, 4294901760
    %1671 = vmatprep.subr.mxu0 %v1670
    %v1672 = vand.u32 %v186, 4294901760
    %v1673 = vsub.f32 %v186, %v1672
    %v1674 = vand.u32 %v1673, 4294901760
    %1675 = vmatpush2.msra.mxu0 %v1674
    %v1676 = vand.u32 %v179, 4294901760
    %v1677 = vsub.f32 %v179, %v1676
    %v1678 = vand.u32 %v1677, 4294901760
    %1679 = vmatprep.subr.mxu0 %v1678
    %v1680 = vand.u32 %v178, 4294901760
    %v1681 = vsub.f32 %v178, %v1680
    %v1682 = vand.u32 %v1681, 4294901760
    %1683 = vmatpush2.msra.mxu0 %v1682
    %v1684 = vand.u32 %v171, 4294901760
    %v1685 = vsub.f32 %v171, %v1684
    %v1686 = vand.u32 %v1685, 4294901760
    %1687 = vmatprep.subr.mxu0 %v1686
    %v1688 = vand.u32 %v170, 4294901760
    %v1689 = vsub.f32 %v170, %v1688
    %v1690 = vand.u32 %v1689, 4294901760
    %1691 = vmatpush2.msra.mxu0 %v1690
    %v1692 = vand.u32 %v39, 4294901760
    %1693 = vmatprep.mubr.f32.mxu0 %v1692
    %v1694 = vand.u32 %v38, 4294901760
    %1695 = vmatmul.mubr.f32.gmra.mxu0 %v1694
    %v1696 = vpop.f32.mrf.mxu0
    %v1697 = vadd.f32 %v1432, %v1696
    %v1698 = vpop.f32.mrf.mxu0
    %v1699 = vadd.f32 %v1434, %v1698
    %1700 = vdwg.mxu0
    %v1701 = vand.u32 %v163, 4294901760
    %1702 = vmatprep.subr.mxu0 %v1701
    %v1703 = vand.u32 %v162, 4294901760
    %1704 = vmatpush1.msra.mxu0 %v1703
    %v1705 = vand.u32 %v155, 4294901760
    %1706 = vmatprep.subr.mxu0 %v1705
    %v1707 = vand.u32 %v154, 4294901760
    %1708 = vmatpush1.msra.mxu0 %v1707
    %v1709 = vand.u32 %v147, 4294901760
    %1710 = vmatprep.subr.mxu0 %v1709
    %v1711 = vand.u32 %v146, 4294901760
    %1712 = vmatpush1.msra.mxu0 %v1711
    %v1713 = vand.u32 %v139, 4294901760
    %1714 = vmatprep.subr.mxu0 %v1713
    %v1715 = vand.u32 %v138, 4294901760
    %1716 = vmatpush1.msra.mxu0 %v1715
    %v1717 = vand.u32 %v131, 4294901760
    %1718 = vmatprep.subr.mxu0 %v1717
    %v1719 = vand.u32 %v130, 4294901760
    %1720 = vmatpush1.msra.mxu0 %v1719
    %v1721 = vand.u32 %v123, 4294901760
    %1722 = vmatprep.subr.mxu0 %v1721
    %v1723 = vand.u32 %v122, 4294901760
    %1724 = vmatpush1.msra.mxu0 %v1723
    %v1725 = vand.u32 %v115, 4294901760
    %1726 = vmatprep.subr.mxu0 %v1725
    %v1727 = vand.u32 %v114, 4294901760
    %1728 = vmatpush1.msra.mxu0 %v1727
    %v1729 = vand.u32 %v107, 4294901760
    %1730 = vmatprep.subr.mxu0 %v1729
    %v1731 = vand.u32 %v106, 4294901760
    %1732 = vmatpush1.msra.mxu0 %v1731
    %v1733 = vand.u32 %v99, 4294901760
    %1734 = vmatprep.subr.mxu0 %v1733
    %v1735 = vand.u32 %v98, 4294901760
    %1736 = vmatpush1.msra.mxu0 %v1735
    %v1737 = vand.u32 %v91, 4294901760
    %1738 = vmatprep.subr.mxu0 %v1737
    %v1739 = vand.u32 %v90, 4294901760
    %1740 = vmatpush1.msra.mxu0 %v1739
    %v1741 = vand.u32 %v83, 4294901760
    %1742 = vmatprep.subr.mxu0 %v1741
    %v1743 = vand.u32 %v82, 4294901760
    %1744 = vmatpush1.msra.mxu0 %v1743
    %v1745 = vand.u32 %v75, 4294901760
    %1746 = vmatprep.subr.mxu0 %v1745
    %v1747 = vand.u32 %v74, 4294901760
    %1748 = vmatpush1.msra.mxu0 %v1747
    %v1749 = vand.u32 %v67, 4294901760
    %1750 = vmatprep.subr.mxu0 %v1749
    %v1751 = vand.u32 %v66, 4294901760
    %1752 = vmatpush1.msra.mxu0 %v1751
    %v1753 = vand.u32 %v59, 4294901760
    %1754 = vmatprep.subr.mxu0 %v1753
    %v1755 = vand.u32 %v58, 4294901760
    %1756 = vmatpush1.msra.mxu0 %v1755
    %v1757 = vand.u32 %v51, 4294901760
    %1758 = vmatprep.subr.mxu0 %v1757
    %v1759 = vand.u32 %v50, 4294901760
    %1760 = vmatpush1.msra.mxu0 %v1759
    %v1761 = vand.u32 %v43, 4294901760
    %1762 = vmatprep.subr.mxu0 %v1761
    %v1763 = vand.u32 %v42, 4294901760
    %1764 = vmatpush1.msra.mxu0 %v1763
    %v1765 = vand.u32 %v291, 4294901760
    %1766 = vmatprep.subr.mxu0 %v1765
    %v1767 = vand.u32 %v290, 4294901760
    %1768 = vmatpush2.msra.mxu0 %v1767
    %v1769 = vand.u32 %v283, 4294901760
    %1770 = vmatprep.subr.mxu0 %v1769
    %v1771 = vand.u32 %v282, 4294901760
    %1772 = vmatpush2.msra.mxu0 %v1771
    %v1773 = vand.u32 %v275, 4294901760
    %1774 = vmatprep.subr.mxu0 %v1773
    %v1775 = vand.u32 %v274, 4294901760
    %1776 = vmatpush2.msra.mxu0 %v1775
    %v1777 = vand.u32 %v267, 4294901760
    %1778 = vmatprep.subr.mxu0 %v1777
    %v1779 = vand.u32 %v266, 4294901760
    %1780 = vmatpush2.msra.mxu0 %v1779
    %v1781 = vand.u32 %v259, 4294901760
    %1782 = vmatprep.subr.mxu0 %v1781
    %v1783 = vand.u32 %v258, 4294901760
    %1784 = vmatpush2.msra.mxu0 %v1783
    %v1785 = vand.u32 %v251, 4294901760
    %1786 = vmatprep.subr.mxu0 %v1785
    %v1787 = vand.u32 %v250, 4294901760
    %1788 = vmatpush2.msra.mxu0 %v1787
    %v1789 = vand.u32 %v243, 4294901760
    %1790 = vmatprep.subr.mxu0 %v1789
    %v1791 = vand.u32 %v242, 4294901760
    %1792 = vmatpush2.msra.mxu0 %v1791
    %v1793 = vand.u32 %v235, 4294901760
    %1794 = vmatprep.subr.mxu0 %v1793
    %v1795 = vand.u32 %v234, 4294901760
    %1796 = vmatpush2.msra.mxu0 %v1795
    %v1797 = vand.u32 %v227, 4294901760
    %1798 = vmatprep.subr.mxu0 %v1797
    %v1799 = vand.u32 %v226, 4294901760
    %1800 = vmatpush2.msra.mxu0 %v1799
    %v1801 = vand.u32 %v219, 4294901760
    %1802 = vmatprep.subr.mxu0 %v1801
    %v1803 = vand.u32 %v218, 4294901760
    %1804 = vmatpush2.msra.mxu0 %v1803
    %v1805 = vand.u32 %v211, 4294901760
    %1806 = vmatprep.subr.mxu0 %v1805
    %v1807 = vand.u32 %v210, 4294901760
    %1808 = vmatpush2.msra.mxu0 %v1807
    %v1809 = vand.u32 %v203, 4294901760
    %1810 = vmatprep.subr.mxu0 %v1809
    %v1811 = vand.u32 %v202, 4294901760
    %1812 = vmatpush2.msra.mxu0 %v1811
    %v1813 = vand.u32 %v195, 4294901760
    %1814 = vmatprep.subr.mxu0 %v1813
    %v1815 = vand.u32 %v194, 4294901760
    %1816 = vmatpush2.msra.mxu0 %v1815
    %v1817 = vand.u32 %v187, 4294901760
    %1818 = vmatprep.subr.mxu0 %v1817
    %v1819 = vand.u32 %v186, 4294901760
    %1820 = vmatpush2.msra.mxu0 %v1819
    %v1821 = vand.u32 %v179, 4294901760
    %1822 = vmatprep.subr.mxu0 %v1821
    %v1823 = vand.u32 %v178, 4294901760
    %1824 = vmatpush2.msra.mxu0 %v1823
    %v1825 = vand.u32 %v171, 4294901760
    %1826 = vmatprep.subr.mxu0 %v1825
    %v1827 = vand.u32 %v170, 4294901760
    %1828 = vmatpush2.msra.mxu0 %v1827
    %v1829 = vand.u32 %v39, 4294901760
    %1830 = vmatprep.mubr.f32.mxu0 %v1829
    %v1831 = vand.u32 %v38, 4294901760
    %1832 = vmatmul.mubr.f32.gmra.mxu0 %v1831
    %v1833 = vpop.f32.mrf.mxu0
    %v1834 = vadd.f32 %v1697, %v1833
    %v1835 = vpop.f32.mrf.mxu0
    %v1836 = vadd.f32 %v1699, %v1835
    %1837 = vdwg.mxu0
    %v1838 = vand.u32 %v419, 4294901760
    %1839 = vmatprep.subr.mxu0 %v1838
    %v1840 = vand.u32 %v418, 4294901760
    %1841 = vmatpush1.msra.mxu0 %v1840
    %v1842 = vand.u32 %v411, 4294901760
    %1843 = vmatprep.subr.mxu0 %v1842
    %v1844 = vand.u32 %v410, 4294901760
    %1845 = vmatpush1.msra.mxu0 %v1844
    %v1846 = vand.u32 %v403, 4294901760
    %1847 = vmatprep.subr.mxu0 %v1846
    %v1848 = vand.u32 %v402, 4294901760
    %1849 = vmatpush1.msra.mxu0 %v1848
    %v1850 = vand.u32 %v395, 4294901760
    %1851 = vmatprep.subr.mxu0 %v1850
    %v1852 = vand.u32 %v394, 4294901760
    %1853 = vmatpush1.msra.mxu0 %v1852
    %v1854 = vand.u32 %v387, 4294901760
    %1855 = vmatprep.subr.mxu0 %v1854
    %v1856 = vand.u32 %v386, 4294901760
    %1857 = vmatpush1.msra.mxu0 %v1856
    %v1858 = vand.u32 %v379, 4294901760
    %1859 = vmatprep.subr.mxu0 %v1858
    %v1860 = vand.u32 %v378, 4294901760
    %1861 = vmatpush1.msra.mxu0 %v1860
    %v1862 = vand.u32 %v371, 4294901760
    %1863 = vmatprep.subr.mxu0 %v1862
    %v1864 = vand.u32 %v370, 4294901760
    %1865 = vmatpush1.msra.mxu0 %v1864
    %v1866 = vand.u32 %v363, 4294901760
    %1867 = vmatprep.subr.mxu0 %v1866
    %v1868 = vand.u32 %v362, 4294901760
    %1869 = vmatpush1.msra.mxu0 %v1868
    %v1870 = vand.u32 %v355, 4294901760
    %1871 = vmatprep.subr.mxu0 %v1870
    %v1872 = vand.u32 %v354, 4294901760
    %1873 = vmatpush1.msra.mxu0 %v1872
    %v1874 = vand.u32 %v347, 4294901760
    %1875 = vmatprep.subr.mxu0 %v1874
    %v1876 = vand.u32 %v346, 4294901760
    %1877 = vmatpush1.msra.mxu0 %v1876
    %v1878 = vand.u32 %v339, 4294901760
    %1879 = vmatprep.subr.mxu0 %v1878
    %v1880 = vand.u32 %v338, 4294901760
    %1881 = vmatpush1.msra.mxu0 %v1880
    %v1882 = vand.u32 %v331, 4294901760
    %1883 = vmatprep.subr.mxu0 %v1882
    %v1884 = vand.u32 %v330, 4294901760
    %1885 = vmatpush1.msra.mxu0 %v1884
    %v1886 = vand.u32 %v323, 4294901760
    %1887 = vmatprep.subr.mxu0 %v1886
    %v1888 = vand.u32 %v322, 4294901760
    %1889 = vmatpush1.msra.mxu0 %v1888
    %v1890 = vand.u32 %v315, 4294901760
    %1891 = vmatprep.subr.mxu0 %v1890
    %v1892 = vand.u32 %v314, 4294901760
    %1893 = vmatpush1.msra.mxu0 %v1892
    %v1894 = vand.u32 %v307, 4294901760
    %1895 = vmatprep.subr.mxu0 %v1894
    %v1896 = vand.u32 %v306, 4294901760
    %1897 = vmatpush1.msra.mxu0 %v1896
    %v1898 = vand.u32 %v299, 4294901760
    %1899 = vmatprep.subr.mxu0 %v1898
    %v1900 = vand.u32 %v298, 4294901760
    %1901 = vmatpush1.msra.mxu0 %v1900
    %v1902 = vand.u32 %v547, 4294901760
    %1903 = vmatprep.subr.mxu0 %v1902
    %v1904 = vand.u32 %v546, 4294901760
    %1905 = vmatpush2.msra.mxu0 %v1904
    %v1906 = vand.u32 %v539, 4294901760
    %1907 = vmatprep.subr.mxu0 %v1906
    %v1908 = vand.u32 %v538, 4294901760
    %1909 = vmatpush2.msra.mxu0 %v1908
    %v1910 = vand.u32 %v531, 4294901760
    %1911 = vmatprep.subr.mxu0 %v1910
    %v1912 = vand.u32 %v530, 4294901760
    %1913 = vmatpush2.msra.mxu0 %v1912
    %v1914 = vand.u32 %v523, 4294901760
    %1915 = vmatprep.subr.mxu0 %v1914
    %v1916 = vand.u32 %v522, 4294901760
    %1917 = vmatpush2.msra.mxu0 %v1916
    %v1918 = vand.u32 %v515, 4294901760
    %1919 = vmatprep.subr.mxu0 %v1918
    %v1920 = vand.u32 %v514, 4294901760
    %1921 = vmatpush2.msra.mxu0 %v1920
    %v1922 = vand.u32 %v507, 4294901760
    %1923 = vmatprep.subr.mxu0 %v1922
    %v1924 = vand.u32 %v506, 4294901760
    %1925 = vmatpush2.msra.mxu0 %v1924
    %v1926 = vand.u32 %v499, 4294901760
    %1927 = vmatprep.subr.mxu0 %v1926
    %v1928 = vand.u32 %v498, 4294901760
    %1929 = vmatpush2.msra.mxu0 %v1928
    %v1930 = vand.u32 %v491, 4294901760
    %1931 = vmatprep.subr.mxu0 %v1930
    %v1932 = vand.u32 %v490, 4294901760
    %1933 = vmatpush2.msra.mxu0 %v1932
    %v1934 = vand.u32 %v483, 4294901760
    %1935 = vmatprep.subr.mxu0 %v1934
    %v1936 = vand.u32 %v482, 4294901760
    %1937 = vmatpush2.msra.mxu0 %v1936
    %v1938 = vand.u32 %v475, 4294901760
    %1939 = vmatprep.subr.mxu0 %v1938
    %v1940 = vand.u32 %v474, 4294901760
    %1941 = vmatpush2.msra.mxu0 %v1940
    %v1942 = vand.u32 %v467, 4294901760
    %1943 = vmatprep.subr.mxu0 %v1942
    %v1944 = vand.u32 %v466, 4294901760
    %1945 = vmatpush2.msra.mxu0 %v1944
    %v1946 = vand.u32 %v459, 4294901760
    %1947 = vmatprep.subr.mxu0 %v1946
    %v1948 = vand.u32 %v458, 4294901760
    %1949 = vmatpush2.msra.mxu0 %v1948
    %v1950 = vand.u32 %v451, 4294901760
    %1951 = vmatprep.subr.mxu0 %v1950
    %v1952 = vand.u32 %v450, 4294901760
    %1953 = vmatpush2.msra.mxu0 %v1952
    %v1954 = vand.u32 %v443, 4294901760
    %1955 = vmatprep.subr.mxu0 %v1954
    %v1956 = vand.u32 %v442, 4294901760
    %1957 = vmatpush2.msra.mxu0 %v1956
    %v1958 = vand.u32 %v435, 4294901760
    %1959 = vmatprep.subr.mxu0 %v1958
    %v1960 = vand.u32 %v434, 4294901760
    %1961 = vmatpush2.msra.mxu0 %v1960
    %v1962 = vand.u32 %v427, 4294901760
    %1963 = vmatprep.subr.mxu0 %v1962
    %v1964 = vand.u32 %v426, 4294901760
    %1965 = vmatpush2.msra.mxu0 %v1964
    %v1966 = vand.u32 %v41, 4294901760
    %v1967 = vsub.f32 %v41, %v1966
    %v1968 = vand.u32 %v1967, 4294901760
    %v1969 = vsub.f32 %v1967, %v1968
    %v1970 = vand.u32 %v1969, 4294901760
    %1971 = vmatprep.mubr.f32.mxu0 %v1970
    %v1972 = vand.u32 %v40, 4294901760
    %v1973 = vsub.f32 %v40, %v1972
    %v1974 = vand.u32 %v1973, 4294901760
    %v1975 = vsub.f32 %v1973, %v1974
    %v1976 = vand.u32 %v1975, 4294901760
    %1977 = vmatmul.mubr.f32.gmra.mxu0 %v1976
    %v1978 = vpop.f32.mrf.mxu0
    %v1979 = vadd.f32 %v1834, %v1978
    %v1980 = vpop.f32.mrf.mxu0
    %v1981 = vadd.f32 %v1836, %v1980
    %1982 = vdwg.mxu0
    %v1983 = vand.u32 %v419, 4294901760
    %v1984 = vsub.f32 %v419, %v1983
    %v1985 = vand.u32 %v1984, 4294901760
    %v1986 = vsub.f32 %v1984, %v1985
    %v1987 = vand.u32 %v1986, 4294901760
    %1988 = vmatprep.subr.mxu0 %v1987
    %v1989 = vand.u32 %v418, 4294901760
    %v1990 = vsub.f32 %v418, %v1989
    %v1991 = vand.u32 %v1990, 4294901760
    %v1992 = vsub.f32 %v1990, %v1991
    %v1993 = vand.u32 %v1992, 4294901760
    %1994 = vmatpush1.msra.mxu0 %v1993
    %v1995 = vand.u32 %v411, 4294901760
    %v1996 = vsub.f32 %v411, %v1995
    %v1997 = vand.u32 %v1996, 4294901760
    %v1998 = vsub.f32 %v1996, %v1997
    %v1999 = vand.u32 %v1998, 4294901760
    %2000 = vmatprep.subr.mxu0 %v1999
    %v2001 = vand.u32 %v410, 4294901760
    %v2002 = vsub.f32 %v410, %v2001
    %v2003 = vand.u32 %v2002, 4294901760
    %v2004 = vsub.f32 %v2002, %v2003
    %v2005 = vand.u32 %v2004, 4294901760
    %2006 = vmatpush1.msra.mxu0 %v2005
    %v2007 = vand.u32 %v403, 4294901760
    %v2008 = vsub.f32 %v403, %v2007
    %v2009 = vand.u32 %v2008, 4294901760
    %v2010 = vsub.f32 %v2008, %v2009
    %v2011 = vand.u32 %v2010, 4294901760
    %2012 = vmatprep.subr.mxu0 %v2011
    %v2013 = vand.u32 %v402, 4294901760
    %v2014 = vsub.f32 %v402, %v2013
    %v2015 = vand.u32 %v2014, 4294901760
    %v2016 = vsub.f32 %v2014, %v2015
    %v2017 = vand.u32 %v2016, 4294901760
    %2018 = vmatpush1.msra.mxu0 %v2017
    %v2019 = vand.u32 %v395, 4294901760
    %v2020 = vsub.f32 %v395, %v2019
    %v2021 = vand.u32 %v2020, 4294901760
    %v2022 = vsub.f32 %v2020, %v2021
    %v2023 = vand.u32 %v2022, 4294901760
    %2024 = vmatprep.subr.mxu0 %v2023
    %v2025 = vand.u32 %v394, 4294901760
    %v2026 = vsub.f32 %v394, %v2025
    %v2027 = vand.u32 %v2026, 4294901760
    %v2028 = vsub.f32 %v2026, %v2027
    %v2029 = vand.u32 %v2028, 4294901760
    %2030 = vmatpush1.msra.mxu0 %v2029
    %v2031 = vand.u32 %v387, 4294901760
    %v2032 = vsub.f32 %v387, %v2031
    %v2033 = vand.u32 %v2032, 4294901760
    %v2034 = vsub.f32 %v2032, %v2033
    %v2035 = vand.u32 %v2034, 4294901760
    %2036 = vmatprep.subr.mxu0 %v2035
    %v2037 = vand.u32 %v386, 4294901760
    %v2038 = vsub.f32 %v386, %v2037
    %v2039 = vand.u32 %v2038, 4294901760
    %v2040 = vsub.f32 %v2038, %v2039
    %v2041 = vand.u32 %v2040, 4294901760
    %2042 = vmatpush1.msra.mxu0 %v2041
    %v2043 = vand.u32 %v379, 4294901760
    %v2044 = vsub.f32 %v379, %v2043
    %v2045 = vand.u32 %v2044, 4294901760
    %v2046 = vsub.f32 %v2044, %v2045
    %v2047 = vand.u32 %v2046, 4294901760
    %2048 = vmatprep.subr.mxu0 %v2047
    %v2049 = vand.u32 %v378, 4294901760
    %v2050 = vsub.f32 %v378, %v2049
    %v2051 = vand.u32 %v2050, 4294901760
    %v2052 = vsub.f32 %v2050, %v2051
    %v2053 = vand.u32 %v2052, 4294901760
    %2054 = vmatpush1.msra.mxu0 %v2053
    %v2055 = vand.u32 %v371, 4294901760
    %v2056 = vsub.f32 %v371, %v2055
    %v2057 = vand.u32 %v2056, 4294901760
    %v2058 = vsub.f32 %v2056, %v2057
    %v2059 = vand.u32 %v2058, 4294901760
    %2060 = vmatprep.subr.mxu0 %v2059
    %v2061 = vand.u32 %v370, 4294901760
    %v2062 = vsub.f32 %v370, %v2061
    %v2063 = vand.u32 %v2062, 4294901760
    %v2064 = vsub.f32 %v2062, %v2063
    %v2065 = vand.u32 %v2064, 4294901760
    %2066 = vmatpush1.msra.mxu0 %v2065
    %v2067 = vand.u32 %v363, 4294901760
    %v2068 = vsub.f32 %v363, %v2067
    %v2069 = vand.u32 %v2068, 4294901760
    %v2070 = vsub.f32 %v2068, %v2069
    %v2071 = vand.u32 %v2070, 4294901760
    %2072 = vmatprep.subr.mxu0 %v2071
    %v2073 = vand.u32 %v362, 4294901760
    %v2074 = vsub.f32 %v362, %v2073
    %v2075 = vand.u32 %v2074, 4294901760
    %v2076 = vsub.f32 %v2074, %v2075
    %v2077 = vand.u32 %v2076, 4294901760
    %2078 = vmatpush1.msra.mxu0 %v2077
    %v2079 = vand.u32 %v355, 4294901760
    %v2080 = vsub.f32 %v355, %v2079
    %v2081 = vand.u32 %v2080, 4294901760
    %v2082 = vsub.f32 %v2080, %v2081
    %v2083 = vand.u32 %v2082, 4294901760
    %2084 = vmatprep.subr.mxu0 %v2083
    %v2085 = vand.u32 %v354, 4294901760
    %v2086 = vsub.f32 %v354, %v2085
    %v2087 = vand.u32 %v2086, 4294901760
    %v2088 = vsub.f32 %v2086, %v2087
    %v2089 = vand.u32 %v2088, 4294901760
    %2090 = vmatpush1.msra.mxu0 %v2089
    %v2091 = vand.u32 %v347, 4294901760
    %v2092 = vsub.f32 %v347, %v2091
    %v2093 = vand.u32 %v2092, 4294901760
    %v2094 = vsub.f32 %v2092, %v2093
    %v2095 = vand.u32 %v2094, 4294901760
    %2096 = vmatprep.subr.mxu0 %v2095
    %v2097 = vand.u32 %v346, 4294901760
    %v2098 = vsub.f32 %v346, %v2097
    %v2099 = vand.u32 %v2098, 4294901760
    %v2100 = vsub.f32 %v2098, %v2099
    %v2101 = vand.u32 %v2100, 4294901760
    %2102 = vmatpush1.msra.mxu0 %v2101
    %v2103 = vand.u32 %v339, 4294901760
    %v2104 = vsub.f32 %v339, %v2103
    %v2105 = vand.u32 %v2104, 4294901760
    %v2106 = vsub.f32 %v2104, %v2105
    %v2107 = vand.u32 %v2106, 4294901760
    %2108 = vmatprep.subr.mxu0 %v2107
    %v2109 = vand.u32 %v338, 4294901760
    %v2110 = vsub.f32 %v338, %v2109
    %v2111 = vand.u32 %v2110, 4294901760
    %v2112 = vsub.f32 %v2110, %v2111
    %v2113 = vand.u32 %v2112, 4294901760
    %2114 = vmatpush1.msra.mxu0 %v2113
    %v2115 = vand.u32 %v331, 4294901760
    %v2116 = vsub.f32 %v331, %v2115
    %v2117 = vand.u32 %v2116, 4294901760
    %v2118 = vsub.f32 %v2116, %v2117
    %v2119 = vand.u32 %v2118, 4294901760
    %2120 = vmatprep.subr.mxu0 %v2119
    %v2121 = vand.u32 %v330, 4294901760
    %v2122 = vsub.f32 %v330, %v2121
    %v2123 = vand.u32 %v2122, 4294901760
    %v2124 = vsub.f32 %v2122, %v2123
    %v2125 = vand.u32 %v2124, 4294901760
    %2126 = vmatpush1.msra.mxu0 %v2125
    %v2127 = vand.u32 %v323, 4294901760
    %v2128 = vsub.f32 %v323, %v2127
    %v2129 = vand.u32 %v2128, 4294901760
    %v2130 = vsub.f32 %v2128, %v2129
    %v2131 = vand.u32 %v2130, 4294901760
    %2132 = vmatprep.subr.mxu0 %v2131
    %v2133 = vand.u32 %v322, 4294901760
    %v2134 = vsub.f32 %v322, %v2133
    %v2135 = vand.u32 %v2134, 4294901760
    %v2136 = vsub.f32 %v2134, %v2135
    %v2137 = vand.u32 %v2136, 4294901760
    %2138 = vmatpush1.msra.mxu0 %v2137
    %v2139 = vand.u32 %v315, 4294901760
    %v2140 = vsub.f32 %v315, %v2139
    %v2141 = vand.u32 %v2140, 4294901760
    %v2142 = vsub.f32 %v2140, %v2141
    %v2143 = vand.u32 %v2142, 4294901760
    %2144 = vmatprep.subr.mxu0 %v2143
    %v2145 = vand.u32 %v314, 4294901760
    %v2146 = vsub.f32 %v314, %v2145
    %v2147 = vand.u32 %v2146, 4294901760
    %v2148 = vsub.f32 %v2146, %v2147
    %v2149 = vand.u32 %v2148, 4294901760
    %2150 = vmatpush1.msra.mxu0 %v2149
    %v2151 = vand.u32 %v307, 4294901760
    %v2152 = vsub.f32 %v307, %v2151
    %v2153 = vand.u32 %v2152, 4294901760
    %v2154 = vsub.f32 %v2152, %v2153
    %v2155 = vand.u32 %v2154, 4294901760
    %2156 = vmatprep.subr.mxu0 %v2155
    %v2157 = vand.u32 %v306, 4294901760
    %v2158 = vsub.f32 %v306, %v2157
    %v2159 = vand.u32 %v2158, 4294901760
    %v2160 = vsub.f32 %v2158, %v2159
    %v2161 = vand.u32 %v2160, 4294901760
    %2162 = vmatpush1.msra.mxu0 %v2161
    %v2163 = vand.u32 %v299, 4294901760
    %v2164 = vsub.f32 %v299, %v2163
    %v2165 = vand.u32 %v2164, 4294901760
    %v2166 = vsub.f32 %v2164, %v2165
    %v2167 = vand.u32 %v2166, 4294901760
    %2168 = vmatprep.subr.mxu0 %v2167
    %v2169 = vand.u32 %v298, 4294901760
    %v2170 = vsub.f32 %v298, %v2169
    %v2171 = vand.u32 %v2170, 4294901760
    %v2172 = vsub.f32 %v2170, %v2171
    %v2173 = vand.u32 %v2172, 4294901760
    %2174 = vmatpush1.msra.mxu0 %v2173
    %v2175 = vand.u32 %v547, 4294901760
    %v2176 = vsub.f32 %v547, %v2175
    %v2177 = vand.u32 %v2176, 4294901760
    %v2178 = vsub.f32 %v2176, %v2177
    %v2179 = vand.u32 %v2178, 4294901760
    %2180 = vmatprep.subr.mxu0 %v2179
    %v2181 = vand.u32 %v546, 4294901760
    %v2182 = vsub.f32 %v546, %v2181
    %v2183 = vand.u32 %v2182, 4294901760
    %v2184 = vsub.f32 %v2182, %v2183
    %v2185 = vand.u32 %v2184, 4294901760
    %2186 = vmatpush2.msra.mxu0 %v2185
    %v2187 = vand.u32 %v539, 4294901760
    %v2188 = vsub.f32 %v539, %v2187
    %v2189 = vand.u32 %v2188, 4294901760
    %v2190 = vsub.f32 %v2188, %v2189
    %v2191 = vand.u32 %v2190, 4294901760
    %2192 = vmatprep.subr.mxu0 %v2191
    %v2193 = vand.u32 %v538, 4294901760
    %v2194 = vsub.f32 %v538, %v2193
    %v2195 = vand.u32 %v2194, 4294901760
    %v2196 = vsub.f32 %v2194, %v2195
    %v2197 = vand.u32 %v2196, 4294901760
    %2198 = vmatpush2.msra.mxu0 %v2197
    %v2199 = vand.u32 %v531, 4294901760
    %v2200 = vsub.f32 %v531, %v2199
    %v2201 = vand.u32 %v2200, 4294901760
    %v2202 = vsub.f32 %v2200, %v2201
    %v2203 = vand.u32 %v2202, 4294901760
    %2204 = vmatprep.subr.mxu0 %v2203
    %v2205 = vand.u32 %v530, 4294901760
    %v2206 = vsub.f32 %v530, %v2205
    %v2207 = vand.u32 %v2206, 4294901760
    %v2208 = vsub.f32 %v2206, %v2207
    %v2209 = vand.u32 %v2208, 4294901760
    %2210 = vmatpush2.msra.mxu0 %v2209
    %v2211 = vand.u32 %v523, 4294901760
    %v2212 = vsub.f32 %v523, %v2211
    %v2213 = vand.u32 %v2212, 4294901760
    %v2214 = vsub.f32 %v2212, %v2213
    %v2215 = vand.u32 %v2214, 4294901760
    %2216 = vmatprep.subr.mxu0 %v2215
    %v2217 = vand.u32 %v522, 4294901760
    %v2218 = vsub.f32 %v522, %v2217
    %v2219 = vand.u32 %v2218, 4294901760
    %v2220 = vsub.f32 %v2218, %v2219
    %v2221 = vand.u32 %v2220, 4294901760
    %2222 = vmatpush2.msra.mxu0 %v2221
    %v2223 = vand.u32 %v515, 4294901760
    %v2224 = vsub.f32 %v515, %v2223
    %v2225 = vand.u32 %v2224, 4294901760
    %v2226 = vsub.f32 %v2224, %v2225
    %v2227 = vand.u32 %v2226, 4294901760
    %2228 = vmatprep.subr.mxu0 %v2227
    %v2229 = vand.u32 %v514, 4294901760
    %v2230 = vsub.f32 %v514, %v2229
    %v2231 = vand.u32 %v2230, 4294901760
    %v2232 = vsub.f32 %v2230, %v2231
    %v2233 = vand.u32 %v2232, 4294901760
    %2234 = vmatpush2.msra.mxu0 %v2233
    %v2235 = vand.u32 %v507, 4294901760
    %v2236 = vsub.f32 %v507, %v2235
    %v2237 = vand.u32 %v2236, 4294901760
    %v2238 = vsub.f32 %v2236, %v2237
    %v2239 = vand.u32 %v2238, 4294901760
    %2240 = vmatprep.subr.mxu0 %v2239
    %v2241 = vand.u32 %v506, 4294901760
    %v2242 = vsub.f32 %v506, %v2241
    %v2243 = vand.u32 %v2242, 4294901760
    %v2244 = vsub.f32 %v2242, %v2243
    %v2245 = vand.u32 %v2244, 4294901760
    %2246 = vmatpush2.msra.mxu0 %v2245
    %v2247 = vand.u32 %v499, 4294901760
    %v2248 = vsub.f32 %v499, %v2247
    %v2249 = vand.u32 %v2248, 4294901760
    %v2250 = vsub.f32 %v2248, %v2249
    %v2251 = vand.u32 %v2250, 4294901760
    %2252 = vmatprep.subr.mxu0 %v2251
    %v2253 = vand.u32 %v498, 4294901760
    %v2254 = vsub.f32 %v498, %v2253
    %v2255 = vand.u32 %v2254, 4294901760
    %v2256 = vsub.f32 %v2254, %v2255
    %v2257 = vand.u32 %v2256, 4294901760
    %2258 = vmatpush2.msra.mxu0 %v2257
    %v2259 = vand.u32 %v491, 4294901760
    %v2260 = vsub.f32 %v491, %v2259
    %v2261 = vand.u32 %v2260, 4294901760
    %v2262 = vsub.f32 %v2260, %v2261
    %v2263 = vand.u32 %v2262, 4294901760
    %2264 = vmatprep.subr.mxu0 %v2263
    %v2265 = vand.u32 %v490, 4294901760
    %v2266 = vsub.f32 %v490, %v2265
    %v2267 = vand.u32 %v2266, 4294901760
    %v2268 = vsub.f32 %v2266, %v2267
    %v2269 = vand.u32 %v2268, 4294901760
    %2270 = vmatpush2.msra.mxu0 %v2269
    %v2271 = vand.u32 %v483, 4294901760
    %v2272 = vsub.f32 %v483, %v2271
    %v2273 = vand.u32 %v2272, 4294901760
    %v2274 = vsub.f32 %v2272, %v2273
    %v2275 = vand.u32 %v2274, 4294901760
    %2276 = vmatprep.subr.mxu0 %v2275
    %v2277 = vand.u32 %v482, 4294901760
    %v2278 = vsub.f32 %v482, %v2277
    %v2279 = vand.u32 %v2278, 4294901760
    %v2280 = vsub.f32 %v2278, %v2279
    %v2281 = vand.u32 %v2280, 4294901760
    %2282 = vmatpush2.msra.mxu0 %v2281
    %v2283 = vand.u32 %v475, 4294901760
    %v2284 = vsub.f32 %v475, %v2283
    %v2285 = vand.u32 %v2284, 4294901760
    %v2286 = vsub.f32 %v2284, %v2285
    %v2287 = vand.u32 %v2286, 4294901760
    %2288 = vmatprep.subr.mxu0 %v2287
    %v2289 = vand.u32 %v474, 4294901760
    %v2290 = vsub.f32 %v474, %v2289
    %v2291 = vand.u32 %v2290, 4294901760
    %v2292 = vsub.f32 %v2290, %v2291
    %v2293 = vand.u32 %v2292, 4294901760
    %2294 = vmatpush2.msra.mxu0 %v2293
    %v2295 = vand.u32 %v467, 4294901760
    %v2296 = vsub.f32 %v467, %v2295
    %v2297 = vand.u32 %v2296, 4294901760
    %v2298 = vsub.f32 %v2296, %v2297
    %v2299 = vand.u32 %v2298, 4294901760
    %2300 = vmatprep.subr.mxu0 %v2299
    %v2301 = vand.u32 %v466, 4294901760
    %v2302 = vsub.f32 %v466, %v2301
    %v2303 = vand.u32 %v2302, 4294901760
    %v2304 = vsub.f32 %v2302, %v2303
    %v2305 = vand.u32 %v2304, 4294901760
    %2306 = vmatpush2.msra.mxu0 %v2305
    %v2307 = vand.u32 %v459, 4294901760
    %v2308 = vsub.f32 %v459, %v2307
    %v2309 = vand.u32 %v2308, 4294901760
    %v2310 = vsub.f32 %v2308, %v2309
    %v2311 = vand.u32 %v2310, 4294901760
    %2312 = vmatprep.subr.mxu0 %v2311
    %v2313 = vand.u32 %v458, 4294901760
    %v2314 = vsub.f32 %v458, %v2313
    %v2315 = vand.u32 %v2314, 4294901760
    %v2316 = vsub.f32 %v2314, %v2315
    %v2317 = vand.u32 %v2316, 4294901760
    %2318 = vmatpush2.msra.mxu0 %v2317
    %v2319 = vand.u32 %v451, 4294901760
    %v2320 = vsub.f32 %v451, %v2319
    %v2321 = vand.u32 %v2320, 4294901760
    %v2322 = vsub.f32 %v2320, %v2321
    %v2323 = vand.u32 %v2322, 4294901760
    %2324 = vmatprep.subr.mxu0 %v2323
    %v2325 = vand.u32 %v450, 4294901760
    %v2326 = vsub.f32 %v450, %v2325
    %v2327 = vand.u32 %v2326, 4294901760
    %v2328 = vsub.f32 %v2326, %v2327
    %v2329 = vand.u32 %v2328, 4294901760
    %2330 = vmatpush2.msra.mxu0 %v2329
    %v2331 = vand.u32 %v443, 4294901760
    %v2332 = vsub.f32 %v443, %v2331
    %v2333 = vand.u32 %v2332, 4294901760
    %v2334 = vsub.f32 %v2332, %v2333
    %v2335 = vand.u32 %v2334, 4294901760
    %2336 = vmatprep.subr.mxu0 %v2335
    %v2337 = vand.u32 %v442, 4294901760
    %v2338 = vsub.f32 %v442, %v2337
    %v2339 = vand.u32 %v2338, 4294901760
    %v2340 = vsub.f32 %v2338, %v2339
    %v2341 = vand.u32 %v2340, 4294901760
    %2342 = vmatpush2.msra.mxu0 %v2341
    %v2343 = vand.u32 %v435, 4294901760
    %v2344 = vsub.f32 %v435, %v2343
    %v2345 = vand.u32 %v2344, 4294901760
    %v2346 = vsub.f32 %v2344, %v2345
    %v2347 = vand.u32 %v2346, 4294901760
    %2348 = vmatprep.subr.mxu0 %v2347
    %v2349 = vand.u32 %v434, 4294901760
    %v2350 = vsub.f32 %v434, %v2349
    %v2351 = vand.u32 %v2350, 4294901760
    %v2352 = vsub.f32 %v2350, %v2351
    %v2353 = vand.u32 %v2352, 4294901760
    %2354 = vmatpush2.msra.mxu0 %v2353
    %v2355 = vand.u32 %v427, 4294901760
    %v2356 = vsub.f32 %v427, %v2355
    %v2357 = vand.u32 %v2356, 4294901760
    %v2358 = vsub.f32 %v2356, %v2357
    %v2359 = vand.u32 %v2358, 4294901760
    %2360 = vmatprep.subr.mxu0 %v2359
    %v2361 = vand.u32 %v426, 4294901760
    %v2362 = vsub.f32 %v426, %v2361
    %v2363 = vand.u32 %v2362, 4294901760
    %v2364 = vsub.f32 %v2362, %v2363
    %v2365 = vand.u32 %v2364, 4294901760
    %2366 = vmatpush2.msra.mxu0 %v2365
    %v2367 = vand.u32 %v41, 4294901760
    %2368 = vmatprep.mubr.f32.mxu0 %v2367
    %v2369 = vand.u32 %v40, 4294901760
    %2370 = vmatmul.mubr.f32.gmra.mxu0 %v2369
    %v2371 = vpop.f32.mrf.mxu0
    %v2372 = vadd.f32 %v1979, %v2371
    %v2373 = vpop.f32.mrf.mxu0
    %v2374 = vadd.f32 %v1981, %v2373
    %2375 = vdwg.mxu0
    %v2376 = vand.u32 %v419, 4294901760
    %v2377 = vsub.f32 %v419, %v2376
    %2378 = vmatprep.subr.mxu0 %v2377
    %v2379 = vand.u32 %v418, 4294901760
    %v2380 = vsub.f32 %v418, %v2379
    %2381 = vmatpush1.msra.mxu0 %v2380
    %v2382 = vand.u32 %v411, 4294901760
    %v2383 = vsub.f32 %v411, %v2382
    %2384 = vmatprep.subr.mxu0 %v2383
    %v2385 = vand.u32 %v410, 4294901760
    %v2386 = vsub.f32 %v410, %v2385
    %2387 = vmatpush1.msra.mxu0 %v2386
    %v2388 = vand.u32 %v403, 4294901760
    %v2389 = vsub.f32 %v403, %v2388
    %2390 = vmatprep.subr.mxu0 %v2389
    %v2391 = vand.u32 %v402, 4294901760
    %v2392 = vsub.f32 %v402, %v2391
    %2393 = vmatpush1.msra.mxu0 %v2392
    %v2394 = vand.u32 %v395, 4294901760
    %v2395 = vsub.f32 %v395, %v2394
    %2396 = vmatprep.subr.mxu0 %v2395
    %v2397 = vand.u32 %v394, 4294901760
    %v2398 = vsub.f32 %v394, %v2397
    %2399 = vmatpush1.msra.mxu0 %v2398
    %v2400 = vand.u32 %v387, 4294901760
    %v2401 = vsub.f32 %v387, %v2400
    %2402 = vmatprep.subr.mxu0 %v2401
    %v2403 = vand.u32 %v386, 4294901760
    %v2404 = vsub.f32 %v386, %v2403
    %2405 = vmatpush1.msra.mxu0 %v2404
    %v2406 = vand.u32 %v379, 4294901760
    %v2407 = vsub.f32 %v379, %v2406
    %2408 = vmatprep.subr.mxu0 %v2407
    %v2409 = vand.u32 %v378, 4294901760
    %v2410 = vsub.f32 %v378, %v2409
    %2411 = vmatpush1.msra.mxu0 %v2410
    %v2412 = vand.u32 %v371, 4294901760
    %v2413 = vsub.f32 %v371, %v2412
    %2414 = vmatprep.subr.mxu0 %v2413
    %v2415 = vand.u32 %v370, 4294901760
    %v2416 = vsub.f32 %v370, %v2415
    %2417 = vmatpush1.msra.mxu0 %v2416
    %v2418 = vand.u32 %v363, 4294901760
    %v2419 = vsub.f32 %v363, %v2418
    %2420 = vmatprep.subr.mxu0 %v2419
    %v2421 = vand.u32 %v362, 4294901760
    %v2422 = vsub.f32 %v362, %v2421
    %2423 = vmatpush1.msra.mxu0 %v2422
    %v2424 = vand.u32 %v355, 4294901760
    %v2425 = vsub.f32 %v355, %v2424
    %2426 = vmatprep.subr.mxu0 %v2425
    %v2427 = vand.u32 %v354, 4294901760
    %v2428 = vsub.f32 %v354, %v2427
    %2429 = vmatpush1.msra.mxu0 %v2428
    %v2430 = vand.u32 %v347, 4294901760
    %v2431 = vsub.f32 %v347, %v2430
    %2432 = vmatprep.subr.mxu0 %v2431
    %v2433 = vand.u32 %v346, 4294901760
    %v2434 = vsub.f32 %v346, %v2433
    %2435 = vmatpush1.msra.mxu0 %v2434
    %v2436 = vand.u32 %v339, 4294901760
    %v2437 = vsub.f32 %v339, %v2436
    %2438 = vmatprep.subr.mxu0 %v2437
    %v2439 = vand.u32 %v338, 4294901760
    %v2440 = vsub.f32 %v338, %v2439
    %2441 = vmatpush1.msra.mxu0 %v2440
    %v2442 = vand.u32 %v331, 4294901760
    %v2443 = vsub.f32 %v331, %v2442
    %2444 = vmatprep.subr.mxu0 %v2443
    %v2445 = vand.u32 %v330, 4294901760
    %v2446 = vsub.f32 %v330, %v2445
    %2447 = vmatpush1.msra.mxu0 %v2446
    %v2448 = vand.u32 %v323, 4294901760
    %v2449 = vsub.f32 %v323, %v2448
    %2450 = vmatprep.subr.mxu0 %v2449
    %v2451 = vand.u32 %v322, 4294901760
    %v2452 = vsub.f32 %v322, %v2451
    %2453 = vmatpush1.msra.mxu0 %v2452
    %v2454 = vand.u32 %v315, 4294901760
    %v2455 = vsub.f32 %v315, %v2454
    %2456 = vmatprep.subr.mxu0 %v2455
    %v2457 = vand.u32 %v314, 4294901760
    %v2458 = vsub.f32 %v314, %v2457
    %2459 = vmatpush1.msra.mxu0 %v2458
    %v2460 = vand.u32 %v307, 4294901760
    %v2461 = vsub.f32 %v307, %v2460
    %2462 = vmatprep.subr.mxu0 %v2461
    %v2463 = vand.u32 %v306, 4294901760
    %v2464 = vsub.f32 %v306, %v2463
    %2465 = vmatpush1.msra.mxu0 %v2464
    %v2466 = vand.u32 %v299, 4294901760
    %v2467 = vsub.f32 %v299, %v2466
    %2468 = vmatprep.subr.mxu0 %v2467
    %v2469 = vand.u32 %v298, 4294901760
    %v2470 = vsub.f32 %v298, %v2469
    %2471 = vmatpush1.msra.mxu0 %v2470
    %v2472 = vand.u32 %v547, 4294901760
    %v2473 = vsub.f32 %v547, %v2472
    %2474 = vmatprep.subr.mxu0 %v2473
    %v2475 = vand.u32 %v546, 4294901760
    %v2476 = vsub.f32 %v546, %v2475
    %2477 = vmatpush2.msra.mxu0 %v2476
    %v2478 = vand.u32 %v539, 4294901760
    %v2479 = vsub.f32 %v539, %v2478
    %2480 = vmatprep.subr.mxu0 %v2479
    %v2481 = vand.u32 %v538, 4294901760
    %v2482 = vsub.f32 %v538, %v2481
    %2483 = vmatpush2.msra.mxu0 %v2482
    %v2484 = vand.u32 %v531, 4294901760
    %v2485 = vsub.f32 %v531, %v2484
    %2486 = vmatprep.subr.mxu0 %v2485
    %v2487 = vand.u32 %v530, 4294901760
    %v2488 = vsub.f32 %v530, %v2487
    %2489 = vmatpush2.msra.mxu0 %v2488
    %v2490 = vand.u32 %v523, 4294901760
    %v2491 = vsub.f32 %v523, %v2490
    %2492 = vmatprep.subr.mxu0 %v2491
    %v2493 = vand.u32 %v522, 4294901760
    %v2494 = vsub.f32 %v522, %v2493
    %2495 = vmatpush2.msra.mxu0 %v2494
    %v2496 = vand.u32 %v515, 4294901760
    %v2497 = vsub.f32 %v515, %v2496
    %2498 = vmatprep.subr.mxu0 %v2497
    %v2499 = vand.u32 %v514, 4294901760
    %v2500 = vsub.f32 %v514, %v2499
    %2501 = vmatpush2.msra.mxu0 %v2500
    %v2502 = vand.u32 %v507, 4294901760
    %v2503 = vsub.f32 %v507, %v2502
    %2504 = vmatprep.subr.mxu0 %v2503
    %v2505 = vand.u32 %v506, 4294901760
    %v2506 = vsub.f32 %v506, %v2505
    %2507 = vmatpush2.msra.mxu0 %v2506
    %v2508 = vand.u32 %v499, 4294901760
    %v2509 = vsub.f32 %v499, %v2508
    %2510 = vmatprep.subr.mxu0 %v2509
    %v2511 = vand.u32 %v498, 4294901760
    %v2512 = vsub.f32 %v498, %v2511
    %2513 = vmatpush2.msra.mxu0 %v2512
    %v2514 = vand.u32 %v491, 4294901760
    %v2515 = vsub.f32 %v491, %v2514
    %2516 = vmatprep.subr.mxu0 %v2515
    %v2517 = vand.u32 %v490, 4294901760
    %v2518 = vsub.f32 %v490, %v2517
    %2519 = vmatpush2.msra.mxu0 %v2518
    %v2520 = vand.u32 %v483, 4294901760
    %v2521 = vsub.f32 %v483, %v2520
    %2522 = vmatprep.subr.mxu0 %v2521
    %v2523 = vand.u32 %v482, 4294901760
    %v2524 = vsub.f32 %v482, %v2523
    %2525 = vmatpush2.msra.mxu0 %v2524
    %v2526 = vand.u32 %v475, 4294901760
    %v2527 = vsub.f32 %v475, %v2526
    %2528 = vmatprep.subr.mxu0 %v2527
    %v2529 = vand.u32 %v474, 4294901760
    %v2530 = vsub.f32 %v474, %v2529
    %2531 = vmatpush2.msra.mxu0 %v2530
    %v2532 = vand.u32 %v467, 4294901760
    %v2533 = vsub.f32 %v467, %v2532
    %2534 = vmatprep.subr.mxu0 %v2533
    %v2535 = vand.u32 %v466, 4294901760
    %v2536 = vsub.f32 %v466, %v2535
    %2537 = vmatpush2.msra.mxu0 %v2536
    %v2538 = vand.u32 %v459, 4294901760
    %v2539 = vsub.f32 %v459, %v2538
    %2540 = vmatprep.subr.mxu0 %v2539
    %v2541 = vand.u32 %v458, 4294901760
    %v2542 = vsub.f32 %v458, %v2541
    %2543 = vmatpush2.msra.mxu0 %v2542
    %v2544 = vand.u32 %v451, 4294901760
    %v2545 = vsub.f32 %v451, %v2544
    %2546 = vmatprep.subr.mxu0 %v2545
    %v2547 = vand.u32 %v450, 4294901760
    %v2548 = vsub.f32 %v450, %v2547
    %2549 = vmatpush2.msra.mxu0 %v2548
    %v2550 = vand.u32 %v443, 4294901760
    %v2551 = vsub.f32 %v443, %v2550
    %2552 = vmatprep.subr.mxu0 %v2551
    %v2553 = vand.u32 %v442, 4294901760
    %v2554 = vsub.f32 %v442, %v2553
    %2555 = vmatpush2.msra.mxu0 %v2554
    %v2556 = vand.u32 %v435, 4294901760
    %v2557 = vsub.f32 %v435, %v2556
    %2558 = vmatprep.subr.mxu0 %v2557
    %v2559 = vand.u32 %v434, 4294901760
    %v2560 = vsub.f32 %v434, %v2559
    %2561 = vmatpush2.msra.mxu0 %v2560
    %v2562 = vand.u32 %v427, 4294901760
    %v2563 = vsub.f32 %v427, %v2562
    %2564 = vmatprep.subr.mxu0 %v2563
    %v2565 = vand.u32 %v426, 4294901760
    %v2566 = vsub.f32 %v426, %v2565
    %2567 = vmatpush2.msra.mxu0 %v2566
    %v2568 = vand.u32 %v41, 4294901760
    %v2569 = vsub.f32 %v41, %v2568
    %2570 = vmatprep.mubr.f32.mxu0 %v2569
    %v2571 = vand.u32 %v40, 4294901760
    %v2572 = vsub.f32 %v40, %v2571
    %2573 = vmatmul.mubr.f32.gmra.mxu0 %v2572
    %v2574 = vpop.f32.mrf.mxu0
    %v2575 = vadd.f32 %v2372, %v2574
    %v2576 = vpop.f32.mrf.mxu0
    %v2577 = vadd.f32 %v2374, %v2576
    %2578 = vdwg.mxu0
    %v2579 = vand.u32 %v419, 4294901760
    %2580 = vmatprep.subr.mxu0 %v2579
    %v2581 = vand.u32 %v418, 4294901760
    %2582 = vmatpush1.msra.mxu0 %v2581
    %v2583 = vand.u32 %v411, 4294901760
    %2584 = vmatprep.subr.mxu0 %v2583
    %v2585 = vand.u32 %v410, 4294901760
    %2586 = vmatpush1.msra.mxu0 %v2585
    %v2587 = vand.u32 %v403, 4294901760
    %2588 = vmatprep.subr.mxu0 %v2587
    %v2589 = vand.u32 %v402, 4294901760
    %2590 = vmatpush1.msra.mxu0 %v2589
    %v2591 = vand.u32 %v395, 4294901760
    %2592 = vmatprep.subr.mxu0 %v2591
    %v2593 = vand.u32 %v394, 4294901760
    %2594 = vmatpush1.msra.mxu0 %v2593
    %v2595 = vand.u32 %v387, 4294901760
    %2596 = vmatprep.subr.mxu0 %v2595
    %v2597 = vand.u32 %v386, 4294901760
    %2598 = vmatpush1.msra.mxu0 %v2597
    %v2599 = vand.u32 %v379, 4294901760
    %2600 = vmatprep.subr.mxu0 %v2599
    %v2601 = vand.u32 %v378, 4294901760
    %2602 = vmatpush1.msra.mxu0 %v2601
    %v2603 = vand.u32 %v371, 4294901760
    %2604 = vmatprep.subr.mxu0 %v2603
    %v2605 = vand.u32 %v370, 4294901760
    %2606 = vmatpush1.msra.mxu0 %v2605
    %v2607 = vand.u32 %v363, 4294901760
    %2608 = vmatprep.subr.mxu0 %v2607
    %v2609 = vand.u32 %v362, 4294901760
    %2610 = vmatpush1.msra.mxu0 %v2609
    %v2611 = vand.u32 %v355, 4294901760
    %2612 = vmatprep.subr.mxu0 %v2611
    %v2613 = vand.u32 %v354, 4294901760
    %2614 = vmatpush1.msra.mxu0 %v2613
    %v2615 = vand.u32 %v347, 4294901760
    %2616 = vmatprep.subr.mxu0 %v2615
    %v2617 = vand.u32 %v346, 4294901760
    %2618 = vmatpush1.msra.mxu0 %v2617
    %v2619 = vand.u32 %v339, 4294901760
    %2620 = vmatprep.subr.mxu0 %v2619
    %v2621 = vand.u32 %v338, 4294901760
    %2622 = vmatpush1.msra.mxu0 %v2621
    %v2623 = vand.u32 %v331, 4294901760
    %2624 = vmatprep.subr.mxu0 %v2623
    %v2625 = vand.u32 %v330, 4294901760
    %2626 = vmatpush1.msra.mxu0 %v2625
    %v2627 = vand.u32 %v323, 4294901760
    %2628 = vmatprep.subr.mxu0 %v2627
    %v2629 = vand.u32 %v322, 4294901760
    %2630 = vmatpush1.msra.mxu0 %v2629
    %v2631 = vand.u32 %v315, 4294901760
    %2632 = vmatprep.subr.mxu0 %v2631
    %v2633 = vand.u32 %v314, 4294901760
    %2634 = vmatpush1.msra.mxu0 %v2633
    %v2635 = vand.u32 %v307, 4294901760
    %2636 = vmatprep.subr.mxu0 %v2635
    %v2637 = vand.u32 %v306, 4294901760
    %2638 = vmatpush1.msra.mxu0 %v2637
    %v2639 = vand.u32 %v299, 4294901760
    %2640 = vmatprep.subr.mxu0 %v2639
    %v2641 = vand.u32 %v298, 4294901760
    %2642 = vmatpush1.msra.mxu0 %v2641
    %v2643 = vand.u32 %v547, 4294901760
    %2644 = vmatprep.subr.mxu0 %v2643
    %v2645 = vand.u32 %v546, 4294901760
    %2646 = vmatpush2.msra.mxu0 %v2645
    %v2647 = vand.u32 %v539, 4294901760
    %2648 = vmatprep.subr.mxu0 %v2647
    %v2649 = vand.u32 %v538, 4294901760
    %2650 = vmatpush2.msra.mxu0 %v2649
    %v2651 = vand.u32 %v531, 4294901760
    %2652 = vmatprep.subr.mxu0 %v2651
    %v2653 = vand.u32 %v530, 4294901760
    %2654 = vmatpush2.msra.mxu0 %v2653
    %v2655 = vand.u32 %v523, 4294901760
    %2656 = vmatprep.subr.mxu0 %v2655
    %v2657 = vand.u32 %v522, 4294901760
    %2658 = vmatpush2.msra.mxu0 %v2657
    %v2659 = vand.u32 %v515, 4294901760
    %2660 = vmatprep.subr.mxu0 %v2659
    %v2661 = vand.u32 %v514, 4294901760
    %2662 = vmatpush2.msra.mxu0 %v2661
    %v2663 = vand.u32 %v507, 4294901760
    %2664 = vmatprep.subr.mxu0 %v2663
    %v2665 = vand.u32 %v506, 4294901760
    %2666 = vmatpush2.msra.mxu0 %v2665
    %v2667 = vand.u32 %v499, 4294901760
    %2668 = vmatprep.subr.mxu0 %v2667
    %v2669 = vand.u32 %v498, 4294901760
    %2670 = vmatpush2.msra.mxu0 %v2669
    %v2671 = vand.u32 %v491, 4294901760
    %2672 = vmatprep.subr.mxu0 %v2671
    %v2673 = vand.u32 %v490, 4294901760
    %2674 = vmatpush2.msra.mxu0 %v2673
    %v2675 = vand.u32 %v483, 4294901760
    %2676 = vmatprep.subr.mxu0 %v2675
    %v2677 = vand.u32 %v482, 4294901760
    %2678 = vmatpush2.msra.mxu0 %v2677
    %v2679 = vand.u32 %v475, 4294901760
    %2680 = vmatprep.subr.mxu0 %v2679
    %v2681 = vand.u32 %v474, 4294901760
    %2682 = vmatpush2.msra.mxu0 %v2681
    %v2683 = vand.u32 %v467, 4294901760
    %2684 = vmatprep.subr.mxu0 %v2683
    %v2685 = vand.u32 %v466, 4294901760
    %2686 = vmatpush2.msra.mxu0 %v2685
    %v2687 = vand.u32 %v459, 4294901760
    %2688 = vmatprep.subr.mxu0 %v2687
    %v2689 = vand.u32 %v458, 4294901760
    %2690 = vmatpush2.msra.mxu0 %v2689
    %v2691 = vand.u32 %v451, 4294901760
    %2692 = vmatprep.subr.mxu0 %v2691
    %v2693 = vand.u32 %v450, 4294901760
    %2694 = vmatpush2.msra.mxu0 %v2693
    %v2695 = vand.u32 %v443, 4294901760
    %2696 = vmatprep.subr.mxu0 %v2695
    %v2697 = vand.u32 %v442, 4294901760
    %2698 = vmatpush2.msra.mxu0 %v2697
    %v2699 = vand.u32 %v435, 4294901760
    %2700 = vmatprep.subr.mxu0 %v2699
    %v2701 = vand.u32 %v434, 4294901760
    %2702 = vmatpush2.msra.mxu0 %v2701
    %v2703 = vand.u32 %v427, 4294901760
    %2704 = vmatprep.subr.mxu0 %v2703
    %v2705 = vand.u32 %v426, 4294901760
    %2706 = vmatpush2.msra.mxu0 %v2705
    %v2707 = vand.u32 %v41, 4294901760
    %v2708 = vsub.f32 %v41, %v2707
    %v2709 = vand.u32 %v2708, 4294901760
    %2710 = vmatprep.mubr.f32.mxu0 %v2709
    %v2711 = vand.u32 %v40, 4294901760
    %v2712 = vsub.f32 %v40, %v2711
    %v2713 = vand.u32 %v2712, 4294901760
    %2714 = vmatmul.mubr.f32.gmra.mxu0 %v2713
    %v2715 = vpop.f32.mrf.mxu0
    %v2716 = vadd.f32 %v2575, %v2715
    %v2717 = vpop.f32.mrf.mxu0
    %v2718 = vadd.f32 %v2577, %v2717
    %2719 = vdwg.mxu0
    %v2720 = vand.u32 %v419, 4294901760
    %v2721 = vsub.f32 %v419, %v2720
    %v2722 = vand.u32 %v2721, 4294901760
    %2723 = vmatprep.subr.mxu0 %v2722
    %v2724 = vand.u32 %v418, 4294901760
    %v2725 = vsub.f32 %v418, %v2724
    %v2726 = vand.u32 %v2725, 4294901760
    %2727 = vmatpush1.msra.mxu0 %v2726
    %v2728 = vand.u32 %v411, 4294901760
    %v2729 = vsub.f32 %v411, %v2728
    %v2730 = vand.u32 %v2729, 4294901760
    %2731 = vmatprep.subr.mxu0 %v2730
    %v2732 = vand.u32 %v410, 4294901760
    %v2733 = vsub.f32 %v410, %v2732
    %v2734 = vand.u32 %v2733, 4294901760
    %2735 = vmatpush1.msra.mxu0 %v2734
    %v2736 = vand.u32 %v403, 4294901760
    %v2737 = vsub.f32 %v403, %v2736
    %v2738 = vand.u32 %v2737, 4294901760
    %2739 = vmatprep.subr.mxu0 %v2738
    %v2740 = vand.u32 %v402, 4294901760
    %v2741 = vsub.f32 %v402, %v2740
    %v2742 = vand.u32 %v2741, 4294901760
    %2743 = vmatpush1.msra.mxu0 %v2742
    %v2744 = vand.u32 %v395, 4294901760
    %v2745 = vsub.f32 %v395, %v2744
    %v2746 = vand.u32 %v2745, 4294901760
    %2747 = vmatprep.subr.mxu0 %v2746
    %v2748 = vand.u32 %v394, 4294901760
    %v2749 = vsub.f32 %v394, %v2748
    %v2750 = vand.u32 %v2749, 4294901760
    %2751 = vmatpush1.msra.mxu0 %v2750
    %v2752 = vand.u32 %v387, 4294901760
    %v2753 = vsub.f32 %v387, %v2752
    %v2754 = vand.u32 %v2753, 4294901760
    %2755 = vmatprep.subr.mxu0 %v2754
    %v2756 = vand.u32 %v386, 4294901760
    %v2757 = vsub.f32 %v386, %v2756
    %v2758 = vand.u32 %v2757, 4294901760
    %2759 = vmatpush1.msra.mxu0 %v2758
    %v2760 = vand.u32 %v379, 4294901760
    %v2761 = vsub.f32 %v379, %v2760
    %v2762 = vand.u32 %v2761, 4294901760
    %2763 = vmatprep.subr.mxu0 %v2762
    %v2764 = vand.u32 %v378, 4294901760
    %v2765 = vsub.f32 %v378, %v2764
    %v2766 = vand.u32 %v2765, 4294901760
    %2767 = vmatpush1.msra.mxu0 %v2766
    %v2768 = vand.u32 %v371, 4294901760
    %v2769 = vsub.f32 %v371, %v2768
    %v2770 = vand.u32 %v2769, 4294901760
    %2771 = vmatprep.subr.mxu0 %v2770
    %v2772 = vand.u32 %v370, 4294901760
    %v2773 = vsub.f32 %v370, %v2772
    %v2774 = vand.u32 %v2773, 4294901760
    %2775 = vmatpush1.msra.mxu0 %v2774
    %v2776 = vand.u32 %v363, 4294901760
    %v2777 = vsub.f32 %v363, %v2776
    %v2778 = vand.u32 %v2777, 4294901760
    %2779 = vmatprep.subr.mxu0 %v2778
    %v2780 = vand.u32 %v362, 4294901760
    %v2781 = vsub.f32 %v362, %v2780
    %v2782 = vand.u32 %v2781, 4294901760
    %2783 = vmatpush1.msra.mxu0 %v2782
    %v2784 = vand.u32 %v355, 4294901760
    %v2785 = vsub.f32 %v355, %v2784
    %v2786 = vand.u32 %v2785, 4294901760
    %2787 = vmatprep.subr.mxu0 %v2786
    %v2788 = vand.u32 %v354, 4294901760
    %v2789 = vsub.f32 %v354, %v2788
    %v2790 = vand.u32 %v2789, 4294901760
    %2791 = vmatpush1.msra.mxu0 %v2790
    %v2792 = vand.u32 %v347, 4294901760
    %v2793 = vsub.f32 %v347, %v2792
    %v2794 = vand.u32 %v2793, 4294901760
    %2795 = vmatprep.subr.mxu0 %v2794
    %v2796 = vand.u32 %v346, 4294901760
    %v2797 = vsub.f32 %v346, %v2796
    %v2798 = vand.u32 %v2797, 4294901760
    %2799 = vmatpush1.msra.mxu0 %v2798
    %v2800 = vand.u32 %v339, 4294901760
    %v2801 = vsub.f32 %v339, %v2800
    %v2802 = vand.u32 %v2801, 4294901760
    %2803 = vmatprep.subr.mxu0 %v2802
    %v2804 = vand.u32 %v338, 4294901760
    %v2805 = vsub.f32 %v338, %v2804
    %v2806 = vand.u32 %v2805, 4294901760
    %2807 = vmatpush1.msra.mxu0 %v2806
    %v2808 = vand.u32 %v331, 4294901760
    %v2809 = vsub.f32 %v331, %v2808
    %v2810 = vand.u32 %v2809, 4294901760
    %2811 = vmatprep.subr.mxu0 %v2810
    %v2812 = vand.u32 %v330, 4294901760
    %v2813 = vsub.f32 %v330, %v2812
    %v2814 = vand.u32 %v2813, 4294901760
    %2815 = vmatpush1.msra.mxu0 %v2814
    %v2816 = vand.u32 %v323, 4294901760
    %v2817 = vsub.f32 %v323, %v2816
    %v2818 = vand.u32 %v2817, 4294901760
    %2819 = vmatprep.subr.mxu0 %v2818
    %v2820 = vand.u32 %v322, 4294901760
    %v2821 = vsub.f32 %v322, %v2820
    %v2822 = vand.u32 %v2821, 4294901760
    %2823 = vmatpush1.msra.mxu0 %v2822
    %v2824 = vand.u32 %v315, 4294901760
    %v2825 = vsub.f32 %v315, %v2824
    %v2826 = vand.u32 %v2825, 4294901760
    %2827 = vmatprep.subr.mxu0 %v2826
    %v2828 = vand.u32 %v314, 4294901760
    %v2829 = vsub.f32 %v314, %v2828
    %v2830 = vand.u32 %v2829, 4294901760
    %2831 = vmatpush1.msra.mxu0 %v2830
    %v2832 = vand.u32 %v307, 4294901760
    %v2833 = vsub.f32 %v307, %v2832
    %v2834 = vand.u32 %v2833, 4294901760
    %2835 = vmatprep.subr.mxu0 %v2834
    %v2836 = vand.u32 %v306, 4294901760
    %v2837 = vsub.f32 %v306, %v2836
    %v2838 = vand.u32 %v2837, 4294901760
    %2839 = vmatpush1.msra.mxu0 %v2838
    %v2840 = vand.u32 %v299, 4294901760
    %v2841 = vsub.f32 %v299, %v2840
    %v2842 = vand.u32 %v2841, 4294901760
    %2843 = vmatprep.subr.mxu0 %v2842
    %v2844 = vand.u32 %v298, 4294901760
    %v2845 = vsub.f32 %v298, %v2844
    %v2846 = vand.u32 %v2845, 4294901760
    %2847 = vmatpush1.msra.mxu0 %v2846
    %v2848 = vand.u32 %v547, 4294901760
    %v2849 = vsub.f32 %v547, %v2848
    %v2850 = vand.u32 %v2849, 4294901760
    %2851 = vmatprep.subr.mxu0 %v2850
    %v2852 = vand.u32 %v546, 4294901760
    %v2853 = vsub.f32 %v546, %v2852
    %v2854 = vand.u32 %v2853, 4294901760
    %2855 = vmatpush2.msra.mxu0 %v2854
    %v2856 = vand.u32 %v539, 4294901760
    %v2857 = vsub.f32 %v539, %v2856
    %v2858 = vand.u32 %v2857, 4294901760
    %2859 = vmatprep.subr.mxu0 %v2858
    %v2860 = vand.u32 %v538, 4294901760
    %v2861 = vsub.f32 %v538, %v2860
    %v2862 = vand.u32 %v2861, 4294901760
    %2863 = vmatpush2.msra.mxu0 %v2862
    %v2864 = vand.u32 %v531, 4294901760
    %v2865 = vsub.f32 %v531, %v2864
    %v2866 = vand.u32 %v2865, 4294901760
    %2867 = vmatprep.subr.mxu0 %v2866
    %v2868 = vand.u32 %v530, 4294901760
    %v2869 = vsub.f32 %v530, %v2868
    %v2870 = vand.u32 %v2869, 4294901760
    %2871 = vmatpush2.msra.mxu0 %v2870
    %v2872 = vand.u32 %v523, 4294901760
    %v2873 = vsub.f32 %v523, %v2872
    %v2874 = vand.u32 %v2873, 4294901760
    %2875 = vmatprep.subr.mxu0 %v2874
    %v2876 = vand.u32 %v522, 4294901760
    %v2877 = vsub.f32 %v522, %v2876
    %v2878 = vand.u32 %v2877, 4294901760
    %2879 = vmatpush2.msra.mxu0 %v2878
    %v2880 = vand.u32 %v515, 4294901760
    %v2881 = vsub.f32 %v515, %v2880
    %v2882 = vand.u32 %v2881, 4294901760
    %2883 = vmatprep.subr.mxu0 %v2882
    %v2884 = vand.u32 %v514, 4294901760
    %v2885 = vsub.f32 %v514, %v2884
    %v2886 = vand.u32 %v2885, 4294901760
    %2887 = vmatpush2.msra.mxu0 %v2886
    %v2888 = vand.u32 %v507, 4294901760
    %v2889 = vsub.f32 %v507, %v2888
    %v2890 = vand.u32 %v2889, 4294901760
    %2891 = vmatprep.subr.mxu0 %v2890
    %v2892 = vand.u32 %v506, 4294901760
    %v2893 = vsub.f32 %v506, %v2892
    %v2894 = vand.u32 %v2893, 4294901760
    %2895 = vmatpush2.msra.mxu0 %v2894
    %v2896 = vand.u32 %v499, 4294901760
    %v2897 = vsub.f32 %v499, %v2896
    %v2898 = vand.u32 %v2897, 4294901760
    %2899 = vmatprep.subr.mxu0 %v2898
    %v2900 = vand.u32 %v498, 4294901760
    %v2901 = vsub.f32 %v498, %v2900
    %v2902 = vand.u32 %v2901, 4294901760
    %2903 = vmatpush2.msra.mxu0 %v2902
    %v2904 = vand.u32 %v491, 4294901760
    %v2905 = vsub.f32 %v491, %v2904
    %v2906 = vand.u32 %v2905, 4294901760
    %2907 = vmatprep.subr.mxu0 %v2906
    %v2908 = vand.u32 %v490, 4294901760
    %v2909 = vsub.f32 %v490, %v2908
    %v2910 = vand.u32 %v2909, 4294901760
    %2911 = vmatpush2.msra.mxu0 %v2910
    %v2912 = vand.u32 %v483, 4294901760
    %v2913 = vsub.f32 %v483, %v2912
    %v2914 = vand.u32 %v2913, 4294901760
    %2915 = vmatprep.subr.mxu0 %v2914
    %v2916 = vand.u32 %v482, 4294901760
    %v2917 = vsub.f32 %v482, %v2916
    %v2918 = vand.u32 %v2917, 4294901760
    %2919 = vmatpush2.msra.mxu0 %v2918
    %v2920 = vand.u32 %v475, 4294901760
    %v2921 = vsub.f32 %v475, %v2920
    %v2922 = vand.u32 %v2921, 4294901760
    %2923 = vmatprep.subr.mxu0 %v2922
    %v2924 = vand.u32 %v474, 4294901760
    %v2925 = vsub.f32 %v474, %v2924
    %v2926 = vand.u32 %v2925, 4294901760
    %2927 = vmatpush2.msra.mxu0 %v2926
    %v2928 = vand.u32 %v467, 4294901760
    %v2929 = vsub.f32 %v467, %v2928
    %v2930 = vand.u32 %v2929, 4294901760
    %2931 = vmatprep.subr.mxu0 %v2930
    %v2932 = vand.u32 %v466, 4294901760
    %v2933 = vsub.f32 %v466, %v2932
    %v2934 = vand.u32 %v2933, 4294901760
    %2935 = vmatpush2.msra.mxu0 %v2934
    %v2936 = vand.u32 %v459, 4294901760
    %v2937 = vsub.f32 %v459, %v2936
    %v2938 = vand.u32 %v2937, 4294901760
    %2939 = vmatprep.subr.mxu0 %v2938
    %v2940 = vand.u32 %v458, 4294901760
    %v2941 = vsub.f32 %v458, %v2940
    %v2942 = vand.u32 %v2941, 4294901760
    %2943 = vmatpush2.msra.mxu0 %v2942
    %v2944 = vand.u32 %v451, 4294901760
    %v2945 = vsub.f32 %v451, %v2944
    %v2946 = vand.u32 %v2945, 4294901760
    %2947 = vmatprep.subr.mxu0 %v2946
    %v2948 = vand.u32 %v450, 4294901760
    %v2949 = vsub.f32 %v450, %v2948
    %v2950 = vand.u32 %v2949, 4294901760
    %2951 = vmatpush2.msra.mxu0 %v2950
    %v2952 = vand.u32 %v443, 4294901760
    %v2953 = vsub.f32 %v443, %v2952
    %v2954 = vand.u32 %v2953, 4294901760
    %2955 = vmatprep.subr.mxu0 %v2954
    %v2956 = vand.u32 %v442, 4294901760
    %v2957 = vsub.f32 %v442, %v2956
    %v2958 = vand.u32 %v2957, 4294901760
    %2959 = vmatpush2.msra.mxu0 %v2958
    %v2960 = vand.u32 %v435, 4294901760
    %v2961 = vsub.f32 %v435, %v2960
    %v2962 = vand.u32 %v2961, 4294901760
    %2963 = vmatprep.subr.mxu0 %v2962
    %v2964 = vand.u32 %v434, 4294901760
    %v2965 = vsub.f32 %v434, %v2964
    %v2966 = vand.u32 %v2965, 4294901760
    %2967 = vmatpush2.msra.mxu0 %v2966
    %v2968 = vand.u32 %v427, 4294901760
    %v2969 = vsub.f32 %v427, %v2968
    %v2970 = vand.u32 %v2969, 4294901760
    %2971 = vmatprep.subr.mxu0 %v2970
    %v2972 = vand.u32 %v426, 4294901760
    %v2973 = vsub.f32 %v426, %v2972
    %v2974 = vand.u32 %v2973, 4294901760
    %2975 = vmatpush2.msra.mxu0 %v2974
    %v2976 = vand.u32 %v41, 4294901760
    %2977 = vmatprep.mubr.f32.mxu0 %v2976
    %v2978 = vand.u32 %v40, 4294901760
    %2979 = vmatmul.mubr.f32.gmra.mxu0 %v2978
    %v2980 = vpop.f32.mrf.mxu0
    %v2981 = vadd.f32 %v2716, %v2980
    %v2982 = vpop.f32.mrf.mxu0
    %v2983 = vadd.f32 %v2718, %v2982
    %2984 = vdwg.mxu0
    %v2985 = vand.u32 %v419, 4294901760
    %2986 = vmatprep.subr.mxu0 %v2985
    %v2987 = vand.u32 %v418, 4294901760
    %2988 = vmatpush1.msra.mxu0 %v2987
    %v2989 = vand.u32 %v411, 4294901760
    %2990 = vmatprep.subr.mxu0 %v2989
    %v2991 = vand.u32 %v410, 4294901760
    %2992 = vmatpush1.msra.mxu0 %v2991
    %v2993 = vand.u32 %v403, 4294901760
    %2994 = vmatprep.subr.mxu0 %v2993
    %v2995 = vand.u32 %v402, 4294901760
    %2996 = vmatpush1.msra.mxu0 %v2995
    %v2997 = vand.u32 %v395, 4294901760
    %2998 = vmatprep.subr.mxu0 %v2997
    %v2999 = vand.u32 %v394, 4294901760
    %3000 = vmatpush1.msra.mxu0 %v2999
    %v3001 = vand.u32 %v387, 4294901760
    %3002 = vmatprep.subr.mxu0 %v3001
    %v3003 = vand.u32 %v386, 4294901760
    %3004 = vmatpush1.msra.mxu0 %v3003
    %v3005 = vand.u32 %v379, 4294901760
    %3006 = vmatprep.subr.mxu0 %v3005
    %v3007 = vand.u32 %v378, 4294901760
    %3008 = vmatpush1.msra.mxu0 %v3007
    %v3009 = vand.u32 %v371, 4294901760
    %3010 = vmatprep.subr.mxu0 %v3009
    %v3011 = vand.u32 %v370, 4294901760
    %3012 = vmatpush1.msra.mxu0 %v3011
    %v3013 = vand.u32 %v363, 4294901760
    %3014 = vmatprep.subr.mxu0 %v3013
    %v3015 = vand.u32 %v362, 4294901760
    %3016 = vmatpush1.msra.mxu0 %v3015
    %v3017 = vand.u32 %v355, 4294901760
    %3018 = vmatprep.subr.mxu0 %v3017
    %v3019 = vand.u32 %v354, 4294901760
    %3020 = vmatpush1.msra.mxu0 %v3019
    %v3021 = vand.u32 %v347, 4294901760
    %3022 = vmatprep.subr.mxu0 %v3021
    %v3023 = vand.u32 %v346, 4294901760
    %3024 = vmatpush1.msra.mxu0 %v3023
    %v3025 = vand.u32 %v339, 4294901760
    %3026 = vmatprep.subr.mxu0 %v3025
    %v3027 = vand.u32 %v338, 4294901760
    %3028 = vmatpush1.msra.mxu0 %v3027
    %v3029 = vand.u32 %v331, 4294901760
    %3030 = vmatprep.subr.mxu0 %v3029
    %v3031 = vand.u32 %v330, 4294901760
    %3032 = vmatpush1.msra.mxu0 %v3031
    %v3033 = vand.u32 %v323, 4294901760
    %3034 = vmatprep.subr.mxu0 %v3033
    %v3035 = vand.u32 %v322, 4294901760
    %3036 = vmatpush1.msra.mxu0 %v3035
    %v3037 = vand.u32 %v315, 4294901760
    %3038 = vmatprep.subr.mxu0 %v3037
    %v3039 = vand.u32 %v314, 4294901760
    %3040 = vmatpush1.msra.mxu0 %v3039
    %v3041 = vand.u32 %v307, 4294901760
    %3042 = vmatprep.subr.mxu0 %v3041
    %v3043 = vand.u32 %v306, 4294901760
    %3044 = vmatpush1.msra.mxu0 %v3043
    %v3045 = vand.u32 %v299, 4294901760
    %3046 = vmatprep.subr.mxu0 %v3045
    %v3047 = vand.u32 %v298, 4294901760
    %3048 = vmatpush1.msra.mxu0 %v3047
    %v3049 = vand.u32 %v547, 4294901760
    %3050 = vmatprep.subr.mxu0 %v3049
    %v3051 = vand.u32 %v546, 4294901760
    %3052 = vmatpush2.msra.mxu0 %v3051
    %v3053 = vand.u32 %v539, 4294901760
    %3054 = vmatprep.subr.mxu0 %v3053
    %v3055 = vand.u32 %v538, 4294901760
    %3056 = vmatpush2.msra.mxu0 %v3055
    %v3057 = vand.u32 %v531, 4294901760
    %3058 = vmatprep.subr.mxu0 %v3057
    %v3059 = vand.u32 %v530, 4294901760
    %3060 = vmatpush2.msra.mxu0 %v3059
    %v3061 = vand.u32 %v523, 4294901760
    %3062 = vmatprep.subr.mxu0 %v3061
    %v3063 = vand.u32 %v522, 4294901760
    %3064 = vmatpush2.msra.mxu0 %v3063
    %v3065 = vand.u32 %v515, 4294901760
    %3066 = vmatprep.subr.mxu0 %v3065
    %v3067 = vand.u32 %v514, 4294901760
    %3068 = vmatpush2.msra.mxu0 %v3067
    %v3069 = vand.u32 %v507, 4294901760
    %3070 = vmatprep.subr.mxu0 %v3069
    %v3071 = vand.u32 %v506, 4294901760
    %3072 = vmatpush2.msra.mxu0 %v3071
    %v3073 = vand.u32 %v499, 4294901760
    %3074 = vmatprep.subr.mxu0 %v3073
    %v3075 = vand.u32 %v498, 4294901760
    %3076 = vmatpush2.msra.mxu0 %v3075
    %v3077 = vand.u32 %v491, 4294901760
    %3078 = vmatprep.subr.mxu0 %v3077
    %v3079 = vand.u32 %v490, 4294901760
    %3080 = vmatpush2.msra.mxu0 %v3079
    %v3081 = vand.u32 %v483, 4294901760
    %3082 = vmatprep.subr.mxu0 %v3081
    %v3083 = vand.u32 %v482, 4294901760
    %3084 = vmatpush2.msra.mxu0 %v3083
    %v3085 = vand.u32 %v475, 4294901760
    %3086 = vmatprep.subr.mxu0 %v3085
    %v3087 = vand.u32 %v474, 4294901760
    %3088 = vmatpush2.msra.mxu0 %v3087
    %v3089 = vand.u32 %v467, 4294901760
    %3090 = vmatprep.subr.mxu0 %v3089
    %v3091 = vand.u32 %v466, 4294901760
    %3092 = vmatpush2.msra.mxu0 %v3091
    %v3093 = vand.u32 %v459, 4294901760
    %3094 = vmatprep.subr.mxu0 %v3093
    %v3095 = vand.u32 %v458, 4294901760
    %3096 = vmatpush2.msra.mxu0 %v3095
    %v3097 = vand.u32 %v451, 4294901760
    %3098 = vmatprep.subr.mxu0 %v3097
    %v3099 = vand.u32 %v450, 4294901760
    %3100 = vmatpush2.msra.mxu0 %v3099
    %v3101 = vand.u32 %v443, 4294901760
    %3102 = vmatprep.subr.mxu0 %v3101
    %v3103 = vand.u32 %v442, 4294901760
    %3104 = vmatpush2.msra.mxu0 %v3103
    %v3105 = vand.u32 %v435, 4294901760
    %3106 = vmatprep.subr.mxu0 %v3105
    %v3107 = vand.u32 %v434, 4294901760
    %3108 = vmatpush2.msra.mxu0 %v3107
    %v3109 = vand.u32 %v427, 4294901760
    %3110 = vmatprep.subr.mxu0 %v3109
    %v3111 = vand.u32 %v426, 4294901760
    %3112 = vmatpush2.msra.mxu0 %v3111
    %v3113 = vand.u32 %v41, 4294901760
    %3114 = vmatprep.mubr.f32.mxu0 %v3113
    %v3115 = vand.u32 %v40, 4294901760
    %3116 = vmatmul.mubr.f32.gmra.mxu0 %v3115
    %v3117 = vpop.f32.mrf.mxu0
    %v3118 = vadd.f32 %v2981, %v3117
    %v3119 = vpop.f32.mrf.mxu0
    %v3120 = vadd.f32 %v2983, %v3119
    %3121 = vdwg.mxu0
    %v3122 = vand.u32 %v165, 4294901760
    %3123 = vmatprep.subr.mxu0 %v3122
    %v3124 = vand.u32 %v164, 4294901760
    %3125 = vmatpush1.msra.mxu0 %v3124
    %v3126 = vand.u32 %v157, 4294901760
    %3127 = vmatprep.subr.mxu0 %v3126
    %v3128 = vand.u32 %v156, 4294901760
    %3129 = vmatpush1.msra.mxu0 %v3128
    %v3130 = vand.u32 %v149, 4294901760
    %3131 = vmatprep.subr.mxu0 %v3130
    %v3132 = vand.u32 %v148, 4294901760
    %3133 = vmatpush1.msra.mxu0 %v3132
    %v3134 = vand.u32 %v141, 4294901760
    %3135 = vmatprep.subr.mxu0 %v3134
    %v3136 = vand.u32 %v140, 4294901760
    %3137 = vmatpush1.msra.mxu0 %v3136
    %v3138 = vand.u32 %v133, 4294901760
    %3139 = vmatprep.subr.mxu0 %v3138
    %v3140 = vand.u32 %v132, 4294901760
    %3141 = vmatpush1.msra.mxu0 %v3140
    %v3142 = vand.u32 %v125, 4294901760
    %3143 = vmatprep.subr.mxu0 %v3142
    %v3144 = vand.u32 %v124, 4294901760
    %3145 = vmatpush1.msra.mxu0 %v3144
    %v3146 = vand.u32 %v117, 4294901760
    %3147 = vmatprep.subr.mxu0 %v3146
    %v3148 = vand.u32 %v116, 4294901760
    %3149 = vmatpush1.msra.mxu0 %v3148
    %v3150 = vand.u32 %v109, 4294901760
    %3151 = vmatprep.subr.mxu0 %v3150
    %v3152 = vand.u32 %v108, 4294901760
    %3153 = vmatpush1.msra.mxu0 %v3152
    %v3154 = vand.u32 %v101, 4294901760
    %3155 = vmatprep.subr.mxu0 %v3154
    %v3156 = vand.u32 %v100, 4294901760
    %3157 = vmatpush1.msra.mxu0 %v3156
    %v3158 = vand.u32 %v93, 4294901760
    %3159 = vmatprep.subr.mxu0 %v3158
    %v3160 = vand.u32 %v92, 4294901760
    %3161 = vmatpush1.msra.mxu0 %v3160
    %v3162 = vand.u32 %v85, 4294901760
    %3163 = vmatprep.subr.mxu0 %v3162
    %v3164 = vand.u32 %v84, 4294901760
    %3165 = vmatpush1.msra.mxu0 %v3164
    %v3166 = vand.u32 %v77, 4294901760
    %3167 = vmatprep.subr.mxu0 %v3166
    %v3168 = vand.u32 %v76, 4294901760
    %3169 = vmatpush1.msra.mxu0 %v3168
    %v3170 = vand.u32 %v69, 4294901760
    %3171 = vmatprep.subr.mxu0 %v3170
    %v3172 = vand.u32 %v68, 4294901760
    %3173 = vmatpush1.msra.mxu0 %v3172
    %v3174 = vand.u32 %v61, 4294901760
    %3175 = vmatprep.subr.mxu0 %v3174
    %v3176 = vand.u32 %v60, 4294901760
    %3177 = vmatpush1.msra.mxu0 %v3176
    %v3178 = vand.u32 %v53, 4294901760
    %3179 = vmatprep.subr.mxu0 %v3178
    %v3180 = vand.u32 %v52, 4294901760
    %3181 = vmatpush1.msra.mxu0 %v3180
    %v3182 = vand.u32 %v45, 4294901760
    %3183 = vmatprep.subr.mxu0 %v3182
    %v3184 = vand.u32 %v44, 4294901760
    %3185 = vmatpush1.msra.mxu0 %v3184
    %v3186 = vand.u32 %v293, 4294901760
    %3187 = vmatprep.subr.mxu0 %v3186
    %v3188 = vand.u32 %v292, 4294901760
    %3189 = vmatpush2.msra.mxu0 %v3188
    %v3190 = vand.u32 %v285, 4294901760
    %3191 = vmatprep.subr.mxu0 %v3190
    %v3192 = vand.u32 %v284, 4294901760
    %3193 = vmatpush2.msra.mxu0 %v3192
    %v3194 = vand.u32 %v277, 4294901760
    %3195 = vmatprep.subr.mxu0 %v3194
    %v3196 = vand.u32 %v276, 4294901760
    %3197 = vmatpush2.msra.mxu0 %v3196
    %v3198 = vand.u32 %v269, 4294901760
    %3199 = vmatprep.subr.mxu0 %v3198
    %v3200 = vand.u32 %v268, 4294901760
    %3201 = vmatpush2.msra.mxu0 %v3200
    %v3202 = vand.u32 %v261, 4294901760
    %3203 = vmatprep.subr.mxu0 %v3202
    %v3204 = vand.u32 %v260, 4294901760
    %3205 = vmatpush2.msra.mxu0 %v3204
    %v3206 = vand.u32 %v253, 4294901760
    %3207 = vmatprep.subr.mxu0 %v3206
    %v3208 = vand.u32 %v252, 4294901760
    %3209 = vmatpush2.msra.mxu0 %v3208
    %v3210 = vand.u32 %v245, 4294901760
    %3211 = vmatprep.subr.mxu0 %v3210
    %v3212 = vand.u32 %v244, 4294901760
    %3213 = vmatpush2.msra.mxu0 %v3212
    %v3214 = vand.u32 %v237, 4294901760
    %3215 = vmatprep.subr.mxu0 %v3214
    %v3216 = vand.u32 %v236, 4294901760
    %3217 = vmatpush2.msra.mxu0 %v3216
    %v3218 = vand.u32 %v229, 4294901760
    %3219 = vmatprep.subr.mxu0 %v3218
    %v3220 = vand.u32 %v228, 4294901760
    %3221 = vmatpush2.msra.mxu0 %v3220
    %v3222 = vand.u32 %v221, 4294901760
    %3223 = vmatprep.subr.mxu0 %v3222
    %v3224 = vand.u32 %v220, 4294901760
    %3225 = vmatpush2.msra.mxu0 %v3224
    %v3226 = vand.u32 %v213, 4294901760
    %3227 = vmatprep.subr.mxu0 %v3226
    %v3228 = vand.u32 %v212, 4294901760
    %3229 = vmatpush2.msra.mxu0 %v3228
    %v3230 = vand.u32 %v205, 4294901760
    %3231 = vmatprep.subr.mxu0 %v3230
    %v3232 = vand.u32 %v204, 4294901760
    %3233 = vmatpush2.msra.mxu0 %v3232
    %v3234 = vand.u32 %v197, 4294901760
    %3235 = vmatprep.subr.mxu0 %v3234
    %v3236 = vand.u32 %v196, 4294901760
    %3237 = vmatpush2.msra.mxu0 %v3236
    %v3238 = vand.u32 %v189, 4294901760
    %3239 = vmatprep.subr.mxu0 %v3238
    %v3240 = vand.u32 %v188, 4294901760
    %3241 = vmatpush2.msra.mxu0 %v3240
    %v3242 = vand.u32 %v181, 4294901760
    %3243 = vmatprep.subr.mxu0 %v3242
    %v3244 = vand.u32 %v180, 4294901760
    %3245 = vmatpush2.msra.mxu0 %v3244
    %v3246 = vand.u32 %v173, 4294901760
    %3247 = vmatprep.subr.mxu0 %v3246
    %v3248 = vand.u32 %v172, 4294901760
    %3249 = vmatpush2.msra.mxu0 %v3248
    %v3250 = vand.u32 %v39, 4294901760
    %v3251 = vsub.f32 %v39, %v3250
    %v3252 = vand.u32 %v3251, 4294901760
    %v3253 = vsub.f32 %v3251, %v3252
    %v3254 = vand.u32 %v3253, 4294901760
    %3255 = vmatprep.mubr.f32.mxu0 %v3254
    %v3256 = vand.u32 %v38, 4294901760
    %v3257 = vsub.f32 %v38, %v3256
    %v3258 = vand.u32 %v3257, 4294901760
    %v3259 = vsub.f32 %v3257, %v3258
    %v3260 = vand.u32 %v3259, 4294901760
    %3261 = vmatmul.mubr.f32.gmra.mxu0 %v3260
    %v3262 = vpop.f32.mrf.mxu0
    %v3263 = vadd.f32 0.0, %v3262
    %v3264 = vpop.f32.mrf.mxu0
    %v3265 = vadd.f32 0.0, %v3264
    %3266 = vdwg.mxu0
    %v3267 = vand.u32 %v165, 4294901760
    %v3268 = vsub.f32 %v165, %v3267
    %v3269 = vand.u32 %v3268, 4294901760
    %v3270 = vsub.f32 %v3268, %v3269
    %v3271 = vand.u32 %v3270, 4294901760
    %3272 = vmatprep.subr.mxu0 %v3271
    %v3273 = vand.u32 %v164, 4294901760
    %v3274 = vsub.f32 %v164, %v3273
    %v3275 = vand.u32 %v3274, 4294901760
    %v3276 = vsub.f32 %v3274, %v3275
    %v3277 = vand.u32 %v3276, 4294901760
    %3278 = vmatpush1.msra.mxu0 %v3277
    %v3279 = vand.u32 %v157, 4294901760
    %v3280 = vsub.f32 %v157, %v3279
    %v3281 = vand.u32 %v3280, 4294901760
    %v3282 = vsub.f32 %v3280, %v3281
    %v3283 = vand.u32 %v3282, 4294901760
    %3284 = vmatprep.subr.mxu0 %v3283
    %v3285 = vand.u32 %v156, 4294901760
    %v3286 = vsub.f32 %v156, %v3285
    %v3287 = vand.u32 %v3286, 4294901760
    %v3288 = vsub.f32 %v3286, %v3287
    %v3289 = vand.u32 %v3288, 4294901760
    %3290 = vmatpush1.msra.mxu0 %v3289
    %v3291 = vand.u32 %v149, 4294901760
    %v3292 = vsub.f32 %v149, %v3291
    %v3293 = vand.u32 %v3292, 4294901760
    %v3294 = vsub.f32 %v3292, %v3293
    %v3295 = vand.u32 %v3294, 4294901760
    %3296 = vmatprep.subr.mxu0 %v3295
    %v3297 = vand.u32 %v148, 4294901760
    %v3298 = vsub.f32 %v148, %v3297
    %v3299 = vand.u32 %v3298, 4294901760
    %v3300 = vsub.f32 %v3298, %v3299
    %v3301 = vand.u32 %v3300, 4294901760
    %3302 = vmatpush1.msra.mxu0 %v3301
    %v3303 = vand.u32 %v141, 4294901760
    %v3304 = vsub.f32 %v141, %v3303
    %v3305 = vand.u32 %v3304, 4294901760
    %v3306 = vsub.f32 %v3304, %v3305
    %v3307 = vand.u32 %v3306, 4294901760
    %3308 = vmatprep.subr.mxu0 %v3307
    %v3309 = vand.u32 %v140, 4294901760
    %v3310 = vsub.f32 %v140, %v3309
    %v3311 = vand.u32 %v3310, 4294901760
    %v3312 = vsub.f32 %v3310, %v3311
    %v3313 = vand.u32 %v3312, 4294901760
    %3314 = vmatpush1.msra.mxu0 %v3313
    %v3315 = vand.u32 %v133, 4294901760
    %v3316 = vsub.f32 %v133, %v3315
    %v3317 = vand.u32 %v3316, 4294901760
    %v3318 = vsub.f32 %v3316, %v3317
    %v3319 = vand.u32 %v3318, 4294901760
    %3320 = vmatprep.subr.mxu0 %v3319
    %v3321 = vand.u32 %v132, 4294901760
    %v3322 = vsub.f32 %v132, %v3321
    %v3323 = vand.u32 %v3322, 4294901760
    %v3324 = vsub.f32 %v3322, %v3323
    %v3325 = vand.u32 %v3324, 4294901760
    %3326 = vmatpush1.msra.mxu0 %v3325
    %v3327 = vand.u32 %v125, 4294901760
    %v3328 = vsub.f32 %v125, %v3327
    %v3329 = vand.u32 %v3328, 4294901760
    %v3330 = vsub.f32 %v3328, %v3329
    %v3331 = vand.u32 %v3330, 4294901760
    %3332 = vmatprep.subr.mxu0 %v3331
    %v3333 = vand.u32 %v124, 4294901760
    %v3334 = vsub.f32 %v124, %v3333
    %v3335 = vand.u32 %v3334, 4294901760
    %v3336 = vsub.f32 %v3334, %v3335
    %v3337 = vand.u32 %v3336, 4294901760
    %3338 = vmatpush1.msra.mxu0 %v3337
    %v3339 = vand.u32 %v117, 4294901760
    %v3340 = vsub.f32 %v117, %v3339
    %v3341 = vand.u32 %v3340, 4294901760
    %v3342 = vsub.f32 %v3340, %v3341
    %v3343 = vand.u32 %v3342, 4294901760
    %3344 = vmatprep.subr.mxu0 %v3343
    %v3345 = vand.u32 %v116, 4294901760
    %v3346 = vsub.f32 %v116, %v3345
    %v3347 = vand.u32 %v3346, 4294901760
    %v3348 = vsub.f32 %v3346, %v3347
    %v3349 = vand.u32 %v3348, 4294901760
    %3350 = vmatpush1.msra.mxu0 %v3349
    %v3351 = vand.u32 %v109, 4294901760
    %v3352 = vsub.f32 %v109, %v3351
    %v3353 = vand.u32 %v3352, 4294901760
    %v3354 = vsub.f32 %v3352, %v3353
    %v3355 = vand.u32 %v3354, 4294901760
    %3356 = vmatprep.subr.mxu0 %v3355
    %v3357 = vand.u32 %v108, 4294901760
    %v3358 = vsub.f32 %v108, %v3357
    %v3359 = vand.u32 %v3358, 4294901760
    %v3360 = vsub.f32 %v3358, %v3359
    %v3361 = vand.u32 %v3360, 4294901760
    %3362 = vmatpush1.msra.mxu0 %v3361
    %v3363 = vand.u32 %v101, 4294901760
    %v3364 = vsub.f32 %v101, %v3363
    %v3365 = vand.u32 %v3364, 4294901760
    %v3366 = vsub.f32 %v3364, %v3365
    %v3367 = vand.u32 %v3366, 4294901760
    %3368 = vmatprep.subr.mxu0 %v3367
    %v3369 = vand.u32 %v100, 4294901760
    %v3370 = vsub.f32 %v100, %v3369
    %v3371 = vand.u32 %v3370, 4294901760
    %v3372 = vsub.f32 %v3370, %v3371
    %v3373 = vand.u32 %v3372, 4294901760
    %3374 = vmatpush1.msra.mxu0 %v3373
    %v3375 = vand.u32 %v93, 4294901760
    %v3376 = vsub.f32 %v93, %v3375
    %v3377 = vand.u32 %v3376, 4294901760
    %v3378 = vsub.f32 %v3376, %v3377
    %v3379 = vand.u32 %v3378, 4294901760
    %3380 = vmatprep.subr.mxu0 %v3379
    %v3381 = vand.u32 %v92, 4294901760
    %v3382 = vsub.f32 %v92, %v3381
    %v3383 = vand.u32 %v3382, 4294901760
    %v3384 = vsub.f32 %v3382, %v3383
    %v3385 = vand.u32 %v3384, 4294901760
    %3386 = vmatpush1.msra.mxu0 %v3385
    %v3387 = vand.u32 %v85, 4294901760
    %v3388 = vsub.f32 %v85, %v3387
    %v3389 = vand.u32 %v3388, 4294901760
    %v3390 = vsub.f32 %v3388, %v3389
    %v3391 = vand.u32 %v3390, 4294901760
    %3392 = vmatprep.subr.mxu0 %v3391
    %v3393 = vand.u32 %v84, 4294901760
    %v3394 = vsub.f32 %v84, %v3393
    %v3395 = vand.u32 %v3394, 4294901760
    %v3396 = vsub.f32 %v3394, %v3395
    %v3397 = vand.u32 %v3396, 4294901760
    %3398 = vmatpush1.msra.mxu0 %v3397
    %v3399 = vand.u32 %v77, 4294901760
    %v3400 = vsub.f32 %v77, %v3399
    %v3401 = vand.u32 %v3400, 4294901760
    %v3402 = vsub.f32 %v3400, %v3401
    %v3403 = vand.u32 %v3402, 4294901760
    %3404 = vmatprep.subr.mxu0 %v3403
    %v3405 = vand.u32 %v76, 4294901760
    %v3406 = vsub.f32 %v76, %v3405
    %v3407 = vand.u32 %v3406, 4294901760
    %v3408 = vsub.f32 %v3406, %v3407
    %v3409 = vand.u32 %v3408, 4294901760
    %3410 = vmatpush1.msra.mxu0 %v3409
    %v3411 = vand.u32 %v69, 4294901760
    %v3412 = vsub.f32 %v69, %v3411
    %v3413 = vand.u32 %v3412, 4294901760
    %v3414 = vsub.f32 %v3412, %v3413
    %v3415 = vand.u32 %v3414, 4294901760
    %3416 = vmatprep.subr.mxu0 %v3415
    %v3417 = vand.u32 %v68, 4294901760
    %v3418 = vsub.f32 %v68, %v3417
    %v3419 = vand.u32 %v3418, 4294901760
    %v3420 = vsub.f32 %v3418, %v3419
    %v3421 = vand.u32 %v3420, 4294901760
    %3422 = vmatpush1.msra.mxu0 %v3421
    %v3423 = vand.u32 %v61, 4294901760
    %v3424 = vsub.f32 %v61, %v3423
    %v3425 = vand.u32 %v3424, 4294901760
    %v3426 = vsub.f32 %v3424, %v3425
    %v3427 = vand.u32 %v3426, 4294901760
    %3428 = vmatprep.subr.mxu0 %v3427
    %v3429 = vand.u32 %v60, 4294901760
    %v3430 = vsub.f32 %v60, %v3429
    %v3431 = vand.u32 %v3430, 4294901760
    %v3432 = vsub.f32 %v3430, %v3431
    %v3433 = vand.u32 %v3432, 4294901760
    %3434 = vmatpush1.msra.mxu0 %v3433
    %v3435 = vand.u32 %v53, 4294901760
    %v3436 = vsub.f32 %v53, %v3435
    %v3437 = vand.u32 %v3436, 4294901760
    %v3438 = vsub.f32 %v3436, %v3437
    %v3439 = vand.u32 %v3438, 4294901760
    %3440 = vmatprep.subr.mxu0 %v3439
    %v3441 = vand.u32 %v52, 4294901760
    %v3442 = vsub.f32 %v52, %v3441
    %v3443 = vand.u32 %v3442, 4294901760
    %v3444 = vsub.f32 %v3442, %v3443
    %v3445 = vand.u32 %v3444, 4294901760
    %3446 = vmatpush1.msra.mxu0 %v3445
    %v3447 = vand.u32 %v45, 4294901760
    %v3448 = vsub.f32 %v45, %v3447
    %v3449 = vand.u32 %v3448, 4294901760
    %v3450 = vsub.f32 %v3448, %v3449
    %v3451 = vand.u32 %v3450, 4294901760
    %3452 = vmatprep.subr.mxu0 %v3451
    %v3453 = vand.u32 %v44, 4294901760
    %v3454 = vsub.f32 %v44, %v3453
    %v3455 = vand.u32 %v3454, 4294901760
    %v3456 = vsub.f32 %v3454, %v3455
    %v3457 = vand.u32 %v3456, 4294901760
    %3458 = vmatpush1.msra.mxu0 %v3457
    %v3459 = vand.u32 %v293, 4294901760
    %v3460 = vsub.f32 %v293, %v3459
    %v3461 = vand.u32 %v3460, 4294901760
    %v3462 = vsub.f32 %v3460, %v3461
    %v3463 = vand.u32 %v3462, 4294901760
    %3464 = vmatprep.subr.mxu0 %v3463
    %v3465 = vand.u32 %v292, 4294901760
    %v3466 = vsub.f32 %v292, %v3465
    %v3467 = vand.u32 %v3466, 4294901760
    %v3468 = vsub.f32 %v3466, %v3467
    %v3469 = vand.u32 %v3468, 4294901760
    %3470 = vmatpush2.msra.mxu0 %v3469
    %v3471 = vand.u32 %v285, 4294901760
    %v3472 = vsub.f32 %v285, %v3471
    %v3473 = vand.u32 %v3472, 4294901760
    %v3474 = vsub.f32 %v3472, %v3473
    %v3475 = vand.u32 %v3474, 4294901760
    %3476 = vmatprep.subr.mxu0 %v3475
    %v3477 = vand.u32 %v284, 4294901760
    %v3478 = vsub.f32 %v284, %v3477
    %v3479 = vand.u32 %v3478, 4294901760
    %v3480 = vsub.f32 %v3478, %v3479
    %v3481 = vand.u32 %v3480, 4294901760
    %3482 = vmatpush2.msra.mxu0 %v3481
    %v3483 = vand.u32 %v277, 4294901760
    %v3484 = vsub.f32 %v277, %v3483
    %v3485 = vand.u32 %v3484, 4294901760
    %v3486 = vsub.f32 %v3484, %v3485
    %v3487 = vand.u32 %v3486, 4294901760
    %3488 = vmatprep.subr.mxu0 %v3487
    %v3489 = vand.u32 %v276, 4294901760
    %v3490 = vsub.f32 %v276, %v3489
    %v3491 = vand.u32 %v3490, 4294901760
    %v3492 = vsub.f32 %v3490, %v3491
    %v3493 = vand.u32 %v3492, 4294901760
    %3494 = vmatpush2.msra.mxu0 %v3493
    %v3495 = vand.u32 %v269, 4294901760
    %v3496 = vsub.f32 %v269, %v3495
    %v3497 = vand.u32 %v3496, 4294901760
    %v3498 = vsub.f32 %v3496, %v3497
    %v3499 = vand.u32 %v3498, 4294901760
    %3500 = vmatprep.subr.mxu0 %v3499
    %v3501 = vand.u32 %v268, 4294901760
    %v3502 = vsub.f32 %v268, %v3501
    %v3503 = vand.u32 %v3502, 4294901760
    %v3504 = vsub.f32 %v3502, %v3503
    %v3505 = vand.u32 %v3504, 4294901760
    %3506 = vmatpush2.msra.mxu0 %v3505
    %v3507 = vand.u32 %v261, 4294901760
    %v3508 = vsub.f32 %v261, %v3507
    %v3509 = vand.u32 %v3508, 4294901760
    %v3510 = vsub.f32 %v3508, %v3509
    %v3511 = vand.u32 %v3510, 4294901760
    %3512 = vmatprep.subr.mxu0 %v3511
    %v3513 = vand.u32 %v260, 4294901760
    %v3514 = vsub.f32 %v260, %v3513
    %v3515 = vand.u32 %v3514, 4294901760
    %v3516 = vsub.f32 %v3514, %v3515
    %v3517 = vand.u32 %v3516, 4294901760
    %3518 = vmatpush2.msra.mxu0 %v3517
    %v3519 = vand.u32 %v253, 4294901760
    %v3520 = vsub.f32 %v253, %v3519
    %v3521 = vand.u32 %v3520, 4294901760
    %v3522 = vsub.f32 %v3520, %v3521
    %v3523 = vand.u32 %v3522, 4294901760
    %3524 = vmatprep.subr.mxu0 %v3523
    %v3525 = vand.u32 %v252, 4294901760
    %v3526 = vsub.f32 %v252, %v3525
    %v3527 = vand.u32 %v3526, 4294901760
    %v3528 = vsub.f32 %v3526, %v3527
    %v3529 = vand.u32 %v3528, 4294901760
    %3530 = vmatpush2.msra.mxu0 %v3529
    %v3531 = vand.u32 %v245, 4294901760
    %v3532 = vsub.f32 %v245, %v3531
    %v3533 = vand.u32 %v3532, 4294901760
    %v3534 = vsub.f32 %v3532, %v3533
    %v3535 = vand.u32 %v3534, 4294901760
    %3536 = vmatprep.subr.mxu0 %v3535
    %v3537 = vand.u32 %v244, 4294901760
    %v3538 = vsub.f32 %v244, %v3537
    %v3539 = vand.u32 %v3538, 4294901760
    %v3540 = vsub.f32 %v3538, %v3539
    %v3541 = vand.u32 %v3540, 4294901760
    %3542 = vmatpush2.msra.mxu0 %v3541
    %v3543 = vand.u32 %v237, 4294901760
    %v3544 = vsub.f32 %v237, %v3543
    %v3545 = vand.u32 %v3544, 4294901760
    %v3546 = vsub.f32 %v3544, %v3545
    %v3547 = vand.u32 %v3546, 4294901760
    %3548 = vmatprep.subr.mxu0 %v3547
    %v3549 = vand.u32 %v236, 4294901760
    %v3550 = vsub.f32 %v236, %v3549
    %v3551 = vand.u32 %v3550, 4294901760
    %v3552 = vsub.f32 %v3550, %v3551
    %v3553 = vand.u32 %v3552, 4294901760
    %3554 = vmatpush2.msra.mxu0 %v3553
    %v3555 = vand.u32 %v229, 4294901760
    %v3556 = vsub.f32 %v229, %v3555
    %v3557 = vand.u32 %v3556, 4294901760
    %v3558 = vsub.f32 %v3556, %v3557
    %v3559 = vand.u32 %v3558, 4294901760
    %3560 = vmatprep.subr.mxu0 %v3559
    %v3561 = vand.u32 %v228, 4294901760
    %v3562 = vsub.f32 %v228, %v3561
    %v3563 = vand.u32 %v3562, 4294901760
    %v3564 = vsub.f32 %v3562, %v3563
    %v3565 = vand.u32 %v3564, 4294901760
    %3566 = vmatpush2.msra.mxu0 %v3565
    %v3567 = vand.u32 %v221, 4294901760
    %v3568 = vsub.f32 %v221, %v3567
    %v3569 = vand.u32 %v3568, 4294901760
    %v3570 = vsub.f32 %v3568, %v3569
    %v3571 = vand.u32 %v3570, 4294901760
    %3572 = vmatprep.subr.mxu0 %v3571
    %v3573 = vand.u32 %v220, 4294901760
    %v3574 = vsub.f32 %v220, %v3573
    %v3575 = vand.u32 %v3574, 4294901760
    %v3576 = vsub.f32 %v3574, %v3575
    %v3577 = vand.u32 %v3576, 4294901760
    %3578 = vmatpush2.msra.mxu0 %v3577
    %v3579 = vand.u32 %v213, 4294901760
    %v3580 = vsub.f32 %v213, %v3579
    %v3581 = vand.u32 %v3580, 4294901760
    %v3582 = vsub.f32 %v3580, %v3581
    %v3583 = vand.u32 %v3582, 4294901760
    %3584 = vmatprep.subr.mxu0 %v3583
    %v3585 = vand.u32 %v212, 4294901760
    %v3586 = vsub.f32 %v212, %v3585
    %v3587 = vand.u32 %v3586, 4294901760
    %v3588 = vsub.f32 %v3586, %v3587
    %v3589 = vand.u32 %v3588, 4294901760
    %3590 = vmatpush2.msra.mxu0 %v3589
    %v3591 = vand.u32 %v205, 4294901760
    %v3592 = vsub.f32 %v205, %v3591
    %v3593 = vand.u32 %v3592, 4294901760
    %v3594 = vsub.f32 %v3592, %v3593
    %v3595 = vand.u32 %v3594, 4294901760
    %3596 = vmatprep.subr.mxu0 %v3595
    %v3597 = vand.u32 %v204, 4294901760
    %v3598 = vsub.f32 %v204, %v3597
    %v3599 = vand.u32 %v3598, 4294901760
    %v3600 = vsub.f32 %v3598, %v3599
    %v3601 = vand.u32 %v3600, 4294901760
    %3602 = vmatpush2.msra.mxu0 %v3601
    %v3603 = vand.u32 %v197, 4294901760
    %v3604 = vsub.f32 %v197, %v3603
    %v3605 = vand.u32 %v3604, 4294901760
    %v3606 = vsub.f32 %v3604, %v3605
    %v3607 = vand.u32 %v3606, 4294901760
    %3608 = vmatprep.subr.mxu0 %v3607
    %v3609 = vand.u32 %v196, 4294901760
    %v3610 = vsub.f32 %v196, %v3609
    %v3611 = vand.u32 %v3610, 4294901760
    %v3612 = vsub.f32 %v3610, %v3611
    %v3613 = vand.u32 %v3612, 4294901760
    %3614 = vmatpush2.msra.mxu0 %v3613
    %v3615 = vand.u32 %v189, 4294901760
    %v3616 = vsub.f32 %v189, %v3615
    %v3617 = vand.u32 %v3616, 4294901760
    %v3618 = vsub.f32 %v3616, %v3617
    %v3619 = vand.u32 %v3618, 4294901760
    %3620 = vmatprep.subr.mxu0 %v3619
    %v3621 = vand.u32 %v188, 4294901760
    %v3622 = vsub.f32 %v188, %v3621
    %v3623 = vand.u32 %v3622, 4294901760
    %v3624 = vsub.f32 %v3622, %v3623
    %v3625 = vand.u32 %v3624, 4294901760
    %3626 = vmatpush2.msra.mxu0 %v3625
    %v3627 = vand.u32 %v181, 4294901760
    %v3628 = vsub.f32 %v181, %v3627
    %v3629 = vand.u32 %v3628, 4294901760
    %v3630 = vsub.f32 %v3628, %v3629
    %v3631 = vand.u32 %v3630, 4294901760
    %3632 = vmatprep.subr.mxu0 %v3631
    %v3633 = vand.u32 %v180, 4294901760
    %v3634 = vsub.f32 %v180, %v3633
    %v3635 = vand.u32 %v3634, 4294901760
    %v3636 = vsub.f32 %v3634, %v3635
    %v3637 = vand.u32 %v3636, 4294901760
    %3638 = vmatpush2.msra.mxu0 %v3637
    %v3639 = vand.u32 %v173, 4294901760
    %v3640 = vsub.f32 %v173, %v3639
    %v3641 = vand.u32 %v3640, 4294901760
    %v3642 = vsub.f32 %v3640, %v3641
    %v3643 = vand.u32 %v3642, 4294901760
    %3644 = vmatprep.subr.mxu0 %v3643
    %v3645 = vand.u32 %v172, 4294901760
    %v3646 = vsub.f32 %v172, %v3645
    %v3647 = vand.u32 %v3646, 4294901760
    %v3648 = vsub.f32 %v3646, %v3647
    %v3649 = vand.u32 %v3648, 4294901760
    %3650 = vmatpush2.msra.mxu0 %v3649
    %v3651 = vand.u32 %v39, 4294901760
    %3652 = vmatprep.mubr.f32.mxu0 %v3651
    %v3653 = vand.u32 %v38, 4294901760
    %3654 = vmatmul.mubr.f32.gmra.mxu0 %v3653
    %v3655 = vpop.f32.mrf.mxu0
    %v3656 = vadd.f32 %v3263, %v3655
    %v3657 = vpop.f32.mrf.mxu0
    %v3658 = vadd.f32 %v3265, %v3657
    %3659 = vdwg.mxu0
    %v3660 = vand.u32 %v165, 4294901760
    %v3661 = vsub.f32 %v165, %v3660
    %3662 = vmatprep.subr.mxu0 %v3661
    %v3663 = vand.u32 %v164, 4294901760
    %v3664 = vsub.f32 %v164, %v3663
    %3665 = vmatpush1.msra.mxu0 %v3664
    %v3666 = vand.u32 %v157, 4294901760
    %v3667 = vsub.f32 %v157, %v3666
    %3668 = vmatprep.subr.mxu0 %v3667
    %v3669 = vand.u32 %v156, 4294901760
    %v3670 = vsub.f32 %v156, %v3669
    %3671 = vmatpush1.msra.mxu0 %v3670
    %v3672 = vand.u32 %v149, 4294901760
    %v3673 = vsub.f32 %v149, %v3672
    %3674 = vmatprep.subr.mxu0 %v3673
    %v3675 = vand.u32 %v148, 4294901760
    %v3676 = vsub.f32 %v148, %v3675
    %3677 = vmatpush1.msra.mxu0 %v3676
    %v3678 = vand.u32 %v141, 4294901760
    %v3679 = vsub.f32 %v141, %v3678
    %3680 = vmatprep.subr.mxu0 %v3679
    %v3681 = vand.u32 %v140, 4294901760
    %v3682 = vsub.f32 %v140, %v3681
    %3683 = vmatpush1.msra.mxu0 %v3682
    %v3684 = vand.u32 %v133, 4294901760
    %v3685 = vsub.f32 %v133, %v3684
    %3686 = vmatprep.subr.mxu0 %v3685
    %v3687 = vand.u32 %v132, 4294901760
    %v3688 = vsub.f32 %v132, %v3687
    %3689 = vmatpush1.msra.mxu0 %v3688
    %v3690 = vand.u32 %v125, 4294901760
    %v3691 = vsub.f32 %v125, %v3690
    %3692 = vmatprep.subr.mxu0 %v3691
    %v3693 = vand.u32 %v124, 4294901760
    %v3694 = vsub.f32 %v124, %v3693
    %3695 = vmatpush1.msra.mxu0 %v3694
    %v3696 = vand.u32 %v117, 4294901760
    %v3697 = vsub.f32 %v117, %v3696
    %3698 = vmatprep.subr.mxu0 %v3697
    %v3699 = vand.u32 %v116, 4294901760
    %v3700 = vsub.f32 %v116, %v3699
    %3701 = vmatpush1.msra.mxu0 %v3700
    %v3702 = vand.u32 %v109, 4294901760
    %v3703 = vsub.f32 %v109, %v3702
    %3704 = vmatprep.subr.mxu0 %v3703
    %v3705 = vand.u32 %v108, 4294901760
    %v3706 = vsub.f32 %v108, %v3705
    %3707 = vmatpush1.msra.mxu0 %v3706
    %v3708 = vand.u32 %v101, 4294901760
    %v3709 = vsub.f32 %v101, %v3708
    %3710 = vmatprep.subr.mxu0 %v3709
    %v3711 = vand.u32 %v100, 4294901760
    %v3712 = vsub.f32 %v100, %v3711
    %3713 = vmatpush1.msra.mxu0 %v3712
    %v3714 = vand.u32 %v93, 4294901760
    %v3715 = vsub.f32 %v93, %v3714
    %3716 = vmatprep.subr.mxu0 %v3715
    %v3717 = vand.u32 %v92, 4294901760
    %v3718 = vsub.f32 %v92, %v3717
    %3719 = vmatpush1.msra.mxu0 %v3718
    %v3720 = vand.u32 %v85, 4294901760
    %v3721 = vsub.f32 %v85, %v3720
    %3722 = vmatprep.subr.mxu0 %v3721
    %v3723 = vand.u32 %v84, 4294901760
    %v3724 = vsub.f32 %v84, %v3723
    %3725 = vmatpush1.msra.mxu0 %v3724
    %v3726 = vand.u32 %v77, 4294901760
    %v3727 = vsub.f32 %v77, %v3726
    %3728 = vmatprep.subr.mxu0 %v3727
    %v3729 = vand.u32 %v76, 4294901760
    %v3730 = vsub.f32 %v76, %v3729
    %3731 = vmatpush1.msra.mxu0 %v3730
    %v3732 = vand.u32 %v69, 4294901760
    %v3733 = vsub.f32 %v69, %v3732
    %3734 = vmatprep.subr.mxu0 %v3733
    %v3735 = vand.u32 %v68, 4294901760
    %v3736 = vsub.f32 %v68, %v3735
    %3737 = vmatpush1.msra.mxu0 %v3736
    %v3738 = vand.u32 %v61, 4294901760
    %v3739 = vsub.f32 %v61, %v3738
    %3740 = vmatprep.subr.mxu0 %v3739
    %v3741 = vand.u32 %v60, 4294901760
    %v3742 = vsub.f32 %v60, %v3741
    %3743 = vmatpush1.msra.mxu0 %v3742
    %v3744 = vand.u32 %v53, 4294901760
    %v3745 = vsub.f32 %v53, %v3744
    %3746 = vmatprep.subr.mxu0 %v3745
    %v3747 = vand.u32 %v52, 4294901760
    %v3748 = vsub.f32 %v52, %v3747
    %3749 = vmatpush1.msra.mxu0 %v3748
    %v3750 = vand.u32 %v45, 4294901760
    %v3751 = vsub.f32 %v45, %v3750
    %3752 = vmatprep.subr.mxu0 %v3751
    %v3753 = vand.u32 %v44, 4294901760
    %v3754 = vsub.f32 %v44, %v3753
    %3755 = vmatpush1.msra.mxu0 %v3754
    %v3756 = vand.u32 %v293, 4294901760
    %v3757 = vsub.f32 %v293, %v3756
    %3758 = vmatprep.subr.mxu0 %v3757
    %v3759 = vand.u32 %v292, 4294901760
    %v3760 = vsub.f32 %v292, %v3759
    %3761 = vmatpush2.msra.mxu0 %v3760
    %v3762 = vand.u32 %v285, 4294901760
    %v3763 = vsub.f32 %v285, %v3762
    %3764 = vmatprep.subr.mxu0 %v3763
    %v3765 = vand.u32 %v284, 4294901760
    %v3766 = vsub.f32 %v284, %v3765
    %3767 = vmatpush2.msra.mxu0 %v3766
    %v3768 = vand.u32 %v277, 4294901760
    %v3769 = vsub.f32 %v277, %v3768
    %3770 = vmatprep.subr.mxu0 %v3769
    %v3771 = vand.u32 %v276, 4294901760
    %v3772 = vsub.f32 %v276, %v3771
    %3773 = vmatpush2.msra.mxu0 %v3772
    %v3774 = vand.u32 %v269, 4294901760
    %v3775 = vsub.f32 %v269, %v3774
    %3776 = vmatprep.subr.mxu0 %v3775
    %v3777 = vand.u32 %v268, 4294901760
    %v3778 = vsub.f32 %v268, %v3777
    %3779 = vmatpush2.msra.mxu0 %v3778
    %v3780 = vand.u32 %v261, 4294901760
    %v3781 = vsub.f32 %v261, %v3780
    %3782 = vmatprep.subr.mxu0 %v3781
    %v3783 = vand.u32 %v260, 4294901760
    %v3784 = vsub.f32 %v260, %v3783
    %3785 = vmatpush2.msra.mxu0 %v3784
    %v3786 = vand.u32 %v253, 4294901760
    %v3787 = vsub.f32 %v253, %v3786
    %3788 = vmatprep.subr.mxu0 %v3787
    %v3789 = vand.u32 %v252, 4294901760
    %v3790 = vsub.f32 %v252, %v3789
    %3791 = vmatpush2.msra.mxu0 %v3790
    %v3792 = vand.u32 %v245, 4294901760
    %v3793 = vsub.f32 %v245, %v3792
    %3794 = vmatprep.subr.mxu0 %v3793
    %v3795 = vand.u32 %v244, 4294901760
    %v3796 = vsub.f32 %v244, %v3795
    %3797 = vmatpush2.msra.mxu0 %v3796
    %v3798 = vand.u32 %v237, 4294901760
    %v3799 = vsub.f32 %v237, %v3798
    %3800 = vmatprep.subr.mxu0 %v3799
    %v3801 = vand.u32 %v236, 4294901760
    %v3802 = vsub.f32 %v236, %v3801
    %3803 = vmatpush2.msra.mxu0 %v3802
    %v3804 = vand.u32 %v229, 4294901760
    %v3805 = vsub.f32 %v229, %v3804
    %3806 = vmatprep.subr.mxu0 %v3805
    %v3807 = vand.u32 %v228, 4294901760
    %v3808 = vsub.f32 %v228, %v3807
    %3809 = vmatpush2.msra.mxu0 %v3808
    %v3810 = vand.u32 %v221, 4294901760
    %v3811 = vsub.f32 %v221, %v3810
    %3812 = vmatprep.subr.mxu0 %v3811
    %v3813 = vand.u32 %v220, 4294901760
    %v3814 = vsub.f32 %v220, %v3813
    %3815 = vmatpush2.msra.mxu0 %v3814
    %v3816 = vand.u32 %v213, 4294901760
    %v3817 = vsub.f32 %v213, %v3816
    %3818 = vmatprep.subr.mxu0 %v3817
    %v3819 = vand.u32 %v212, 4294901760
    %v3820 = vsub.f32 %v212, %v3819
    %3821 = vmatpush2.msra.mxu0 %v3820
    %v3822 = vand.u32 %v205, 4294901760
    %v3823 = vsub.f32 %v205, %v3822
    %3824 = vmatprep.subr.mxu0 %v3823
    %v3825 = vand.u32 %v204, 4294901760
    %v3826 = vsub.f32 %v204, %v3825
    %3827 = vmatpush2.msra.mxu0 %v3826
    %v3828 = vand.u32 %v197, 4294901760
    %v3829 = vsub.f32 %v197, %v3828
    %3830 = vmatprep.subr.mxu0 %v3829
    %v3831 = vand.u32 %v196, 4294901760
    %v3832 = vsub.f32 %v196, %v3831
    %3833 = vmatpush2.msra.mxu0 %v3832
    %v3834 = vand.u32 %v189, 4294901760
    %v3835 = vsub.f32 %v189, %v3834
    %3836 = vmatprep.subr.mxu0 %v3835
    %v3837 = vand.u32 %v188, 4294901760
    %v3838 = vsub.f32 %v188, %v3837
    %3839 = vmatpush2.msra.mxu0 %v3838
    %v3840 = vand.u32 %v181, 4294901760
    %v3841 = vsub.f32 %v181, %v3840
    %3842 = vmatprep.subr.mxu0 %v3841
    %v3843 = vand.u32 %v180, 4294901760
    %v3844 = vsub.f32 %v180, %v3843
    %3845 = vmatpush2.msra.mxu0 %v3844
    %v3846 = vand.u32 %v173, 4294901760
    %v3847 = vsub.f32 %v173, %v3846
    %3848 = vmatprep.subr.mxu0 %v3847
    %v3849 = vand.u32 %v172, 4294901760
    %v3850 = vsub.f32 %v172, %v3849
    %3851 = vmatpush2.msra.mxu0 %v3850
    %v3852 = vand.u32 %v39, 4294901760
    %v3853 = vsub.f32 %v39, %v3852
    %3854 = vmatprep.mubr.f32.mxu0 %v3853
    %v3855 = vand.u32 %v38, 4294901760
    %v3856 = vsub.f32 %v38, %v3855
    %3857 = vmatmul.mubr.f32.gmra.mxu0 %v3856
    %v3858 = vpop.f32.mrf.mxu0
    %v3859 = vadd.f32 %v3656, %v3858
    %v3860 = vpop.f32.mrf.mxu0
    %v3861 = vadd.f32 %v3658, %v3860
    %3862 = vdwg.mxu0
    %v3863 = vand.u32 %v165, 4294901760
    %3864 = vmatprep.subr.mxu0 %v3863
    %v3865 = vand.u32 %v164, 4294901760
    %3866 = vmatpush1.msra.mxu0 %v3865
    %v3867 = vand.u32 %v157, 4294901760
    %3868 = vmatprep.subr.mxu0 %v3867
    %v3869 = vand.u32 %v156, 4294901760
    %3870 = vmatpush1.msra.mxu0 %v3869
    %v3871 = vand.u32 %v149, 4294901760
    %3872 = vmatprep.subr.mxu0 %v3871
    %v3873 = vand.u32 %v148, 4294901760
    %3874 = vmatpush1.msra.mxu0 %v3873
    %v3875 = vand.u32 %v141, 4294901760
    %3876 = vmatprep.subr.mxu0 %v3875
    %v3877 = vand.u32 %v140, 4294901760
    %3878 = vmatpush1.msra.mxu0 %v3877
    %v3879 = vand.u32 %v133, 4294901760
    %3880 = vmatprep.subr.mxu0 %v3879
    %v3881 = vand.u32 %v132, 4294901760
    %3882 = vmatpush1.msra.mxu0 %v3881
    %v3883 = vand.u32 %v125, 4294901760
    %3884 = vmatprep.subr.mxu0 %v3883
    %v3885 = vand.u32 %v124, 4294901760
    %3886 = vmatpush1.msra.mxu0 %v3885
    %v3887 = vand.u32 %v117, 4294901760
    %3888 = vmatprep.subr.mxu0 %v3887
    %v3889 = vand.u32 %v116, 4294901760
    %3890 = vmatpush1.msra.mxu0 %v3889
    %v3891 = vand.u32 %v109, 4294901760
    %3892 = vmatprep.subr.mxu0 %v3891
    %v3893 = vand.u32 %v108, 4294901760
    %3894 = vmatpush1.msra.mxu0 %v3893
    %v3895 = vand.u32 %v101, 4294901760
    %3896 = vmatprep.subr.mxu0 %v3895
    %v3897 = vand.u32 %v100, 4294901760
    %3898 = vmatpush1.msra.mxu0 %v3897
    %v3899 = vand.u32 %v93, 4294901760
    %3900 = vmatprep.subr.mxu0 %v3899
    %v3901 = vand.u32 %v92, 4294901760
    %3902 = vmatpush1.msra.mxu0 %v3901
    %v3903 = vand.u32 %v85, 4294901760
    %3904 = vmatprep.subr.mxu0 %v3903
    %v3905 = vand.u32 %v84, 4294901760
    %3906 = vmatpush1.msra.mxu0 %v3905
    %v3907 = vand.u32 %v77, 4294901760
    %3908 = vmatprep.subr.mxu0 %v3907
    %v3909 = vand.u32 %v76, 4294901760
    %3910 = vmatpush1.msra.mxu0 %v3909
    %v3911 = vand.u32 %v69, 4294901760
    %3912 = vmatprep.subr.mxu0 %v3911
    %v3913 = vand.u32 %v68, 4294901760
    %3914 = vmatpush1.msra.mxu0 %v3913
    %v3915 = vand.u32 %v61, 4294901760
    %3916 = vmatprep.subr.mxu0 %v3915
    %v3917 = vand.u32 %v60, 4294901760
    %3918 = vmatpush1.msra.mxu0 %v3917
    %v3919 = vand.u32 %v53, 4294901760
    %3920 = vmatprep.subr.mxu0 %v3919
    %v3921 = vand.u32 %v52, 4294901760
    %3922 = vmatpush1.msra.mxu0 %v3921
    %v3923 = vand.u32 %v45, 4294901760
    %3924 = vmatprep.subr.mxu0 %v3923
    %v3925 = vand.u32 %v44, 4294901760
    %3926 = vmatpush1.msra.mxu0 %v3925
    %v3927 = vand.u32 %v293, 4294901760
    %3928 = vmatprep.subr.mxu0 %v3927
    %v3929 = vand.u32 %v292, 4294901760
    %3930 = vmatpush2.msra.mxu0 %v3929
    %v3931 = vand.u32 %v285, 4294901760
    %3932 = vmatprep.subr.mxu0 %v3931
    %v3933 = vand.u32 %v284, 4294901760
    %3934 = vmatpush2.msra.mxu0 %v3933
    %v3935 = vand.u32 %v277, 4294901760
    %3936 = vmatprep.subr.mxu0 %v3935
    %v3937 = vand.u32 %v276, 4294901760
    %3938 = vmatpush2.msra.mxu0 %v3937
    %v3939 = vand.u32 %v269, 4294901760
    %3940 = vmatprep.subr.mxu0 %v3939
    %v3941 = vand.u32 %v268, 4294901760
    %3942 = vmatpush2.msra.mxu0 %v3941
    %v3943 = vand.u32 %v261, 4294901760
    %3944 = vmatprep.subr.mxu0 %v3943
    %v3945 = vand.u32 %v260, 4294901760
    %3946 = vmatpush2.msra.mxu0 %v3945
    %v3947 = vand.u32 %v253, 4294901760
    %3948 = vmatprep.subr.mxu0 %v3947
    %v3949 = vand.u32 %v252, 4294901760
    %3950 = vmatpush2.msra.mxu0 %v3949
    %v3951 = vand.u32 %v245, 4294901760
    %3952 = vmatprep.subr.mxu0 %v3951
    %v3953 = vand.u32 %v244, 4294901760
    %3954 = vmatpush2.msra.mxu0 %v3953
    %v3955 = vand.u32 %v237, 4294901760
    %3956 = vmatprep.subr.mxu0 %v3955
    %v3957 = vand.u32 %v236, 4294901760
    %3958 = vmatpush2.msra.mxu0 %v3957
    %v3959 = vand.u32 %v229, 4294901760
    %3960 = vmatprep.subr.mxu0 %v3959
    %v3961 = vand.u32 %v228, 4294901760
    %3962 = vmatpush2.msra.mxu0 %v3961
    %v3963 = vand.u32 %v221, 4294901760
    %3964 = vmatprep.subr.mxu0 %v3963
    %v3965 = vand.u32 %v220, 4294901760
    %3966 = vmatpush2.msra.mxu0 %v3965
    %v3967 = vand.u32 %v213, 4294901760
    %3968 = vmatprep.subr.mxu0 %v3967
    %v3969 = vand.u32 %v212, 4294901760
    %3970 = vmatpush2.msra.mxu0 %v3969
    %v3971 = vand.u32 %v205, 4294901760
    %3972 = vmatprep.subr.mxu0 %v3971
    %v3973 = vand.u32 %v204, 4294901760
    %3974 = vmatpush2.msra.mxu0 %v3973
    %v3975 = vand.u32 %v197, 4294901760
    %3976 = vmatprep.subr.mxu0 %v3975
    %v3977 = vand.u32 %v196, 4294901760
    %3978 = vmatpush2.msra.mxu0 %v3977
    %v3979 = vand.u32 %v189, 4294901760
    %3980 = vmatprep.subr.mxu0 %v3979
    %v3981 = vand.u32 %v188, 4294901760
    %3982 = vmatpush2.msra.mxu0 %v3981
    %v3983 = vand.u32 %v181, 4294901760
    %3984 = vmatprep.subr.mxu0 %v3983
    %v3985 = vand.u32 %v180, 4294901760
    %3986 = vmatpush2.msra.mxu0 %v3985
    %v3987 = vand.u32 %v173, 4294901760
    %3988 = vmatprep.subr.mxu0 %v3987
    %v3989 = vand.u32 %v172, 4294901760
    %3990 = vmatpush2.msra.mxu0 %v3989
    %v3991 = vand.u32 %v39, 4294901760
    %v3992 = vsub.f32 %v39, %v3991
    %v3993 = vand.u32 %v3992, 4294901760
    %3994 = vmatprep.mubr.f32.mxu0 %v3993
    %v3995 = vand.u32 %v38, 4294901760
    %v3996 = vsub.f32 %v38, %v3995
    %v3997 = vand.u32 %v3996, 4294901760
    %3998 = vmatmul.mubr.f32.gmra.mxu0 %v3997
    %v3999 = vpop.f32.mrf.mxu0
    %v4000 = vadd.f32 %v3859, %v3999
    %v4001 = vpop.f32.mrf.mxu0
    %v4002 = vadd.f32 %v3861, %v4001
    %4003 = vdwg.mxu0
    %v4004 = vand.u32 %v165, 4294901760
    %v4005 = vsub.f32 %v165, %v4004
    %v4006 = vand.u32 %v4005, 4294901760
    %4007 = vmatprep.subr.mxu0 %v4006
    %v4008 = vand.u32 %v164, 4294901760
    %v4009 = vsub.f32 %v164, %v4008
    %v4010 = vand.u32 %v4009, 4294901760
    %4011 = vmatpush1.msra.mxu0 %v4010
    %v4012 = vand.u32 %v157, 4294901760
    %v4013 = vsub.f32 %v157, %v4012
    %v4014 = vand.u32 %v4013, 4294901760
    %4015 = vmatprep.subr.mxu0 %v4014
    %v4016 = vand.u32 %v156, 4294901760
    %v4017 = vsub.f32 %v156, %v4016
    %v4018 = vand.u32 %v4017, 4294901760
    %4019 = vmatpush1.msra.mxu0 %v4018
    %v4020 = vand.u32 %v149, 4294901760
    %v4021 = vsub.f32 %v149, %v4020
    %v4022 = vand.u32 %v4021, 4294901760
    %4023 = vmatprep.subr.mxu0 %v4022
    %v4024 = vand.u32 %v148, 4294901760
    %v4025 = vsub.f32 %v148, %v4024
    %v4026 = vand.u32 %v4025, 4294901760
    %4027 = vmatpush1.msra.mxu0 %v4026
    %v4028 = vand.u32 %v141, 4294901760
    %v4029 = vsub.f32 %v141, %v4028
    %v4030 = vand.u32 %v4029, 4294901760
    %4031 = vmatprep.subr.mxu0 %v4030
    %v4032 = vand.u32 %v140, 4294901760
    %v4033 = vsub.f32 %v140, %v4032
    %v4034 = vand.u32 %v4033, 4294901760
    %4035 = vmatpush1.msra.mxu0 %v4034
    %v4036 = vand.u32 %v133, 4294901760
    %v4037 = vsub.f32 %v133, %v4036
    %v4038 = vand.u32 %v4037, 4294901760
    %4039 = vmatprep.subr.mxu0 %v4038
    %v4040 = vand.u32 %v132, 4294901760
    %v4041 = vsub.f32 %v132, %v4040
    %v4042 = vand.u32 %v4041, 4294901760
    %4043 = vmatpush1.msra.mxu0 %v4042
    %v4044 = vand.u32 %v125, 4294901760
    %v4045 = vsub.f32 %v125, %v4044
    %v4046 = vand.u32 %v4045, 4294901760
    %4047 = vmatprep.subr.mxu0 %v4046
    %v4048 = vand.u32 %v124, 4294901760
    %v4049 = vsub.f32 %v124, %v4048
    %v4050 = vand.u32 %v4049, 4294901760
    %4051 = vmatpush1.msra.mxu0 %v4050
    %v4052 = vand.u32 %v117, 4294901760
    %v4053 = vsub.f32 %v117, %v4052
    %v4054 = vand.u32 %v4053, 4294901760
    %4055 = vmatprep.subr.mxu0 %v4054
    %v4056 = vand.u32 %v116, 4294901760
    %v4057 = vsub.f32 %v116, %v4056
    %v4058 = vand.u32 %v4057, 4294901760
    %4059 = vmatpush1.msra.mxu0 %v4058
    %v4060 = vand.u32 %v109, 4294901760
    %v4061 = vsub.f32 %v109, %v4060
    %v4062 = vand.u32 %v4061, 4294901760
    %4063 = vmatprep.subr.mxu0 %v4062
    %v4064 = vand.u32 %v108, 4294901760
    %v4065 = vsub.f32 %v108, %v4064
    %v4066 = vand.u32 %v4065, 4294901760
    %4067 = vmatpush1.msra.mxu0 %v4066
    %v4068 = vand.u32 %v101, 4294901760
    %v4069 = vsub.f32 %v101, %v4068
    %v4070 = vand.u32 %v4069, 4294901760
    %4071 = vmatprep.subr.mxu0 %v4070
    %v4072 = vand.u32 %v100, 4294901760
    %v4073 = vsub.f32 %v100, %v4072
    %v4074 = vand.u32 %v4073, 4294901760
    %4075 = vmatpush1.msra.mxu0 %v4074
    %v4076 = vand.u32 %v93, 4294901760
    %v4077 = vsub.f32 %v93, %v4076
    %v4078 = vand.u32 %v4077, 4294901760
    %4079 = vmatprep.subr.mxu0 %v4078
    %v4080 = vand.u32 %v92, 4294901760
    %v4081 = vsub.f32 %v92, %v4080
    %v4082 = vand.u32 %v4081, 4294901760
    %4083 = vmatpush1.msra.mxu0 %v4082
    %v4084 = vand.u32 %v85, 4294901760
    %v4085 = vsub.f32 %v85, %v4084
    %v4086 = vand.u32 %v4085, 4294901760
    %4087 = vmatprep.subr.mxu0 %v4086
    %v4088 = vand.u32 %v84, 4294901760
    %v4089 = vsub.f32 %v84, %v4088
    %v4090 = vand.u32 %v4089, 4294901760
    %4091 = vmatpush1.msra.mxu0 %v4090
    %v4092 = vand.u32 %v77, 4294901760
    %v4093 = vsub.f32 %v77, %v4092
    %v4094 = vand.u32 %v4093, 4294901760
    %4095 = vmatprep.subr.mxu0 %v4094
    %v4096 = vand.u32 %v76, 4294901760
    %v4097 = vsub.f32 %v76, %v4096
    %v4098 = vand.u32 %v4097, 4294901760
    %4099 = vmatpush1.msra.mxu0 %v4098
    %v4100 = vand.u32 %v69, 4294901760
    %v4101 = vsub.f32 %v69, %v4100
    %v4102 = vand.u32 %v4101, 4294901760
    %4103 = vmatprep.subr.mxu0 %v4102
    %v4104 = vand.u32 %v68, 4294901760
    %v4105 = vsub.f32 %v68, %v4104
    %v4106 = vand.u32 %v4105, 4294901760
    %4107 = vmatpush1.msra.mxu0 %v4106
    %v4108 = vand.u32 %v61, 4294901760
    %v4109 = vsub.f32 %v61, %v4108
    %v4110 = vand.u32 %v4109, 4294901760
    %4111 = vmatprep.subr.mxu0 %v4110
    %v4112 = vand.u32 %v60, 4294901760
    %v4113 = vsub.f32 %v60, %v4112
    %v4114 = vand.u32 %v4113, 4294901760
    %4115 = vmatpush1.msra.mxu0 %v4114
    %v4116 = vand.u32 %v53, 4294901760
    %v4117 = vsub.f32 %v53, %v4116
    %v4118 = vand.u32 %v4117, 4294901760
    %4119 = vmatprep.subr.mxu0 %v4118
    %v4120 = vand.u32 %v52, 4294901760
    %v4121 = vsub.f32 %v52, %v4120
    %v4122 = vand.u32 %v4121, 4294901760
    %4123 = vmatpush1.msra.mxu0 %v4122
    %v4124 = vand.u32 %v45, 4294901760
    %v4125 = vsub.f32 %v45, %v4124
    %v4126 = vand.u32 %v4125, 4294901760
    %4127 = vmatprep.subr.mxu0 %v4126
    %v4128 = vand.u32 %v44, 4294901760
    %v4129 = vsub.f32 %v44, %v4128
    %v4130 = vand.u32 %v4129, 4294901760
    %4131 = vmatpush1.msra.mxu0 %v4130
    %v4132 = vand.u32 %v293, 4294901760
    %v4133 = vsub.f32 %v293, %v4132
    %v4134 = vand.u32 %v4133, 4294901760
    %4135 = vmatprep.subr.mxu0 %v4134
    %v4136 = vand.u32 %v292, 4294901760
    %v4137 = vsub.f32 %v292, %v4136
    %v4138 = vand.u32 %v4137, 4294901760
    %4139 = vmatpush2.msra.mxu0 %v4138
    %v4140 = vand.u32 %v285, 4294901760
    %v4141 = vsub.f32 %v285, %v4140
    %v4142 = vand.u32 %v4141, 4294901760
    %4143 = vmatprep.subr.mxu0 %v4142
    %v4144 = vand.u32 %v284, 4294901760
    %v4145 = vsub.f32 %v284, %v4144
    %v4146 = vand.u32 %v4145, 4294901760
    %4147 = vmatpush2.msra.mxu0 %v4146
    %v4148 = vand.u32 %v277, 4294901760
    %v4149 = vsub.f32 %v277, %v4148
    %v4150 = vand.u32 %v4149, 4294901760
    %4151 = vmatprep.subr.mxu0 %v4150
    %v4152 = vand.u32 %v276, 4294901760
    %v4153 = vsub.f32 %v276, %v4152
    %v4154 = vand.u32 %v4153, 4294901760
    %4155 = vmatpush2.msra.mxu0 %v4154
    %v4156 = vand.u32 %v269, 4294901760
    %v4157 = vsub.f32 %v269, %v4156
    %v4158 = vand.u32 %v4157, 4294901760
    %4159 = vmatprep.subr.mxu0 %v4158
    %v4160 = vand.u32 %v268, 4294901760
    %v4161 = vsub.f32 %v268, %v4160
    %v4162 = vand.u32 %v4161, 4294901760
    %4163 = vmatpush2.msra.mxu0 %v4162
    %v4164 = vand.u32 %v261, 4294901760
    %v4165 = vsub.f32 %v261, %v4164
    %v4166 = vand.u32 %v4165, 4294901760
    %4167 = vmatprep.subr.mxu0 %v4166
    %v4168 = vand.u32 %v260, 4294901760
    %v4169 = vsub.f32 %v260, %v4168
    %v4170 = vand.u32 %v4169, 4294901760
    %4171 = vmatpush2.msra.mxu0 %v4170
    %v4172 = vand.u32 %v253, 4294901760
    %v4173 = vsub.f32 %v253, %v4172
    %v4174 = vand.u32 %v4173, 4294901760
    %4175 = vmatprep.subr.mxu0 %v4174
    %v4176 = vand.u32 %v252, 4294901760
    %v4177 = vsub.f32 %v252, %v4176
    %v4178 = vand.u32 %v4177, 4294901760
    %4179 = vmatpush2.msra.mxu0 %v4178
    %v4180 = vand.u32 %v245, 4294901760
    %v4181 = vsub.f32 %v245, %v4180
    %v4182 = vand.u32 %v4181, 4294901760
    %4183 = vmatprep.subr.mxu0 %v4182
    %v4184 = vand.u32 %v244, 4294901760
    %v4185 = vsub.f32 %v244, %v4184
    %v4186 = vand.u32 %v4185, 4294901760
    %4187 = vmatpush2.msra.mxu0 %v4186
    %v4188 = vand.u32 %v237, 4294901760
    %v4189 = vsub.f32 %v237, %v4188
    %v4190 = vand.u32 %v4189, 4294901760
    %4191 = vmatprep.subr.mxu0 %v4190
    %v4192 = vand.u32 %v236, 4294901760
    %v4193 = vsub.f32 %v236, %v4192
    %v4194 = vand.u32 %v4193, 4294901760
    %4195 = vmatpush2.msra.mxu0 %v4194
    %v4196 = vand.u32 %v229, 4294901760
    %v4197 = vsub.f32 %v229, %v4196
    %v4198 = vand.u32 %v4197, 4294901760
    %4199 = vmatprep.subr.mxu0 %v4198
    %v4200 = vand.u32 %v228, 4294901760
    %v4201 = vsub.f32 %v228, %v4200
    %v4202 = vand.u32 %v4201, 4294901760
    %4203 = vmatpush2.msra.mxu0 %v4202
    %v4204 = vand.u32 %v221, 4294901760
    %v4205 = vsub.f32 %v221, %v4204
    %v4206 = vand.u32 %v4205, 4294901760
    %4207 = vmatprep.subr.mxu0 %v4206
    %v4208 = vand.u32 %v220, 4294901760
    %v4209 = vsub.f32 %v220, %v4208
    %v4210 = vand.u32 %v4209, 4294901760
    %4211 = vmatpush2.msra.mxu0 %v4210
    %v4212 = vand.u32 %v213, 4294901760
    %v4213 = vsub.f32 %v213, %v4212
    %v4214 = vand.u32 %v4213, 4294901760
    %4215 = vmatprep.subr.mxu0 %v4214
    %v4216 = vand.u32 %v212, 4294901760
    %v4217 = vsub.f32 %v212, %v4216
    %v4218 = vand.u32 %v4217, 4294901760
    %4219 = vmatpush2.msra.mxu0 %v4218
    %v4220 = vand.u32 %v205, 4294901760
    %v4221 = vsub.f32 %v205, %v4220
    %v4222 = vand.u32 %v4221, 4294901760
    %4223 = vmatprep.subr.mxu0 %v4222
    %v4224 = vand.u32 %v204, 4294901760
    %v4225 = vsub.f32 %v204, %v4224
    %v4226 = vand.u32 %v4225, 4294901760
    %4227 = vmatpush2.msra.mxu0 %v4226
    %v4228 = vand.u32 %v197, 4294901760
    %v4229 = vsub.f32 %v197, %v4228
    %v4230 = vand.u32 %v4229, 4294901760
    %4231 = vmatprep.subr.mxu0 %v4230
    %v4232 = vand.u32 %v196, 4294901760
    %v4233 = vsub.f32 %v196, %v4232
    %v4234 = vand.u32 %v4233, 4294901760
    %4235 = vmatpush2.msra.mxu0 %v4234
    %v4236 = vand.u32 %v189, 4294901760
    %v4237 = vsub.f32 %v189, %v4236
    %v4238 = vand.u32 %v4237, 4294901760
    %4239 = vmatprep.subr.mxu0 %v4238
    %v4240 = vand.u32 %v188, 4294901760
    %v4241 = vsub.f32 %v188, %v4240
    %v4242 = vand.u32 %v4241, 4294901760
    %4243 = vmatpush2.msra.mxu0 %v4242
    %v4244 = vand.u32 %v181, 4294901760
    %v4245 = vsub.f32 %v181, %v4244
    %v4246 = vand.u32 %v4245, 4294901760
    %4247 = vmatprep.subr.mxu0 %v4246
    %v4248 = vand.u32 %v180, 4294901760
    %v4249 = vsub.f32 %v180, %v4248
    %v4250 = vand.u32 %v4249, 4294901760
    %4251 = vmatpush2.msra.mxu0 %v4250
    %v4252 = vand.u32 %v173, 4294901760
    %v4253 = vsub.f32 %v173, %v4252
    %v4254 = vand.u32 %v4253, 4294901760
    %4255 = vmatprep.subr.mxu0 %v4254
    %v4256 = vand.u32 %v172, 4294901760
    %v4257 = vsub.f32 %v172, %v4256
    %v4258 = vand.u32 %v4257, 4294901760
    %4259 = vmatpush2.msra.mxu0 %v4258
    %v4260 = vand.u32 %v39, 4294901760
    %4261 = vmatprep.mubr.f32.mxu0 %v4260
    %v4262 = vand.u32 %v38, 4294901760
    %4263 = vmatmul.mubr.f32.gmra.mxu0 %v4262
    %v4264 = vpop.f32.mrf.mxu0
    %v4265 = vadd.f32 %v4000, %v4264
    %v4266 = vpop.f32.mrf.mxu0
    %v4267 = vadd.f32 %v4002, %v4266
    %4268 = vdwg.mxu0
    %v4269 = vand.u32 %v165, 4294901760
    %4270 = vmatprep.subr.mxu0 %v4269
    %v4271 = vand.u32 %v164, 4294901760
    %4272 = vmatpush1.msra.mxu0 %v4271
    %v4273 = vand.u32 %v157, 4294901760
    %4274 = vmatprep.subr.mxu0 %v4273
    %v4275 = vand.u32 %v156, 4294901760
    %4276 = vmatpush1.msra.mxu0 %v4275
    %v4277 = vand.u32 %v149, 4294901760
    %4278 = vmatprep.subr.mxu0 %v4277
    %v4279 = vand.u32 %v148, 4294901760
    %4280 = vmatpush1.msra.mxu0 %v4279
    %v4281 = vand.u32 %v141, 4294901760
    %4282 = vmatprep.subr.mxu0 %v4281
    %v4283 = vand.u32 %v140, 4294901760
    %4284 = vmatpush1.msra.mxu0 %v4283
    %v4285 = vand.u32 %v133, 4294901760
    %4286 = vmatprep.subr.mxu0 %v4285
    %v4287 = vand.u32 %v132, 4294901760
    %4288 = vmatpush1.msra.mxu0 %v4287
    %v4289 = vand.u32 %v125, 4294901760
    %4290 = vmatprep.subr.mxu0 %v4289
    %v4291 = vand.u32 %v124, 4294901760
    %4292 = vmatpush1.msra.mxu0 %v4291
    %v4293 = vand.u32 %v117, 4294901760
    %4294 = vmatprep.subr.mxu0 %v4293
    %v4295 = vand.u32 %v116, 4294901760
    %4296 = vmatpush1.msra.mxu0 %v4295
    %v4297 = vand.u32 %v109, 4294901760
    %4298 = vmatprep.subr.mxu0 %v4297
    %v4299 = vand.u32 %v108, 4294901760
    %4300 = vmatpush1.msra.mxu0 %v4299
    %v4301 = vand.u32 %v101, 4294901760
    %4302 = vmatprep.subr.mxu0 %v4301
    %v4303 = vand.u32 %v100, 4294901760
    %4304 = vmatpush1.msra.mxu0 %v4303
    %v4305 = vand.u32 %v93, 4294901760
    %4306 = vmatprep.subr.mxu0 %v4305
    %v4307 = vand.u32 %v92, 4294901760
    %4308 = vmatpush1.msra.mxu0 %v4307
    %v4309 = vand.u32 %v85, 4294901760
    %4310 = vmatprep.subr.mxu0 %v4309
    %v4311 = vand.u32 %v84, 4294901760
    %4312 = vmatpush1.msra.mxu0 %v4311
    %v4313 = vand.u32 %v77, 4294901760
    %4314 = vmatprep.subr.mxu0 %v4313
    %v4315 = vand.u32 %v76, 4294901760
    %4316 = vmatpush1.msra.mxu0 %v4315
    %v4317 = vand.u32 %v69, 4294901760
    %4318 = vmatprep.subr.mxu0 %v4317
    %v4319 = vand.u32 %v68, 4294901760
    %4320 = vmatpush1.msra.mxu0 %v4319
    %v4321 = vand.u32 %v61, 4294901760
    %4322 = vmatprep.subr.mxu0 %v4321
    %v4323 = vand.u32 %v60, 4294901760
    %4324 = vmatpush1.msra.mxu0 %v4323
    %v4325 = vand.u32 %v53, 4294901760
    %4326 = vmatprep.subr.mxu0 %v4325
    %v4327 = vand.u32 %v52, 4294901760
    %4328 = vmatpush1.msra.mxu0 %v4327
    %v4329 = vand.u32 %v45, 4294901760
    %4330 = vmatprep.subr.mxu0 %v4329
    %v4331 = vand.u32 %v44, 4294901760
    %4332 = vmatpush1.msra.mxu0 %v4331
    %v4333 = vand.u32 %v293, 4294901760
    %4334 = vmatprep.subr.mxu0 %v4333
    %v4335 = vand.u32 %v292, 4294901760
    %4336 = vmatpush2.msra.mxu0 %v4335
    %v4337 = vand.u32 %v285, 4294901760
    %4338 = vmatprep.subr.mxu0 %v4337
    %v4339 = vand.u32 %v284, 4294901760
    %4340 = vmatpush2.msra.mxu0 %v4339
    %v4341 = vand.u32 %v277, 4294901760
    %4342 = vmatprep.subr.mxu0 %v4341
    %v4343 = vand.u32 %v276, 4294901760
    %4344 = vmatpush2.msra.mxu0 %v4343
    %v4345 = vand.u32 %v269, 4294901760
    %4346 = vmatprep.subr.mxu0 %v4345
    %v4347 = vand.u32 %v268, 4294901760
    %4348 = vmatpush2.msra.mxu0 %v4347
    %v4349 = vand.u32 %v261, 4294901760
    %4350 = vmatprep.subr.mxu0 %v4349
    %v4351 = vand.u32 %v260, 4294901760
    %4352 = vmatpush2.msra.mxu0 %v4351
    %v4353 = vand.u32 %v253, 4294901760
    %4354 = vmatprep.subr.mxu0 %v4353
    %v4355 = vand.u32 %v252, 4294901760
    %4356 = vmatpush2.msra.mxu0 %v4355
    %v4357 = vand.u32 %v245, 4294901760
    %4358 = vmatprep.subr.mxu0 %v4357
    %v4359 = vand.u32 %v244, 4294901760
    %4360 = vmatpush2.msra.mxu0 %v4359
    %v4361 = vand.u32 %v237, 4294901760
    %4362 = vmatprep.subr.mxu0 %v4361
    %v4363 = vand.u32 %v236, 4294901760
    %4364 = vmatpush2.msra.mxu0 %v4363
    %v4365 = vand.u32 %v229, 4294901760
    %4366 = vmatprep.subr.mxu0 %v4365
    %v4367 = vand.u32 %v228, 4294901760
    %4368 = vmatpush2.msra.mxu0 %v4367
    %v4369 = vand.u32 %v221, 4294901760
    %4370 = vmatprep.subr.mxu0 %v4369
    %v4371 = vand.u32 %v220, 4294901760
    %4372 = vmatpush2.msra.mxu0 %v4371
    %v4373 = vand.u32 %v213, 4294901760
    %4374 = vmatprep.subr.mxu0 %v4373
    %v4375 = vand.u32 %v212, 4294901760
    %4376 = vmatpush2.msra.mxu0 %v4375
    %v4377 = vand.u32 %v205, 4294901760
    %4378 = vmatprep.subr.mxu0 %v4377
    %v4379 = vand.u32 %v204, 4294901760
    %4380 = vmatpush2.msra.mxu0 %v4379
    %v4381 = vand.u32 %v197, 4294901760
    %4382 = vmatprep.subr.mxu0 %v4381
    %v4383 = vand.u32 %v196, 4294901760
    %4384 = vmatpush2.msra.mxu0 %v4383
    %v4385 = vand.u32 %v189, 4294901760
    %4386 = vmatprep.subr.mxu0 %v4385
    %v4387 = vand.u32 %v188, 4294901760
    %4388 = vmatpush2.msra.mxu0 %v4387
    %v4389 = vand.u32 %v181, 4294901760
    %4390 = vmatprep.subr.mxu0 %v4389
    %v4391 = vand.u32 %v180, 4294901760
    %4392 = vmatpush2.msra.mxu0 %v4391
    %v4393 = vand.u32 %v173, 4294901760
    %4394 = vmatprep.subr.mxu0 %v4393
    %v4395 = vand.u32 %v172, 4294901760
    %4396 = vmatpush2.msra.mxu0 %v4395
    %v4397 = vand.u32 %v39, 4294901760
    %4398 = vmatprep.mubr.f32.mxu0 %v4397
    %v4399 = vand.u32 %v38, 4294901760
    %4400 = vmatmul.mubr.f32.gmra.mxu0 %v4399
    %v4401 = vpop.f32.mrf.mxu0
    %v4402 = vadd.f32 %v4265, %v4401
    %v4403 = vpop.f32.mrf.mxu0
    %v4404 = vadd.f32 %v4267, %v4403
    %4405 = vdwg.mxu0
    %v4406 = vand.u32 %v421, 4294901760
    %4407 = vmatprep.subr.mxu0 %v4406
    %v4408 = vand.u32 %v420, 4294901760
    %4409 = vmatpush1.msra.mxu0 %v4408
    %v4410 = vand.u32 %v413, 4294901760
    %4411 = vmatprep.subr.mxu0 %v4410
    %v4412 = vand.u32 %v412, 4294901760
    %4413 = vmatpush1.msra.mxu0 %v4412
    %v4414 = vand.u32 %v405, 4294901760
    %4415 = vmatprep.subr.mxu0 %v4414
    %v4416 = vand.u32 %v404, 4294901760
    %4417 = vmatpush1.msra.mxu0 %v4416
    %v4418 = vand.u32 %v397, 4294901760
    %4419 = vmatprep.subr.mxu0 %v4418
    %v4420 = vand.u32 %v396, 4294901760
    %4421 = vmatpush1.msra.mxu0 %v4420
    %v4422 = vand.u32 %v389, 4294901760
    %4423 = vmatprep.subr.mxu0 %v4422
    %v4424 = vand.u32 %v388, 4294901760
    %4425 = vmatpush1.msra.mxu0 %v4424
    %v4426 = vand.u32 %v381, 4294901760
    %4427 = vmatprep.subr.mxu0 %v4426
    %v4428 = vand.u32 %v380, 4294901760
    %4429 = vmatpush1.msra.mxu0 %v4428
    %v4430 = vand.u32 %v373, 4294901760
    %4431 = vmatprep.subr.mxu0 %v4430
    %v4432 = vand.u32 %v372, 4294901760
    %4433 = vmatpush1.msra.mxu0 %v4432
    %v4434 = vand.u32 %v365, 4294901760
    %4435 = vmatprep.subr.mxu0 %v4434
    %v4436 = vand.u32 %v364, 4294901760
    %4437 = vmatpush1.msra.mxu0 %v4436
    %v4438 = vand.u32 %v357, 4294901760
    %4439 = vmatprep.subr.mxu0 %v4438
    %v4440 = vand.u32 %v356, 4294901760
    %4441 = vmatpush1.msra.mxu0 %v4440
    %v4442 = vand.u32 %v349, 4294901760
    %4443 = vmatprep.subr.mxu0 %v4442
    %v4444 = vand.u32 %v348, 4294901760
    %4445 = vmatpush1.msra.mxu0 %v4444
    %v4446 = vand.u32 %v341, 4294901760
    %4447 = vmatprep.subr.mxu0 %v4446
    %v4448 = vand.u32 %v340, 4294901760
    %4449 = vmatpush1.msra.mxu0 %v4448
    %v4450 = vand.u32 %v333, 4294901760
    %4451 = vmatprep.subr.mxu0 %v4450
    %v4452 = vand.u32 %v332, 4294901760
    %4453 = vmatpush1.msra.mxu0 %v4452
    %v4454 = vand.u32 %v325, 4294901760
    %4455 = vmatprep.subr.mxu0 %v4454
    %v4456 = vand.u32 %v324, 4294901760
    %4457 = vmatpush1.msra.mxu0 %v4456
    %v4458 = vand.u32 %v317, 4294901760
    %4459 = vmatprep.subr.mxu0 %v4458
    %v4460 = vand.u32 %v316, 4294901760
    %4461 = vmatpush1.msra.mxu0 %v4460
    %v4462 = vand.u32 %v309, 4294901760
    %4463 = vmatprep.subr.mxu0 %v4462
    %v4464 = vand.u32 %v308, 4294901760
    %4465 = vmatpush1.msra.mxu0 %v4464
    %v4466 = vand.u32 %v301, 4294901760
    %4467 = vmatprep.subr.mxu0 %v4466
    %v4468 = vand.u32 %v300, 4294901760
    %4469 = vmatpush1.msra.mxu0 %v4468
    %v4470 = vand.u32 %v549, 4294901760
    %4471 = vmatprep.subr.mxu0 %v4470
    %v4472 = vand.u32 %v548, 4294901760
    %4473 = vmatpush2.msra.mxu0 %v4472
    %v4474 = vand.u32 %v541, 4294901760
    %4475 = vmatprep.subr.mxu0 %v4474
    %v4476 = vand.u32 %v540, 4294901760
    %4477 = vmatpush2.msra.mxu0 %v4476
    %v4478 = vand.u32 %v533, 4294901760
    %4479 = vmatprep.subr.mxu0 %v4478
    %v4480 = vand.u32 %v532, 4294901760
    %4481 = vmatpush2.msra.mxu0 %v4480
    %v4482 = vand.u32 %v525, 4294901760
    %4483 = vmatprep.subr.mxu0 %v4482
    %v4484 = vand.u32 %v524, 4294901760
    %4485 = vmatpush2.msra.mxu0 %v4484
    %v4486 = vand.u32 %v517, 4294901760
    %4487 = vmatprep.subr.mxu0 %v4486
    %v4488 = vand.u32 %v516, 4294901760
    %4489 = vmatpush2.msra.mxu0 %v4488
    %v4490 = vand.u32 %v509, 4294901760
    %4491 = vmatprep.subr.mxu0 %v4490
    %v4492 = vand.u32 %v508, 4294901760
    %4493 = vmatpush2.msra.mxu0 %v4492
    %v4494 = vand.u32 %v501, 4294901760
    %4495 = vmatprep.subr.mxu0 %v4494
    %v4496 = vand.u32 %v500, 4294901760
    %4497 = vmatpush2.msra.mxu0 %v4496
    %v4498 = vand.u32 %v493, 4294901760
    %4499 = vmatprep.subr.mxu0 %v4498
    %v4500 = vand.u32 %v492, 4294901760
    %4501 = vmatpush2.msra.mxu0 %v4500
    %v4502 = vand.u32 %v485, 4294901760
    %4503 = vmatprep.subr.mxu0 %v4502
    %v4504 = vand.u32 %v484, 4294901760
    %4505 = vmatpush2.msra.mxu0 %v4504
    %v4506 = vand.u32 %v477, 4294901760
    %4507 = vmatprep.subr.mxu0 %v4506
    %v4508 = vand.u32 %v476, 4294901760
    %4509 = vmatpush2.msra.mxu0 %v4508
    %v4510 = vand.u32 %v469, 4294901760
    %4511 = vmatprep.subr.mxu0 %v4510
    %v4512 = vand.u32 %v468, 4294901760
    %4513 = vmatpush2.msra.mxu0 %v4512
    %v4514 = vand.u32 %v461, 4294901760
    %4515 = vmatprep.subr.mxu0 %v4514
    %v4516 = vand.u32 %v460, 4294901760
    %4517 = vmatpush2.msra.mxu0 %v4516
    %v4518 = vand.u32 %v453, 4294901760
    %4519 = vmatprep.subr.mxu0 %v4518
    %v4520 = vand.u32 %v452, 4294901760
    %4521 = vmatpush2.msra.mxu0 %v4520
    %v4522 = vand.u32 %v445, 4294901760
    %4523 = vmatprep.subr.mxu0 %v4522
    %v4524 = vand.u32 %v444, 4294901760
    %4525 = vmatpush2.msra.mxu0 %v4524
    %v4526 = vand.u32 %v437, 4294901760
    %4527 = vmatprep.subr.mxu0 %v4526
    %v4528 = vand.u32 %v436, 4294901760
    %4529 = vmatpush2.msra.mxu0 %v4528
    %v4530 = vand.u32 %v429, 4294901760
    %4531 = vmatprep.subr.mxu0 %v4530
    %v4532 = vand.u32 %v428, 4294901760
    %4533 = vmatpush2.msra.mxu0 %v4532
    %v4534 = vand.u32 %v41, 4294901760
    %v4535 = vsub.f32 %v41, %v4534
    %v4536 = vand.u32 %v4535, 4294901760
    %v4537 = vsub.f32 %v4535, %v4536
    %v4538 = vand.u32 %v4537, 4294901760
    %4539 = vmatprep.mubr.f32.mxu0 %v4538
    %v4540 = vand.u32 %v40, 4294901760
    %v4541 = vsub.f32 %v40, %v4540
    %v4542 = vand.u32 %v4541, 4294901760
    %v4543 = vsub.f32 %v4541, %v4542
    %v4544 = vand.u32 %v4543, 4294901760
    %4545 = vmatmul.mubr.f32.gmra.mxu0 %v4544
    %v4546 = vpop.f32.mrf.mxu0
    %v4547 = vadd.f32 %v4402, %v4546
    %v4548 = vpop.f32.mrf.mxu0
    %v4549 = vadd.f32 %v4404, %v4548
    %4550 = vdwg.mxu0
    %v4551 = vand.u32 %v421, 4294901760
    %v4552 = vsub.f32 %v421, %v4551
    %v4553 = vand.u32 %v4552, 4294901760
    %v4554 = vsub.f32 %v4552, %v4553
    %v4555 = vand.u32 %v4554, 4294901760
    %4556 = vmatprep.subr.mxu0 %v4555
    %v4557 = vand.u32 %v420, 4294901760
    %v4558 = vsub.f32 %v420, %v4557
    %v4559 = vand.u32 %v4558, 4294901760
    %v4560 = vsub.f32 %v4558, %v4559
    %v4561 = vand.u32 %v4560, 4294901760
    %4562 = vmatpush1.msra.mxu0 %v4561
    %v4563 = vand.u32 %v413, 4294901760
    %v4564 = vsub.f32 %v413, %v4563
    %v4565 = vand.u32 %v4564, 4294901760
    %v4566 = vsub.f32 %v4564, %v4565
    %v4567 = vand.u32 %v4566, 4294901760
    %4568 = vmatprep.subr.mxu0 %v4567
    %v4569 = vand.u32 %v412, 4294901760
    %v4570 = vsub.f32 %v412, %v4569
    %v4571 = vand.u32 %v4570, 4294901760
    %v4572 = vsub.f32 %v4570, %v4571
    %v4573 = vand.u32 %v4572, 4294901760
    %4574 = vmatpush1.msra.mxu0 %v4573
    %v4575 = vand.u32 %v405, 4294901760
    %v4576 = vsub.f32 %v405, %v4575
    %v4577 = vand.u32 %v4576, 4294901760
    %v4578 = vsub.f32 %v4576, %v4577
    %v4579 = vand.u32 %v4578, 4294901760
    %4580 = vmatprep.subr.mxu0 %v4579
    %v4581 = vand.u32 %v404, 4294901760
    %v4582 = vsub.f32 %v404, %v4581
    %v4583 = vand.u32 %v4582, 4294901760
    %v4584 = vsub.f32 %v4582, %v4583
    %v4585 = vand.u32 %v4584, 4294901760
    %4586 = vmatpush1.msra.mxu0 %v4585
    %v4587 = vand.u32 %v397, 4294901760
    %v4588 = vsub.f32 %v397, %v4587
    %v4589 = vand.u32 %v4588, 4294901760
    %v4590 = vsub.f32 %v4588, %v4589
    %v4591 = vand.u32 %v4590, 4294901760
    %4592 = vmatprep.subr.mxu0 %v4591
    %v4593 = vand.u32 %v396, 4294901760
    %v4594 = vsub.f32 %v396, %v4593
    %v4595 = vand.u32 %v4594, 4294901760
    %v4596 = vsub.f32 %v4594, %v4595
    %v4597 = vand.u32 %v4596, 4294901760
    %4598 = vmatpush1.msra.mxu0 %v4597
    %v4599 = vand.u32 %v389, 4294901760
    %v4600 = vsub.f32 %v389, %v4599
    %v4601 = vand.u32 %v4600, 4294901760
    %v4602 = vsub.f32 %v4600, %v4601
    %v4603 = vand.u32 %v4602, 4294901760
    %4604 = vmatprep.subr.mxu0 %v4603
    %v4605 = vand.u32 %v388, 4294901760
    %v4606 = vsub.f32 %v388, %v4605
    %v4607 = vand.u32 %v4606, 4294901760
    %v4608 = vsub.f32 %v4606, %v4607
    %v4609 = vand.u32 %v4608, 4294901760
    %4610 = vmatpush1.msra.mxu0 %v4609
    %v4611 = vand.u32 %v381, 4294901760
    %v4612 = vsub.f32 %v381, %v4611
    %v4613 = vand.u32 %v4612, 4294901760
    %v4614 = vsub.f32 %v4612, %v4613
    %v4615 = vand.u32 %v4614, 4294901760
    %4616 = vmatprep.subr.mxu0 %v4615
    %v4617 = vand.u32 %v380, 4294901760
    %v4618 = vsub.f32 %v380, %v4617
    %v4619 = vand.u32 %v4618, 4294901760
    %v4620 = vsub.f32 %v4618, %v4619
    %v4621 = vand.u32 %v4620, 4294901760
    %4622 = vmatpush1.msra.mxu0 %v4621
    %v4623 = vand.u32 %v373, 4294901760
    %v4624 = vsub.f32 %v373, %v4623
    %v4625 = vand.u32 %v4624, 4294901760
    %v4626 = vsub.f32 %v4624, %v4625
    %v4627 = vand.u32 %v4626, 4294901760
    %4628 = vmatprep.subr.mxu0 %v4627
    %v4629 = vand.u32 %v372, 4294901760
    %v4630 = vsub.f32 %v372, %v4629
    %v4631 = vand.u32 %v4630, 4294901760
    %v4632 = vsub.f32 %v4630, %v4631
    %v4633 = vand.u32 %v4632, 4294901760
    %4634 = vmatpush1.msra.mxu0 %v4633
    %v4635 = vand.u32 %v365, 4294901760
    %v4636 = vsub.f32 %v365, %v4635
    %v4637 = vand.u32 %v4636, 4294901760
    %v4638 = vsub.f32 %v4636, %v4637
    %v4639 = vand.u32 %v4638, 4294901760
    %4640 = vmatprep.subr.mxu0 %v4639
    %v4641 = vand.u32 %v364, 4294901760
    %v4642 = vsub.f32 %v364, %v4641
    %v4643 = vand.u32 %v4642, 4294901760
    %v4644 = vsub.f32 %v4642, %v4643
    %v4645 = vand.u32 %v4644, 4294901760
    %4646 = vmatpush1.msra.mxu0 %v4645
    %v4647 = vand.u32 %v357, 4294901760
    %v4648 = vsub.f32 %v357, %v4647
    %v4649 = vand.u32 %v4648, 4294901760
    %v4650 = vsub.f32 %v4648, %v4649
    %v4651 = vand.u32 %v4650, 4294901760
    %4652 = vmatprep.subr.mxu0 %v4651
    %v4653 = vand.u32 %v356, 4294901760
    %v4654 = vsub.f32 %v356, %v4653
    %v4655 = vand.u32 %v4654, 4294901760
    %v4656 = vsub.f32 %v4654, %v4655
    %v4657 = vand.u32 %v4656, 4294901760
    %4658 = vmatpush1.msra.mxu0 %v4657
    %v4659 = vand.u32 %v349, 4294901760
    %v4660 = vsub.f32 %v349, %v4659
    %v4661 = vand.u32 %v4660, 4294901760
    %v4662 = vsub.f32 %v4660, %v4661
    %v4663 = vand.u32 %v4662, 4294901760
    %4664 = vmatprep.subr.mxu0 %v4663
    %v4665 = vand.u32 %v348, 4294901760
    %v4666 = vsub.f32 %v348, %v4665
    %v4667 = vand.u32 %v4666, 4294901760
    %v4668 = vsub.f32 %v4666, %v4667
    %v4669 = vand.u32 %v4668, 4294901760
    %4670 = vmatpush1.msra.mxu0 %v4669
    %v4671 = vand.u32 %v341, 4294901760
    %v4672 = vsub.f32 %v341, %v4671
    %v4673 = vand.u32 %v4672, 4294901760
    %v4674 = vsub.f32 %v4672, %v4673
    %v4675 = vand.u32 %v4674, 4294901760
    %4676 = vmatprep.subr.mxu0 %v4675
    %v4677 = vand.u32 %v340, 4294901760
    %v4678 = vsub.f32 %v340, %v4677
    %v4679 = vand.u32 %v4678, 4294901760
    %v4680 = vsub.f32 %v4678, %v4679
    %v4681 = vand.u32 %v4680, 4294901760
    %4682 = vmatpush1.msra.mxu0 %v4681
    %v4683 = vand.u32 %v333, 4294901760
    %v4684 = vsub.f32 %v333, %v4683
    %v4685 = vand.u32 %v4684, 4294901760
    %v4686 = vsub.f32 %v4684, %v4685
    %v4687 = vand.u32 %v4686, 4294901760
    %4688 = vmatprep.subr.mxu0 %v4687
    %v4689 = vand.u32 %v332, 4294901760
    %v4690 = vsub.f32 %v332, %v4689
    %v4691 = vand.u32 %v4690, 4294901760
    %v4692 = vsub.f32 %v4690, %v4691
    %v4693 = vand.u32 %v4692, 4294901760
    %4694 = vmatpush1.msra.mxu0 %v4693
    %v4695 = vand.u32 %v325, 4294901760
    %v4696 = vsub.f32 %v325, %v4695
    %v4697 = vand.u32 %v4696, 4294901760
    %v4698 = vsub.f32 %v4696, %v4697
    %v4699 = vand.u32 %v4698, 4294901760
    %4700 = vmatprep.subr.mxu0 %v4699
    %v4701 = vand.u32 %v324, 4294901760
    %v4702 = vsub.f32 %v324, %v4701
    %v4703 = vand.u32 %v4702, 4294901760
    %v4704 = vsub.f32 %v4702, %v4703
    %v4705 = vand.u32 %v4704, 4294901760
    %4706 = vmatpush1.msra.mxu0 %v4705
    %v4707 = vand.u32 %v317, 4294901760
    %v4708 = vsub.f32 %v317, %v4707
    %v4709 = vand.u32 %v4708, 4294901760
    %v4710 = vsub.f32 %v4708, %v4709
    %v4711 = vand.u32 %v4710, 4294901760
    %4712 = vmatprep.subr.mxu0 %v4711
    %v4713 = vand.u32 %v316, 4294901760
    %v4714 = vsub.f32 %v316, %v4713
    %v4715 = vand.u32 %v4714, 4294901760
    %v4716 = vsub.f32 %v4714, %v4715
    %v4717 = vand.u32 %v4716, 4294901760
    %4718 = vmatpush1.msra.mxu0 %v4717
    %v4719 = vand.u32 %v309, 4294901760
    %v4720 = vsub.f32 %v309, %v4719
    %v4721 = vand.u32 %v4720, 4294901760
    %v4722 = vsub.f32 %v4720, %v4721
    %v4723 = vand.u32 %v4722, 4294901760
    %4724 = vmatprep.subr.mxu0 %v4723
    %v4725 = vand.u32 %v308, 4294901760
    %v4726 = vsub.f32 %v308, %v4725
    %v4727 = vand.u32 %v4726, 4294901760
    %v4728 = vsub.f32 %v4726, %v4727
    %v4729 = vand.u32 %v4728, 4294901760
    %4730 = vmatpush1.msra.mxu0 %v4729
    %v4731 = vand.u32 %v301, 4294901760
    %v4732 = vsub.f32 %v301, %v4731
    %v4733 = vand.u32 %v4732, 4294901760
    %v4734 = vsub.f32 %v4732, %v4733
    %v4735 = vand.u32 %v4734, 4294901760
    %4736 = vmatprep.subr.mxu0 %v4735
    %v4737 = vand.u32 %v300, 4294901760
    %v4738 = vsub.f32 %v300, %v4737
    %v4739 = vand.u32 %v4738, 4294901760
    %v4740 = vsub.f32 %v4738, %v4739
    %v4741 = vand.u32 %v4740, 4294901760
    %4742 = vmatpush1.msra.mxu0 %v4741
    %v4743 = vand.u32 %v549, 4294901760
    %v4744 = vsub.f32 %v549, %v4743
    %v4745 = vand.u32 %v4744, 4294901760
    %v4746 = vsub.f32 %v4744, %v4745
    %v4747 = vand.u32 %v4746, 4294901760
    %4748 = vmatprep.subr.mxu0 %v4747
    %v4749 = vand.u32 %v548, 4294901760
    %v4750 = vsub.f32 %v548, %v4749
    %v4751 = vand.u32 %v4750, 4294901760
    %v4752 = vsub.f32 %v4750, %v4751
    %v4753 = vand.u32 %v4752, 4294901760
    %4754 = vmatpush2.msra.mxu0 %v4753
    %v4755 = vand.u32 %v541, 4294901760
    %v4756 = vsub.f32 %v541, %v4755
    %v4757 = vand.u32 %v4756, 4294901760
    %v4758 = vsub.f32 %v4756, %v4757
    %v4759 = vand.u32 %v4758, 4294901760
    %4760 = vmatprep.subr.mxu0 %v4759
    %v4761 = vand.u32 %v540, 4294901760
    %v4762 = vsub.f32 %v540, %v4761
    %v4763 = vand.u32 %v4762, 4294901760
    %v4764 = vsub.f32 %v4762, %v4763
    %v4765 = vand.u32 %v4764, 4294901760
    %4766 = vmatpush2.msra.mxu0 %v4765
    %v4767 = vand.u32 %v533, 4294901760
    %v4768 = vsub.f32 %v533, %v4767
    %v4769 = vand.u32 %v4768, 4294901760
    %v4770 = vsub.f32 %v4768, %v4769
    %v4771 = vand.u32 %v4770, 4294901760
    %4772 = vmatprep.subr.mxu0 %v4771
    %v4773 = vand.u32 %v532, 4294901760
    %v4774 = vsub.f32 %v532, %v4773
    %v4775 = vand.u32 %v4774, 4294901760
    %v4776 = vsub.f32 %v4774, %v4775
    %v4777 = vand.u32 %v4776, 4294901760
    %4778 = vmatpush2.msra.mxu0 %v4777
    %v4779 = vand.u32 %v525, 4294901760
    %v4780 = vsub.f32 %v525, %v4779
    %v4781 = vand.u32 %v4780, 4294901760
    %v4782 = vsub.f32 %v4780, %v4781
    %v4783 = vand.u32 %v4782, 4294901760
    %4784 = vmatprep.subr.mxu0 %v4783
    %v4785 = vand.u32 %v524, 4294901760
    %v4786 = vsub.f32 %v524, %v4785
    %v4787 = vand.u32 %v4786, 4294901760
    %v4788 = vsub.f32 %v4786, %v4787
    %v4789 = vand.u32 %v4788, 4294901760
    %4790 = vmatpush2.msra.mxu0 %v4789
    %v4791 = vand.u32 %v517, 4294901760
    %v4792 = vsub.f32 %v517, %v4791
    %v4793 = vand.u32 %v4792, 4294901760
    %v4794 = vsub.f32 %v4792, %v4793
    %v4795 = vand.u32 %v4794, 4294901760
    %4796 = vmatprep.subr.mxu0 %v4795
    %v4797 = vand.u32 %v516, 4294901760
    %v4798 = vsub.f32 %v516, %v4797
    %v4799 = vand.u32 %v4798, 4294901760
    %v4800 = vsub.f32 %v4798, %v4799
    %v4801 = vand.u32 %v4800, 4294901760
    %4802 = vmatpush2.msra.mxu0 %v4801
    %v4803 = vand.u32 %v509, 4294901760
    %v4804 = vsub.f32 %v509, %v4803
    %v4805 = vand.u32 %v4804, 4294901760
    %v4806 = vsub.f32 %v4804, %v4805
    %v4807 = vand.u32 %v4806, 4294901760
    %4808 = vmatprep.subr.mxu0 %v4807
    %v4809 = vand.u32 %v508, 4294901760
    %v4810 = vsub.f32 %v508, %v4809
    %v4811 = vand.u32 %v4810, 4294901760
    %v4812 = vsub.f32 %v4810, %v4811
    %v4813 = vand.u32 %v4812, 4294901760
    %4814 = vmatpush2.msra.mxu0 %v4813
    %v4815 = vand.u32 %v501, 4294901760
    %v4816 = vsub.f32 %v501, %v4815
    %v4817 = vand.u32 %v4816, 4294901760
    %v4818 = vsub.f32 %v4816, %v4817
    %v4819 = vand.u32 %v4818, 4294901760
    %4820 = vmatprep.subr.mxu0 %v4819
    %v4821 = vand.u32 %v500, 4294901760
    %v4822 = vsub.f32 %v500, %v4821
    %v4823 = vand.u32 %v4822, 4294901760
    %v4824 = vsub.f32 %v4822, %v4823
    %v4825 = vand.u32 %v4824, 4294901760
    %4826 = vmatpush2.msra.mxu0 %v4825
    %v4827 = vand.u32 %v493, 4294901760
    %v4828 = vsub.f32 %v493, %v4827
    %v4829 = vand.u32 %v4828, 4294901760
    %v4830 = vsub.f32 %v4828, %v4829
    %v4831 = vand.u32 %v4830, 4294901760
    %4832 = vmatprep.subr.mxu0 %v4831
    %v4833 = vand.u32 %v492, 4294901760
    %v4834 = vsub.f32 %v492, %v4833
    %v4835 = vand.u32 %v4834, 4294901760
    %v4836 = vsub.f32 %v4834, %v4835
    %v4837 = vand.u32 %v4836, 4294901760
    %4838 = vmatpush2.msra.mxu0 %v4837
    %v4839 = vand.u32 %v485, 4294901760
    %v4840 = vsub.f32 %v485, %v4839
    %v4841 = vand.u32 %v4840, 4294901760
    %v4842 = vsub.f32 %v4840, %v4841
    %v4843 = vand.u32 %v4842, 4294901760
    %4844 = vmatprep.subr.mxu0 %v4843
    %v4845 = vand.u32 %v484, 4294901760
    %v4846 = vsub.f32 %v484, %v4845
    %v4847 = vand.u32 %v4846, 4294901760
    %v4848 = vsub.f32 %v4846, %v4847
    %v4849 = vand.u32 %v4848, 4294901760
    %4850 = vmatpush2.msra.mxu0 %v4849
    %v4851 = vand.u32 %v477, 4294901760
    %v4852 = vsub.f32 %v477, %v4851
    %v4853 = vand.u32 %v4852, 4294901760
    %v4854 = vsub.f32 %v4852, %v4853
    %v4855 = vand.u32 %v4854, 4294901760
    %4856 = vmatprep.subr.mxu0 %v4855
    %v4857 = vand.u32 %v476, 4294901760
    %v4858 = vsub.f32 %v476, %v4857
    %v4859 = vand.u32 %v4858, 4294901760
    %v4860 = vsub.f32 %v4858, %v4859
    %v4861 = vand.u32 %v4860, 4294901760
    %4862 = vmatpush2.msra.mxu0 %v4861
    %v4863 = vand.u32 %v469, 4294901760
    %v4864 = vsub.f32 %v469, %v4863
    %v4865 = vand.u32 %v4864, 4294901760
    %v4866 = vsub.f32 %v4864, %v4865
    %v4867 = vand.u32 %v4866, 4294901760
    %4868 = vmatprep.subr.mxu0 %v4867
    %v4869 = vand.u32 %v468, 4294901760
    %v4870 = vsub.f32 %v468, %v4869
    %v4871 = vand.u32 %v4870, 4294901760
    %v4872 = vsub.f32 %v4870, %v4871
    %v4873 = vand.u32 %v4872, 4294901760
    %4874 = vmatpush2.msra.mxu0 %v4873
    %v4875 = vand.u32 %v461, 4294901760
    %v4876 = vsub.f32 %v461, %v4875
    %v4877 = vand.u32 %v4876, 4294901760
    %v4878 = vsub.f32 %v4876, %v4877
    %v4879 = vand.u32 %v4878, 4294901760
    %4880 = vmatprep.subr.mxu0 %v4879
    %v4881 = vand.u32 %v460, 4294901760
    %v4882 = vsub.f32 %v460, %v4881
    %v4883 = vand.u32 %v4882, 4294901760
    %v4884 = vsub.f32 %v4882, %v4883
    %v4885 = vand.u32 %v4884, 4294901760
    %4886 = vmatpush2.msra.mxu0 %v4885
    %v4887 = vand.u32 %v453, 4294901760
    %v4888 = vsub.f32 %v453, %v4887
    %v4889 = vand.u32 %v4888, 4294901760
    %v4890 = vsub.f32 %v4888, %v4889
    %v4891 = vand.u32 %v4890, 4294901760
    %4892 = vmatprep.subr.mxu0 %v4891
    %v4893 = vand.u32 %v452, 4294901760
    %v4894 = vsub.f32 %v452, %v4893
    %v4895 = vand.u32 %v4894, 4294901760
    %v4896 = vsub.f32 %v4894, %v4895
    %v4897 = vand.u32 %v4896, 4294901760
    %4898 = vmatpush2.msra.mxu0 %v4897
    %v4899 = vand.u32 %v445, 4294901760
    %v4900 = vsub.f32 %v445, %v4899
    %v4901 = vand.u32 %v4900, 4294901760
    %v4902 = vsub.f32 %v4900, %v4901
    %v4903 = vand.u32 %v4902, 4294901760
    %4904 = vmatprep.subr.mxu0 %v4903
    %v4905 = vand.u32 %v444, 4294901760
    %v4906 = vsub.f32 %v444, %v4905
    %v4907 = vand.u32 %v4906, 4294901760
    %v4908 = vsub.f32 %v4906, %v4907
    %v4909 = vand.u32 %v4908, 4294901760
    %4910 = vmatpush2.msra.mxu0 %v4909
    %v4911 = vand.u32 %v437, 4294901760
    %v4912 = vsub.f32 %v437, %v4911
    %v4913 = vand.u32 %v4912, 4294901760
    %v4914 = vsub.f32 %v4912, %v4913
    %v4915 = vand.u32 %v4914, 4294901760
    %4916 = vmatprep.subr.mxu0 %v4915
    %v4917 = vand.u32 %v436, 4294901760
    %v4918 = vsub.f32 %v436, %v4917
    %v4919 = vand.u32 %v4918, 4294901760
    %v4920 = vsub.f32 %v4918, %v4919
    %v4921 = vand.u32 %v4920, 4294901760
    %4922 = vmatpush2.msra.mxu0 %v4921
    %v4923 = vand.u32 %v429, 4294901760
    %v4924 = vsub.f32 %v429, %v4923
    %v4925 = vand.u32 %v4924, 4294901760
    %v4926 = vsub.f32 %v4924, %v4925
    %v4927 = vand.u32 %v4926, 4294901760
    %4928 = vmatprep.subr.mxu0 %v4927
    %v4929 = vand.u32 %v428, 4294901760
    %v4930 = vsub.f32 %v428, %v4929
    %v4931 = vand.u32 %v4930, 4294901760
    %v4932 = vsub.f32 %v4930, %v4931
    %v4933 = vand.u32 %v4932, 4294901760
    %4934 = vmatpush2.msra.mxu0 %v4933
    %v4935 = vand.u32 %v41, 4294901760
    %4936 = vmatprep.mubr.f32.mxu0 %v4935
    %v4937 = vand.u32 %v40, 4294901760
    %4938 = vmatmul.mubr.f32.gmra.mxu0 %v4937
    %v4939 = vpop.f32.mrf.mxu0
    %v4940 = vadd.f32 %v4547, %v4939
    %v4941 = vpop.f32.mrf.mxu0
    %v4942 = vadd.f32 %v4549, %v4941
    %4943 = vdwg.mxu0
    %v4944 = vand.u32 %v421, 4294901760
    %v4945 = vsub.f32 %v421, %v4944
    %4946 = vmatprep.subr.mxu0 %v4945
    %v4947 = vand.u32 %v420, 4294901760
    %v4948 = vsub.f32 %v420, %v4947
    %4949 = vmatpush1.msra.mxu0 %v4948
    %v4950 = vand.u32 %v413, 4294901760
    %v4951 = vsub.f32 %v413, %v4950
    %4952 = vmatprep.subr.mxu0 %v4951
    %v4953 = vand.u32 %v412, 4294901760
    %v4954 = vsub.f32 %v412, %v4953
    %4955 = vmatpush1.msra.mxu0 %v4954
    %v4956 = vand.u32 %v405, 4294901760
    %v4957 = vsub.f32 %v405, %v4956
    %4958 = vmatprep.subr.mxu0 %v4957
    %v4959 = vand.u32 %v404, 4294901760
    %v4960 = vsub.f32 %v404, %v4959
    %4961 = vmatpush1.msra.mxu0 %v4960
    %v4962 = vand.u32 %v397, 4294901760
    %v4963 = vsub.f32 %v397, %v4962
    %4964 = vmatprep.subr.mxu0 %v4963
    %v4965 = vand.u32 %v396, 4294901760
    %v4966 = vsub.f32 %v396, %v4965
    %4967 = vmatpush1.msra.mxu0 %v4966
    %v4968 = vand.u32 %v389, 4294901760
    %v4969 = vsub.f32 %v389, %v4968
    %4970 = vmatprep.subr.mxu0 %v4969
    %v4971 = vand.u32 %v388, 4294901760
    %v4972 = vsub.f32 %v388, %v4971
    %4973 = vmatpush1.msra.mxu0 %v4972
    %v4974 = vand.u32 %v381, 4294901760
    %v4975 = vsub.f32 %v381, %v4974
    %4976 = vmatprep.subr.mxu0 %v4975
    %v4977 = vand.u32 %v380, 4294901760
    %v4978 = vsub.f32 %v380, %v4977
    %4979 = vmatpush1.msra.mxu0 %v4978
    %v4980 = vand.u32 %v373, 4294901760
    %v4981 = vsub.f32 %v373, %v4980
    %4982 = vmatprep.subr.mxu0 %v4981
    %v4983 = vand.u32 %v372, 4294901760
    %v4984 = vsub.f32 %v372, %v4983
    %4985 = vmatpush1.msra.mxu0 %v4984
    %v4986 = vand.u32 %v365, 4294901760
    %v4987 = vsub.f32 %v365, %v4986
    %4988 = vmatprep.subr.mxu0 %v4987
    %v4989 = vand.u32 %v364, 4294901760
    %v4990 = vsub.f32 %v364, %v4989
    %4991 = vmatpush1.msra.mxu0 %v4990
    %v4992 = vand.u32 %v357, 4294901760
    %v4993 = vsub.f32 %v357, %v4992
    %4994 = vmatprep.subr.mxu0 %v4993
    %v4995 = vand.u32 %v356, 4294901760
    %v4996 = vsub.f32 %v356, %v4995
    %4997 = vmatpush1.msra.mxu0 %v4996
    %v4998 = vand.u32 %v349, 4294901760
    %v4999 = vsub.f32 %v349, %v4998
    %5000 = vmatprep.subr.mxu0 %v4999
    %v5001 = vand.u32 %v348, 4294901760
    %v5002 = vsub.f32 %v348, %v5001
    %5003 = vmatpush1.msra.mxu0 %v5002
    %v5004 = vand.u32 %v341, 4294901760
    %v5005 = vsub.f32 %v341, %v5004
    %5006 = vmatprep.subr.mxu0 %v5005
    %v5007 = vand.u32 %v340, 4294901760
    %v5008 = vsub.f32 %v340, %v5007
    %5009 = vmatpush1.msra.mxu0 %v5008
    %v5010 = vand.u32 %v333, 4294901760
    %v5011 = vsub.f32 %v333, %v5010
    %5012 = vmatprep.subr.mxu0 %v5011
    %v5013 = vand.u32 %v332, 4294901760
    %v5014 = vsub.f32 %v332, %v5013
    %5015 = vmatpush1.msra.mxu0 %v5014
    %v5016 = vand.u32 %v325, 4294901760
    %v5017 = vsub.f32 %v325, %v5016
    %5018 = vmatprep.subr.mxu0 %v5017
    %v5019 = vand.u32 %v324, 4294901760
    %v5020 = vsub.f32 %v324, %v5019
    %5021 = vmatpush1.msra.mxu0 %v5020
    %v5022 = vand.u32 %v317, 4294901760
    %v5023 = vsub.f32 %v317, %v5022
    %5024 = vmatprep.subr.mxu0 %v5023
    %v5025 = vand.u32 %v316, 4294901760
    %v5026 = vsub.f32 %v316, %v5025
    %5027 = vmatpush1.msra.mxu0 %v5026
    %v5028 = vand.u32 %v309, 4294901760
    %v5029 = vsub.f32 %v309, %v5028
    %5030 = vmatprep.subr.mxu0 %v5029
    %v5031 = vand.u32 %v308, 4294901760
    %v5032 = vsub.f32 %v308, %v5031
    %5033 = vmatpush1.msra.mxu0 %v5032
    %v5034 = vand.u32 %v301, 4294901760
    %v5035 = vsub.f32 %v301, %v5034
    %5036 = vmatprep.subr.mxu0 %v5035
    %v5037 = vand.u32 %v300, 4294901760
    %v5038 = vsub.f32 %v300, %v5037
    %5039 = vmatpush1.msra.mxu0 %v5038
    %v5040 = vand.u32 %v549, 4294901760
    %v5041 = vsub.f32 %v549, %v5040
    %5042 = vmatprep.subr.mxu0 %v5041
    %v5043 = vand.u32 %v548, 4294901760
    %v5044 = vsub.f32 %v548, %v5043
    %5045 = vmatpush2.msra.mxu0 %v5044
    %v5046 = vand.u32 %v541, 4294901760
    %v5047 = vsub.f32 %v541, %v5046
    %5048 = vmatprep.subr.mxu0 %v5047
    %v5049 = vand.u32 %v540, 4294901760
    %v5050 = vsub.f32 %v540, %v5049
    %5051 = vmatpush2.msra.mxu0 %v5050
    %v5052 = vand.u32 %v533, 4294901760
    %v5053 = vsub.f32 %v533, %v5052
    %5054 = vmatprep.subr.mxu0 %v5053
    %v5055 = vand.u32 %v532, 4294901760
    %v5056 = vsub.f32 %v532, %v5055
    %5057 = vmatpush2.msra.mxu0 %v5056
    %v5058 = vand.u32 %v525, 4294901760
    %v5059 = vsub.f32 %v525, %v5058
    %5060 = vmatprep.subr.mxu0 %v5059
    %v5061 = vand.u32 %v524, 4294901760
    %v5062 = vsub.f32 %v524, %v5061
    %5063 = vmatpush2.msra.mxu0 %v5062
    %v5064 = vand.u32 %v517, 4294901760
    %v5065 = vsub.f32 %v517, %v5064
    %5066 = vmatprep.subr.mxu0 %v5065
    %v5067 = vand.u32 %v516, 4294901760
    %v5068 = vsub.f32 %v516, %v5067
    %5069 = vmatpush2.msra.mxu0 %v5068
    %v5070 = vand.u32 %v509, 4294901760
    %v5071 = vsub.f32 %v509, %v5070
    %5072 = vmatprep.subr.mxu0 %v5071
    %v5073 = vand.u32 %v508, 4294901760
    %v5074 = vsub.f32 %v508, %v5073
    %5075 = vmatpush2.msra.mxu0 %v5074
    %v5076 = vand.u32 %v501, 4294901760
    %v5077 = vsub.f32 %v501, %v5076
    %5078 = vmatprep.subr.mxu0 %v5077
    %v5079 = vand.u32 %v500, 4294901760
    %v5080 = vsub.f32 %v500, %v5079
    %5081 = vmatpush2.msra.mxu0 %v5080
    %v5082 = vand.u32 %v493, 4294901760
    %v5083 = vsub.f32 %v493, %v5082
    %5084 = vmatprep.subr.mxu0 %v5083
    %v5085 = vand.u32 %v492, 4294901760
    %v5086 = vsub.f32 %v492, %v5085
    %5087 = vmatpush2.msra.mxu0 %v5086
    %v5088 = vand.u32 %v485, 4294901760
    %v5089 = vsub.f32 %v485, %v5088
    %5090 = vmatprep.subr.mxu0 %v5089
    %v5091 = vand.u32 %v484, 4294901760
    %v5092 = vsub.f32 %v484, %v5091
    %5093 = vmatpush2.msra.mxu0 %v5092
    %v5094 = vand.u32 %v477, 4294901760
    %v5095 = vsub.f32 %v477, %v5094
    %5096 = vmatprep.subr.mxu0 %v5095
    %v5097 = vand.u32 %v476, 4294901760
    %v5098 = vsub.f32 %v476, %v5097
    %5099 = vmatpush2.msra.mxu0 %v5098
    %v5100 = vand.u32 %v469, 4294901760
    %v5101 = vsub.f32 %v469, %v5100
    %5102 = vmatprep.subr.mxu0 %v5101
    %v5103 = vand.u32 %v468, 4294901760
    %v5104 = vsub.f32 %v468, %v5103
    %5105 = vmatpush2.msra.mxu0 %v5104
    %v5106 = vand.u32 %v461, 4294901760
    %v5107 = vsub.f32 %v461, %v5106
    %5108 = vmatprep.subr.mxu0 %v5107
    %v5109 = vand.u32 %v460, 4294901760
    %v5110 = vsub.f32 %v460, %v5109
    %5111 = vmatpush2.msra.mxu0 %v5110
    %v5112 = vand.u32 %v453, 4294901760
    %v5113 = vsub.f32 %v453, %v5112
    %5114 = vmatprep.subr.mxu0 %v5113
    %v5115 = vand.u32 %v452, 4294901760
    %v5116 = vsub.f32 %v452, %v5115
    %5117 = vmatpush2.msra.mxu0 %v5116
    %v5118 = vand.u32 %v445, 4294901760
    %v5119 = vsub.f32 %v445, %v5118
    %5120 = vmatprep.subr.mxu0 %v5119
    %v5121 = vand.u32 %v444, 4294901760
    %v5122 = vsub.f32 %v444, %v5121
    %5123 = vmatpush2.msra.mxu0 %v5122
    %v5124 = vand.u32 %v437, 4294901760
    %v5125 = vsub.f32 %v437, %v5124
    %5126 = vmatprep.subr.mxu0 %v5125
    %v5127 = vand.u32 %v436, 4294901760
    %v5128 = vsub.f32 %v436, %v5127
    %5129 = vmatpush2.msra.mxu0 %v5128
    %v5130 = vand.u32 %v429, 4294901760
    %v5131 = vsub.f32 %v429, %v5130
    %5132 = vmatprep.subr.mxu0 %v5131
    %v5133 = vand.u32 %v428, 4294901760
    %v5134 = vsub.f32 %v428, %v5133
    %5135 = vmatpush2.msra.mxu0 %v5134
    %v5136 = vand.u32 %v41, 4294901760
    %v5137 = vsub.f32 %v41, %v5136
    %5138 = vmatprep.mubr.f32.mxu0 %v5137
    %v5139 = vand.u32 %v40, 4294901760
    %v5140 = vsub.f32 %v40, %v5139
    %5141 = vmatmul.mubr.f32.gmra.mxu0 %v5140
    %v5142 = vpop.f32.mrf.mxu0
    %v5143 = vadd.f32 %v4940, %v5142
    %v5144 = vpop.f32.mrf.mxu0
    %v5145 = vadd.f32 %v4942, %v5144
    %5146 = vdwg.mxu0
    %v5147 = vand.u32 %v421, 4294901760
    %5148 = vmatprep.subr.mxu0 %v5147
    %v5149 = vand.u32 %v420, 4294901760
    %5150 = vmatpush1.msra.mxu0 %v5149
    %v5151 = vand.u32 %v413, 4294901760
    %5152 = vmatprep.subr.mxu0 %v5151
    %v5153 = vand.u32 %v412, 4294901760
    %5154 = vmatpush1.msra.mxu0 %v5153
    %v5155 = vand.u32 %v405, 4294901760
    %5156 = vmatprep.subr.mxu0 %v5155
    %v5157 = vand.u32 %v404, 4294901760
    %5158 = vmatpush1.msra.mxu0 %v5157
    %v5159 = vand.u32 %v397, 4294901760
    %5160 = vmatprep.subr.mxu0 %v5159
    %v5161 = vand.u32 %v396, 4294901760
    %5162 = vmatpush1.msra.mxu0 %v5161
    %v5163 = vand.u32 %v389, 4294901760
    %5164 = vmatprep.subr.mxu0 %v5163
    %v5165 = vand.u32 %v388, 4294901760
    %5166 = vmatpush1.msra.mxu0 %v5165
    %v5167 = vand.u32 %v381, 4294901760
    %5168 = vmatprep.subr.mxu0 %v5167
    %v5169 = vand.u32 %v380, 4294901760
    %5170 = vmatpush1.msra.mxu0 %v5169
    %v5171 = vand.u32 %v373, 4294901760
    %5172 = vmatprep.subr.mxu0 %v5171
    %v5173 = vand.u32 %v372, 4294901760
    %5174 = vmatpush1.msra.mxu0 %v5173
    %v5175 = vand.u32 %v365, 4294901760
    %5176 = vmatprep.subr.mxu0 %v5175
    %v5177 = vand.u32 %v364, 4294901760
    %5178 = vmatpush1.msra.mxu0 %v5177
    %v5179 = vand.u32 %v357, 4294901760
    %5180 = vmatprep.subr.mxu0 %v5179
    %v5181 = vand.u32 %v356, 4294901760
    %5182 = vmatpush1.msra.mxu0 %v5181
    %v5183 = vand.u32 %v349, 4294901760
    %5184 = vmatprep.subr.mxu0 %v5183
    %v5185 = vand.u32 %v348, 4294901760
    %5186 = vmatpush1.msra.mxu0 %v5185
    %v5187 = vand.u32 %v341, 4294901760
    %5188 = vmatprep.subr.mxu0 %v5187
    %v5189 = vand.u32 %v340, 4294901760
    %5190 = vmatpush1.msra.mxu0 %v5189
    %v5191 = vand.u32 %v333, 4294901760
    %5192 = vmatprep.subr.mxu0 %v5191
    %v5193 = vand.u32 %v332, 4294901760
    %5194 = vmatpush1.msra.mxu0 %v5193
    %v5195 = vand.u32 %v325, 4294901760
    %5196 = vmatprep.subr.mxu0 %v5195
    %v5197 = vand.u32 %v324, 4294901760
    %5198 = vmatpush1.msra.mxu0 %v5197
    %v5199 = vand.u32 %v317, 4294901760
    %5200 = vmatprep.subr.mxu0 %v5199
    %v5201 = vand.u32 %v316, 4294901760
    %5202 = vmatpush1.msra.mxu0 %v5201
    %v5203 = vand.u32 %v309, 4294901760
    %5204 = vmatprep.subr.mxu0 %v5203
    %v5205 = vand.u32 %v308, 4294901760
    %5206 = vmatpush1.msra.mxu0 %v5205
    %v5207 = vand.u32 %v301, 4294901760
    %5208 = vmatprep.subr.mxu0 %v5207
    %v5209 = vand.u32 %v300, 4294901760
    %5210 = vmatpush1.msra.mxu0 %v5209
    %v5211 = vand.u32 %v549, 4294901760
    %5212 = vmatprep.subr.mxu0 %v5211
    %v5213 = vand.u32 %v548, 4294901760
    %5214 = vmatpush2.msra.mxu0 %v5213
    %v5215 = vand.u32 %v541, 4294901760
    %5216 = vmatprep.subr.mxu0 %v5215
    %v5217 = vand.u32 %v540, 4294901760
    %5218 = vmatpush2.msra.mxu0 %v5217
    %v5219 = vand.u32 %v533, 4294901760
    %5220 = vmatprep.subr.mxu0 %v5219
    %v5221 = vand.u32 %v532, 4294901760
    %5222 = vmatpush2.msra.mxu0 %v5221
    %v5223 = vand.u32 %v525, 4294901760
    %5224 = vmatprep.subr.mxu0 %v5223
    %v5225 = vand.u32 %v524, 4294901760
    %5226 = vmatpush2.msra.mxu0 %v5225
    %v5227 = vand.u32 %v517, 4294901760
    %5228 = vmatprep.subr.mxu0 %v5227
    %v5229 = vand.u32 %v516, 4294901760
    %5230 = vmatpush2.msra.mxu0 %v5229
    %v5231 = vand.u32 %v509, 4294901760
    %5232 = vmatprep.subr.mxu0 %v5231
    %v5233 = vand.u32 %v508, 4294901760
    %5234 = vmatpush2.msra.mxu0 %v5233
    %v5235 = vand.u32 %v501, 4294901760
    %5236 = vmatprep.subr.mxu0 %v5235
    %v5237 = vand.u32 %v500, 4294901760
    %5238 = vmatpush2.msra.mxu0 %v5237
    %v5239 = vand.u32 %v493, 4294901760
    %5240 = vmatprep.subr.mxu0 %v5239
    %v5241 = vand.u32 %v492, 4294901760
    %5242 = vmatpush2.msra.mxu0 %v5241
    %v5243 = vand.u32 %v485, 4294901760
    %5244 = vmatprep.subr.mxu0 %v5243
    %v5245 = vand.u32 %v484, 4294901760
    %5246 = vmatpush2.msra.mxu0 %v5245
    %v5247 = vand.u32 %v477, 4294901760
    %5248 = vmatprep.subr.mxu0 %v5247
    %v5249 = vand.u32 %v476, 4294901760
    %5250 = vmatpush2.msra.mxu0 %v5249
    %v5251 = vand.u32 %v469, 4294901760
    %5252 = vmatprep.subr.mxu0 %v5251
    %v5253 = vand.u32 %v468, 4294901760
    %5254 = vmatpush2.msra.mxu0 %v5253
    %v5255 = vand.u32 %v461, 4294901760
    %5256 = vmatprep.subr.mxu0 %v5255
    %v5257 = vand.u32 %v460, 4294901760
    %5258 = vmatpush2.msra.mxu0 %v5257
    %v5259 = vand.u32 %v453, 4294901760
    %5260 = vmatprep.subr.mxu0 %v5259
    %v5261 = vand.u32 %v452, 4294901760
    %5262 = vmatpush2.msra.mxu0 %v5261
    %v5263 = vand.u32 %v445, 4294901760
    %5264 = vmatprep.subr.mxu0 %v5263
    %v5265 = vand.u32 %v444, 4294901760
    %5266 = vmatpush2.msra.mxu0 %v5265
    %v5267 = vand.u32 %v437, 4294901760
    %5268 = vmatprep.subr.mxu0 %v5267
    %v5269 = vand.u32 %v436, 4294901760
    %5270 = vmatpush2.msra.mxu0 %v5269
    %v5271 = vand.u32 %v429, 4294901760
    %5272 = vmatprep.subr.mxu0 %v5271
    %v5273 = vand.u32 %v428, 4294901760
    %5274 = vmatpush2.msra.mxu0 %v5273
    %v5275 = vand.u32 %v41, 4294901760
    %v5276 = vsub.f32 %v41, %v5275
    %v5277 = vand.u32 %v5276, 4294901760
    %5278 = vmatprep.mubr.f32.mxu0 %v5277
    %v5279 = vand.u32 %v40, 4294901760
    %v5280 = vsub.f32 %v40, %v5279
    %v5281 = vand.u32 %v5280, 4294901760
    %5282 = vmatmul.mubr.f32.gmra.mxu0 %v5281
    %v5283 = vpop.f32.mrf.mxu0
    %v5284 = vadd.f32 %v5143, %v5283
    %v5285 = vpop.f32.mrf.mxu0
    %v5286 = vadd.f32 %v5145, %v5285
    %5287 = vdwg.mxu0
    %v5288 = vand.u32 %v421, 4294901760
    %v5289 = vsub.f32 %v421, %v5288
    %v5290 = vand.u32 %v5289, 4294901760
    %5291 = vmatprep.subr.mxu0 %v5290
    %v5292 = vand.u32 %v420, 4294901760
    %v5293 = vsub.f32 %v420, %v5292
    %v5294 = vand.u32 %v5293, 4294901760
    %5295 = vmatpush1.msra.mxu0 %v5294
    %v5296 = vand.u32 %v413, 4294901760
    %v5297 = vsub.f32 %v413, %v5296
    %v5298 = vand.u32 %v5297, 4294901760
    %5299 = vmatprep.subr.mxu0 %v5298
    %v5300 = vand.u32 %v412, 4294901760
    %v5301 = vsub.f32 %v412, %v5300
    %v5302 = vand.u32 %v5301, 4294901760
    %5303 = vmatpush1.msra.mxu0 %v5302
    %v5304 = vand.u32 %v405, 4294901760
    %v5305 = vsub.f32 %v405, %v5304
    %v5306 = vand.u32 %v5305, 4294901760
    %5307 = vmatprep.subr.mxu0 %v5306
    %v5308 = vand.u32 %v404, 4294901760
    %v5309 = vsub.f32 %v404, %v5308
    %v5310 = vand.u32 %v5309, 4294901760
    %5311 = vmatpush1.msra.mxu0 %v5310
    %v5312 = vand.u32 %v397, 4294901760
    %v5313 = vsub.f32 %v397, %v5312
    %v5314 = vand.u32 %v5313, 4294901760
    %5315 = vmatprep.subr.mxu0 %v5314
    %v5316 = vand.u32 %v396, 4294901760
    %v5317 = vsub.f32 %v396, %v5316
    %v5318 = vand.u32 %v5317, 4294901760
    %5319 = vmatpush1.msra.mxu0 %v5318
    %v5320 = vand.u32 %v389, 4294901760
    %v5321 = vsub.f32 %v389, %v5320
    %v5322 = vand.u32 %v5321, 4294901760
    %5323 = vmatprep.subr.mxu0 %v5322
    %v5324 = vand.u32 %v388, 4294901760
    %v5325 = vsub.f32 %v388, %v5324
    %v5326 = vand.u32 %v5325, 4294901760
    %5327 = vmatpush1.msra.mxu0 %v5326
    %v5328 = vand.u32 %v381, 4294901760
    %v5329 = vsub.f32 %v381, %v5328
    %v5330 = vand.u32 %v5329, 4294901760
    %5331 = vmatprep.subr.mxu0 %v5330
    %v5332 = vand.u32 %v380, 4294901760
    %v5333 = vsub.f32 %v380, %v5332
    %v5334 = vand.u32 %v5333, 4294901760
    %5335 = vmatpush1.msra.mxu0 %v5334
    %v5336 = vand.u32 %v373, 4294901760
    %v5337 = vsub.f32 %v373, %v5336
    %v5338 = vand.u32 %v5337, 4294901760
    %5339 = vmatprep.subr.mxu0 %v5338
    %v5340 = vand.u32 %v372, 4294901760
    %v5341 = vsub.f32 %v372, %v5340
    %v5342 = vand.u32 %v5341, 4294901760
    %5343 = vmatpush1.msra.mxu0 %v5342
    %v5344 = vand.u32 %v365, 4294901760
    %v5345 = vsub.f32 %v365, %v5344
    %v5346 = vand.u32 %v5345, 4294901760
    %5347 = vmatprep.subr.mxu0 %v5346
    %v5348 = vand.u32 %v364, 4294901760
    %v5349 = vsub.f32 %v364, %v5348
    %v5350 = vand.u32 %v5349, 4294901760
    %5351 = vmatpush1.msra.mxu0 %v5350
    %v5352 = vand.u32 %v357, 4294901760
    %v5353 = vsub.f32 %v357, %v5352
    %v5354 = vand.u32 %v5353, 4294901760
    %5355 = vmatprep.subr.mxu0 %v5354
    %v5356 = vand.u32 %v356, 4294901760
    %v5357 = vsub.f32 %v356, %v5356
    %v5358 = vand.u32 %v5357, 4294901760
    %5359 = vmatpush1.msra.mxu0 %v5358
    %v5360 = vand.u32 %v349, 4294901760
    %v5361 = vsub.f32 %v349, %v5360
    %v5362 = vand.u32 %v5361, 4294901760
    %5363 = vmatprep.subr.mxu0 %v5362
    %v5364 = vand.u32 %v348, 4294901760
    %v5365 = vsub.f32 %v348, %v5364
    %v5366 = vand.u32 %v5365, 4294901760
    %5367 = vmatpush1.msra.mxu0 %v5366
    %v5368 = vand.u32 %v341, 4294901760
    %v5369 = vsub.f32 %v341, %v5368
    %v5370 = vand.u32 %v5369, 4294901760
    %5371 = vmatprep.subr.mxu0 %v5370
    %v5372 = vand.u32 %v340, 4294901760
    %v5373 = vsub.f32 %v340, %v5372
    %v5374 = vand.u32 %v5373, 4294901760
    %5375 = vmatpush1.msra.mxu0 %v5374
    %v5376 = vand.u32 %v333, 4294901760
    %v5377 = vsub.f32 %v333, %v5376
    %v5378 = vand.u32 %v5377, 4294901760
    %5379 = vmatprep.subr.mxu0 %v5378
    %v5380 = vand.u32 %v332, 4294901760
    %v5381 = vsub.f32 %v332, %v5380
    %v5382 = vand.u32 %v5381, 4294901760
    %5383 = vmatpush1.msra.mxu0 %v5382
    %v5384 = vand.u32 %v325, 4294901760
    %v5385 = vsub.f32 %v325, %v5384
    %v5386 = vand.u32 %v5385, 4294901760
    %5387 = vmatprep.subr.mxu0 %v5386
    %v5388 = vand.u32 %v324, 4294901760
    %v5389 = vsub.f32 %v324, %v5388
    %v5390 = vand.u32 %v5389, 4294901760
    %5391 = vmatpush1.msra.mxu0 %v5390
    %v5392 = vand.u32 %v317, 4294901760
    %v5393 = vsub.f32 %v317, %v5392
    %v5394 = vand.u32 %v5393, 4294901760
    %5395 = vmatprep.subr.mxu0 %v5394
    %v5396 = vand.u32 %v316, 4294901760
    %v5397 = vsub.f32 %v316, %v5396
    %v5398 = vand.u32 %v5397, 4294901760
    %5399 = vmatpush1.msra.mxu0 %v5398
    %v5400 = vand.u32 %v309, 4294901760
    %v5401 = vsub.f32 %v309, %v5400
    %v5402 = vand.u32 %v5401, 4294901760
    %5403 = vmatprep.subr.mxu0 %v5402
    %v5404 = vand.u32 %v308, 4294901760
    %v5405 = vsub.f32 %v308, %v5404
    %v5406 = vand.u32 %v5405, 4294901760
    %5407 = vmatpush1.msra.mxu0 %v5406
    %v5408 = vand.u32 %v301, 4294901760
    %v5409 = vsub.f32 %v301, %v5408
    %v5410 = vand.u32 %v5409, 4294901760
    %5411 = vmatprep.subr.mxu0 %v5410
    %v5412 = vand.u32 %v300, 4294901760
    %v5413 = vsub.f32 %v300, %v5412
    %v5414 = vand.u32 %v5413, 4294901760
    %5415 = vmatpush1.msra.mxu0 %v5414
    %v5416 = vand.u32 %v549, 4294901760
    %v5417 = vsub.f32 %v549, %v5416
    %v5418 = vand.u32 %v5417, 4294901760
    %5419 = vmatprep.subr.mxu0 %v5418
    %v5420 = vand.u32 %v548, 4294901760
    %v5421 = vsub.f32 %v548, %v5420
    %v5422 = vand.u32 %v5421, 4294901760
    %5423 = vmatpush2.msra.mxu0 %v5422
    %v5424 = vand.u32 %v541, 4294901760
    %v5425 = vsub.f32 %v541, %v5424
    %v5426 = vand.u32 %v5425, 4294901760
    %5427 = vmatprep.subr.mxu0 %v5426
    %v5428 = vand.u32 %v540, 4294901760
    %v5429 = vsub.f32 %v540, %v5428
    %v5430 = vand.u32 %v5429, 4294901760
    %5431 = vmatpush2.msra.mxu0 %v5430
    %v5432 = vand.u32 %v533, 4294901760
    %v5433 = vsub.f32 %v533, %v5432
    %v5434 = vand.u32 %v5433, 4294901760
    %5435 = vmatprep.subr.mxu0 %v5434
    %v5436 = vand.u32 %v532, 4294901760
    %v5437 = vsub.f32 %v532, %v5436
    %v5438 = vand.u32 %v5437, 4294901760
    %5439 = vmatpush2.msra.mxu0 %v5438
    %v5440 = vand.u32 %v525, 4294901760
    %v5441 = vsub.f32 %v525, %v5440
    %v5442 = vand.u32 %v5441, 4294901760
    %5443 = vmatprep.subr.mxu0 %v5442
    %v5444 = vand.u32 %v524, 4294901760
    %v5445 = vsub.f32 %v524, %v5444
    %v5446 = vand.u32 %v5445, 4294901760
    %5447 = vmatpush2.msra.mxu0 %v5446
    %v5448 = vand.u32 %v517, 4294901760
    %v5449 = vsub.f32 %v517, %v5448
    %v5450 = vand.u32 %v5449, 4294901760
    %5451 = vmatprep.subr.mxu0 %v5450
    %v5452 = vand.u32 %v516, 4294901760
    %v5453 = vsub.f32 %v516, %v5452
    %v5454 = vand.u32 %v5453, 4294901760
    %5455 = vmatpush2.msra.mxu0 %v5454
    %v5456 = vand.u32 %v509, 4294901760
    %v5457 = vsub.f32 %v509, %v5456
    %v5458 = vand.u32 %v5457, 4294901760
    %5459 = vmatprep.subr.mxu0 %v5458
    %v5460 = vand.u32 %v508, 4294901760
    %v5461 = vsub.f32 %v508, %v5460
    %v5462 = vand.u32 %v5461, 4294901760
    %5463 = vmatpush2.msra.mxu0 %v5462
    %v5464 = vand.u32 %v501, 4294901760
    %v5465 = vsub.f32 %v501, %v5464
    %v5466 = vand.u32 %v5465, 4294901760
    %5467 = vmatprep.subr.mxu0 %v5466
    %v5468 = vand.u32 %v500, 4294901760
    %v5469 = vsub.f32 %v500, %v5468
    %v5470 = vand.u32 %v5469, 4294901760
    %5471 = vmatpush2.msra.mxu0 %v5470
    %v5472 = vand.u32 %v493, 4294901760
    %v5473 = vsub.f32 %v493, %v5472
    %v5474 = vand.u32 %v5473, 4294901760
    %5475 = vmatprep.subr.mxu0 %v5474
    %v5476 = vand.u32 %v492, 4294901760
    %v5477 = vsub.f32 %v492, %v5476
    %v5478 = vand.u32 %v5477, 4294901760
    %5479 = vmatpush2.msra.mxu0 %v5478
    %v5480 = vand.u32 %v485, 4294901760
    %v5481 = vsub.f32 %v485, %v5480
    %v5482 = vand.u32 %v5481, 4294901760
    %5483 = vmatprep.subr.mxu0 %v5482
    %v5484 = vand.u32 %v484, 4294901760
    %v5485 = vsub.f32 %v484, %v5484
    %v5486 = vand.u32 %v5485, 4294901760
    %5487 = vmatpush2.msra.mxu0 %v5486
    %v5488 = vand.u32 %v477, 4294901760
    %v5489 = vsub.f32 %v477, %v5488
    %v5490 = vand.u32 %v5489, 4294901760
    %5491 = vmatprep.subr.mxu0 %v5490
    %v5492 = vand.u32 %v476, 4294901760
    %v5493 = vsub.f32 %v476, %v5492
    %v5494 = vand.u32 %v5493, 4294901760
    %5495 = vmatpush2.msra.mxu0 %v5494
    %v5496 = vand.u32 %v469, 4294901760
    %v5497 = vsub.f32 %v469, %v5496
    %v5498 = vand.u32 %v5497, 4294901760
    %5499 = vmatprep.subr.mxu0 %v5498
    %v5500 = vand.u32 %v468, 4294901760
    %v5501 = vsub.f32 %v468, %v5500
    %v5502 = vand.u32 %v5501, 4294901760
    %5503 = vmatpush2.msra.mxu0 %v5502
    %v5504 = vand.u32 %v461, 4294901760
    %v5505 = vsub.f32 %v461, %v5504
    %v5506 = vand.u32 %v5505, 4294901760
    %5507 = vmatprep.subr.mxu0 %v5506
    %v5508 = vand.u32 %v460, 4294901760
    %v5509 = vsub.f32 %v460, %v5508
    %v5510 = vand.u32 %v5509, 4294901760
    %5511 = vmatpush2.msra.mxu0 %v5510
    %v5512 = vand.u32 %v453, 4294901760
    %v5513 = vsub.f32 %v453, %v5512
    %v5514 = vand.u32 %v5513, 4294901760
    %5515 = vmatprep.subr.mxu0 %v5514
    %v5516 = vand.u32 %v452, 4294901760
    %v5517 = vsub.f32 %v452, %v5516
    %v5518 = vand.u32 %v5517, 4294901760
    %5519 = vmatpush2.msra.mxu0 %v5518
    %v5520 = vand.u32 %v445, 4294901760
    %v5521 = vsub.f32 %v445, %v5520
    %v5522 = vand.u32 %v5521, 4294901760
    %5523 = vmatprep.subr.mxu0 %v5522
    %v5524 = vand.u32 %v444, 4294901760
    %v5525 = vsub.f32 %v444, %v5524
    %v5526 = vand.u32 %v5525, 4294901760
    %5527 = vmatpush2.msra.mxu0 %v5526
    %v5528 = vand.u32 %v437, 4294901760
    %v5529 = vsub.f32 %v437, %v5528
    %v5530 = vand.u32 %v5529, 4294901760
    %5531 = vmatprep.subr.mxu0 %v5530
    %v5532 = vand.u32 %v436, 4294901760
    %v5533 = vsub.f32 %v436, %v5532
    %v5534 = vand.u32 %v5533, 4294901760
    %5535 = vmatpush2.msra.mxu0 %v5534
    %v5536 = vand.u32 %v429, 4294901760
    %v5537 = vsub.f32 %v429, %v5536
    %v5538 = vand.u32 %v5537, 4294901760
    %5539 = vmatprep.subr.mxu0 %v5538
    %v5540 = vand.u32 %v428, 4294901760
    %v5541 = vsub.f32 %v428, %v5540
    %v5542 = vand.u32 %v5541, 4294901760
    %5543 = vmatpush2.msra.mxu0 %v5542
    %v5544 = vand.u32 %v41, 4294901760
    %5545 = vmatprep.mubr.f32.mxu0 %v5544
    %v5546 = vand.u32 %v40, 4294901760
    %5547 = vmatmul.mubr.f32.gmra.mxu0 %v5546
    %v5548 = vpop.f32.mrf.mxu0
    %v5549 = vadd.f32 %v5284, %v5548
    %v5550 = vpop.f32.mrf.mxu0
    %v5551 = vadd.f32 %v5286, %v5550
    %5552 = vdwg.mxu0
    %v5553 = vand.u32 %v421, 4294901760
    %5554 = vmatprep.subr.mxu0 %v5553
    %v5555 = vand.u32 %v420, 4294901760
    %5556 = vmatpush1.msra.mxu0 %v5555
    %v5557 = vand.u32 %v413, 4294901760
    %5558 = vmatprep.subr.mxu0 %v5557
    %v5559 = vand.u32 %v412, 4294901760
    %5560 = vmatpush1.msra.mxu0 %v5559
    %v5561 = vand.u32 %v405, 4294901760
    %5562 = vmatprep.subr.mxu0 %v5561
    %v5563 = vand.u32 %v404, 4294901760
    %5564 = vmatpush1.msra.mxu0 %v5563
    %v5565 = vand.u32 %v397, 4294901760
    %5566 = vmatprep.subr.mxu0 %v5565
    %v5567 = vand.u32 %v396, 4294901760
    %5568 = vmatpush1.msra.mxu0 %v5567
    %v5569 = vand.u32 %v389, 4294901760
    %5570 = vmatprep.subr.mxu0 %v5569
    %v5571 = vand.u32 %v388, 4294901760
    %5572 = vmatpush1.msra.mxu0 %v5571
    %v5573 = vand.u32 %v381, 4294901760
    %5574 = vmatprep.subr.mxu0 %v5573
    %v5575 = vand.u32 %v380, 4294901760
    %5576 = vmatpush1.msra.mxu0 %v5575
    %v5577 = vand.u32 %v373, 4294901760
    %5578 = vmatprep.subr.mxu0 %v5577
    %v5579 = vand.u32 %v372, 4294901760
    %5580 = vmatpush1.msra.mxu0 %v5579
    %v5581 = vand.u32 %v365, 4294901760
    %5582 = vmatprep.subr.mxu0 %v5581
    %v5583 = vand.u32 %v364, 4294901760
    %5584 = vmatpush1.msra.mxu0 %v5583
    %v5585 = vand.u32 %v357, 4294901760
    %5586 = vmatprep.subr.mxu0 %v5585
    %v5587 = vand.u32 %v356, 4294901760
    %5588 = vmatpush1.msra.mxu0 %v5587
    %v5589 = vand.u32 %v349, 4294901760
    %5590 = vmatprep.subr.mxu0 %v5589
    %v5591 = vand.u32 %v348, 4294901760
    %5592 = vmatpush1.msra.mxu0 %v5591
    %v5593 = vand.u32 %v341, 4294901760
    %5594 = vmatprep.subr.mxu0 %v5593
    %v5595 = vand.u32 %v340, 4294901760
    %5596 = vmatpush1.msra.mxu0 %v5595
    %v5597 = vand.u32 %v333, 4294901760
    %5598 = vmatprep.subr.mxu0 %v5597
    %v5599 = vand.u32 %v332, 4294901760
    %5600 = vmatpush1.msra.mxu0 %v5599
    %v5601 = vand.u32 %v325, 4294901760
    %5602 = vmatprep.subr.mxu0 %v5601
    %v5603 = vand.u32 %v324, 4294901760
    %5604 = vmatpush1.msra.mxu0 %v5603
    %v5605 = vand.u32 %v317, 4294901760
    %5606 = vmatprep.subr.mxu0 %v5605
    %v5607 = vand.u32 %v316, 4294901760
    %5608 = vmatpush1.msra.mxu0 %v5607
    %v5609 = vand.u32 %v309, 4294901760
    %5610 = vmatprep.subr.mxu0 %v5609
    %v5611 = vand.u32 %v308, 4294901760
    %5612 = vmatpush1.msra.mxu0 %v5611
    %v5613 = vand.u32 %v301, 4294901760
    %5614 = vmatprep.subr.mxu0 %v5613
    %v5615 = vand.u32 %v300, 4294901760
    %5616 = vmatpush1.msra.mxu0 %v5615
    %v5617 = vand.u32 %v549, 4294901760
    %5618 = vmatprep.subr.mxu0 %v5617
    %v5619 = vand.u32 %v548, 4294901760
    %5620 = vmatpush2.msra.mxu0 %v5619
    %v5621 = vand.u32 %v541, 4294901760
    %5622 = vmatprep.subr.mxu0 %v5621
    %v5623 = vand.u32 %v540, 4294901760
    %5624 = vmatpush2.msra.mxu0 %v5623
    %v5625 = vand.u32 %v533, 4294901760
    %5626 = vmatprep.subr.mxu0 %v5625
    %v5627 = vand.u32 %v532, 4294901760
    %5628 = vmatpush2.msra.mxu0 %v5627
    %v5629 = vand.u32 %v525, 4294901760
    %5630 = vmatprep.subr.mxu0 %v5629
    %v5631 = vand.u32 %v524, 4294901760
    %5632 = vmatpush2.msra.mxu0 %v5631
    %v5633 = vand.u32 %v517, 4294901760
    %5634 = vmatprep.subr.mxu0 %v5633
    %v5635 = vand.u32 %v516, 4294901760
    %5636 = vmatpush2.msra.mxu0 %v5635
    %v5637 = vand.u32 %v509, 4294901760
    %5638 = vmatprep.subr.mxu0 %v5637
    %v5639 = vand.u32 %v508, 4294901760
    %5640 = vmatpush2.msra.mxu0 %v5639
    %v5641 = vand.u32 %v501, 4294901760
    %5642 = vmatprep.subr.mxu0 %v5641
    %v5643 = vand.u32 %v500, 4294901760
    %5644 = vmatpush2.msra.mxu0 %v5643
    %v5645 = vand.u32 %v493, 4294901760
    %5646 = vmatprep.subr.mxu0 %v5645
    %v5647 = vand.u32 %v492, 4294901760
    %5648 = vmatpush2.msra.mxu0 %v5647
    %v5649 = vand.u32 %v485, 4294901760
    %5650 = vmatprep.subr.mxu0 %v5649
    %v5651 = vand.u32 %v484, 4294901760
    %5652 = vmatpush2.msra.mxu0 %v5651
    %v5653 = vand.u32 %v477, 4294901760
    %5654 = vmatprep.subr.mxu0 %v5653
    %v5655 = vand.u32 %v476, 4294901760
    %5656 = vmatpush2.msra.mxu0 %v5655
    %v5657 = vand.u32 %v469, 4294901760
    %5658 = vmatprep.subr.mxu0 %v5657
    %v5659 = vand.u32 %v468, 4294901760
    %5660 = vmatpush2.msra.mxu0 %v5659
    %v5661 = vand.u32 %v461, 4294901760
    %5662 = vmatprep.subr.mxu0 %v5661
    %v5663 = vand.u32 %v460, 4294901760
    %5664 = vmatpush2.msra.mxu0 %v5663
    %v5665 = vand.u32 %v453, 4294901760
    %5666 = vmatprep.subr.mxu0 %v5665
    %v5667 = vand.u32 %v452, 4294901760
    %5668 = vmatpush2.msra.mxu0 %v5667
    %v5669 = vand.u32 %v445, 4294901760
    %5670 = vmatprep.subr.mxu0 %v5669
    %v5671 = vand.u32 %v444, 4294901760
    %5672 = vmatpush2.msra.mxu0 %v5671
    %v5673 = vand.u32 %v437, 4294901760
    %5674 = vmatprep.subr.mxu0 %v5673
    %v5675 = vand.u32 %v436, 4294901760
    %5676 = vmatpush2.msra.mxu0 %v5675
    %v5677 = vand.u32 %v429, 4294901760
    %5678 = vmatprep.subr.mxu0 %v5677
    %v5679 = vand.u32 %v428, 4294901760
    %5680 = vmatpush2.msra.mxu0 %v5679
    %v5681 = vand.u32 %v41, 4294901760
    %5682 = vmatprep.mubr.f32.mxu0 %v5681
    %v5683 = vand.u32 %v40, 4294901760
    %5684 = vmatmul.mubr.f32.gmra.mxu0 %v5683
    %v5685 = vpop.f32.mrf.mxu0
    %v5686 = vadd.f32 %v5549, %v5685
    %v5687 = vpop.f32.mrf.mxu0
    %v5688 = vadd.f32 %v5551, %v5687
    %5689 = vdwg.mxu0
    %v5690 = vand.u32 %v167, 4294901760
    %5691 = vmatprep.subr.mxu0 %v5690
    %v5692 = vand.u32 %v166, 4294901760
    %5693 = vmatpush1.msra.mxu0 %v5692
    %v5694 = vand.u32 %v159, 4294901760
    %5695 = vmatprep.subr.mxu0 %v5694
    %v5696 = vand.u32 %v158, 4294901760
    %5697 = vmatpush1.msra.mxu0 %v5696
    %v5698 = vand.u32 %v151, 4294901760
    %5699 = vmatprep.subr.mxu0 %v5698
    %v5700 = vand.u32 %v150, 4294901760
    %5701 = vmatpush1.msra.mxu0 %v5700
    %v5702 = vand.u32 %v143, 4294901760
    %5703 = vmatprep.subr.mxu0 %v5702
    %v5704 = vand.u32 %v142, 4294901760
    %5705 = vmatpush1.msra.mxu0 %v5704
    %v5706 = vand.u32 %v135, 4294901760
    %5707 = vmatprep.subr.mxu0 %v5706
    %v5708 = vand.u32 %v134, 4294901760
    %5709 = vmatpush1.msra.mxu0 %v5708
    %v5710 = vand.u32 %v127, 4294901760
    %5711 = vmatprep.subr.mxu0 %v5710
    %v5712 = vand.u32 %v126, 4294901760
    %5713 = vmatpush1.msra.mxu0 %v5712
    %v5714 = vand.u32 %v119, 4294901760
    %5715 = vmatprep.subr.mxu0 %v5714
    %v5716 = vand.u32 %v118, 4294901760
    %5717 = vmatpush1.msra.mxu0 %v5716
    %v5718 = vand.u32 %v111, 4294901760
    %5719 = vmatprep.subr.mxu0 %v5718
    %v5720 = vand.u32 %v110, 4294901760
    %5721 = vmatpush1.msra.mxu0 %v5720
    %v5722 = vand.u32 %v103, 4294901760
    %5723 = vmatprep.subr.mxu0 %v5722
    %v5724 = vand.u32 %v102, 4294901760
    %5725 = vmatpush1.msra.mxu0 %v5724
    %v5726 = vand.u32 %v95, 4294901760
    %5727 = vmatprep.subr.mxu0 %v5726
    %v5728 = vand.u32 %v94, 4294901760
    %5729 = vmatpush1.msra.mxu0 %v5728
    %v5730 = vand.u32 %v87, 4294901760
    %5731 = vmatprep.subr.mxu0 %v5730
    %v5732 = vand.u32 %v86, 4294901760
    %5733 = vmatpush1.msra.mxu0 %v5732
    %v5734 = vand.u32 %v79, 4294901760
    %5735 = vmatprep.subr.mxu0 %v5734
    %v5736 = vand.u32 %v78, 4294901760
    %5737 = vmatpush1.msra.mxu0 %v5736
    %v5738 = vand.u32 %v71, 4294901760
    %5739 = vmatprep.subr.mxu0 %v5738
    %v5740 = vand.u32 %v70, 4294901760
    %5741 = vmatpush1.msra.mxu0 %v5740
    %v5742 = vand.u32 %v63, 4294901760
    %5743 = vmatprep.subr.mxu0 %v5742
    %v5744 = vand.u32 %v62, 4294901760
    %5745 = vmatpush1.msra.mxu0 %v5744
    %v5746 = vand.u32 %v55, 4294901760
    %5747 = vmatprep.subr.mxu0 %v5746
    %v5748 = vand.u32 %v54, 4294901760
    %5749 = vmatpush1.msra.mxu0 %v5748
    %v5750 = vand.u32 %v47, 4294901760
    %5751 = vmatprep.subr.mxu0 %v5750
    %v5752 = vand.u32 %v46, 4294901760
    %5753 = vmatpush1.msra.mxu0 %v5752
    %v5754 = vand.u32 %v295, 4294901760
    %5755 = vmatprep.subr.mxu0 %v5754
    %v5756 = vand.u32 %v294, 4294901760
    %5757 = vmatpush2.msra.mxu0 %v5756
    %v5758 = vand.u32 %v287, 4294901760
    %5759 = vmatprep.subr.mxu0 %v5758
    %v5760 = vand.u32 %v286, 4294901760
    %5761 = vmatpush2.msra.mxu0 %v5760
    %v5762 = vand.u32 %v279, 4294901760
    %5763 = vmatprep.subr.mxu0 %v5762
    %v5764 = vand.u32 %v278, 4294901760
    %5765 = vmatpush2.msra.mxu0 %v5764
    %v5766 = vand.u32 %v271, 4294901760
    %5767 = vmatprep.subr.mxu0 %v5766
    %v5768 = vand.u32 %v270, 4294901760
    %5769 = vmatpush2.msra.mxu0 %v5768
    %v5770 = vand.u32 %v263, 4294901760
    %5771 = vmatprep.subr.mxu0 %v5770
    %v5772 = vand.u32 %v262, 4294901760
    %5773 = vmatpush2.msra.mxu0 %v5772
    %v5774 = vand.u32 %v255, 4294901760
    %5775 = vmatprep.subr.mxu0 %v5774
    %v5776 = vand.u32 %v254, 4294901760
    %5777 = vmatpush2.msra.mxu0 %v5776
    %v5778 = vand.u32 %v247, 4294901760
    %5779 = vmatprep.subr.mxu0 %v5778
    %v5780 = vand.u32 %v246, 4294901760
    %5781 = vmatpush2.msra.mxu0 %v5780
    %v5782 = vand.u32 %v239, 4294901760
    %5783 = vmatprep.subr.mxu0 %v5782
    %v5784 = vand.u32 %v238, 4294901760
    %5785 = vmatpush2.msra.mxu0 %v5784
    %v5786 = vand.u32 %v231, 4294901760
    %5787 = vmatprep.subr.mxu0 %v5786
    %v5788 = vand.u32 %v230, 4294901760
    %5789 = vmatpush2.msra.mxu0 %v5788
    %v5790 = vand.u32 %v223, 4294901760
    %5791 = vmatprep.subr.mxu0 %v5790
    %v5792 = vand.u32 %v222, 4294901760
    %5793 = vmatpush2.msra.mxu0 %v5792
    %v5794 = vand.u32 %v215, 4294901760
    %5795 = vmatprep.subr.mxu0 %v5794
    %v5796 = vand.u32 %v214, 4294901760
    %5797 = vmatpush2.msra.mxu0 %v5796
    %v5798 = vand.u32 %v207, 4294901760
    %5799 = vmatprep.subr.mxu0 %v5798
    %v5800 = vand.u32 %v206, 4294901760
    %5801 = vmatpush2.msra.mxu0 %v5800
    %v5802 = vand.u32 %v199, 4294901760
    %5803 = vmatprep.subr.mxu0 %v5802
    %v5804 = vand.u32 %v198, 4294901760
    %5805 = vmatpush2.msra.mxu0 %v5804
    %v5806 = vand.u32 %v191, 4294901760
    %5807 = vmatprep.subr.mxu0 %v5806
    %v5808 = vand.u32 %v190, 4294901760
    %5809 = vmatpush2.msra.mxu0 %v5808
    %v5810 = vand.u32 %v183, 4294901760
    %5811 = vmatprep.subr.mxu0 %v5810
    %v5812 = vand.u32 %v182, 4294901760
    %5813 = vmatpush2.msra.mxu0 %v5812
    %v5814 = vand.u32 %v175, 4294901760
    %5815 = vmatprep.subr.mxu0 %v5814
    %v5816 = vand.u32 %v174, 4294901760
    %5817 = vmatpush2.msra.mxu0 %v5816
    %v5818 = vand.u32 %v39, 4294901760
    %v5819 = vsub.f32 %v39, %v5818
    %v5820 = vand.u32 %v5819, 4294901760
    %v5821 = vsub.f32 %v5819, %v5820
    %v5822 = vand.u32 %v5821, 4294901760
    %5823 = vmatprep.mubr.f32.mxu0 %v5822
    %v5824 = vand.u32 %v38, 4294901760
    %v5825 = vsub.f32 %v38, %v5824
    %v5826 = vand.u32 %v5825, 4294901760
    %v5827 = vsub.f32 %v5825, %v5826
    %v5828 = vand.u32 %v5827, 4294901760
    %5829 = vmatmul.mubr.f32.gmra.mxu0 %v5828
    %v5830 = vpop.f32.mrf.mxu0
    %v5831 = vadd.f32 0.0, %v5830
    %v5832 = vpop.f32.mrf.mxu0
    %v5833 = vadd.f32 0.0, %v5832
    %5834 = vdwg.mxu0
    %v5835 = vand.u32 %v167, 4294901760
    %v5836 = vsub.f32 %v167, %v5835
    %v5837 = vand.u32 %v5836, 4294901760
    %v5838 = vsub.f32 %v5836, %v5837
    %v5839 = vand.u32 %v5838, 4294901760
    %5840 = vmatprep.subr.mxu0 %v5839
    %v5841 = vand.u32 %v166, 4294901760
    %v5842 = vsub.f32 %v166, %v5841
    %v5843 = vand.u32 %v5842, 4294901760
    %v5844 = vsub.f32 %v5842, %v5843
    %v5845 = vand.u32 %v5844, 4294901760
    %5846 = vmatpush1.msra.mxu0 %v5845
    %v5847 = vand.u32 %v159, 4294901760
    %v5848 = vsub.f32 %v159, %v5847
    %v5849 = vand.u32 %v5848, 4294901760
    %v5850 = vsub.f32 %v5848, %v5849
    %v5851 = vand.u32 %v5850, 4294901760
    %5852 = vmatprep.subr.mxu0 %v5851
    %v5853 = vand.u32 %v158, 4294901760
    %v5854 = vsub.f32 %v158, %v5853
    %v5855 = vand.u32 %v5854, 4294901760
    %v5856 = vsub.f32 %v5854, %v5855
    %v5857 = vand.u32 %v5856, 4294901760
    %5858 = vmatpush1.msra.mxu0 %v5857
    %v5859 = vand.u32 %v151, 4294901760
    %v5860 = vsub.f32 %v151, %v5859
    %v5861 = vand.u32 %v5860, 4294901760
    %v5862 = vsub.f32 %v5860, %v5861
    %v5863 = vand.u32 %v5862, 4294901760
    %5864 = vmatprep.subr.mxu0 %v5863
    %v5865 = vand.u32 %v150, 4294901760
    %v5866 = vsub.f32 %v150, %v5865
    %v5867 = vand.u32 %v5866, 4294901760
    %v5868 = vsub.f32 %v5866, %v5867
    %v5869 = vand.u32 %v5868, 4294901760
    %5870 = vmatpush1.msra.mxu0 %v5869
    %v5871 = vand.u32 %v143, 4294901760
    %v5872 = vsub.f32 %v143, %v5871
    %v5873 = vand.u32 %v5872, 4294901760
    %v5874 = vsub.f32 %v5872, %v5873
    %v5875 = vand.u32 %v5874, 4294901760
    %5876 = vmatprep.subr.mxu0 %v5875
    %v5877 = vand.u32 %v142, 4294901760
    %v5878 = vsub.f32 %v142, %v5877
    %v5879 = vand.u32 %v5878, 4294901760
    %v5880 = vsub.f32 %v5878, %v5879
    %v5881 = vand.u32 %v5880, 4294901760
    %5882 = vmatpush1.msra.mxu0 %v5881
    %v5883 = vand.u32 %v135, 4294901760
    %v5884 = vsub.f32 %v135, %v5883
    %v5885 = vand.u32 %v5884, 4294901760
    %v5886 = vsub.f32 %v5884, %v5885
    %v5887 = vand.u32 %v5886, 4294901760
    %5888 = vmatprep.subr.mxu0 %v5887
    %v5889 = vand.u32 %v134, 4294901760
    %v5890 = vsub.f32 %v134, %v5889
    %v5891 = vand.u32 %v5890, 4294901760
    %v5892 = vsub.f32 %v5890, %v5891
    %v5893 = vand.u32 %v5892, 4294901760
    %5894 = vmatpush1.msra.mxu0 %v5893
    %v5895 = vand.u32 %v127, 4294901760
    %v5896 = vsub.f32 %v127, %v5895
    %v5897 = vand.u32 %v5896, 4294901760
    %v5898 = vsub.f32 %v5896, %v5897
    %v5899 = vand.u32 %v5898, 4294901760
    %5900 = vmatprep.subr.mxu0 %v5899
    %v5901 = vand.u32 %v126, 4294901760
    %v5902 = vsub.f32 %v126, %v5901
    %v5903 = vand.u32 %v5902, 4294901760
    %v5904 = vsub.f32 %v5902, %v5903
    %v5905 = vand.u32 %v5904, 4294901760
    %5906 = vmatpush1.msra.mxu0 %v5905
    %v5907 = vand.u32 %v119, 4294901760
    %v5908 = vsub.f32 %v119, %v5907
    %v5909 = vand.u32 %v5908, 4294901760
    %v5910 = vsub.f32 %v5908, %v5909
    %v5911 = vand.u32 %v5910, 4294901760
    %5912 = vmatprep.subr.mxu0 %v5911
    %v5913 = vand.u32 %v118, 4294901760
    %v5914 = vsub.f32 %v118, %v5913
    %v5915 = vand.u32 %v5914, 4294901760
    %v5916 = vsub.f32 %v5914, %v5915
    %v5917 = vand.u32 %v5916, 4294901760
    %5918 = vmatpush1.msra.mxu0 %v5917
    %v5919 = vand.u32 %v111, 4294901760
    %v5920 = vsub.f32 %v111, %v5919
    %v5921 = vand.u32 %v5920, 4294901760
    %v5922 = vsub.f32 %v5920, %v5921
    %v5923 = vand.u32 %v5922, 4294901760
    %5924 = vmatprep.subr.mxu0 %v5923
    %v5925 = vand.u32 %v110, 4294901760
    %v5926 = vsub.f32 %v110, %v5925
    %v5927 = vand.u32 %v5926, 4294901760
    %v5928 = vsub.f32 %v5926, %v5927
    %v5929 = vand.u32 %v5928, 4294901760
    %5930 = vmatpush1.msra.mxu0 %v5929
    %v5931 = vand.u32 %v103, 4294901760
    %v5932 = vsub.f32 %v103, %v5931
    %v5933 = vand.u32 %v5932, 4294901760
    %v5934 = vsub.f32 %v5932, %v5933
    %v5935 = vand.u32 %v5934, 4294901760
    %5936 = vmatprep.subr.mxu0 %v5935
    %v5937 = vand.u32 %v102, 4294901760
    %v5938 = vsub.f32 %v102, %v5937
    %v5939 = vand.u32 %v5938, 4294901760
    %v5940 = vsub.f32 %v5938, %v5939
    %v5941 = vand.u32 %v5940, 4294901760
    %5942 = vmatpush1.msra.mxu0 %v5941
    %v5943 = vand.u32 %v95, 4294901760
    %v5944 = vsub.f32 %v95, %v5943
    %v5945 = vand.u32 %v5944, 4294901760
    %v5946 = vsub.f32 %v5944, %v5945
    %v5947 = vand.u32 %v5946, 4294901760
    %5948 = vmatprep.subr.mxu0 %v5947
    %v5949 = vand.u32 %v94, 4294901760
    %v5950 = vsub.f32 %v94, %v5949
    %v5951 = vand.u32 %v5950, 4294901760
    %v5952 = vsub.f32 %v5950, %v5951
    %v5953 = vand.u32 %v5952, 4294901760
    %5954 = vmatpush1.msra.mxu0 %v5953
    %v5955 = vand.u32 %v87, 4294901760
    %v5956 = vsub.f32 %v87, %v5955
    %v5957 = vand.u32 %v5956, 4294901760
    %v5958 = vsub.f32 %v5956, %v5957
    %v5959 = vand.u32 %v5958, 4294901760
    %5960 = vmatprep.subr.mxu0 %v5959
    %v5961 = vand.u32 %v86, 4294901760
    %v5962 = vsub.f32 %v86, %v5961
    %v5963 = vand.u32 %v5962, 4294901760
    %v5964 = vsub.f32 %v5962, %v5963
    %v5965 = vand.u32 %v5964, 4294901760
    %5966 = vmatpush1.msra.mxu0 %v5965
    %v5967 = vand.u32 %v79, 4294901760
    %v5968 = vsub.f32 %v79, %v5967
    %v5969 = vand.u32 %v5968, 4294901760
    %v5970 = vsub.f32 %v5968, %v5969
    %v5971 = vand.u32 %v5970, 4294901760
    %5972 = vmatprep.subr.mxu0 %v5971
    %v5973 = vand.u32 %v78, 4294901760
    %v5974 = vsub.f32 %v78, %v5973
    %v5975 = vand.u32 %v5974, 4294901760
    %v5976 = vsub.f32 %v5974, %v5975
    %v5977 = vand.u32 %v5976, 4294901760
    %5978 = vmatpush1.msra.mxu0 %v5977
    %v5979 = vand.u32 %v71, 4294901760
    %v5980 = vsub.f32 %v71, %v5979
    %v5981 = vand.u32 %v5980, 4294901760
    %v5982 = vsub.f32 %v5980, %v5981
    %v5983 = vand.u32 %v5982, 4294901760
    %5984 = vmatprep.subr.mxu0 %v5983
    %v5985 = vand.u32 %v70, 4294901760
    %v5986 = vsub.f32 %v70, %v5985
    %v5987 = vand.u32 %v5986, 4294901760
    %v5988 = vsub.f32 %v5986, %v5987
    %v5989 = vand.u32 %v5988, 4294901760
    %5990 = vmatpush1.msra.mxu0 %v5989
    %v5991 = vand.u32 %v63, 4294901760
    %v5992 = vsub.f32 %v63, %v5991
    %v5993 = vand.u32 %v5992, 4294901760
    %v5994 = vsub.f32 %v5992, %v5993
    %v5995 = vand.u32 %v5994, 4294901760
    %5996 = vmatprep.subr.mxu0 %v5995
    %v5997 = vand.u32 %v62, 4294901760
    %v5998 = vsub.f32 %v62, %v5997
    %v5999 = vand.u32 %v5998, 4294901760
    %v6000 = vsub.f32 %v5998, %v5999
    %v6001 = vand.u32 %v6000, 4294901760
    %6002 = vmatpush1.msra.mxu0 %v6001
    %v6003 = vand.u32 %v55, 4294901760
    %v6004 = vsub.f32 %v55, %v6003
    %v6005 = vand.u32 %v6004, 4294901760
    %v6006 = vsub.f32 %v6004, %v6005
    %v6007 = vand.u32 %v6006, 4294901760
    %6008 = vmatprep.subr.mxu0 %v6007
    %v6009 = vand.u32 %v54, 4294901760
    %v6010 = vsub.f32 %v54, %v6009
    %v6011 = vand.u32 %v6010, 4294901760
    %v6012 = vsub.f32 %v6010, %v6011
    %v6013 = vand.u32 %v6012, 4294901760
    %6014 = vmatpush1.msra.mxu0 %v6013
    %v6015 = vand.u32 %v47, 4294901760
    %v6016 = vsub.f32 %v47, %v6015
    %v6017 = vand.u32 %v6016, 4294901760
    %v6018 = vsub.f32 %v6016, %v6017
    %v6019 = vand.u32 %v6018, 4294901760
    %6020 = vmatprep.subr.mxu0 %v6019
    %v6021 = vand.u32 %v46, 4294901760
    %v6022 = vsub.f32 %v46, %v6021
    %v6023 = vand.u32 %v6022, 4294901760
    %v6024 = vsub.f32 %v6022, %v6023
    %v6025 = vand.u32 %v6024, 4294901760
    %6026 = vmatpush1.msra.mxu0 %v6025
    %v6027 = vand.u32 %v295, 4294901760
    %v6028 = vsub.f32 %v295, %v6027
    %v6029 = vand.u32 %v6028, 4294901760
    %v6030 = vsub.f32 %v6028, %v6029
    %v6031 = vand.u32 %v6030, 4294901760
    %6032 = vmatprep.subr.mxu0 %v6031
    %v6033 = vand.u32 %v294, 4294901760
    %v6034 = vsub.f32 %v294, %v6033
    %v6035 = vand.u32 %v6034, 4294901760
    %v6036 = vsub.f32 %v6034, %v6035
    %v6037 = vand.u32 %v6036, 4294901760
    %6038 = vmatpush2.msra.mxu0 %v6037
    %v6039 = vand.u32 %v287, 4294901760
    %v6040 = vsub.f32 %v287, %v6039
    %v6041 = vand.u32 %v6040, 4294901760
    %v6042 = vsub.f32 %v6040, %v6041
    %v6043 = vand.u32 %v6042, 4294901760
    %6044 = vmatprep.subr.mxu0 %v6043
    %v6045 = vand.u32 %v286, 4294901760
    %v6046 = vsub.f32 %v286, %v6045
    %v6047 = vand.u32 %v6046, 4294901760
    %v6048 = vsub.f32 %v6046, %v6047
    %v6049 = vand.u32 %v6048, 4294901760
    %6050 = vmatpush2.msra.mxu0 %v6049
    %v6051 = vand.u32 %v279, 4294901760
    %v6052 = vsub.f32 %v279, %v6051
    %v6053 = vand.u32 %v6052, 4294901760
    %v6054 = vsub.f32 %v6052, %v6053
    %v6055 = vand.u32 %v6054, 4294901760
    %6056 = vmatprep.subr.mxu0 %v6055
    %v6057 = vand.u32 %v278, 4294901760
    %v6058 = vsub.f32 %v278, %v6057
    %v6059 = vand.u32 %v6058, 4294901760
    %v6060 = vsub.f32 %v6058, %v6059
    %v6061 = vand.u32 %v6060, 4294901760
    %6062 = vmatpush2.msra.mxu0 %v6061
    %v6063 = vand.u32 %v271, 4294901760
    %v6064 = vsub.f32 %v271, %v6063
    %v6065 = vand.u32 %v6064, 4294901760
    %v6066 = vsub.f32 %v6064, %v6065
    %v6067 = vand.u32 %v6066, 4294901760
    %6068 = vmatprep.subr.mxu0 %v6067
    %v6069 = vand.u32 %v270, 4294901760
    %v6070 = vsub.f32 %v270, %v6069
    %v6071 = vand.u32 %v6070, 4294901760
    %v6072 = vsub.f32 %v6070, %v6071
    %v6073 = vand.u32 %v6072, 4294901760
    %6074 = vmatpush2.msra.mxu0 %v6073
    %v6075 = vand.u32 %v263, 4294901760
    %v6076 = vsub.f32 %v263, %v6075
    %v6077 = vand.u32 %v6076, 4294901760
    %v6078 = vsub.f32 %v6076, %v6077
    %v6079 = vand.u32 %v6078, 4294901760
    %6080 = vmatprep.subr.mxu0 %v6079
    %v6081 = vand.u32 %v262, 4294901760
    %v6082 = vsub.f32 %v262, %v6081
    %v6083 = vand.u32 %v6082, 4294901760
    %v6084 = vsub.f32 %v6082, %v6083
    %v6085 = vand.u32 %v6084, 4294901760
    %6086 = vmatpush2.msra.mxu0 %v6085
    %v6087 = vand.u32 %v255, 4294901760
    %v6088 = vsub.f32 %v255, %v6087
    %v6089 = vand.u32 %v6088, 4294901760
    %v6090 = vsub.f32 %v6088, %v6089
    %v6091 = vand.u32 %v6090, 4294901760
    %6092 = vmatprep.subr.mxu0 %v6091
    %v6093 = vand.u32 %v254, 4294901760
    %v6094 = vsub.f32 %v254, %v6093
    %v6095 = vand.u32 %v6094, 4294901760
    %v6096 = vsub.f32 %v6094, %v6095
    %v6097 = vand.u32 %v6096, 4294901760
    %6098 = vmatpush2.msra.mxu0 %v6097
    %v6099 = vand.u32 %v247, 4294901760
    %v6100 = vsub.f32 %v247, %v6099
    %v6101 = vand.u32 %v6100, 4294901760
    %v6102 = vsub.f32 %v6100, %v6101
    %v6103 = vand.u32 %v6102, 4294901760
    %6104 = vmatprep.subr.mxu0 %v6103
    %v6105 = vand.u32 %v246, 4294901760
    %v6106 = vsub.f32 %v246, %v6105
    %v6107 = vand.u32 %v6106, 4294901760
    %v6108 = vsub.f32 %v6106, %v6107
    %v6109 = vand.u32 %v6108, 4294901760
    %6110 = vmatpush2.msra.mxu0 %v6109
    %v6111 = vand.u32 %v239, 4294901760
    %v6112 = vsub.f32 %v239, %v6111
    %v6113 = vand.u32 %v6112, 4294901760
    %v6114 = vsub.f32 %v6112, %v6113
    %v6115 = vand.u32 %v6114, 4294901760
    %6116 = vmatprep.subr.mxu0 %v6115
    %v6117 = vand.u32 %v238, 4294901760
    %v6118 = vsub.f32 %v238, %v6117
    %v6119 = vand.u32 %v6118, 4294901760
    %v6120 = vsub.f32 %v6118, %v6119
    %v6121 = vand.u32 %v6120, 4294901760
    %6122 = vmatpush2.msra.mxu0 %v6121
    %v6123 = vand.u32 %v231, 4294901760
    %v6124 = vsub.f32 %v231, %v6123
    %v6125 = vand.u32 %v6124, 4294901760
    %v6126 = vsub.f32 %v6124, %v6125
    %v6127 = vand.u32 %v6126, 4294901760
    %6128 = vmatprep.subr.mxu0 %v6127
    %v6129 = vand.u32 %v230, 4294901760
    %v6130 = vsub.f32 %v230, %v6129
    %v6131 = vand.u32 %v6130, 4294901760
    %v6132 = vsub.f32 %v6130, %v6131
    %v6133 = vand.u32 %v6132, 4294901760
    %6134 = vmatpush2.msra.mxu0 %v6133
    %v6135 = vand.u32 %v223, 4294901760
    %v6136 = vsub.f32 %v223, %v6135
    %v6137 = vand.u32 %v6136, 4294901760
    %v6138 = vsub.f32 %v6136, %v6137
    %v6139 = vand.u32 %v6138, 4294901760
    %6140 = vmatprep.subr.mxu0 %v6139
    %v6141 = vand.u32 %v222, 4294901760
    %v6142 = vsub.f32 %v222, %v6141
    %v6143 = vand.u32 %v6142, 4294901760
    %v6144 = vsub.f32 %v6142, %v6143
    %v6145 = vand.u32 %v6144, 4294901760
    %6146 = vmatpush2.msra.mxu0 %v6145
    %v6147 = vand.u32 %v215, 4294901760
    %v6148 = vsub.f32 %v215, %v6147
    %v6149 = vand.u32 %v6148, 4294901760
    %v6150 = vsub.f32 %v6148, %v6149
    %v6151 = vand.u32 %v6150, 4294901760
    %6152 = vmatprep.subr.mxu0 %v6151
    %v6153 = vand.u32 %v214, 4294901760
    %v6154 = vsub.f32 %v214, %v6153
    %v6155 = vand.u32 %v6154, 4294901760
    %v6156 = vsub.f32 %v6154, %v6155
    %v6157 = vand.u32 %v6156, 4294901760
    %6158 = vmatpush2.msra.mxu0 %v6157
    %v6159 = vand.u32 %v207, 4294901760
    %v6160 = vsub.f32 %v207, %v6159
    %v6161 = vand.u32 %v6160, 4294901760
    %v6162 = vsub.f32 %v6160, %v6161
    %v6163 = vand.u32 %v6162, 4294901760
    %6164 = vmatprep.subr.mxu0 %v6163
    %v6165 = vand.u32 %v206, 4294901760
    %v6166 = vsub.f32 %v206, %v6165
    %v6167 = vand.u32 %v6166, 4294901760
    %v6168 = vsub.f32 %v6166, %v6167
    %v6169 = vand.u32 %v6168, 4294901760
    %6170 = vmatpush2.msra.mxu0 %v6169
    %v6171 = vand.u32 %v199, 4294901760
    %v6172 = vsub.f32 %v199, %v6171
    %v6173 = vand.u32 %v6172, 4294901760
    %v6174 = vsub.f32 %v6172, %v6173
    %v6175 = vand.u32 %v6174, 4294901760
    %6176 = vmatprep.subr.mxu0 %v6175
    %v6177 = vand.u32 %v198, 4294901760
    %v6178 = vsub.f32 %v198, %v6177
    %v6179 = vand.u32 %v6178, 4294901760
    %v6180 = vsub.f32 %v6178, %v6179
    %v6181 = vand.u32 %v6180, 4294901760
    %6182 = vmatpush2.msra.mxu0 %v6181
    %v6183 = vand.u32 %v191, 4294901760
    %v6184 = vsub.f32 %v191, %v6183
    %v6185 = vand.u32 %v6184, 4294901760
    %v6186 = vsub.f32 %v6184, %v6185
    %v6187 = vand.u32 %v6186, 4294901760
    %6188 = vmatprep.subr.mxu0 %v6187
    %v6189 = vand.u32 %v190, 4294901760
    %v6190 = vsub.f32 %v190, %v6189
    %v6191 = vand.u32 %v6190, 4294901760
    %v6192 = vsub.f32 %v6190, %v6191
    %v6193 = vand.u32 %v6192, 4294901760
    %6194 = vmatpush2.msra.mxu0 %v6193
    %v6195 = vand.u32 %v183, 4294901760
    %v6196 = vsub.f32 %v183, %v6195
    %v6197 = vand.u32 %v6196, 4294901760
    %v6198 = vsub.f32 %v6196, %v6197
    %v6199 = vand.u32 %v6198, 4294901760
    %6200 = vmatprep.subr.mxu0 %v6199
    %v6201 = vand.u32 %v182, 4294901760
    %v6202 = vsub.f32 %v182, %v6201
    %v6203 = vand.u32 %v6202, 4294901760
    %v6204 = vsub.f32 %v6202, %v6203
    %v6205 = vand.u32 %v6204, 4294901760
    %6206 = vmatpush2.msra.mxu0 %v6205
    %v6207 = vand.u32 %v175, 4294901760
    %v6208 = vsub.f32 %v175, %v6207
    %v6209 = vand.u32 %v6208, 4294901760
    %v6210 = vsub.f32 %v6208, %v6209
    %v6211 = vand.u32 %v6210, 4294901760
    %6212 = vmatprep.subr.mxu0 %v6211
    %v6213 = vand.u32 %v174, 4294901760
    %v6214 = vsub.f32 %v174, %v6213
    %v6215 = vand.u32 %v6214, 4294901760
    %v6216 = vsub.f32 %v6214, %v6215
    %v6217 = vand.u32 %v6216, 4294901760
    %6218 = vmatpush2.msra.mxu0 %v6217
    %v6219 = vand.u32 %v39, 4294901760
    %6220 = vmatprep.mubr.f32.mxu0 %v6219
    %v6221 = vand.u32 %v38, 4294901760
    %6222 = vmatmul.mubr.f32.gmra.mxu0 %v6221
    %v6223 = vpop.f32.mrf.mxu0
    %v6224 = vadd.f32 %v5831, %v6223
    %v6225 = vpop.f32.mrf.mxu0
    %v6226 = vadd.f32 %v5833, %v6225
    %6227 = vdwg.mxu0
    %v6228 = vand.u32 %v167, 4294901760
    %v6229 = vsub.f32 %v167, %v6228
    %6230 = vmatprep.subr.mxu0 %v6229
    %v6231 = vand.u32 %v166, 4294901760
    %v6232 = vsub.f32 %v166, %v6231
    %6233 = vmatpush1.msra.mxu0 %v6232
    %v6234 = vand.u32 %v159, 4294901760
    %v6235 = vsub.f32 %v159, %v6234
    %6236 = vmatprep.subr.mxu0 %v6235
    %v6237 = vand.u32 %v158, 4294901760
    %v6238 = vsub.f32 %v158, %v6237
    %6239 = vmatpush1.msra.mxu0 %v6238
    %v6240 = vand.u32 %v151, 4294901760
    %v6241 = vsub.f32 %v151, %v6240
    %6242 = vmatprep.subr.mxu0 %v6241
    %v6243 = vand.u32 %v150, 4294901760
    %v6244 = vsub.f32 %v150, %v6243
    %6245 = vmatpush1.msra.mxu0 %v6244
    %v6246 = vand.u32 %v143, 4294901760
    %v6247 = vsub.f32 %v143, %v6246
    %6248 = vmatprep.subr.mxu0 %v6247
    %v6249 = vand.u32 %v142, 4294901760
    %v6250 = vsub.f32 %v142, %v6249
    %6251 = vmatpush1.msra.mxu0 %v6250
    %v6252 = vand.u32 %v135, 4294901760
    %v6253 = vsub.f32 %v135, %v6252
    %6254 = vmatprep.subr.mxu0 %v6253
    %v6255 = vand.u32 %v134, 4294901760
    %v6256 = vsub.f32 %v134, %v6255
    %6257 = vmatpush1.msra.mxu0 %v6256
    %v6258 = vand.u32 %v127, 4294901760
    %v6259 = vsub.f32 %v127, %v6258
    %6260 = vmatprep.subr.mxu0 %v6259
    %v6261 = vand.u32 %v126, 4294901760
    %v6262 = vsub.f32 %v126, %v6261
    %6263 = vmatpush1.msra.mxu0 %v6262
    %v6264 = vand.u32 %v119, 4294901760
    %v6265 = vsub.f32 %v119, %v6264
    %6266 = vmatprep.subr.mxu0 %v6265
    %v6267 = vand.u32 %v118, 4294901760
    %v6268 = vsub.f32 %v118, %v6267
    %6269 = vmatpush1.msra.mxu0 %v6268
    %v6270 = vand.u32 %v111, 4294901760
    %v6271 = vsub.f32 %v111, %v6270
    %6272 = vmatprep.subr.mxu0 %v6271
    %v6273 = vand.u32 %v110, 4294901760
    %v6274 = vsub.f32 %v110, %v6273
    %6275 = vmatpush1.msra.mxu0 %v6274
    %v6276 = vand.u32 %v103, 4294901760
    %v6277 = vsub.f32 %v103, %v6276
    %6278 = vmatprep.subr.mxu0 %v6277
    %v6279 = vand.u32 %v102, 4294901760
    %v6280 = vsub.f32 %v102, %v6279
    %6281 = vmatpush1.msra.mxu0 %v6280
    %v6282 = vand.u32 %v95, 4294901760
    %v6283 = vsub.f32 %v95, %v6282
    %6284 = vmatprep.subr.mxu0 %v6283
    %v6285 = vand.u32 %v94, 4294901760
    %v6286 = vsub.f32 %v94, %v6285
    %6287 = vmatpush1.msra.mxu0 %v6286
    %v6288 = vand.u32 %v87, 4294901760
    %v6289 = vsub.f32 %v87, %v6288
    %6290 = vmatprep.subr.mxu0 %v6289
    %v6291 = vand.u32 %v86, 4294901760
    %v6292 = vsub.f32 %v86, %v6291
    %6293 = vmatpush1.msra.mxu0 %v6292
    %v6294 = vand.u32 %v79, 4294901760
    %v6295 = vsub.f32 %v79, %v6294
    %6296 = vmatprep.subr.mxu0 %v6295
    %v6297 = vand.u32 %v78, 4294901760
    %v6298 = vsub.f32 %v78, %v6297
    %6299 = vmatpush1.msra.mxu0 %v6298
    %v6300 = vand.u32 %v71, 4294901760
    %v6301 = vsub.f32 %v71, %v6300
    %6302 = vmatprep.subr.mxu0 %v6301
    %v6303 = vand.u32 %v70, 4294901760
    %v6304 = vsub.f32 %v70, %v6303
    %6305 = vmatpush1.msra.mxu0 %v6304
    %v6306 = vand.u32 %v63, 4294901760
    %v6307 = vsub.f32 %v63, %v6306
    %6308 = vmatprep.subr.mxu0 %v6307
    %v6309 = vand.u32 %v62, 4294901760
    %v6310 = vsub.f32 %v62, %v6309
    %6311 = vmatpush1.msra.mxu0 %v6310
    %v6312 = vand.u32 %v55, 4294901760
    %v6313 = vsub.f32 %v55, %v6312
    %6314 = vmatprep.subr.mxu0 %v6313
    %v6315 = vand.u32 %v54, 4294901760
    %v6316 = vsub.f32 %v54, %v6315
    %6317 = vmatpush1.msra.mxu0 %v6316
    %v6318 = vand.u32 %v47, 4294901760
    %v6319 = vsub.f32 %v47, %v6318
    %6320 = vmatprep.subr.mxu0 %v6319
    %v6321 = vand.u32 %v46, 4294901760
    %v6322 = vsub.f32 %v46, %v6321
    %6323 = vmatpush1.msra.mxu0 %v6322
    %v6324 = vand.u32 %v295, 4294901760
    %v6325 = vsub.f32 %v295, %v6324
    %6326 = vmatprep.subr.mxu0 %v6325
    %v6327 = vand.u32 %v294, 4294901760
    %v6328 = vsub.f32 %v294, %v6327
    %6329 = vmatpush2.msra.mxu0 %v6328
    %v6330 = vand.u32 %v287, 4294901760
    %v6331 = vsub.f32 %v287, %v6330
    %6332 = vmatprep.subr.mxu0 %v6331
    %v6333 = vand.u32 %v286, 4294901760
    %v6334 = vsub.f32 %v286, %v6333
    %6335 = vmatpush2.msra.mxu0 %v6334
    %v6336 = vand.u32 %v279, 4294901760
    %v6337 = vsub.f32 %v279, %v6336
    %6338 = vmatprep.subr.mxu0 %v6337
    %v6339 = vand.u32 %v278, 4294901760
    %v6340 = vsub.f32 %v278, %v6339
    %6341 = vmatpush2.msra.mxu0 %v6340
    %v6342 = vand.u32 %v271, 4294901760
    %v6343 = vsub.f32 %v271, %v6342
    %6344 = vmatprep.subr.mxu0 %v6343
    %v6345 = vand.u32 %v270, 4294901760
    %v6346 = vsub.f32 %v270, %v6345
    %6347 = vmatpush2.msra.mxu0 %v6346
    %v6348 = vand.u32 %v263, 4294901760
    %v6349 = vsub.f32 %v263, %v6348
    %6350 = vmatprep.subr.mxu0 %v6349
    %v6351 = vand.u32 %v262, 4294901760
    %v6352 = vsub.f32 %v262, %v6351
    %6353 = vmatpush2.msra.mxu0 %v6352
    %v6354 = vand.u32 %v255, 4294901760
    %v6355 = vsub.f32 %v255, %v6354
    %6356 = vmatprep.subr.mxu0 %v6355
    %v6357 = vand.u32 %v254, 4294901760
    %v6358 = vsub.f32 %v254, %v6357
    %6359 = vmatpush2.msra.mxu0 %v6358
    %v6360 = vand.u32 %v247, 4294901760
    %v6361 = vsub.f32 %v247, %v6360
    %6362 = vmatprep.subr.mxu0 %v6361
    %v6363 = vand.u32 %v246, 4294901760
    %v6364 = vsub.f32 %v246, %v6363
    %6365 = vmatpush2.msra.mxu0 %v6364
    %v6366 = vand.u32 %v239, 4294901760
    %v6367 = vsub.f32 %v239, %v6366
    %6368 = vmatprep.subr.mxu0 %v6367
    %v6369 = vand.u32 %v238, 4294901760
    %v6370 = vsub.f32 %v238, %v6369
    %6371 = vmatpush2.msra.mxu0 %v6370
    %v6372 = vand.u32 %v231, 4294901760
    %v6373 = vsub.f32 %v231, %v6372
    %6374 = vmatprep.subr.mxu0 %v6373
    %v6375 = vand.u32 %v230, 4294901760
    %v6376 = vsub.f32 %v230, %v6375
    %6377 = vmatpush2.msra.mxu0 %v6376
    %v6378 = vand.u32 %v223, 4294901760
    %v6379 = vsub.f32 %v223, %v6378
    %6380 = vmatprep.subr.mxu0 %v6379
    %v6381 = vand.u32 %v222, 4294901760
    %v6382 = vsub.f32 %v222, %v6381
    %6383 = vmatpush2.msra.mxu0 %v6382
    %v6384 = vand.u32 %v215, 4294901760
    %v6385 = vsub.f32 %v215, %v6384
    %6386 = vmatprep.subr.mxu0 %v6385
    %v6387 = vand.u32 %v214, 4294901760
    %v6388 = vsub.f32 %v214, %v6387
    %6389 = vmatpush2.msra.mxu0 %v6388
    %v6390 = vand.u32 %v207, 4294901760
    %v6391 = vsub.f32 %v207, %v6390
    %6392 = vmatprep.subr.mxu0 %v6391
    %v6393 = vand.u32 %v206, 4294901760
    %v6394 = vsub.f32 %v206, %v6393
    %6395 = vmatpush2.msra.mxu0 %v6394
    %v6396 = vand.u32 %v199, 4294901760
    %v6397 = vsub.f32 %v199, %v6396
    %6398 = vmatprep.subr.mxu0 %v6397
    %v6399 = vand.u32 %v198, 4294901760
    %v6400 = vsub.f32 %v198, %v6399
    %6401 = vmatpush2.msra.mxu0 %v6400
    %v6402 = vand.u32 %v191, 4294901760
    %v6403 = vsub.f32 %v191, %v6402
    %6404 = vmatprep.subr.mxu0 %v6403
    %v6405 = vand.u32 %v190, 4294901760
    %v6406 = vsub.f32 %v190, %v6405
    %6407 = vmatpush2.msra.mxu0 %v6406
    %v6408 = vand.u32 %v183, 4294901760
    %v6409 = vsub.f32 %v183, %v6408
    %6410 = vmatprep.subr.mxu0 %v6409
    %v6411 = vand.u32 %v182, 4294901760
    %v6412 = vsub.f32 %v182, %v6411
    %6413 = vmatpush2.msra.mxu0 %v6412
    %v6414 = vand.u32 %v175, 4294901760
    %v6415 = vsub.f32 %v175, %v6414
    %6416 = vmatprep.subr.mxu0 %v6415
    %v6417 = vand.u32 %v174, 4294901760
    %v6418 = vsub.f32 %v174, %v6417
    %6419 = vmatpush2.msra.mxu0 %v6418
    %v6420 = vand.u32 %v39, 4294901760
    %v6421 = vsub.f32 %v39, %v6420
    %6422 = vmatprep.mubr.f32.mxu0 %v6421
    %v6423 = vand.u32 %v38, 4294901760
    %v6424 = vsub.f32 %v38, %v6423
    %6425 = vmatmul.mubr.f32.gmra.mxu0 %v6424
    %v6426 = vpop.f32.mrf.mxu0
    %v6427 = vadd.f32 %v6224, %v6426
    %v6428 = vpop.f32.mrf.mxu0
    %v6429 = vadd.f32 %v6226, %v6428
    %6430 = vdwg.mxu0
    %v6431 = vand.u32 %v167, 4294901760
    %6432 = vmatprep.subr.mxu0 %v6431
    %v6433 = vand.u32 %v166, 4294901760
    %6434 = vmatpush1.msra.mxu0 %v6433
    %v6435 = vand.u32 %v159, 4294901760
    %6436 = vmatprep.subr.mxu0 %v6435
    %v6437 = vand.u32 %v158, 4294901760
    %6438 = vmatpush1.msra.mxu0 %v6437
    %v6439 = vand.u32 %v151, 4294901760
    %6440 = vmatprep.subr.mxu0 %v6439
    %v6441 = vand.u32 %v150, 4294901760
    %6442 = vmatpush1.msra.mxu0 %v6441
    %v6443 = vand.u32 %v143, 4294901760
    %6444 = vmatprep.subr.mxu0 %v6443
    %v6445 = vand.u32 %v142, 4294901760
    %6446 = vmatpush1.msra.mxu0 %v6445
    %v6447 = vand.u32 %v135, 4294901760
    %6448 = vmatprep.subr.mxu0 %v6447
    %v6449 = vand.u32 %v134, 4294901760
    %6450 = vmatpush1.msra.mxu0 %v6449
    %v6451 = vand.u32 %v127, 4294901760
    %6452 = vmatprep.subr.mxu0 %v6451
    %v6453 = vand.u32 %v126, 4294901760
    %6454 = vmatpush1.msra.mxu0 %v6453
    %v6455 = vand.u32 %v119, 4294901760
    %6456 = vmatprep.subr.mxu0 %v6455
    %v6457 = vand.u32 %v118, 4294901760
    %6458 = vmatpush1.msra.mxu0 %v6457
    %v6459 = vand.u32 %v111, 4294901760
    %6460 = vmatprep.subr.mxu0 %v6459
    %v6461 = vand.u32 %v110, 4294901760
    %6462 = vmatpush1.msra.mxu0 %v6461
    %v6463 = vand.u32 %v103, 4294901760
    %6464 = vmatprep.subr.mxu0 %v6463
    %v6465 = vand.u32 %v102, 4294901760
    %6466 = vmatpush1.msra.mxu0 %v6465
    %v6467 = vand.u32 %v95, 4294901760
    %6468 = vmatprep.subr.mxu0 %v6467
    %v6469 = vand.u32 %v94, 4294901760
    %6470 = vmatpush1.msra.mxu0 %v6469
    %v6471 = vand.u32 %v87, 4294901760
    %6472 = vmatprep.subr.mxu0 %v6471
    %v6473 = vand.u32 %v86, 4294901760
    %6474 = vmatpush1.msra.mxu0 %v6473
    %v6475 = vand.u32 %v79, 4294901760
    %6476 = vmatprep.subr.mxu0 %v6475
    %v6477 = vand.u32 %v78, 4294901760
    %6478 = vmatpush1.msra.mxu0 %v6477
    %v6479 = vand.u32 %v71, 4294901760
    %6480 = vmatprep.subr.mxu0 %v6479
    %v6481 = vand.u32 %v70, 4294901760
    %6482 = vmatpush1.msra.mxu0 %v6481
    %v6483 = vand.u32 %v63, 4294901760
    %6484 = vmatprep.subr.mxu0 %v6483
    %v6485 = vand.u32 %v62, 4294901760
    %6486 = vmatpush1.msra.mxu0 %v6485
    %v6487 = vand.u32 %v55, 4294901760
    %6488 = vmatprep.subr.mxu0 %v6487
    %v6489 = vand.u32 %v54, 4294901760
    %6490 = vmatpush1.msra.mxu0 %v6489
    %v6491 = vand.u32 %v47, 4294901760
    %6492 = vmatprep.subr.mxu0 %v6491
    %v6493 = vand.u32 %v46, 4294901760
    %6494 = vmatpush1.msra.mxu0 %v6493
    %v6495 = vand.u32 %v295, 4294901760
    %6496 = vmatprep.subr.mxu0 %v6495
    %v6497 = vand.u32 %v294, 4294901760
    %6498 = vmatpush2.msra.mxu0 %v6497
    %v6499 = vand.u32 %v287, 4294901760
    %6500 = vmatprep.subr.mxu0 %v6499
    %v6501 = vand.u32 %v286, 4294901760
    %6502 = vmatpush2.msra.mxu0 %v6501
    %v6503 = vand.u32 %v279, 4294901760
    %6504 = vmatprep.subr.mxu0 %v6503
    %v6505 = vand.u32 %v278, 4294901760
    %6506 = vmatpush2.msra.mxu0 %v6505
    %v6507 = vand.u32 %v271, 4294901760
    %6508 = vmatprep.subr.mxu0 %v6507
    %v6509 = vand.u32 %v270, 4294901760
    %6510 = vmatpush2.msra.mxu0 %v6509
    %v6511 = vand.u32 %v263, 4294901760
    %6512 = vmatprep.subr.mxu0 %v6511
    %v6513 = vand.u32 %v262, 4294901760
    %6514 = vmatpush2.msra.mxu0 %v6513
    %v6515 = vand.u32 %v255, 4294901760
    %6516 = vmatprep.subr.mxu0 %v6515
    %v6517 = vand.u32 %v254, 4294901760
    %6518 = vmatpush2.msra.mxu0 %v6517
    %v6519 = vand.u32 %v247, 4294901760
    %6520 = vmatprep.subr.mxu0 %v6519
    %v6521 = vand.u32 %v246, 4294901760
    %6522 = vmatpush2.msra.mxu0 %v6521
    %v6523 = vand.u32 %v239, 4294901760
    %6524 = vmatprep.subr.mxu0 %v6523
    %v6525 = vand.u32 %v238, 4294901760
    %6526 = vmatpush2.msra.mxu0 %v6525
    %v6527 = vand.u32 %v231, 4294901760
    %6528 = vmatprep.subr.mxu0 %v6527
    %v6529 = vand.u32 %v230, 4294901760
    %6530 = vmatpush2.msra.mxu0 %v6529
    %v6531 = vand.u32 %v223, 4294901760
    %6532 = vmatprep.subr.mxu0 %v6531
    %v6533 = vand.u32 %v222, 4294901760
    %6534 = vmatpush2.msra.mxu0 %v6533
    %v6535 = vand.u32 %v215, 4294901760
    %6536 = vmatprep.subr.mxu0 %v6535
    %v6537 = vand.u32 %v214, 4294901760
    %6538 = vmatpush2.msra.mxu0 %v6537
    %v6539 = vand.u32 %v207, 4294901760
    %6540 = vmatprep.subr.mxu0 %v6539
    %v6541 = vand.u32 %v206, 4294901760
    %6542 = vmatpush2.msra.mxu0 %v6541
    %v6543 = vand.u32 %v199, 4294901760
    %6544 = vmatprep.subr.mxu0 %v6543
    %v6545 = vand.u32 %v198, 4294901760
    %6546 = vmatpush2.msra.mxu0 %v6545
    %v6547 = vand.u32 %v191, 4294901760
    %6548 = vmatprep.subr.mxu0 %v6547
    %v6549 = vand.u32 %v190, 4294901760
    %6550 = vmatpush2.msra.mxu0 %v6549
    %v6551 = vand.u32 %v183, 4294901760
    %6552 = vmatprep.subr.mxu0 %v6551
    %v6553 = vand.u32 %v182, 4294901760
    %6554 = vmatpush2.msra.mxu0 %v6553
    %v6555 = vand.u32 %v175, 4294901760
    %6556 = vmatprep.subr.mxu0 %v6555
    %v6557 = vand.u32 %v174, 4294901760
    %6558 = vmatpush2.msra.mxu0 %v6557
    %v6559 = vand.u32 %v39, 4294901760
    %v6560 = vsub.f32 %v39, %v6559
    %v6561 = vand.u32 %v6560, 4294901760
    %6562 = vmatprep.mubr.f32.mxu0 %v6561
    %v6563 = vand.u32 %v38, 4294901760
    %v6564 = vsub.f32 %v38, %v6563
    %v6565 = vand.u32 %v6564, 4294901760
    %6566 = vmatmul.mubr.f32.gmra.mxu0 %v6565
    %v6567 = vpop.f32.mrf.mxu0
    %v6568 = vadd.f32 %v6427, %v6567
    %v6569 = vpop.f32.mrf.mxu0
    %v6570 = vadd.f32 %v6429, %v6569
    %6571 = vdwg.mxu0
    %v6572 = vand.u32 %v167, 4294901760
    %v6573 = vsub.f32 %v167, %v6572
    %v6574 = vand.u32 %v6573, 4294901760
    %6575 = vmatprep.subr.mxu0 %v6574
    %v6576 = vand.u32 %v166, 4294901760
    %v6577 = vsub.f32 %v166, %v6576
    %v6578 = vand.u32 %v6577, 4294901760
    %6579 = vmatpush1.msra.mxu0 %v6578
    %v6580 = vand.u32 %v159, 4294901760
    %v6581 = vsub.f32 %v159, %v6580
    %v6582 = vand.u32 %v6581, 4294901760
    %6583 = vmatprep.subr.mxu0 %v6582
    %v6584 = vand.u32 %v158, 4294901760
    %v6585 = vsub.f32 %v158, %v6584
    %v6586 = vand.u32 %v6585, 4294901760
    %6587 = vmatpush1.msra.mxu0 %v6586
    %v6588 = vand.u32 %v151, 4294901760
    %v6589 = vsub.f32 %v151, %v6588
    %v6590 = vand.u32 %v6589, 4294901760
    %6591 = vmatprep.subr.mxu0 %v6590
    %v6592 = vand.u32 %v150, 4294901760
    %v6593 = vsub.f32 %v150, %v6592
    %v6594 = vand.u32 %v6593, 4294901760
    %6595 = vmatpush1.msra.mxu0 %v6594
    %v6596 = vand.u32 %v143, 4294901760
    %v6597 = vsub.f32 %v143, %v6596
    %v6598 = vand.u32 %v6597, 4294901760
    %6599 = vmatprep.subr.mxu0 %v6598
    %v6600 = vand.u32 %v142, 4294901760
    %v6601 = vsub.f32 %v142, %v6600
    %v6602 = vand.u32 %v6601, 4294901760
    %6603 = vmatpush1.msra.mxu0 %v6602
    %v6604 = vand.u32 %v135, 4294901760
    %v6605 = vsub.f32 %v135, %v6604
    %v6606 = vand.u32 %v6605, 4294901760
    %6607 = vmatprep.subr.mxu0 %v6606
    %v6608 = vand.u32 %v134, 4294901760
    %v6609 = vsub.f32 %v134, %v6608
    %v6610 = vand.u32 %v6609, 4294901760
    %6611 = vmatpush1.msra.mxu0 %v6610
    %v6612 = vand.u32 %v127, 4294901760
    %v6613 = vsub.f32 %v127, %v6612
    %v6614 = vand.u32 %v6613, 4294901760
    %6615 = vmatprep.subr.mxu0 %v6614
    %v6616 = vand.u32 %v126, 4294901760
    %v6617 = vsub.f32 %v126, %v6616
    %v6618 = vand.u32 %v6617, 4294901760
    %6619 = vmatpush1.msra.mxu0 %v6618
    %v6620 = vand.u32 %v119, 4294901760
    %v6621 = vsub.f32 %v119, %v6620
    %v6622 = vand.u32 %v6621, 4294901760
    %6623 = vmatprep.subr.mxu0 %v6622
    %v6624 = vand.u32 %v118, 4294901760
    %v6625 = vsub.f32 %v118, %v6624
    %v6626 = vand.u32 %v6625, 4294901760
    %6627 = vmatpush1.msra.mxu0 %v6626
    %v6628 = vand.u32 %v111, 4294901760
    %v6629 = vsub.f32 %v111, %v6628
    %v6630 = vand.u32 %v6629, 4294901760
    %6631 = vmatprep.subr.mxu0 %v6630
    %v6632 = vand.u32 %v110, 4294901760
    %v6633 = vsub.f32 %v110, %v6632
    %v6634 = vand.u32 %v6633, 4294901760
    %6635 = vmatpush1.msra.mxu0 %v6634
    %v6636 = vand.u32 %v103, 4294901760
    %v6637 = vsub.f32 %v103, %v6636
    %v6638 = vand.u32 %v6637, 4294901760
    %6639 = vmatprep.subr.mxu0 %v6638
    %v6640 = vand.u32 %v102, 4294901760
    %v6641 = vsub.f32 %v102, %v6640
    %v6642 = vand.u32 %v6641, 4294901760
    %6643 = vmatpush1.msra.mxu0 %v6642
    %v6644 = vand.u32 %v95, 4294901760
    %v6645 = vsub.f32 %v95, %v6644
    %v6646 = vand.u32 %v6645, 4294901760
    %6647 = vmatprep.subr.mxu0 %v6646
    %v6648 = vand.u32 %v94, 4294901760
    %v6649 = vsub.f32 %v94, %v6648
    %v6650 = vand.u32 %v6649, 4294901760
    %6651 = vmatpush1.msra.mxu0 %v6650
    %v6652 = vand.u32 %v87, 4294901760
    %v6653 = vsub.f32 %v87, %v6652
    %v6654 = vand.u32 %v6653, 4294901760
    %6655 = vmatprep.subr.mxu0 %v6654
    %v6656 = vand.u32 %v86, 4294901760
    %v6657 = vsub.f32 %v86, %v6656
    %v6658 = vand.u32 %v6657, 4294901760
    %6659 = vmatpush1.msra.mxu0 %v6658
    %v6660 = vand.u32 %v79, 4294901760
    %v6661 = vsub.f32 %v79, %v6660
    %v6662 = vand.u32 %v6661, 4294901760
    %6663 = vmatprep.subr.mxu0 %v6662
    %v6664 = vand.u32 %v78, 4294901760
    %v6665 = vsub.f32 %v78, %v6664
    %v6666 = vand.u32 %v6665, 4294901760
    %6667 = vmatpush1.msra.mxu0 %v6666
    %v6668 = vand.u32 %v71, 4294901760
    %v6669 = vsub.f32 %v71, %v6668
    %v6670 = vand.u32 %v6669, 4294901760
    %6671 = vmatprep.subr.mxu0 %v6670
    %v6672 = vand.u32 %v70, 4294901760
    %v6673 = vsub.f32 %v70, %v6672
    %v6674 = vand.u32 %v6673, 4294901760
    %6675 = vmatpush1.msra.mxu0 %v6674
    %v6676 = vand.u32 %v63, 4294901760
    %v6677 = vsub.f32 %v63, %v6676
    %v6678 = vand.u32 %v6677, 4294901760
    %6679 = vmatprep.subr.mxu0 %v6678
    %v6680 = vand.u32 %v62, 4294901760
    %v6681 = vsub.f32 %v62, %v6680
    %v6682 = vand.u32 %v6681, 4294901760
    %6683 = vmatpush1.msra.mxu0 %v6682
    %v6684 = vand.u32 %v55, 4294901760
    %v6685 = vsub.f32 %v55, %v6684
    %v6686 = vand.u32 %v6685, 4294901760
    %6687 = vmatprep.subr.mxu0 %v6686
    %v6688 = vand.u32 %v54, 4294901760
    %v6689 = vsub.f32 %v54, %v6688
    %v6690 = vand.u32 %v6689, 4294901760
    %6691 = vmatpush1.msra.mxu0 %v6690
    %v6692 = vand.u32 %v47, 4294901760
    %v6693 = vsub.f32 %v47, %v6692
    %v6694 = vand.u32 %v6693, 4294901760
    %6695 = vmatprep.subr.mxu0 %v6694
    %v6696 = vand.u32 %v46, 4294901760
    %v6697 = vsub.f32 %v46, %v6696
    %v6698 = vand.u32 %v6697, 4294901760
    %6699 = vmatpush1.msra.mxu0 %v6698
    %v6700 = vand.u32 %v295, 4294901760
    %v6701 = vsub.f32 %v295, %v6700
    %v6702 = vand.u32 %v6701, 4294901760
    %6703 = vmatprep.subr.mxu0 %v6702
    %v6704 = vand.u32 %v294, 4294901760
    %v6705 = vsub.f32 %v294, %v6704
    %v6706 = vand.u32 %v6705, 4294901760
    %6707 = vmatpush2.msra.mxu0 %v6706
    %v6708 = vand.u32 %v287, 4294901760
    %v6709 = vsub.f32 %v287, %v6708
    %v6710 = vand.u32 %v6709, 4294901760
    %6711 = vmatprep.subr.mxu0 %v6710
    %v6712 = vand.u32 %v286, 4294901760
    %v6713 = vsub.f32 %v286, %v6712
    %v6714 = vand.u32 %v6713, 4294901760
    %6715 = vmatpush2.msra.mxu0 %v6714
    %v6716 = vand.u32 %v279, 4294901760
    %v6717 = vsub.f32 %v279, %v6716
    %v6718 = vand.u32 %v6717, 4294901760
    %6719 = vmatprep.subr.mxu0 %v6718
    %v6720 = vand.u32 %v278, 4294901760
    %v6721 = vsub.f32 %v278, %v6720
    %v6722 = vand.u32 %v6721, 4294901760
    %6723 = vmatpush2.msra.mxu0 %v6722
    %v6724 = vand.u32 %v271, 4294901760
    %v6725 = vsub.f32 %v271, %v6724
    %v6726 = vand.u32 %v6725, 4294901760
    %6727 = vmatprep.subr.mxu0 %v6726
    %v6728 = vand.u32 %v270, 4294901760
    %v6729 = vsub.f32 %v270, %v6728
    %v6730 = vand.u32 %v6729, 4294901760
    %6731 = vmatpush2.msra.mxu0 %v6730
    %v6732 = vand.u32 %v263, 4294901760
    %v6733 = vsub.f32 %v263, %v6732
    %v6734 = vand.u32 %v6733, 4294901760
    %6735 = vmatprep.subr.mxu0 %v6734
    %v6736 = vand.u32 %v262, 4294901760
    %v6737 = vsub.f32 %v262, %v6736
    %v6738 = vand.u32 %v6737, 4294901760
    %6739 = vmatpush2.msra.mxu0 %v6738
    %v6740 = vand.u32 %v255, 4294901760
    %v6741 = vsub.f32 %v255, %v6740
    %v6742 = vand.u32 %v6741, 4294901760
    %6743 = vmatprep.subr.mxu0 %v6742
    %v6744 = vand.u32 %v254, 4294901760
    %v6745 = vsub.f32 %v254, %v6744
    %v6746 = vand.u32 %v6745, 4294901760
    %6747 = vmatpush2.msra.mxu0 %v6746
    %v6748 = vand.u32 %v247, 4294901760
    %v6749 = vsub.f32 %v247, %v6748
    %v6750 = vand.u32 %v6749, 4294901760
    %6751 = vmatprep.subr.mxu0 %v6750
    %v6752 = vand.u32 %v246, 4294901760
    %v6753 = vsub.f32 %v246, %v6752
    %v6754 = vand.u32 %v6753, 4294901760
    %6755 = vmatpush2.msra.mxu0 %v6754
    %v6756 = vand.u32 %v239, 4294901760
    %v6757 = vsub.f32 %v239, %v6756
    %v6758 = vand.u32 %v6757, 4294901760
    %6759 = vmatprep.subr.mxu0 %v6758
    %v6760 = vand.u32 %v238, 4294901760
    %v6761 = vsub.f32 %v238, %v6760
    %v6762 = vand.u32 %v6761, 4294901760
    %6763 = vmatpush2.msra.mxu0 %v6762
    %v6764 = vand.u32 %v231, 4294901760
    %v6765 = vsub.f32 %v231, %v6764
    %v6766 = vand.u32 %v6765, 4294901760
    %6767 = vmatprep.subr.mxu0 %v6766
    %v6768 = vand.u32 %v230, 4294901760
    %v6769 = vsub.f32 %v230, %v6768
    %v6770 = vand.u32 %v6769, 4294901760
    %6771 = vmatpush2.msra.mxu0 %v6770
    %v6772 = vand.u32 %v223, 4294901760
    %v6773 = vsub.f32 %v223, %v6772
    %v6774 = vand.u32 %v6773, 4294901760
    %6775 = vmatprep.subr.mxu0 %v6774
    %v6776 = vand.u32 %v222, 4294901760
    %v6777 = vsub.f32 %v222, %v6776
    %v6778 = vand.u32 %v6777, 4294901760
    %6779 = vmatpush2.msra.mxu0 %v6778
    %v6780 = vand.u32 %v215, 4294901760
    %v6781 = vsub.f32 %v215, %v6780
    %v6782 = vand.u32 %v6781, 4294901760
    %6783 = vmatprep.subr.mxu0 %v6782
    %v6784 = vand.u32 %v214, 4294901760
    %v6785 = vsub.f32 %v214, %v6784
    %v6786 = vand.u32 %v6785, 4294901760
    %6787 = vmatpush2.msra.mxu0 %v6786
    %v6788 = vand.u32 %v207, 4294901760
    %v6789 = vsub.f32 %v207, %v6788
    %v6790 = vand.u32 %v6789, 4294901760
    %6791 = vmatprep.subr.mxu0 %v6790
    %v6792 = vand.u32 %v206, 4294901760
    %v6793 = vsub.f32 %v206, %v6792
    %v6794 = vand.u32 %v6793, 4294901760
    %6795 = vmatpush2.msra.mxu0 %v6794
    %v6796 = vand.u32 %v199, 4294901760
    %v6797 = vsub.f32 %v199, %v6796
    %v6798 = vand.u32 %v6797, 4294901760
    %6799 = vmatprep.subr.mxu0 %v6798
    %v6800 = vand.u32 %v198, 4294901760
    %v6801 = vsub.f32 %v198, %v6800
    %v6802 = vand.u32 %v6801, 4294901760
    %6803 = vmatpush2.msra.mxu0 %v6802
    %v6804 = vand.u32 %v191, 4294901760
    %v6805 = vsub.f32 %v191, %v6804
    %v6806 = vand.u32 %v6805, 4294901760
    %6807 = vmatprep.subr.mxu0 %v6806
    %v6808 = vand.u32 %v190, 4294901760
    %v6809 = vsub.f32 %v190, %v6808
    %v6810 = vand.u32 %v6809, 4294901760
    %6811 = vmatpush2.msra.mxu0 %v6810
    %v6812 = vand.u32 %v183, 4294901760
    %v6813 = vsub.f32 %v183, %v6812
    %v6814 = vand.u32 %v6813, 4294901760
    %6815 = vmatprep.subr.mxu0 %v6814
    %v6816 = vand.u32 %v182, 4294901760
    %v6817 = vsub.f32 %v182, %v6816
    %v6818 = vand.u32 %v6817, 4294901760
    %6819 = vmatpush2.msra.mxu0 %v6818
    %v6820 = vand.u32 %v175, 4294901760
    %v6821 = vsub.f32 %v175, %v6820
    %v6822 = vand.u32 %v6821, 4294901760
    %6823 = vmatprep.subr.mxu0 %v6822
    %v6824 = vand.u32 %v174, 4294901760
    %v6825 = vsub.f32 %v174, %v6824
    %v6826 = vand.u32 %v6825, 4294901760
    %6827 = vmatpush2.msra.mxu0 %v6826
    %v6828 = vand.u32 %v39, 4294901760
    %6829 = vmatprep.mubr.f32.mxu0 %v6828
    %v6830 = vand.u32 %v38, 4294901760
    %6831 = vmatmul.mubr.f32.gmra.mxu0 %v6830
    %v6832 = vpop.f32.mrf.mxu0
    %v6833 = vadd.f32 %v6568, %v6832
    %v6834 = vpop.f32.mrf.mxu0
    %v6835 = vadd.f32 %v6570, %v6834
    %6836 = vdwg.mxu0
    %v6837 = vand.u32 %v167, 4294901760
    %6838 = vmatprep.subr.mxu0 %v6837
    %v6839 = vand.u32 %v166, 4294901760
    %6840 = vmatpush1.msra.mxu0 %v6839
    %v6841 = vand.u32 %v159, 4294901760
    %6842 = vmatprep.subr.mxu0 %v6841
    %v6843 = vand.u32 %v158, 4294901760
    %6844 = vmatpush1.msra.mxu0 %v6843
    %v6845 = vand.u32 %v151, 4294901760
    %6846 = vmatprep.subr.mxu0 %v6845
    %v6847 = vand.u32 %v150, 4294901760
    %6848 = vmatpush1.msra.mxu0 %v6847
    %v6849 = vand.u32 %v143, 4294901760
    %6850 = vmatprep.subr.mxu0 %v6849
    %v6851 = vand.u32 %v142, 4294901760
    %6852 = vmatpush1.msra.mxu0 %v6851
    %v6853 = vand.u32 %v135, 4294901760
    %6854 = vmatprep.subr.mxu0 %v6853
    %v6855 = vand.u32 %v134, 4294901760
    %6856 = vmatpush1.msra.mxu0 %v6855
    %v6857 = vand.u32 %v127, 4294901760
    %6858 = vmatprep.subr.mxu0 %v6857
    %v6859 = vand.u32 %v126, 4294901760
    %6860 = vmatpush1.msra.mxu0 %v6859
    %v6861 = vand.u32 %v119, 4294901760
    %6862 = vmatprep.subr.mxu0 %v6861
    %v6863 = vand.u32 %v118, 4294901760
    %6864 = vmatpush1.msra.mxu0 %v6863
    %v6865 = vand.u32 %v111, 4294901760
    %6866 = vmatprep.subr.mxu0 %v6865
    %v6867 = vand.u32 %v110, 4294901760
    %6868 = vmatpush1.msra.mxu0 %v6867
    %v6869 = vand.u32 %v103, 4294901760
    %6870 = vmatprep.subr.mxu0 %v6869
    %v6871 = vand.u32 %v102, 4294901760
    %6872 = vmatpush1.msra.mxu0 %v6871
    %v6873 = vand.u32 %v95, 4294901760
    %6874 = vmatprep.subr.mxu0 %v6873
    %v6875 = vand.u32 %v94, 4294901760
    %6876 = vmatpush1.msra.mxu0 %v6875
    %v6877 = vand.u32 %v87, 4294901760
    %6878 = vmatprep.subr.mxu0 %v6877
    %v6879 = vand.u32 %v86, 4294901760
    %6880 = vmatpush1.msra.mxu0 %v6879
    %v6881 = vand.u32 %v79, 4294901760
    %6882 = vmatprep.subr.mxu0 %v6881
    %v6883 = vand.u32 %v78, 4294901760
    %6884 = vmatpush1.msra.mxu0 %v6883
    %v6885 = vand.u32 %v71, 4294901760
    %6886 = vmatprep.subr.mxu0 %v6885
    %v6887 = vand.u32 %v70, 4294901760
    %6888 = vmatpush1.msra.mxu0 %v6887
    %v6889 = vand.u32 %v63, 4294901760
    %6890 = vmatprep.subr.mxu0 %v6889
    %v6891 = vand.u32 %v62, 4294901760
    %6892 = vmatpush1.msra.mxu0 %v6891
    %v6893 = vand.u32 %v55, 4294901760
    %6894 = vmatprep.subr.mxu0 %v6893
    %v6895 = vand.u32 %v54, 4294901760
    %6896 = vmatpush1.msra.mxu0 %v6895
    %v6897 = vand.u32 %v47, 4294901760
    %6898 = vmatprep.subr.mxu0 %v6897
    %v6899 = vand.u32 %v46, 4294901760
    %6900 = vmatpush1.msra.mxu0 %v6899
    %v6901 = vand.u32 %v295, 4294901760
    %6902 = vmatprep.subr.mxu0 %v6901
    %v6903 = vand.u32 %v294, 4294901760
    %6904 = vmatpush2.msra.mxu0 %v6903
    %v6905 = vand.u32 %v287, 4294901760
    %6906 = vmatprep.subr.mxu0 %v6905
    %v6907 = vand.u32 %v286, 4294901760
    %6908 = vmatpush2.msra.mxu0 %v6907
    %v6909 = vand.u32 %v279, 4294901760
    %6910 = vmatprep.subr.mxu0 %v6909
    %v6911 = vand.u32 %v278, 4294901760
    %6912 = vmatpush2.msra.mxu0 %v6911
    %v6913 = vand.u32 %v271, 4294901760
    %6914 = vmatprep.subr.mxu0 %v6913
    %v6915 = vand.u32 %v270, 4294901760
    %6916 = vmatpush2.msra.mxu0 %v6915
    %v6917 = vand.u32 %v263, 4294901760
    %6918 = vmatprep.subr.mxu0 %v6917
    %v6919 = vand.u32 %v262, 4294901760
    %6920 = vmatpush2.msra.mxu0 %v6919
    %v6921 = vand.u32 %v255, 4294901760
    %6922 = vmatprep.subr.mxu0 %v6921
    %v6923 = vand.u32 %v254, 4294901760
    %6924 = vmatpush2.msra.mxu0 %v6923
    %v6925 = vand.u32 %v247, 4294901760
    %6926 = vmatprep.subr.mxu0 %v6925
    %v6927 = vand.u32 %v246, 4294901760
    %6928 = vmatpush2.msra.mxu0 %v6927
    %v6929 = vand.u32 %v239, 4294901760
    %6930 = vmatprep.subr.mxu0 %v6929
    %v6931 = vand.u32 %v238, 4294901760
    %6932 = vmatpush2.msra.mxu0 %v6931
    %v6933 = vand.u32 %v231, 4294901760
    %6934 = vmatprep.subr.mxu0 %v6933
    %v6935 = vand.u32 %v230, 4294901760
    %6936 = vmatpush2.msra.mxu0 %v6935
    %v6937 = vand.u32 %v223, 4294901760
    %6938 = vmatprep.subr.mxu0 %v6937
    %v6939 = vand.u32 %v222, 4294901760
    %6940 = vmatpush2.msra.mxu0 %v6939
    %v6941 = vand.u32 %v215, 4294901760
    %6942 = vmatprep.subr.mxu0 %v6941
    %v6943 = vand.u32 %v214, 4294901760
    %6944 = vmatpush2.msra.mxu0 %v6943
    %v6945 = vand.u32 %v207, 4294901760
    %6946 = vmatprep.subr.mxu0 %v6945
    %v6947 = vand.u32 %v206, 4294901760
    %6948 = vmatpush2.msra.mxu0 %v6947
    %v6949 = vand.u32 %v199, 4294901760
    %6950 = vmatprep.subr.mxu0 %v6949
    %v6951 = vand.u32 %v198, 4294901760
    %6952 = vmatpush2.msra.mxu0 %v6951
    %v6953 = vand.u32 %v191, 4294901760
    %6954 = vmatprep.subr.mxu0 %v6953
    %v6955 = vand.u32 %v190, 4294901760
    %6956 = vmatpush2.msra.mxu0 %v6955
    %v6957 = vand.u32 %v183, 4294901760
    %6958 = vmatprep.subr.mxu0 %v6957
    %v6959 = vand.u32 %v182, 4294901760
    %6960 = vmatpush2.msra.mxu0 %v6959
    %v6961 = vand.u32 %v175, 4294901760
    %6962 = vmatprep.subr.mxu0 %v6961
    %v6963 = vand.u32 %v174, 4294901760
    %6964 = vmatpush2.msra.mxu0 %v6963
    %v6965 = vand.u32 %v39, 4294901760
    %6966 = vmatprep.mubr.f32.mxu0 %v6965
    %v6967 = vand.u32 %v38, 4294901760
    %6968 = vmatmul.mubr.f32.gmra.mxu0 %v6967
    %v6969 = vpop.f32.mrf.mxu0
    %v6970 = vadd.f32 %v6833, %v6969
    %v6971 = vpop.f32.mrf.mxu0
    %v6972 = vadd.f32 %v6835, %v6971
    %6973 = vdwg.mxu0
    %v6974 = vand.u32 %v423, 4294901760
    %6975 = vmatprep.subr.mxu0 %v6974
    %v6976 = vand.u32 %v422, 4294901760
    %6977 = vmatpush1.msra.mxu0 %v6976
    %v6978 = vand.u32 %v415, 4294901760
    %6979 = vmatprep.subr.mxu0 %v6978
    %v6980 = vand.u32 %v414, 4294901760
    %6981 = vmatpush1.msra.mxu0 %v6980
    %v6982 = vand.u32 %v407, 4294901760
    %6983 = vmatprep.subr.mxu0 %v6982
    %v6984 = vand.u32 %v406, 4294901760
    %6985 = vmatpush1.msra.mxu0 %v6984
    %v6986 = vand.u32 %v399, 4294901760
    %6987 = vmatprep.subr.mxu0 %v6986
    %v6988 = vand.u32 %v398, 4294901760
    %6989 = vmatpush1.msra.mxu0 %v6988
    %v6990 = vand.u32 %v391, 4294901760
    %6991 = vmatprep.subr.mxu0 %v6990
    %v6992 = vand.u32 %v390, 4294901760
    %6993 = vmatpush1.msra.mxu0 %v6992
    %v6994 = vand.u32 %v383, 4294901760
    %6995 = vmatprep.subr.mxu0 %v6994
    %v6996 = vand.u32 %v382, 4294901760
    %6997 = vmatpush1.msra.mxu0 %v6996
    %v6998 = vand.u32 %v375, 4294901760
    %6999 = vmatprep.subr.mxu0 %v6998
    %v7000 = vand.u32 %v374, 4294901760
    %7001 = vmatpush1.msra.mxu0 %v7000
    %v7002 = vand.u32 %v367, 4294901760
    %7003 = vmatprep.subr.mxu0 %v7002
    %v7004 = vand.u32 %v366, 4294901760
    %7005 = vmatpush1.msra.mxu0 %v7004
    %v7006 = vand.u32 %v359, 4294901760
    %7007 = vmatprep.subr.mxu0 %v7006
    %v7008 = vand.u32 %v358, 4294901760
    %7009 = vmatpush1.msra.mxu0 %v7008
    %v7010 = vand.u32 %v351, 4294901760
    %7011 = vmatprep.subr.mxu0 %v7010
    %v7012 = vand.u32 %v350, 4294901760
    %7013 = vmatpush1.msra.mxu0 %v7012
    %v7014 = vand.u32 %v343, 4294901760
    %7015 = vmatprep.subr.mxu0 %v7014
    %v7016 = vand.u32 %v342, 4294901760
    %7017 = vmatpush1.msra.mxu0 %v7016
    %v7018 = vand.u32 %v335, 4294901760
    %7019 = vmatprep.subr.mxu0 %v7018
    %v7020 = vand.u32 %v334, 4294901760
    %7021 = vmatpush1.msra.mxu0 %v7020
    %v7022 = vand.u32 %v327, 4294901760
    %7023 = vmatprep.subr.mxu0 %v7022
    %v7024 = vand.u32 %v326, 4294901760
    %7025 = vmatpush1.msra.mxu0 %v7024
    %v7026 = vand.u32 %v319, 4294901760
    %7027 = vmatprep.subr.mxu0 %v7026
    %v7028 = vand.u32 %v318, 4294901760
    %7029 = vmatpush1.msra.mxu0 %v7028
    %v7030 = vand.u32 %v311, 4294901760
    %7031 = vmatprep.subr.mxu0 %v7030
    %v7032 = vand.u32 %v310, 4294901760
    %7033 = vmatpush1.msra.mxu0 %v7032
    %v7034 = vand.u32 %v303, 4294901760
    %7035 = vmatprep.subr.mxu0 %v7034
    %v7036 = vand.u32 %v302, 4294901760
    %7037 = vmatpush1.msra.mxu0 %v7036
    %v7038 = vand.u32 %v551, 4294901760
    %7039 = vmatprep.subr.mxu0 %v7038
    %v7040 = vand.u32 %v550, 4294901760
    %7041 = vmatpush2.msra.mxu0 %v7040
    %v7042 = vand.u32 %v543, 4294901760
    %7043 = vmatprep.subr.mxu0 %v7042
    %v7044 = vand.u32 %v542, 4294901760
    %7045 = vmatpush2.msra.mxu0 %v7044
    %v7046 = vand.u32 %v535, 4294901760
    %7047 = vmatprep.subr.mxu0 %v7046
    %v7048 = vand.u32 %v534, 4294901760
    %7049 = vmatpush2.msra.mxu0 %v7048
    %v7050 = vand.u32 %v527, 4294901760
    %7051 = vmatprep.subr.mxu0 %v7050
    %v7052 = vand.u32 %v526, 4294901760
    %7053 = vmatpush2.msra.mxu0 %v7052
    %v7054 = vand.u32 %v519, 4294901760
    %7055 = vmatprep.subr.mxu0 %v7054
    %v7056 = vand.u32 %v518, 4294901760
    %7057 = vmatpush2.msra.mxu0 %v7056
    %v7058 = vand.u32 %v511, 4294901760
    %7059 = vmatprep.subr.mxu0 %v7058
    %v7060 = vand.u32 %v510, 4294901760
    %7061 = vmatpush2.msra.mxu0 %v7060
    %v7062 = vand.u32 %v503, 4294901760
    %7063 = vmatprep.subr.mxu0 %v7062
    %v7064 = vand.u32 %v502, 4294901760
    %7065 = vmatpush2.msra.mxu0 %v7064
    %v7066 = vand.u32 %v495, 4294901760
    %7067 = vmatprep.subr.mxu0 %v7066
    %v7068 = vand.u32 %v494, 4294901760
    %7069 = vmatpush2.msra.mxu0 %v7068
    %v7070 = vand.u32 %v487, 4294901760
    %7071 = vmatprep.subr.mxu0 %v7070
    %v7072 = vand.u32 %v486, 4294901760
    %7073 = vmatpush2.msra.mxu0 %v7072
    %v7074 = vand.u32 %v479, 4294901760
    %7075 = vmatprep.subr.mxu0 %v7074
    %v7076 = vand.u32 %v478, 4294901760
    %7077 = vmatpush2.msra.mxu0 %v7076
    %v7078 = vand.u32 %v471, 4294901760
    %7079 = vmatprep.subr.mxu0 %v7078
    %v7080 = vand.u32 %v470, 4294901760
    %7081 = vmatpush2.msra.mxu0 %v7080
    %v7082 = vand.u32 %v463, 4294901760
    %7083 = vmatprep.subr.mxu0 %v7082
    %v7084 = vand.u32 %v462, 4294901760
    %7085 = vmatpush2.msra.mxu0 %v7084
    %v7086 = vand.u32 %v455, 4294901760
    %7087 = vmatprep.subr.mxu0 %v7086
    %v7088 = vand.u32 %v454, 4294901760
    %7089 = vmatpush2.msra.mxu0 %v7088
    %v7090 = vand.u32 %v447, 4294901760
    %7091 = vmatprep.subr.mxu0 %v7090
    %v7092 = vand.u32 %v446, 4294901760
    %7093 = vmatpush2.msra.mxu0 %v7092
    %v7094 = vand.u32 %v439, 4294901760
    %7095 = vmatprep.subr.mxu0 %v7094
    %v7096 = vand.u32 %v438, 4294901760
    %7097 = vmatpush2.msra.mxu0 %v7096
    %v7098 = vand.u32 %v431, 4294901760
    %7099 = vmatprep.subr.mxu0 %v7098
    %v7100 = vand.u32 %v430, 4294901760
    %7101 = vmatpush2.msra.mxu0 %v7100
    %v7102 = vand.u32 %v41, 4294901760
    %v7103 = vsub.f32 %v41, %v7102
    %v7104 = vand.u32 %v7103, 4294901760
    %v7105 = vsub.f32 %v7103, %v7104
    %v7106 = vand.u32 %v7105, 4294901760
    %7107 = vmatprep.mubr.f32.mxu0 %v7106
    %v7108 = vand.u32 %v40, 4294901760
    %v7109 = vsub.f32 %v40, %v7108
    %v7110 = vand.u32 %v7109, 4294901760
    %v7111 = vsub.f32 %v7109, %v7110
    %v7112 = vand.u32 %v7111, 4294901760
    %7113 = vmatmul.mubr.f32.gmra.mxu0 %v7112
    %v7114 = vpop.f32.mrf.mxu0
    %v7115 = vadd.f32 %v6970, %v7114
    %v7116 = vpop.f32.mrf.mxu0
    %v7117 = vadd.f32 %v6972, %v7116
    %7118 = vdwg.mxu0
    %v7119 = vand.u32 %v423, 4294901760
    %v7120 = vsub.f32 %v423, %v7119
    %v7121 = vand.u32 %v7120, 4294901760
    %v7122 = vsub.f32 %v7120, %v7121
    %v7123 = vand.u32 %v7122, 4294901760
    %7124 = vmatprep.subr.mxu0 %v7123
    %v7125 = vand.u32 %v422, 4294901760
    %v7126 = vsub.f32 %v422, %v7125
    %v7127 = vand.u32 %v7126, 4294901760
    %v7128 = vsub.f32 %v7126, %v7127
    %v7129 = vand.u32 %v7128, 4294901760
    %7130 = vmatpush1.msra.mxu0 %v7129
    %v7131 = vand.u32 %v415, 4294901760
    %v7132 = vsub.f32 %v415, %v7131
    %v7133 = vand.u32 %v7132, 4294901760
    %v7134 = vsub.f32 %v7132, %v7133
    %v7135 = vand.u32 %v7134, 4294901760
    %7136 = vmatprep.subr.mxu0 %v7135
    %v7137 = vand.u32 %v414, 4294901760
    %v7138 = vsub.f32 %v414, %v7137
    %v7139 = vand.u32 %v7138, 4294901760
    %v7140 = vsub.f32 %v7138, %v7139
    %v7141 = vand.u32 %v7140, 4294901760
    %7142 = vmatpush1.msra.mxu0 %v7141
    %v7143 = vand.u32 %v407, 4294901760
    %v7144 = vsub.f32 %v407, %v7143
    %v7145 = vand.u32 %v7144, 4294901760
    %v7146 = vsub.f32 %v7144, %v7145
    %v7147 = vand.u32 %v7146, 4294901760
    %7148 = vmatprep.subr.mxu0 %v7147
    %v7149 = vand.u32 %v406, 4294901760
    %v7150 = vsub.f32 %v406, %v7149
    %v7151 = vand.u32 %v7150, 4294901760
    %v7152 = vsub.f32 %v7150, %v7151
    %v7153 = vand.u32 %v7152, 4294901760
    %7154 = vmatpush1.msra.mxu0 %v7153
    %v7155 = vand.u32 %v399, 4294901760
    %v7156 = vsub.f32 %v399, %v7155
    %v7157 = vand.u32 %v7156, 4294901760
    %v7158 = vsub.f32 %v7156, %v7157
    %v7159 = vand.u32 %v7158, 4294901760
    %7160 = vmatprep.subr.mxu0 %v7159
    %v7161 = vand.u32 %v398, 4294901760
    %v7162 = vsub.f32 %v398, %v7161
    %v7163 = vand.u32 %v7162, 4294901760
    %v7164 = vsub.f32 %v7162, %v7163
    %v7165 = vand.u32 %v7164, 4294901760
    %7166 = vmatpush1.msra.mxu0 %v7165
    %v7167 = vand.u32 %v391, 4294901760
    %v7168 = vsub.f32 %v391, %v7167
    %v7169 = vand.u32 %v7168, 4294901760
    %v7170 = vsub.f32 %v7168, %v7169
    %v7171 = vand.u32 %v7170, 4294901760
    %7172 = vmatprep.subr.mxu0 %v7171
    %v7173 = vand.u32 %v390, 4294901760
    %v7174 = vsub.f32 %v390, %v7173
    %v7175 = vand.u32 %v7174, 4294901760
    %v7176 = vsub.f32 %v7174, %v7175
    %v7177 = vand.u32 %v7176, 4294901760
    %7178 = vmatpush1.msra.mxu0 %v7177
    %v7179 = vand.u32 %v383, 4294901760
    %v7180 = vsub.f32 %v383, %v7179
    %v7181 = vand.u32 %v7180, 4294901760
    %v7182 = vsub.f32 %v7180, %v7181
    %v7183 = vand.u32 %v7182, 4294901760
    %7184 = vmatprep.subr.mxu0 %v7183
    %v7185 = vand.u32 %v382, 4294901760
    %v7186 = vsub.f32 %v382, %v7185
    %v7187 = vand.u32 %v7186, 4294901760
    %v7188 = vsub.f32 %v7186, %v7187
    %v7189 = vand.u32 %v7188, 4294901760
    %7190 = vmatpush1.msra.mxu0 %v7189
    %v7191 = vand.u32 %v375, 4294901760
    %v7192 = vsub.f32 %v375, %v7191
    %v7193 = vand.u32 %v7192, 4294901760
    %v7194 = vsub.f32 %v7192, %v7193
    %v7195 = vand.u32 %v7194, 4294901760
    %7196 = vmatprep.subr.mxu0 %v7195
    %v7197 = vand.u32 %v374, 4294901760
    %v7198 = vsub.f32 %v374, %v7197
    %v7199 = vand.u32 %v7198, 4294901760
    %v7200 = vsub.f32 %v7198, %v7199
    %v7201 = vand.u32 %v7200, 4294901760
    %7202 = vmatpush1.msra.mxu0 %v7201
    %v7203 = vand.u32 %v367, 4294901760
    %v7204 = vsub.f32 %v367, %v7203
    %v7205 = vand.u32 %v7204, 4294901760
    %v7206 = vsub.f32 %v7204, %v7205
    %v7207 = vand.u32 %v7206, 4294901760
    %7208 = vmatprep.subr.mxu0 %v7207
    %v7209 = vand.u32 %v366, 4294901760
    %v7210 = vsub.f32 %v366, %v7209
    %v7211 = vand.u32 %v7210, 4294901760
    %v7212 = vsub.f32 %v7210, %v7211
    %v7213 = vand.u32 %v7212, 4294901760
    %7214 = vmatpush1.msra.mxu0 %v7213
    %v7215 = vand.u32 %v359, 4294901760
    %v7216 = vsub.f32 %v359, %v7215
    %v7217 = vand.u32 %v7216, 4294901760
    %v7218 = vsub.f32 %v7216, %v7217
    %v7219 = vand.u32 %v7218, 4294901760
    %7220 = vmatprep.subr.mxu0 %v7219
    %v7221 = vand.u32 %v358, 4294901760
    %v7222 = vsub.f32 %v358, %v7221
    %v7223 = vand.u32 %v7222, 4294901760
    %v7224 = vsub.f32 %v7222, %v7223
    %v7225 = vand.u32 %v7224, 4294901760
    %7226 = vmatpush1.msra.mxu0 %v7225
    %v7227 = vand.u32 %v351, 4294901760
    %v7228 = vsub.f32 %v351, %v7227
    %v7229 = vand.u32 %v7228, 4294901760
    %v7230 = vsub.f32 %v7228, %v7229
    %v7231 = vand.u32 %v7230, 4294901760
    %7232 = vmatprep.subr.mxu0 %v7231
    %v7233 = vand.u32 %v350, 4294901760
    %v7234 = vsub.f32 %v350, %v7233
    %v7235 = vand.u32 %v7234, 4294901760
    %v7236 = vsub.f32 %v7234, %v7235
    %v7237 = vand.u32 %v7236, 4294901760
    %7238 = vmatpush1.msra.mxu0 %v7237
    %v7239 = vand.u32 %v343, 4294901760
    %v7240 = vsub.f32 %v343, %v7239
    %v7241 = vand.u32 %v7240, 4294901760
    %v7242 = vsub.f32 %v7240, %v7241
    %v7243 = vand.u32 %v7242, 4294901760
    %7244 = vmatprep.subr.mxu0 %v7243
    %v7245 = vand.u32 %v342, 4294901760
    %v7246 = vsub.f32 %v342, %v7245
    %v7247 = vand.u32 %v7246, 4294901760
    %v7248 = vsub.f32 %v7246, %v7247
    %v7249 = vand.u32 %v7248, 4294901760
    %7250 = vmatpush1.msra.mxu0 %v7249
    %v7251 = vand.u32 %v335, 4294901760
    %v7252 = vsub.f32 %v335, %v7251
    %v7253 = vand.u32 %v7252, 4294901760
    %v7254 = vsub.f32 %v7252, %v7253
    %v7255 = vand.u32 %v7254, 4294901760
    %7256 = vmatprep.subr.mxu0 %v7255
    %v7257 = vand.u32 %v334, 4294901760
    %v7258 = vsub.f32 %v334, %v7257
    %v7259 = vand.u32 %v7258, 4294901760
    %v7260 = vsub.f32 %v7258, %v7259
    %v7261 = vand.u32 %v7260, 4294901760
    %7262 = vmatpush1.msra.mxu0 %v7261
    %v7263 = vand.u32 %v327, 4294901760
    %v7264 = vsub.f32 %v327, %v7263
    %v7265 = vand.u32 %v7264, 4294901760
    %v7266 = vsub.f32 %v7264, %v7265
    %v7267 = vand.u32 %v7266, 4294901760
    %7268 = vmatprep.subr.mxu0 %v7267
    %v7269 = vand.u32 %v326, 4294901760
    %v7270 = vsub.f32 %v326, %v7269
    %v7271 = vand.u32 %v7270, 4294901760
    %v7272 = vsub.f32 %v7270, %v7271
    %v7273 = vand.u32 %v7272, 4294901760
    %7274 = vmatpush1.msra.mxu0 %v7273
    %v7275 = vand.u32 %v319, 4294901760
    %v7276 = vsub.f32 %v319, %v7275
    %v7277 = vand.u32 %v7276, 4294901760
    %v7278 = vsub.f32 %v7276, %v7277
    %v7279 = vand.u32 %v7278, 4294901760
    %7280 = vmatprep.subr.mxu0 %v7279
    %v7281 = vand.u32 %v318, 4294901760
    %v7282 = vsub.f32 %v318, %v7281
    %v7283 = vand.u32 %v7282, 4294901760
    %v7284 = vsub.f32 %v7282, %v7283
    %v7285 = vand.u32 %v7284, 4294901760
    %7286 = vmatpush1.msra.mxu0 %v7285
    %v7287 = vand.u32 %v311, 4294901760
    %v7288 = vsub.f32 %v311, %v7287
    %v7289 = vand.u32 %v7288, 4294901760
    %v7290 = vsub.f32 %v7288, %v7289
    %v7291 = vand.u32 %v7290, 4294901760
    %7292 = vmatprep.subr.mxu0 %v7291
    %v7293 = vand.u32 %v310, 4294901760
    %v7294 = vsub.f32 %v310, %v7293
    %v7295 = vand.u32 %v7294, 4294901760
    %v7296 = vsub.f32 %v7294, %v7295
    %v7297 = vand.u32 %v7296, 4294901760
    %7298 = vmatpush1.msra.mxu0 %v7297
    %v7299 = vand.u32 %v303, 4294901760
    %v7300 = vsub.f32 %v303, %v7299
    %v7301 = vand.u32 %v7300, 4294901760
    %v7302 = vsub.f32 %v7300, %v7301
    %v7303 = vand.u32 %v7302, 4294901760
    %7304 = vmatprep.subr.mxu0 %v7303
    %v7305 = vand.u32 %v302, 4294901760
    %v7306 = vsub.f32 %v302, %v7305
    %v7307 = vand.u32 %v7306, 4294901760
    %v7308 = vsub.f32 %v7306, %v7307
    %v7309 = vand.u32 %v7308, 4294901760
    %7310 = vmatpush1.msra.mxu0 %v7309
    %v7311 = vand.u32 %v551, 4294901760
    %v7312 = vsub.f32 %v551, %v7311
    %v7313 = vand.u32 %v7312, 4294901760
    %v7314 = vsub.f32 %v7312, %v7313
    %v7315 = vand.u32 %v7314, 4294901760
    %7316 = vmatprep.subr.mxu0 %v7315
    %v7317 = vand.u32 %v550, 4294901760
    %v7318 = vsub.f32 %v550, %v7317
    %v7319 = vand.u32 %v7318, 4294901760
    %v7320 = vsub.f32 %v7318, %v7319
    %v7321 = vand.u32 %v7320, 4294901760
    %7322 = vmatpush2.msra.mxu0 %v7321
    %v7323 = vand.u32 %v543, 4294901760
    %v7324 = vsub.f32 %v543, %v7323
    %v7325 = vand.u32 %v7324, 4294901760
    %v7326 = vsub.f32 %v7324, %v7325
    %v7327 = vand.u32 %v7326, 4294901760
    %7328 = vmatprep.subr.mxu0 %v7327
    %v7329 = vand.u32 %v542, 4294901760
    %v7330 = vsub.f32 %v542, %v7329
    %v7331 = vand.u32 %v7330, 4294901760
    %v7332 = vsub.f32 %v7330, %v7331
    %v7333 = vand.u32 %v7332, 4294901760
    %7334 = vmatpush2.msra.mxu0 %v7333
    %v7335 = vand.u32 %v535, 4294901760
    %v7336 = vsub.f32 %v535, %v7335
    %v7337 = vand.u32 %v7336, 4294901760
    %v7338 = vsub.f32 %v7336, %v7337
    %v7339 = vand.u32 %v7338, 4294901760
    %7340 = vmatprep.subr.mxu0 %v7339
    %v7341 = vand.u32 %v534, 4294901760
    %v7342 = vsub.f32 %v534, %v7341
    %v7343 = vand.u32 %v7342, 4294901760
    %v7344 = vsub.f32 %v7342, %v7343
    %v7345 = vand.u32 %v7344, 4294901760
    %7346 = vmatpush2.msra.mxu0 %v7345
    %v7347 = vand.u32 %v527, 4294901760
    %v7348 = vsub.f32 %v527, %v7347
    %v7349 = vand.u32 %v7348, 4294901760
    %v7350 = vsub.f32 %v7348, %v7349
    %v7351 = vand.u32 %v7350, 4294901760
    %7352 = vmatprep.subr.mxu0 %v7351
    %v7353 = vand.u32 %v526, 4294901760
    %v7354 = vsub.f32 %v526, %v7353
    %v7355 = vand.u32 %v7354, 4294901760
    %v7356 = vsub.f32 %v7354, %v7355
    %v7357 = vand.u32 %v7356, 4294901760
    %7358 = vmatpush2.msra.mxu0 %v7357
    %v7359 = vand.u32 %v519, 4294901760
    %v7360 = vsub.f32 %v519, %v7359
    %v7361 = vand.u32 %v7360, 4294901760
    %v7362 = vsub.f32 %v7360, %v7361
    %v7363 = vand.u32 %v7362, 4294901760
    %7364 = vmatprep.subr.mxu0 %v7363
    %v7365 = vand.u32 %v518, 4294901760
    %v7366 = vsub.f32 %v518, %v7365
    %v7367 = vand.u32 %v7366, 4294901760
    %v7368 = vsub.f32 %v7366, %v7367
    %v7369 = vand.u32 %v7368, 4294901760
    %7370 = vmatpush2.msra.mxu0 %v7369
    %v7371 = vand.u32 %v511, 4294901760
    %v7372 = vsub.f32 %v511, %v7371
    %v7373 = vand.u32 %v7372, 4294901760
    %v7374 = vsub.f32 %v7372, %v7373
    %v7375 = vand.u32 %v7374, 4294901760
    %7376 = vmatprep.subr.mxu0 %v7375
    %v7377 = vand.u32 %v510, 4294901760
    %v7378 = vsub.f32 %v510, %v7377
    %v7379 = vand.u32 %v7378, 4294901760
    %v7380 = vsub.f32 %v7378, %v7379
    %v7381 = vand.u32 %v7380, 4294901760
    %7382 = vmatpush2.msra.mxu0 %v7381
    %v7383 = vand.u32 %v503, 4294901760
    %v7384 = vsub.f32 %v503, %v7383
    %v7385 = vand.u32 %v7384, 4294901760
    %v7386 = vsub.f32 %v7384, %v7385
    %v7387 = vand.u32 %v7386, 4294901760
    %7388 = vmatprep.subr.mxu0 %v7387
    %v7389 = vand.u32 %v502, 4294901760
    %v7390 = vsub.f32 %v502, %v7389
    %v7391 = vand.u32 %v7390, 4294901760
    %v7392 = vsub.f32 %v7390, %v7391
    %v7393 = vand.u32 %v7392, 4294901760
    %7394 = vmatpush2.msra.mxu0 %v7393
    %v7395 = vand.u32 %v495, 4294901760
    %v7396 = vsub.f32 %v495, %v7395
    %v7397 = vand.u32 %v7396, 4294901760
    %v7398 = vsub.f32 %v7396, %v7397
    %v7399 = vand.u32 %v7398, 4294901760
    %7400 = vmatprep.subr.mxu0 %v7399
    %v7401 = vand.u32 %v494, 4294901760
    %v7402 = vsub.f32 %v494, %v7401
    %v7403 = vand.u32 %v7402, 4294901760
    %v7404 = vsub.f32 %v7402, %v7403
    %v7405 = vand.u32 %v7404, 4294901760
    %7406 = vmatpush2.msra.mxu0 %v7405
    %v7407 = vand.u32 %v487, 4294901760
    %v7408 = vsub.f32 %v487, %v7407
    %v7409 = vand.u32 %v7408, 4294901760
    %v7410 = vsub.f32 %v7408, %v7409
    %v7411 = vand.u32 %v7410, 4294901760
    %7412 = vmatprep.subr.mxu0 %v7411
    %v7413 = vand.u32 %v486, 4294901760
    %v7414 = vsub.f32 %v486, %v7413
    %v7415 = vand.u32 %v7414, 4294901760
    %v7416 = vsub.f32 %v7414, %v7415
    %v7417 = vand.u32 %v7416, 4294901760
    %7418 = vmatpush2.msra.mxu0 %v7417
    %v7419 = vand.u32 %v479, 4294901760
    %v7420 = vsub.f32 %v479, %v7419
    %v7421 = vand.u32 %v7420, 4294901760
    %v7422 = vsub.f32 %v7420, %v7421
    %v7423 = vand.u32 %v7422, 4294901760
    %7424 = vmatprep.subr.mxu0 %v7423
    %v7425 = vand.u32 %v478, 4294901760
    %v7426 = vsub.f32 %v478, %v7425
    %v7427 = vand.u32 %v7426, 4294901760
    %v7428 = vsub.f32 %v7426, %v7427
    %v7429 = vand.u32 %v7428, 4294901760
    %7430 = vmatpush2.msra.mxu0 %v7429
    %v7431 = vand.u32 %v471, 4294901760
    %v7432 = vsub.f32 %v471, %v7431
    %v7433 = vand.u32 %v7432, 4294901760
    %v7434 = vsub.f32 %v7432, %v7433
    %v7435 = vand.u32 %v7434, 4294901760
    %7436 = vmatprep.subr.mxu0 %v7435
    %v7437 = vand.u32 %v470, 4294901760
    %v7438 = vsub.f32 %v470, %v7437
    %v7439 = vand.u32 %v7438, 4294901760
    %v7440 = vsub.f32 %v7438, %v7439
    %v7441 = vand.u32 %v7440, 4294901760
    %7442 = vmatpush2.msra.mxu0 %v7441
    %v7443 = vand.u32 %v463, 4294901760
    %v7444 = vsub.f32 %v463, %v7443
    %v7445 = vand.u32 %v7444, 4294901760
    %v7446 = vsub.f32 %v7444, %v7445
    %v7447 = vand.u32 %v7446, 4294901760
    %7448 = vmatprep.subr.mxu0 %v7447
    %v7449 = vand.u32 %v462, 4294901760
    %v7450 = vsub.f32 %v462, %v7449
    %v7451 = vand.u32 %v7450, 4294901760
    %v7452 = vsub.f32 %v7450, %v7451
    %v7453 = vand.u32 %v7452, 4294901760
    %7454 = vmatpush2.msra.mxu0 %v7453
    %v7455 = vand.u32 %v455, 4294901760
    %v7456 = vsub.f32 %v455, %v7455
    %v7457 = vand.u32 %v7456, 4294901760
    %v7458 = vsub.f32 %v7456, %v7457
    %v7459 = vand.u32 %v7458, 4294901760
    %7460 = vmatprep.subr.mxu0 %v7459
    %v7461 = vand.u32 %v454, 4294901760
    %v7462 = vsub.f32 %v454, %v7461
    %v7463 = vand.u32 %v7462, 4294901760
    %v7464 = vsub.f32 %v7462, %v7463
    %v7465 = vand.u32 %v7464, 4294901760
    %7466 = vmatpush2.msra.mxu0 %v7465
    %v7467 = vand.u32 %v447, 4294901760
    %v7468 = vsub.f32 %v447, %v7467
    %v7469 = vand.u32 %v7468, 4294901760
    %v7470 = vsub.f32 %v7468, %v7469
    %v7471 = vand.u32 %v7470, 4294901760
    %7472 = vmatprep.subr.mxu0 %v7471
    %v7473 = vand.u32 %v446, 4294901760
    %v7474 = vsub.f32 %v446, %v7473
    %v7475 = vand.u32 %v7474, 4294901760
    %v7476 = vsub.f32 %v7474, %v7475
    %v7477 = vand.u32 %v7476, 4294901760
    %7478 = vmatpush2.msra.mxu0 %v7477
    %v7479 = vand.u32 %v439, 4294901760
    %v7480 = vsub.f32 %v439, %v7479
    %v7481 = vand.u32 %v7480, 4294901760
    %v7482 = vsub.f32 %v7480, %v7481
    %v7483 = vand.u32 %v7482, 4294901760
    %7484 = vmatprep.subr.mxu0 %v7483
    %v7485 = vand.u32 %v438, 4294901760
    %v7486 = vsub.f32 %v438, %v7485
    %v7487 = vand.u32 %v7486, 4294901760
    %v7488 = vsub.f32 %v7486, %v7487
    %v7489 = vand.u32 %v7488, 4294901760
    %7490 = vmatpush2.msra.mxu0 %v7489
    %v7491 = vand.u32 %v431, 4294901760
    %v7492 = vsub.f32 %v431, %v7491
    %v7493 = vand.u32 %v7492, 4294901760
    %v7494 = vsub.f32 %v7492, %v7493
    %v7495 = vand.u32 %v7494, 4294901760
    %7496 = vmatprep.subr.mxu0 %v7495
    %v7497 = vand.u32 %v430, 4294901760
    %v7498 = vsub.f32 %v430, %v7497
    %v7499 = vand.u32 %v7498, 4294901760
    %v7500 = vsub.f32 %v7498, %v7499
    %v7501 = vand.u32 %v7500, 4294901760
    %7502 = vmatpush2.msra.mxu0 %v7501
    %v7503 = vand.u32 %v41, 4294901760
    %7504 = vmatprep.mubr.f32.mxu0 %v7503
    %v7505 = vand.u32 %v40, 4294901760
    %7506 = vmatmul.mubr.f32.gmra.mxu0 %v7505
    %v7507 = vpop.f32.mrf.mxu0
    %v7508 = vadd.f32 %v7115, %v7507
    %v7509 = vpop.f32.mrf.mxu0
    %v7510 = vadd.f32 %v7117, %v7509
    %7511 = vdwg.mxu0
    %v7512 = vand.u32 %v423, 4294901760
    %v7513 = vsub.f32 %v423, %v7512
    %7514 = vmatprep.subr.mxu0 %v7513
    %v7515 = vand.u32 %v422, 4294901760
    %v7516 = vsub.f32 %v422, %v7515
    %7517 = vmatpush1.msra.mxu0 %v7516
    %v7518 = vand.u32 %v415, 4294901760
    %v7519 = vsub.f32 %v415, %v7518
    %7520 = vmatprep.subr.mxu0 %v7519
    %v7521 = vand.u32 %v414, 4294901760
    %v7522 = vsub.f32 %v414, %v7521
    %7523 = vmatpush1.msra.mxu0 %v7522
    %v7524 = vand.u32 %v407, 4294901760
    %v7525 = vsub.f32 %v407, %v7524
    %7526 = vmatprep.subr.mxu0 %v7525
    %v7527 = vand.u32 %v406, 4294901760
    %v7528 = vsub.f32 %v406, %v7527
    %7529 = vmatpush1.msra.mxu0 %v7528
    %v7530 = vand.u32 %v399, 4294901760
    %v7531 = vsub.f32 %v399, %v7530
    %7532 = vmatprep.subr.mxu0 %v7531
    %v7533 = vand.u32 %v398, 4294901760
    %v7534 = vsub.f32 %v398, %v7533
    %7535 = vmatpush1.msra.mxu0 %v7534
    %v7536 = vand.u32 %v391, 4294901760
    %v7537 = vsub.f32 %v391, %v7536
    %7538 = vmatprep.subr.mxu0 %v7537
    %v7539 = vand.u32 %v390, 4294901760
    %v7540 = vsub.f32 %v390, %v7539
    %7541 = vmatpush1.msra.mxu0 %v7540
    %v7542 = vand.u32 %v383, 4294901760
    %v7543 = vsub.f32 %v383, %v7542
    %7544 = vmatprep.subr.mxu0 %v7543
    %v7545 = vand.u32 %v382, 4294901760
    %v7546 = vsub.f32 %v382, %v7545
    %7547 = vmatpush1.msra.mxu0 %v7546
    %v7548 = vand.u32 %v375, 4294901760
    %v7549 = vsub.f32 %v375, %v7548
    %7550 = vmatprep.subr.mxu0 %v7549
    %v7551 = vand.u32 %v374, 4294901760
    %v7552 = vsub.f32 %v374, %v7551
    %7553 = vmatpush1.msra.mxu0 %v7552
    %v7554 = vand.u32 %v367, 4294901760
    %v7555 = vsub.f32 %v367, %v7554
    %7556 = vmatprep.subr.mxu0 %v7555
    %v7557 = vand.u32 %v366, 4294901760
    %v7558 = vsub.f32 %v366, %v7557
    %7559 = vmatpush1.msra.mxu0 %v7558
    %v7560 = vand.u32 %v359, 4294901760
    %v7561 = vsub.f32 %v359, %v7560
    %7562 = vmatprep.subr.mxu0 %v7561
    %v7563 = vand.u32 %v358, 4294901760
    %v7564 = vsub.f32 %v358, %v7563
    %7565 = vmatpush1.msra.mxu0 %v7564
    %v7566 = vand.u32 %v351, 4294901760
    %v7567 = vsub.f32 %v351, %v7566
    %7568 = vmatprep.subr.mxu0 %v7567
    %v7569 = vand.u32 %v350, 4294901760
    %v7570 = vsub.f32 %v350, %v7569
    %7571 = vmatpush1.msra.mxu0 %v7570
    %v7572 = vand.u32 %v343, 4294901760
    %v7573 = vsub.f32 %v343, %v7572
    %7574 = vmatprep.subr.mxu0 %v7573
    %v7575 = vand.u32 %v342, 4294901760
    %v7576 = vsub.f32 %v342, %v7575
    %7577 = vmatpush1.msra.mxu0 %v7576
    %v7578 = vand.u32 %v335, 4294901760
    %v7579 = vsub.f32 %v335, %v7578
    %7580 = vmatprep.subr.mxu0 %v7579
    %v7581 = vand.u32 %v334, 4294901760
    %v7582 = vsub.f32 %v334, %v7581
    %7583 = vmatpush1.msra.mxu0 %v7582
    %v7584 = vand.u32 %v327, 4294901760
    %v7585 = vsub.f32 %v327, %v7584
    %7586 = vmatprep.subr.mxu0 %v7585
    %v7587 = vand.u32 %v326, 4294901760
    %v7588 = vsub.f32 %v326, %v7587
    %7589 = vmatpush1.msra.mxu0 %v7588
    %v7590 = vand.u32 %v319, 4294901760
    %v7591 = vsub.f32 %v319, %v7590
    %7592 = vmatprep.subr.mxu0 %v7591
    %v7593 = vand.u32 %v318, 4294901760
    %v7594 = vsub.f32 %v318, %v7593
    %7595 = vmatpush1.msra.mxu0 %v7594
    %v7596 = vand.u32 %v311, 4294901760
    %v7597 = vsub.f32 %v311, %v7596
    %7598 = vmatprep.subr.mxu0 %v7597
    %v7599 = vand.u32 %v310, 4294901760
    %v7600 = vsub.f32 %v310, %v7599
    %7601 = vmatpush1.msra.mxu0 %v7600
    %v7602 = vand.u32 %v303, 4294901760
    %v7603 = vsub.f32 %v303, %v7602
    %7604 = vmatprep.subr.mxu0 %v7603
    %v7605 = vand.u32 %v302, 4294901760
    %v7606 = vsub.f32 %v302, %v7605
    %7607 = vmatpush1.msra.mxu0 %v7606
    %v7608 = vand.u32 %v551, 4294901760
    %v7609 = vsub.f32 %v551, %v7608
    %7610 = vmatprep.subr.mxu0 %v7609
    %v7611 = vand.u32 %v550, 4294901760
    %v7612 = vsub.f32 %v550, %v7611
    %7613 = vmatpush2.msra.mxu0 %v7612
    %v7614 = vand.u32 %v543, 4294901760
    %v7615 = vsub.f32 %v543, %v7614
    %7616 = vmatprep.subr.mxu0 %v7615
    %v7617 = vand.u32 %v542, 4294901760
    %v7618 = vsub.f32 %v542, %v7617
    %7619 = vmatpush2.msra.mxu0 %v7618
    %v7620 = vand.u32 %v535, 4294901760
    %v7621 = vsub.f32 %v535, %v7620
    %7622 = vmatprep.subr.mxu0 %v7621
    %v7623 = vand.u32 %v534, 4294901760
    %v7624 = vsub.f32 %v534, %v7623
    %7625 = vmatpush2.msra.mxu0 %v7624
    %v7626 = vand.u32 %v527, 4294901760
    %v7627 = vsub.f32 %v527, %v7626
    %7628 = vmatprep.subr.mxu0 %v7627
    %v7629 = vand.u32 %v526, 4294901760
    %v7630 = vsub.f32 %v526, %v7629
    %7631 = vmatpush2.msra.mxu0 %v7630
    %v7632 = vand.u32 %v519, 4294901760
    %v7633 = vsub.f32 %v519, %v7632
    %7634 = vmatprep.subr.mxu0 %v7633
    %v7635 = vand.u32 %v518, 4294901760
    %v7636 = vsub.f32 %v518, %v7635
    %7637 = vmatpush2.msra.mxu0 %v7636
    %v7638 = vand.u32 %v511, 4294901760
    %v7639 = vsub.f32 %v511, %v7638
    %7640 = vmatprep.subr.mxu0 %v7639
    %v7641 = vand.u32 %v510, 4294901760
    %v7642 = vsub.f32 %v510, %v7641
    %7643 = vmatpush2.msra.mxu0 %v7642
    %v7644 = vand.u32 %v503, 4294901760
    %v7645 = vsub.f32 %v503, %v7644
    %7646 = vmatprep.subr.mxu0 %v7645
    %v7647 = vand.u32 %v502, 4294901760
    %v7648 = vsub.f32 %v502, %v7647
    %7649 = vmatpush2.msra.mxu0 %v7648
    %v7650 = vand.u32 %v495, 4294901760
    %v7651 = vsub.f32 %v495, %v7650
    %7652 = vmatprep.subr.mxu0 %v7651
    %v7653 = vand.u32 %v494, 4294901760
    %v7654 = vsub.f32 %v494, %v7653
    %7655 = vmatpush2.msra.mxu0 %v7654
    %v7656 = vand.u32 %v487, 4294901760
    %v7657 = vsub.f32 %v487, %v7656
    %7658 = vmatprep.subr.mxu0 %v7657
    %v7659 = vand.u32 %v486, 4294901760
    %v7660 = vsub.f32 %v486, %v7659
    %7661 = vmatpush2.msra.mxu0 %v7660
    %v7662 = vand.u32 %v479, 4294901760
    %v7663 = vsub.f32 %v479, %v7662
    %7664 = vmatprep.subr.mxu0 %v7663
    %v7665 = vand.u32 %v478, 4294901760
    %v7666 = vsub.f32 %v478, %v7665
    %7667 = vmatpush2.msra.mxu0 %v7666
    %v7668 = vand.u32 %v471, 4294901760
    %v7669 = vsub.f32 %v471, %v7668
    %7670 = vmatprep.subr.mxu0 %v7669
    %v7671 = vand.u32 %v470, 4294901760
    %v7672 = vsub.f32 %v470, %v7671
    %7673 = vmatpush2.msra.mxu0 %v7672
    %v7674 = vand.u32 %v463, 4294901760
    %v7675 = vsub.f32 %v463, %v7674
    %7676 = vmatprep.subr.mxu0 %v7675
    %v7677 = vand.u32 %v462, 4294901760
    %v7678 = vsub.f32 %v462, %v7677
    %7679 = vmatpush2.msra.mxu0 %v7678
    %v7680 = vand.u32 %v455, 4294901760
    %v7681 = vsub.f32 %v455, %v7680
    %7682 = vmatprep.subr.mxu0 %v7681
    %v7683 = vand.u32 %v454, 4294901760
    %v7684 = vsub.f32 %v454, %v7683
    %7685 = vmatpush2.msra.mxu0 %v7684
    %v7686 = vand.u32 %v447, 4294901760
    %v7687 = vsub.f32 %v447, %v7686
    %7688 = vmatprep.subr.mxu0 %v7687
    %v7689 = vand.u32 %v446, 4294901760
    %v7690 = vsub.f32 %v446, %v7689
    %7691 = vmatpush2.msra.mxu0 %v7690
    %v7692 = vand.u32 %v439, 4294901760
    %v7693 = vsub.f32 %v439, %v7692
    %7694 = vmatprep.subr.mxu0 %v7693
    %v7695 = vand.u32 %v438, 4294901760
    %v7696 = vsub.f32 %v438, %v7695
    %7697 = vmatpush2.msra.mxu0 %v7696
    %v7698 = vand.u32 %v431, 4294901760
    %v7699 = vsub.f32 %v431, %v7698
    %7700 = vmatprep.subr.mxu0 %v7699
    %v7701 = vand.u32 %v430, 4294901760
    %v7702 = vsub.f32 %v430, %v7701
    %7703 = vmatpush2.msra.mxu0 %v7702
    %v7704 = vand.u32 %v41, 4294901760
    %v7705 = vsub.f32 %v41, %v7704
    %7706 = vmatprep.mubr.f32.mxu0 %v7705
    %v7707 = vand.u32 %v40, 4294901760
    %v7708 = vsub.f32 %v40, %v7707
    %7709 = vmatmul.mubr.f32.gmra.mxu0 %v7708
    %v7710 = vpop.f32.mrf.mxu0
    %v7711 = vadd.f32 %v7508, %v7710
    %v7712 = vpop.f32.mrf.mxu0
    %v7713 = vadd.f32 %v7510, %v7712
    %7714 = vdwg.mxu0
    %v7715 = vand.u32 %v423, 4294901760
    %7716 = vmatprep.subr.mxu0 %v7715
    %v7717 = vand.u32 %v422, 4294901760
    %7718 = vmatpush1.msra.mxu0 %v7717
    %v7719 = vand.u32 %v415, 4294901760
    %7720 = vmatprep.subr.mxu0 %v7719
    %v7721 = vand.u32 %v414, 4294901760
    %7722 = vmatpush1.msra.mxu0 %v7721
    %v7723 = vand.u32 %v407, 4294901760
    %7724 = vmatprep.subr.mxu0 %v7723
    %v7725 = vand.u32 %v406, 4294901760
    %7726 = vmatpush1.msra.mxu0 %v7725
    %v7727 = vand.u32 %v399, 4294901760
    %7728 = vmatprep.subr.mxu0 %v7727
    %v7729 = vand.u32 %v398, 4294901760
    %7730 = vmatpush1.msra.mxu0 %v7729
    %v7731 = vand.u32 %v391, 4294901760
    %7732 = vmatprep.subr.mxu0 %v7731
    %v7733 = vand.u32 %v390, 4294901760
    %7734 = vmatpush1.msra.mxu0 %v7733
    %v7735 = vand.u32 %v383, 4294901760
    %7736 = vmatprep.subr.mxu0 %v7735
    %v7737 = vand.u32 %v382, 4294901760
    %7738 = vmatpush1.msra.mxu0 %v7737
    %v7739 = vand.u32 %v375, 4294901760
    %7740 = vmatprep.subr.mxu0 %v7739
    %v7741 = vand.u32 %v374, 4294901760
    %7742 = vmatpush1.msra.mxu0 %v7741
    %v7743 = vand.u32 %v367, 4294901760
    %7744 = vmatprep.subr.mxu0 %v7743
    %v7745 = vand.u32 %v366, 4294901760
    %7746 = vmatpush1.msra.mxu0 %v7745
    %v7747 = vand.u32 %v359, 4294901760
    %7748 = vmatprep.subr.mxu0 %v7747
    %v7749 = vand.u32 %v358, 4294901760
    %7750 = vmatpush1.msra.mxu0 %v7749
    %v7751 = vand.u32 %v351, 4294901760
    %7752 = vmatprep.subr.mxu0 %v7751
    %v7753 = vand.u32 %v350, 4294901760
    %7754 = vmatpush1.msra.mxu0 %v7753
    %v7755 = vand.u32 %v343, 4294901760
    %7756 = vmatprep.subr.mxu0 %v7755
    %v7757 = vand.u32 %v342, 4294901760
    %7758 = vmatpush1.msra.mxu0 %v7757
    %v7759 = vand.u32 %v335, 4294901760
    %7760 = vmatprep.subr.mxu0 %v7759
    %v7761 = vand.u32 %v334, 4294901760
    %7762 = vmatpush1.msra.mxu0 %v7761
    %v7763 = vand.u32 %v327, 4294901760
    %7764 = vmatprep.subr.mxu0 %v7763
    %v7765 = vand.u32 %v326, 4294901760
    %7766 = vmatpush1.msra.mxu0 %v7765
    %v7767 = vand.u32 %v319, 4294901760
    %7768 = vmatprep.subr.mxu0 %v7767
    %v7769 = vand.u32 %v318, 4294901760
    %7770 = vmatpush1.msra.mxu0 %v7769
    %v7771 = vand.u32 %v311, 4294901760
    %7772 = vmatprep.subr.mxu0 %v7771
    %v7773 = vand.u32 %v310, 4294901760
    %7774 = vmatpush1.msra.mxu0 %v7773
    %v7775 = vand.u32 %v303, 4294901760
    %7776 = vmatprep.subr.mxu0 %v7775
    %v7777 = vand.u32 %v302, 4294901760
    %7778 = vmatpush1.msra.mxu0 %v7777
    %v7779 = vand.u32 %v551, 4294901760
    %7780 = vmatprep.subr.mxu0 %v7779
    %v7781 = vand.u32 %v550, 4294901760
    %7782 = vmatpush2.msra.mxu0 %v7781
    %v7783 = vand.u32 %v543, 4294901760
    %7784 = vmatprep.subr.mxu0 %v7783
    %v7785 = vand.u32 %v542, 4294901760
    %7786 = vmatpush2.msra.mxu0 %v7785
    %v7787 = vand.u32 %v535, 4294901760
    %7788 = vmatprep.subr.mxu0 %v7787
    %v7789 = vand.u32 %v534, 4294901760
    %7790 = vmatpush2.msra.mxu0 %v7789
    %v7791 = vand.u32 %v527, 4294901760
    %7792 = vmatprep.subr.mxu0 %v7791
    %v7793 = vand.u32 %v526, 4294901760
    %7794 = vmatpush2.msra.mxu0 %v7793
    %v7795 = vand.u32 %v519, 4294901760
    %7796 = vmatprep.subr.mxu0 %v7795
    %v7797 = vand.u32 %v518, 4294901760
    %7798 = vmatpush2.msra.mxu0 %v7797
    %v7799 = vand.u32 %v511, 4294901760
    %7800 = vmatprep.subr.mxu0 %v7799
    %v7801 = vand.u32 %v510, 4294901760
    %7802 = vmatpush2.msra.mxu0 %v7801
    %v7803 = vand.u32 %v503, 4294901760
    %7804 = vmatprep.subr.mxu0 %v7803
    %v7805 = vand.u32 %v502, 4294901760
    %7806 = vmatpush2.msra.mxu0 %v7805
    %v7807 = vand.u32 %v495, 4294901760
    %7808 = vmatprep.subr.mxu0 %v7807
    %v7809 = vand.u32 %v494, 4294901760
    %7810 = vmatpush2.msra.mxu0 %v7809
    %v7811 = vand.u32 %v487, 4294901760
    %7812 = vmatprep.subr.mxu0 %v7811
    %v7813 = vand.u32 %v486, 4294901760
    %7814 = vmatpush2.msra.mxu0 %v7813
    %v7815 = vand.u32 %v479, 4294901760
    %7816 = vmatprep.subr.mxu0 %v7815
    %v7817 = vand.u32 %v478, 4294901760
    %7818 = vmatpush2.msra.mxu0 %v7817
    %v7819 = vand.u32 %v471, 4294901760
    %7820 = vmatprep.subr.mxu0 %v7819
    %v7821 = vand.u32 %v470, 4294901760
    %7822 = vmatpush2.msra.mxu0 %v7821
    %v7823 = vand.u32 %v463, 4294901760
    %7824 = vmatprep.subr.mxu0 %v7823
    %v7825 = vand.u32 %v462, 4294901760
    %7826 = vmatpush2.msra.mxu0 %v7825
    %v7827 = vand.u32 %v455, 4294901760
    %7828 = vmatprep.subr.mxu0 %v7827
    %v7829 = vand.u32 %v454, 4294901760
    %7830 = vmatpush2.msra.mxu0 %v7829
    %v7831 = vand.u32 %v447, 4294901760
    %7832 = vmatprep.subr.mxu0 %v7831
    %v7833 = vand.u32 %v446, 4294901760
    %7834 = vmatpush2.msra.mxu0 %v7833
    %v7835 = vand.u32 %v439, 4294901760
    %7836 = vmatprep.subr.mxu0 %v7835
    %v7837 = vand.u32 %v438, 4294901760
    %7838 = vmatpush2.msra.mxu0 %v7837
    %v7839 = vand.u32 %v431, 4294901760
    %7840 = vmatprep.subr.mxu0 %v7839
    %v7841 = vand.u32 %v430, 4294901760
    %7842 = vmatpush2.msra.mxu0 %v7841
    %v7843 = vand.u32 %v41, 4294901760
    %v7844 = vsub.f32 %v41, %v7843
    %v7845 = vand.u32 %v7844, 4294901760
    %7846 = vmatprep.mubr.f32.mxu0 %v7845
    %v7847 = vand.u32 %v40, 4294901760
    %v7848 = vsub.f32 %v40, %v7847
    %v7849 = vand.u32 %v7848, 4294901760
    %7850 = vmatmul.mubr.f32.gmra.mxu0 %v7849
    %v7851 = vpop.f32.mrf.mxu0
    %v7852 = vadd.f32 %v7711, %v7851
    %v7853 = vpop.f32.mrf.mxu0
    %v7854 = vadd.f32 %v7713, %v7853
    %7855 = vdwg.mxu0
    %v7856 = vand.u32 %v423, 4294901760
    %v7857 = vsub.f32 %v423, %v7856
    %v7858 = vand.u32 %v7857, 4294901760
    %7859 = vmatprep.subr.mxu0 %v7858
    %v7860 = vand.u32 %v422, 4294901760
    %v7861 = vsub.f32 %v422, %v7860
    %v7862 = vand.u32 %v7861, 4294901760
    %7863 = vmatpush1.msra.mxu0 %v7862
    %v7864 = vand.u32 %v415, 4294901760
    %v7865 = vsub.f32 %v415, %v7864
    %v7866 = vand.u32 %v7865, 4294901760
    %7867 = vmatprep.subr.mxu0 %v7866
    %v7868 = vand.u32 %v414, 4294901760
    %v7869 = vsub.f32 %v414, %v7868
    %v7870 = vand.u32 %v7869, 4294901760
    %7871 = vmatpush1.msra.mxu0 %v7870
    %v7872 = vand.u32 %v407, 4294901760
    %v7873 = vsub.f32 %v407, %v7872
    %v7874 = vand.u32 %v7873, 4294901760
    %7875 = vmatprep.subr.mxu0 %v7874
    %v7876 = vand.u32 %v406, 4294901760
    %v7877 = vsub.f32 %v406, %v7876
    %v7878 = vand.u32 %v7877, 4294901760
    %7879 = vmatpush1.msra.mxu0 %v7878
    %v7880 = vand.u32 %v399, 4294901760
    %v7881 = vsub.f32 %v399, %v7880
    %v7882 = vand.u32 %v7881, 4294901760
    %7883 = vmatprep.subr.mxu0 %v7882
    %v7884 = vand.u32 %v398, 4294901760
    %v7885 = vsub.f32 %v398, %v7884
    %v7886 = vand.u32 %v7885, 4294901760
    %7887 = vmatpush1.msra.mxu0 %v7886
    %v7888 = vand.u32 %v391, 4294901760
    %v7889 = vsub.f32 %v391, %v7888
    %v7890 = vand.u32 %v7889, 4294901760
    %7891 = vmatprep.subr.mxu0 %v7890
    %v7892 = vand.u32 %v390, 4294901760
    %v7893 = vsub.f32 %v390, %v7892
    %v7894 = vand.u32 %v7893, 4294901760
    %7895 = vmatpush1.msra.mxu0 %v7894
    %v7896 = vand.u32 %v383, 4294901760
    %v7897 = vsub.f32 %v383, %v7896
    %v7898 = vand.u32 %v7897, 4294901760
    %7899 = vmatprep.subr.mxu0 %v7898
    %v7900 = vand.u32 %v382, 4294901760
    %v7901 = vsub.f32 %v382, %v7900
    %v7902 = vand.u32 %v7901, 4294901760
    %7903 = vmatpush1.msra.mxu0 %v7902
    %v7904 = vand.u32 %v375, 4294901760
    %v7905 = vsub.f32 %v375, %v7904
    %v7906 = vand.u32 %v7905, 4294901760
    %7907 = vmatprep.subr.mxu0 %v7906
    %v7908 = vand.u32 %v374, 4294901760
    %v7909 = vsub.f32 %v374, %v7908
    %v7910 = vand.u32 %v7909, 4294901760
    %7911 = vmatpush1.msra.mxu0 %v7910
    %v7912 = vand.u32 %v367, 4294901760
    %v7913 = vsub.f32 %v367, %v7912
    %v7914 = vand.u32 %v7913, 4294901760
    %7915 = vmatprep.subr.mxu0 %v7914
    %v7916 = vand.u32 %v366, 4294901760
    %v7917 = vsub.f32 %v366, %v7916
    %v7918 = vand.u32 %v7917, 4294901760
    %7919 = vmatpush1.msra.mxu0 %v7918
    %v7920 = vand.u32 %v359, 4294901760
    %v7921 = vsub.f32 %v359, %v7920
    %v7922 = vand.u32 %v7921, 4294901760
    %7923 = vmatprep.subr.mxu0 %v7922
    %v7924 = vand.u32 %v358, 4294901760
    %v7925 = vsub.f32 %v358, %v7924
    %v7926 = vand.u32 %v7925, 4294901760
    %7927 = vmatpush1.msra.mxu0 %v7926
    %v7928 = vand.u32 %v351, 4294901760
    %v7929 = vsub.f32 %v351, %v7928
    %v7930 = vand.u32 %v7929, 4294901760
    %7931 = vmatprep.subr.mxu0 %v7930
    %v7932 = vand.u32 %v350, 4294901760
    %v7933 = vsub.f32 %v350, %v7932
    %v7934 = vand.u32 %v7933, 4294901760
    %7935 = vmatpush1.msra.mxu0 %v7934
    %v7936 = vand.u32 %v343, 4294901760
    %v7937 = vsub.f32 %v343, %v7936
    %v7938 = vand.u32 %v7937, 4294901760
    %7939 = vmatprep.subr.mxu0 %v7938
    %v7940 = vand.u32 %v342, 4294901760
    %v7941 = vsub.f32 %v342, %v7940
    %v7942 = vand.u32 %v7941, 4294901760
    %7943 = vmatpush1.msra.mxu0 %v7942
    %v7944 = vand.u32 %v335, 4294901760
    %v7945 = vsub.f32 %v335, %v7944
    %v7946 = vand.u32 %v7945, 4294901760
    %7947 = vmatprep.subr.mxu0 %v7946
    %v7948 = vand.u32 %v334, 4294901760
    %v7949 = vsub.f32 %v334, %v7948
    %v7950 = vand.u32 %v7949, 4294901760
    %7951 = vmatpush1.msra.mxu0 %v7950
    %v7952 = vand.u32 %v327, 4294901760
    %v7953 = vsub.f32 %v327, %v7952
    %v7954 = vand.u32 %v7953, 4294901760
    %7955 = vmatprep.subr.mxu0 %v7954
    %v7956 = vand.u32 %v326, 4294901760
    %v7957 = vsub.f32 %v326, %v7956
    %v7958 = vand.u32 %v7957, 4294901760
    %7959 = vmatpush1.msra.mxu0 %v7958
    %v7960 = vand.u32 %v319, 4294901760
    %v7961 = vsub.f32 %v319, %v7960
    %v7962 = vand.u32 %v7961, 4294901760
    %7963 = vmatprep.subr.mxu0 %v7962
    %v7964 = vand.u32 %v318, 4294901760
    %v7965 = vsub.f32 %v318, %v7964
    %v7966 = vand.u32 %v7965, 4294901760
    %7967 = vmatpush1.msra.mxu0 %v7966
    %v7968 = vand.u32 %v311, 4294901760
    %v7969 = vsub.f32 %v311, %v7968
    %v7970 = vand.u32 %v7969, 4294901760
    %7971 = vmatprep.subr.mxu0 %v7970
    %v7972 = vand.u32 %v310, 4294901760
    %v7973 = vsub.f32 %v310, %v7972
    %v7974 = vand.u32 %v7973, 4294901760
    %7975 = vmatpush1.msra.mxu0 %v7974
    %v7976 = vand.u32 %v303, 4294901760
    %v7977 = vsub.f32 %v303, %v7976
    %v7978 = vand.u32 %v7977, 4294901760
    %7979 = vmatprep.subr.mxu0 %v7978
    %v7980 = vand.u32 %v302, 4294901760
    %v7981 = vsub.f32 %v302, %v7980
    %v7982 = vand.u32 %v7981, 4294901760
    %7983 = vmatpush1.msra.mxu0 %v7982
    %v7984 = vand.u32 %v551, 4294901760
    %v7985 = vsub.f32 %v551, %v7984
    %v7986 = vand.u32 %v7985, 4294901760
    %7987 = vmatprep.subr.mxu0 %v7986
    %v7988 = vand.u32 %v550, 4294901760
    %v7989 = vsub.f32 %v550, %v7988
    %v7990 = vand.u32 %v7989, 4294901760
    %7991 = vmatpush2.msra.mxu0 %v7990
    %v7992 = vand.u32 %v543, 4294901760
    %v7993 = vsub.f32 %v543, %v7992
    %v7994 = vand.u32 %v7993, 4294901760
    %7995 = vmatprep.subr.mxu0 %v7994
    %v7996 = vand.u32 %v542, 4294901760
    %v7997 = vsub.f32 %v542, %v7996
    %v7998 = vand.u32 %v7997, 4294901760
    %7999 = vmatpush2.msra.mxu0 %v7998
    %v8000 = vand.u32 %v535, 4294901760
    %v8001 = vsub.f32 %v535, %v8000
    %v8002 = vand.u32 %v8001, 4294901760
    %8003 = vmatprep.subr.mxu0 %v8002
    %v8004 = vand.u32 %v534, 4294901760
    %v8005 = vsub.f32 %v534, %v8004
    %v8006 = vand.u32 %v8005, 4294901760
    %8007 = vmatpush2.msra.mxu0 %v8006
    %v8008 = vand.u32 %v527, 4294901760
    %v8009 = vsub.f32 %v527, %v8008
    %v8010 = vand.u32 %v8009, 4294901760
    %8011 = vmatprep.subr.mxu0 %v8010
    %v8012 = vand.u32 %v526, 4294901760
    %v8013 = vsub.f32 %v526, %v8012
    %v8014 = vand.u32 %v8013, 4294901760
    %8015 = vmatpush2.msra.mxu0 %v8014
    %v8016 = vand.u32 %v519, 4294901760
    %v8017 = vsub.f32 %v519, %v8016
    %v8018 = vand.u32 %v8017, 4294901760
    %8019 = vmatprep.subr.mxu0 %v8018
    %v8020 = vand.u32 %v518, 4294901760
    %v8021 = vsub.f32 %v518, %v8020
    %v8022 = vand.u32 %v8021, 4294901760
    %8023 = vmatpush2.msra.mxu0 %v8022
    %v8024 = vand.u32 %v511, 4294901760
    %v8025 = vsub.f32 %v511, %v8024
    %v8026 = vand.u32 %v8025, 4294901760
    %8027 = vmatprep.subr.mxu0 %v8026
    %v8028 = vand.u32 %v510, 4294901760
    %v8029 = vsub.f32 %v510, %v8028
    %v8030 = vand.u32 %v8029, 4294901760
    %8031 = vmatpush2.msra.mxu0 %v8030
    %v8032 = vand.u32 %v503, 4294901760
    %v8033 = vsub.f32 %v503, %v8032
    %v8034 = vand.u32 %v8033, 4294901760
    %8035 = vmatprep.subr.mxu0 %v8034
    %v8036 = vand.u32 %v502, 4294901760
    %v8037 = vsub.f32 %v502, %v8036
    %v8038 = vand.u32 %v8037, 4294901760
    %8039 = vmatpush2.msra.mxu0 %v8038
    %v8040 = vand.u32 %v495, 4294901760
    %v8041 = vsub.f32 %v495, %v8040
    %v8042 = vand.u32 %v8041, 4294901760
    %8043 = vmatprep.subr.mxu0 %v8042
    %v8044 = vand.u32 %v494, 4294901760
    %v8045 = vsub.f32 %v494, %v8044
    %v8046 = vand.u32 %v8045, 4294901760
    %8047 = vmatpush2.msra.mxu0 %v8046
    %v8048 = vand.u32 %v487, 4294901760
    %v8049 = vsub.f32 %v487, %v8048
    %v8050 = vand.u32 %v8049, 4294901760
    %8051 = vmatprep.subr.mxu0 %v8050
    %v8052 = vand.u32 %v486, 4294901760
    %v8053 = vsub.f32 %v486, %v8052
    %v8054 = vand.u32 %v8053, 4294901760
    %8055 = vmatpush2.msra.mxu0 %v8054
    %v8056 = vand.u32 %v479, 4294901760
    %v8057 = vsub.f32 %v479, %v8056
    %v8058 = vand.u32 %v8057, 4294901760
    %8059 = vmatprep.subr.mxu0 %v8058
    %v8060 = vand.u32 %v478, 4294901760
    %v8061 = vsub.f32 %v478, %v8060
    %v8062 = vand.u32 %v8061, 4294901760
    %8063 = vmatpush2.msra.mxu0 %v8062
    %v8064 = vand.u32 %v471, 4294901760
    %v8065 = vsub.f32 %v471, %v8064
    %v8066 = vand.u32 %v8065, 4294901760
    %8067 = vmatprep.subr.mxu0 %v8066
    %v8068 = vand.u32 %v470, 4294901760
    %v8069 = vsub.f32 %v470, %v8068
    %v8070 = vand.u32 %v8069, 4294901760
    %8071 = vmatpush2.msra.mxu0 %v8070
    %v8072 = vand.u32 %v463, 4294901760
    %v8073 = vsub.f32 %v463, %v8072
    %v8074 = vand.u32 %v8073, 4294901760
    %8075 = vmatprep.subr.mxu0 %v8074
    %v8076 = vand.u32 %v462, 4294901760
    %v8077 = vsub.f32 %v462, %v8076
    %v8078 = vand.u32 %v8077, 4294901760
    %8079 = vmatpush2.msra.mxu0 %v8078
    %v8080 = vand.u32 %v455, 4294901760
    %v8081 = vsub.f32 %v455, %v8080
    %v8082 = vand.u32 %v8081, 4294901760
    %8083 = vmatprep.subr.mxu0 %v8082
    %v8084 = vand.u32 %v454, 4294901760
    %v8085 = vsub.f32 %v454, %v8084
    %v8086 = vand.u32 %v8085, 4294901760
    %8087 = vmatpush2.msra.mxu0 %v8086
    %v8088 = vand.u32 %v447, 4294901760
    %v8089 = vsub.f32 %v447, %v8088
    %v8090 = vand.u32 %v8089, 4294901760
    %8091 = vmatprep.subr.mxu0 %v8090
    %v8092 = vand.u32 %v446, 4294901760
    %v8093 = vsub.f32 %v446, %v8092
    %v8094 = vand.u32 %v8093, 4294901760
    %8095 = vmatpush2.msra.mxu0 %v8094
    %v8096 = vand.u32 %v439, 4294901760
    %v8097 = vsub.f32 %v439, %v8096
    %v8098 = vand.u32 %v8097, 4294901760
    %8099 = vmatprep.subr.mxu0 %v8098
    %v8100 = vand.u32 %v438, 4294901760
    %v8101 = vsub.f32 %v438, %v8100
    %v8102 = vand.u32 %v8101, 4294901760
    %8103 = vmatpush2.msra.mxu0 %v8102
    %v8104 = vand.u32 %v431, 4294901760
    %v8105 = vsub.f32 %v431, %v8104
    %v8106 = vand.u32 %v8105, 4294901760
    %8107 = vmatprep.subr.mxu0 %v8106
    %v8108 = vand.u32 %v430, 4294901760
    %v8109 = vsub.f32 %v430, %v8108
    %v8110 = vand.u32 %v8109, 4294901760
    %8111 = vmatpush2.msra.mxu0 %v8110
    %v8112 = vand.u32 %v41, 4294901760
    %8113 = vmatprep.mubr.f32.mxu0 %v8112
    %v8114 = vand.u32 %v40, 4294901760
    %8115 = vmatmul.mubr.f32.gmra.mxu0 %v8114
    %v8116 = vpop.f32.mrf.mxu0
    %v8117 = vadd.f32 %v7852, %v8116
    %v8118 = vpop.f32.mrf.mxu0
    %v8119 = vadd.f32 %v7854, %v8118
    %8120 = vdwg.mxu0
    %v8121 = vand.u32 %v423, 4294901760
    %8122 = vmatprep.subr.mxu0 %v8121
    %v8123 = vand.u32 %v422, 4294901760
    %8124 = vmatpush1.msra.mxu0 %v8123
    %v8125 = vand.u32 %v415, 4294901760
    %8126 = vmatprep.subr.mxu0 %v8125
    %v8127 = vand.u32 %v414, 4294901760
    %8128 = vmatpush1.msra.mxu0 %v8127
    %v8129 = vand.u32 %v407, 4294901760
    %8130 = vmatprep.subr.mxu0 %v8129
    %v8131 = vand.u32 %v406, 4294901760
    %8132 = vmatpush1.msra.mxu0 %v8131
    %v8133 = vand.u32 %v399, 4294901760
    %8134 = vmatprep.subr.mxu0 %v8133
    %v8135 = vand.u32 %v398, 4294901760
    %8136 = vmatpush1.msra.mxu0 %v8135
    %v8137 = vand.u32 %v391, 4294901760
    %8138 = vmatprep.subr.mxu0 %v8137
    %v8139 = vand.u32 %v390, 4294901760
    %8140 = vmatpush1.msra.mxu0 %v8139
    %v8141 = vand.u32 %v383, 4294901760
    %8142 = vmatprep.subr.mxu0 %v8141
    %v8143 = vand.u32 %v382, 4294901760
    %8144 = vmatpush1.msra.mxu0 %v8143
    %v8145 = vand.u32 %v375, 4294901760
    %8146 = vmatprep.subr.mxu0 %v8145
    %v8147 = vand.u32 %v374, 4294901760
    %8148 = vmatpush1.msra.mxu0 %v8147
    %v8149 = vand.u32 %v367, 4294901760
    %8150 = vmatprep.subr.mxu0 %v8149
    %v8151 = vand.u32 %v366, 4294901760
    %8152 = vmatpush1.msra.mxu0 %v8151
    %v8153 = vand.u32 %v359, 4294901760
    %8154 = vmatprep.subr.mxu0 %v8153
    %v8155 = vand.u32 %v358, 4294901760
    %8156 = vmatpush1.msra.mxu0 %v8155
    %v8157 = vand.u32 %v351, 4294901760
    %8158 = vmatprep.subr.mxu0 %v8157
    %v8159 = vand.u32 %v350, 4294901760
    %8160 = vmatpush1.msra.mxu0 %v8159
    %v8161 = vand.u32 %v343, 4294901760
    %8162 = vmatprep.subr.mxu0 %v8161
    %v8163 = vand.u32 %v342, 4294901760
    %8164 = vmatpush1.msra.mxu0 %v8163
    %v8165 = vand.u32 %v335, 4294901760
    %8166 = vmatprep.subr.mxu0 %v8165
    %v8167 = vand.u32 %v334, 4294901760
    %8168 = vmatpush1.msra.mxu0 %v8167
    %v8169 = vand.u32 %v327, 4294901760
    %8170 = vmatprep.subr.mxu0 %v8169
    %v8171 = vand.u32 %v326, 4294901760
    %8172 = vmatpush1.msra.mxu0 %v8171
    %v8173 = vand.u32 %v319, 4294901760
    %8174 = vmatprep.subr.mxu0 %v8173
    %v8175 = vand.u32 %v318, 4294901760
    %8176 = vmatpush1.msra.mxu0 %v8175
    %v8177 = vand.u32 %v311, 4294901760
    %8178 = vmatprep.subr.mxu0 %v8177
    %v8179 = vand.u32 %v310, 4294901760
    %8180 = vmatpush1.msra.mxu0 %v8179
    %v8181 = vand.u32 %v303, 4294901760
    %8182 = vmatprep.subr.mxu0 %v8181
    %v8183 = vand.u32 %v302, 4294901760
    %8184 = vmatpush1.msra.mxu0 %v8183
    %v8185 = vand.u32 %v551, 4294901760
    %8186 = vmatprep.subr.mxu0 %v8185
    %v8187 = vand.u32 %v550, 4294901760
    %8188 = vmatpush2.msra.mxu0 %v8187
    %v8189 = vand.u32 %v543, 4294901760
    %8190 = vmatprep.subr.mxu0 %v8189
    %v8191 = vand.u32 %v542, 4294901760
    %8192 = vmatpush2.msra.mxu0 %v8191
    %v8193 = vand.u32 %v535, 4294901760
    %8194 = vmatprep.subr.mxu0 %v8193
    %v8195 = vand.u32 %v534, 4294901760
    %8196 = vmatpush2.msra.mxu0 %v8195
    %v8197 = vand.u32 %v527, 4294901760
    %8198 = vmatprep.subr.mxu0 %v8197
    %v8199 = vand.u32 %v526, 4294901760
    %8200 = vmatpush2.msra.mxu0 %v8199
    %v8201 = vand.u32 %v519, 4294901760
    %8202 = vmatprep.subr.mxu0 %v8201
    %v8203 = vand.u32 %v518, 4294901760
    %8204 = vmatpush2.msra.mxu0 %v8203
    %v8205 = vand.u32 %v511, 4294901760
    %8206 = vmatprep.subr.mxu0 %v8205
    %v8207 = vand.u32 %v510, 4294901760
    %8208 = vmatpush2.msra.mxu0 %v8207
    %v8209 = vand.u32 %v503, 4294901760
    %8210 = vmatprep.subr.mxu0 %v8209
    %v8211 = vand.u32 %v502, 4294901760
    %8212 = vmatpush2.msra.mxu0 %v8211
    %v8213 = vand.u32 %v495, 4294901760
    %8214 = vmatprep.subr.mxu0 %v8213
    %v8215 = vand.u32 %v494, 4294901760
    %8216 = vmatpush2.msra.mxu0 %v8215
    %v8217 = vand.u32 %v487, 4294901760
    %8218 = vmatprep.subr.mxu0 %v8217
    %v8219 = vand.u32 %v486, 4294901760
    %8220 = vmatpush2.msra.mxu0 %v8219
    %v8221 = vand.u32 %v479, 4294901760
    %8222 = vmatprep.subr.mxu0 %v8221
    %v8223 = vand.u32 %v478, 4294901760
    %8224 = vmatpush2.msra.mxu0 %v8223
    %v8225 = vand.u32 %v471, 4294901760
    %8226 = vmatprep.subr.mxu0 %v8225
    %v8227 = vand.u32 %v470, 4294901760
    %8228 = vmatpush2.msra.mxu0 %v8227
    %v8229 = vand.u32 %v463, 4294901760
    %8230 = vmatprep.subr.mxu0 %v8229
    %v8231 = vand.u32 %v462, 4294901760
    %8232 = vmatpush2.msra.mxu0 %v8231
    %v8233 = vand.u32 %v455, 4294901760
    %8234 = vmatprep.subr.mxu0 %v8233
    %v8235 = vand.u32 %v454, 4294901760
    %8236 = vmatpush2.msra.mxu0 %v8235
    %v8237 = vand.u32 %v447, 4294901760
    %8238 = vmatprep.subr.mxu0 %v8237
    %v8239 = vand.u32 %v446, 4294901760
    %8240 = vmatpush2.msra.mxu0 %v8239
    %v8241 = vand.u32 %v439, 4294901760
    %8242 = vmatprep.subr.mxu0 %v8241
    %v8243 = vand.u32 %v438, 4294901760
    %8244 = vmatpush2.msra.mxu0 %v8243
    %v8245 = vand.u32 %v431, 4294901760
    %8246 = vmatprep.subr.mxu0 %v8245
    %v8247 = vand.u32 %v430, 4294901760
    %8248 = vmatpush2.msra.mxu0 %v8247
    %v8249 = vand.u32 %v41, 4294901760
    %8250 = vmatprep.mubr.f32.mxu0 %v8249
    %v8251 = vand.u32 %v40, 4294901760
    %8252 = vmatmul.mubr.f32.gmra.mxu0 %v8251
    %v8253 = vpop.f32.mrf.mxu0
    %v8254 = vadd.f32 %v8117, %v8253
    %v8255 = vpop.f32.mrf.mxu0
    %v8256 = vadd.f32 %v8119, %v8255
    %8257 = vdwg.mxu0
    %v8258 = vand.u32 %v169, 4294901760
    %8259 = vmatprep.subr.mxu0 %v8258
    %v8260 = vand.u32 %v168, 4294901760
    %8261 = vmatpush1.msra.mxu0 %v8260
    %v8262 = vand.u32 %v161, 4294901760
    %8263 = vmatprep.subr.mxu0 %v8262
    %v8264 = vand.u32 %v160, 4294901760
    %8265 = vmatpush1.msra.mxu0 %v8264
    %v8266 = vand.u32 %v153, 4294901760
    %8267 = vmatprep.subr.mxu0 %v8266
    %v8268 = vand.u32 %v152, 4294901760
    %8269 = vmatpush1.msra.mxu0 %v8268
    %v8270 = vand.u32 %v145, 4294901760
    %8271 = vmatprep.subr.mxu0 %v8270
    %v8272 = vand.u32 %v144, 4294901760
    %8273 = vmatpush1.msra.mxu0 %v8272
    %v8274 = vand.u32 %v137, 4294901760
    %8275 = vmatprep.subr.mxu0 %v8274
    %v8276 = vand.u32 %v136, 4294901760
    %8277 = vmatpush1.msra.mxu0 %v8276
    %v8278 = vand.u32 %v129, 4294901760
    %8279 = vmatprep.subr.mxu0 %v8278
    %v8280 = vand.u32 %v128, 4294901760
    %8281 = vmatpush1.msra.mxu0 %v8280
    %v8282 = vand.u32 %v121, 4294901760
    %8283 = vmatprep.subr.mxu0 %v8282
    %v8284 = vand.u32 %v120, 4294901760
    %8285 = vmatpush1.msra.mxu0 %v8284
    %v8286 = vand.u32 %v113, 4294901760
    %8287 = vmatprep.subr.mxu0 %v8286
    %v8288 = vand.u32 %v112, 4294901760
    %8289 = vmatpush1.msra.mxu0 %v8288
    %v8290 = vand.u32 %v105, 4294901760
    %8291 = vmatprep.subr.mxu0 %v8290
    %v8292 = vand.u32 %v104, 4294901760
    %8293 = vmatpush1.msra.mxu0 %v8292
    %v8294 = vand.u32 %v97, 4294901760
    %8295 = vmatprep.subr.mxu0 %v8294
    %v8296 = vand.u32 %v96, 4294901760
    %8297 = vmatpush1.msra.mxu0 %v8296
    %v8298 = vand.u32 %v89, 4294901760
    %8299 = vmatprep.subr.mxu0 %v8298
    %v8300 = vand.u32 %v88, 4294901760
    %8301 = vmatpush1.msra.mxu0 %v8300
    %v8302 = vand.u32 %v81, 4294901760
    %8303 = vmatprep.subr.mxu0 %v8302
    %v8304 = vand.u32 %v80, 4294901760
    %8305 = vmatpush1.msra.mxu0 %v8304
    %v8306 = vand.u32 %v73, 4294901760
    %8307 = vmatprep.subr.mxu0 %v8306
    %v8308 = vand.u32 %v72, 4294901760
    %8309 = vmatpush1.msra.mxu0 %v8308
    %v8310 = vand.u32 %v65, 4294901760
    %8311 = vmatprep.subr.mxu0 %v8310
    %v8312 = vand.u32 %v64, 4294901760
    %8313 = vmatpush1.msra.mxu0 %v8312
    %v8314 = vand.u32 %v57, 4294901760
    %8315 = vmatprep.subr.mxu0 %v8314
    %v8316 = vand.u32 %v56, 4294901760
    %8317 = vmatpush1.msra.mxu0 %v8316
    %v8318 = vand.u32 %v49, 4294901760
    %8319 = vmatprep.subr.mxu0 %v8318
    %v8320 = vand.u32 %v48, 4294901760
    %8321 = vmatpush1.msra.mxu0 %v8320
    %v8322 = vand.u32 %v297, 4294901760
    %8323 = vmatprep.subr.mxu0 %v8322
    %v8324 = vand.u32 %v296, 4294901760
    %8325 = vmatpush2.msra.mxu0 %v8324
    %v8326 = vand.u32 %v289, 4294901760
    %8327 = vmatprep.subr.mxu0 %v8326
    %v8328 = vand.u32 %v288, 4294901760
    %8329 = vmatpush2.msra.mxu0 %v8328
    %v8330 = vand.u32 %v281, 4294901760
    %8331 = vmatprep.subr.mxu0 %v8330
    %v8332 = vand.u32 %v280, 4294901760
    %8333 = vmatpush2.msra.mxu0 %v8332
    %v8334 = vand.u32 %v273, 4294901760
    %8335 = vmatprep.subr.mxu0 %v8334
    %v8336 = vand.u32 %v272, 4294901760
    %8337 = vmatpush2.msra.mxu0 %v8336
    %v8338 = vand.u32 %v265, 4294901760
    %8339 = vmatprep.subr.mxu0 %v8338
    %v8340 = vand.u32 %v264, 4294901760
    %8341 = vmatpush2.msra.mxu0 %v8340
    %v8342 = vand.u32 %v257, 4294901760
    %8343 = vmatprep.subr.mxu0 %v8342
    %v8344 = vand.u32 %v256, 4294901760
    %8345 = vmatpush2.msra.mxu0 %v8344
    %v8346 = vand.u32 %v249, 4294901760
    %8347 = vmatprep.subr.mxu0 %v8346
    %v8348 = vand.u32 %v248, 4294901760
    %8349 = vmatpush2.msra.mxu0 %v8348
    %v8350 = vand.u32 %v241, 4294901760
    %8351 = vmatprep.subr.mxu0 %v8350
    %v8352 = vand.u32 %v240, 4294901760
    %8353 = vmatpush2.msra.mxu0 %v8352
    %v8354 = vand.u32 %v233, 4294901760
    %8355 = vmatprep.subr.mxu0 %v8354
    %v8356 = vand.u32 %v232, 4294901760
    %8357 = vmatpush2.msra.mxu0 %v8356
    %v8358 = vand.u32 %v225, 4294901760
    %8359 = vmatprep.subr.mxu0 %v8358
    %v8360 = vand.u32 %v224, 4294901760
    %8361 = vmatpush2.msra.mxu0 %v8360
    %v8362 = vand.u32 %v217, 4294901760
    %8363 = vmatprep.subr.mxu0 %v8362
    %v8364 = vand.u32 %v216, 4294901760
    %8365 = vmatpush2.msra.mxu0 %v8364
    %v8366 = vand.u32 %v209, 4294901760
    %8367 = vmatprep.subr.mxu0 %v8366
    %v8368 = vand.u32 %v208, 4294901760
    %8369 = vmatpush2.msra.mxu0 %v8368
    %v8370 = vand.u32 %v201, 4294901760
    %8371 = vmatprep.subr.mxu0 %v8370
    %v8372 = vand.u32 %v200, 4294901760
    %8373 = vmatpush2.msra.mxu0 %v8372
    %v8374 = vand.u32 %v193, 4294901760
    %8375 = vmatprep.subr.mxu0 %v8374
    %v8376 = vand.u32 %v192, 4294901760
    %8377 = vmatpush2.msra.mxu0 %v8376
    %v8378 = vand.u32 %v185, 4294901760
    %8379 = vmatprep.subr.mxu0 %v8378
    %v8380 = vand.u32 %v184, 4294901760
    %8381 = vmatpush2.msra.mxu0 %v8380
    %v8382 = vand.u32 %v177, 4294901760
    %8383 = vmatprep.subr.mxu0 %v8382
    %v8384 = vand.u32 %v176, 4294901760
    %8385 = vmatpush2.msra.mxu0 %v8384
    %v8386 = vand.u32 %v39, 4294901760
    %v8387 = vsub.f32 %v39, %v8386
    %v8388 = vand.u32 %v8387, 4294901760
    %v8389 = vsub.f32 %v8387, %v8388
    %v8390 = vand.u32 %v8389, 4294901760
    %8391 = vmatprep.mubr.f32.mxu0 %v8390
    %v8392 = vand.u32 %v38, 4294901760
    %v8393 = vsub.f32 %v38, %v8392
    %v8394 = vand.u32 %v8393, 4294901760
    %v8395 = vsub.f32 %v8393, %v8394
    %v8396 = vand.u32 %v8395, 4294901760
    %8397 = vmatmul.mubr.f32.gmra.mxu0 %v8396
    %v8398 = vpop.f32.mrf.mxu0
    %v8399 = vadd.f32 0.0, %v8398
    %v8400 = vpop.f32.mrf.mxu0
    %v8401 = vadd.f32 0.0, %v8400
    %8402 = vdwg.mxu0
    %v8403 = vand.u32 %v169, 4294901760
    %v8404 = vsub.f32 %v169, %v8403
    %v8405 = vand.u32 %v8404, 4294901760
    %v8406 = vsub.f32 %v8404, %v8405
    %v8407 = vand.u32 %v8406, 4294901760
    %8408 = vmatprep.subr.mxu0 %v8407
    %v8409 = vand.u32 %v168, 4294901760
    %v8410 = vsub.f32 %v168, %v8409
    %v8411 = vand.u32 %v8410, 4294901760
    %v8412 = vsub.f32 %v8410, %v8411
    %v8413 = vand.u32 %v8412, 4294901760
    %8414 = vmatpush1.msra.mxu0 %v8413
    %v8415 = vand.u32 %v161, 4294901760
    %v8416 = vsub.f32 %v161, %v8415
    %v8417 = vand.u32 %v8416, 4294901760
    %v8418 = vsub.f32 %v8416, %v8417
    %v8419 = vand.u32 %v8418, 4294901760
    %8420 = vmatprep.subr.mxu0 %v8419
    %v8421 = vand.u32 %v160, 4294901760
    %v8422 = vsub.f32 %v160, %v8421
    %v8423 = vand.u32 %v8422, 4294901760
    %v8424 = vsub.f32 %v8422, %v8423
    %v8425 = vand.u32 %v8424, 4294901760
    %8426 = vmatpush1.msra.mxu0 %v8425
    %v8427 = vand.u32 %v153, 4294901760
    %v8428 = vsub.f32 %v153, %v8427
    %v8429 = vand.u32 %v8428, 4294901760
    %v8430 = vsub.f32 %v8428, %v8429
    %v8431 = vand.u32 %v8430, 4294901760
    %8432 = vmatprep.subr.mxu0 %v8431
    %v8433 = vand.u32 %v152, 4294901760
    %v8434 = vsub.f32 %v152, %v8433
    %v8435 = vand.u32 %v8434, 4294901760
    %v8436 = vsub.f32 %v8434, %v8435
    %v8437 = vand.u32 %v8436, 4294901760
    %8438 = vmatpush1.msra.mxu0 %v8437
    %v8439 = vand.u32 %v145, 4294901760
    %v8440 = vsub.f32 %v145, %v8439
    %v8441 = vand.u32 %v8440, 4294901760
    %v8442 = vsub.f32 %v8440, %v8441
    %v8443 = vand.u32 %v8442, 4294901760
    %8444 = vmatprep.subr.mxu0 %v8443
    %v8445 = vand.u32 %v144, 4294901760
    %v8446 = vsub.f32 %v144, %v8445
    %v8447 = vand.u32 %v8446, 4294901760
    %v8448 = vsub.f32 %v8446, %v8447
    %v8449 = vand.u32 %v8448, 4294901760
    %8450 = vmatpush1.msra.mxu0 %v8449
    %v8451 = vand.u32 %v137, 4294901760
    %v8452 = vsub.f32 %v137, %v8451
    %v8453 = vand.u32 %v8452, 4294901760
    %v8454 = vsub.f32 %v8452, %v8453
    %v8455 = vand.u32 %v8454, 4294901760
    %8456 = vmatprep.subr.mxu0 %v8455
    %v8457 = vand.u32 %v136, 4294901760
    %v8458 = vsub.f32 %v136, %v8457
    %v8459 = vand.u32 %v8458, 4294901760
    %v8460 = vsub.f32 %v8458, %v8459
    %v8461 = vand.u32 %v8460, 4294901760
    %8462 = vmatpush1.msra.mxu0 %v8461
    %v8463 = vand.u32 %v129, 4294901760
    %v8464 = vsub.f32 %v129, %v8463
    %v8465 = vand.u32 %v8464, 4294901760
    %v8466 = vsub.f32 %v8464, %v8465
    %v8467 = vand.u32 %v8466, 4294901760
    %8468 = vmatprep.subr.mxu0 %v8467
    %v8469 = vand.u32 %v128, 4294901760
    %v8470 = vsub.f32 %v128, %v8469
    %v8471 = vand.u32 %v8470, 4294901760
    %v8472 = vsub.f32 %v8470, %v8471
    %v8473 = vand.u32 %v8472, 4294901760
    %8474 = vmatpush1.msra.mxu0 %v8473
    %v8475 = vand.u32 %v121, 4294901760
    %v8476 = vsub.f32 %v121, %v8475
    %v8477 = vand.u32 %v8476, 4294901760
    %v8478 = vsub.f32 %v8476, %v8477
    %v8479 = vand.u32 %v8478, 4294901760
    %8480 = vmatprep.subr.mxu0 %v8479
    %v8481 = vand.u32 %v120, 4294901760
    %v8482 = vsub.f32 %v120, %v8481
    %v8483 = vand.u32 %v8482, 4294901760
    %v8484 = vsub.f32 %v8482, %v8483
    %v8485 = vand.u32 %v8484, 4294901760
    %8486 = vmatpush1.msra.mxu0 %v8485
    %v8487 = vand.u32 %v113, 4294901760
    %v8488 = vsub.f32 %v113, %v8487
    %v8489 = vand.u32 %v8488, 4294901760
    %v8490 = vsub.f32 %v8488, %v8489
    %v8491 = vand.u32 %v8490, 4294901760
    %8492 = vmatprep.subr.mxu0 %v8491
    %v8493 = vand.u32 %v112, 4294901760
    %v8494 = vsub.f32 %v112, %v8493
    %v8495 = vand.u32 %v8494, 4294901760
    %v8496 = vsub.f32 %v8494, %v8495
    %v8497 = vand.u32 %v8496, 4294901760
    %8498 = vmatpush1.msra.mxu0 %v8497
    %v8499 = vand.u32 %v105, 4294901760
    %v8500 = vsub.f32 %v105, %v8499
    %v8501 = vand.u32 %v8500, 4294901760
    %v8502 = vsub.f32 %v8500, %v8501
    %v8503 = vand.u32 %v8502, 4294901760
    %8504 = vmatprep.subr.mxu0 %v8503
    %v8505 = vand.u32 %v104, 4294901760
    %v8506 = vsub.f32 %v104, %v8505
    %v8507 = vand.u32 %v8506, 4294901760
    %v8508 = vsub.f32 %v8506, %v8507
    %v8509 = vand.u32 %v8508, 4294901760
    %8510 = vmatpush1.msra.mxu0 %v8509
    %v8511 = vand.u32 %v97, 4294901760
    %v8512 = vsub.f32 %v97, %v8511
    %v8513 = vand.u32 %v8512, 4294901760
    %v8514 = vsub.f32 %v8512, %v8513
    %v8515 = vand.u32 %v8514, 4294901760
    %8516 = vmatprep.subr.mxu0 %v8515
    %v8517 = vand.u32 %v96, 4294901760
    %v8518 = vsub.f32 %v96, %v8517
    %v8519 = vand.u32 %v8518, 4294901760
    %v8520 = vsub.f32 %v8518, %v8519
    %v8521 = vand.u32 %v8520, 4294901760
    %8522 = vmatpush1.msra.mxu0 %v8521
    %v8523 = vand.u32 %v89, 4294901760
    %v8524 = vsub.f32 %v89, %v8523
    %v8525 = vand.u32 %v8524, 4294901760
    %v8526 = vsub.f32 %v8524, %v8525
    %v8527 = vand.u32 %v8526, 4294901760
    %8528 = vmatprep.subr.mxu0 %v8527
    %v8529 = vand.u32 %v88, 4294901760
    %v8530 = vsub.f32 %v88, %v8529
    %v8531 = vand.u32 %v8530, 4294901760
    %v8532 = vsub.f32 %v8530, %v8531
    %v8533 = vand.u32 %v8532, 4294901760
    %8534 = vmatpush1.msra.mxu0 %v8533
    %v8535 = vand.u32 %v81, 4294901760
    %v8536 = vsub.f32 %v81, %v8535
    %v8537 = vand.u32 %v8536, 4294901760
    %v8538 = vsub.f32 %v8536, %v8537
    %v8539 = vand.u32 %v8538, 4294901760
    %8540 = vmatprep.subr.mxu0 %v8539
    %v8541 = vand.u32 %v80, 4294901760
    %v8542 = vsub.f32 %v80, %v8541
    %v8543 = vand.u32 %v8542, 4294901760
    %v8544 = vsub.f32 %v8542, %v8543
    %v8545 = vand.u32 %v8544, 4294901760
    %8546 = vmatpush1.msra.mxu0 %v8545
    %v8547 = vand.u32 %v73, 4294901760
    %v8548 = vsub.f32 %v73, %v8547
    %v8549 = vand.u32 %v8548, 4294901760
    %v8550 = vsub.f32 %v8548, %v8549
    %v8551 = vand.u32 %v8550, 4294901760
    %8552 = vmatprep.subr.mxu0 %v8551
    %v8553 = vand.u32 %v72, 4294901760
    %v8554 = vsub.f32 %v72, %v8553
    %v8555 = vand.u32 %v8554, 4294901760
    %v8556 = vsub.f32 %v8554, %v8555
    %v8557 = vand.u32 %v8556, 4294901760
    %8558 = vmatpush1.msra.mxu0 %v8557
    %v8559 = vand.u32 %v65, 4294901760
    %v8560 = vsub.f32 %v65, %v8559
    %v8561 = vand.u32 %v8560, 4294901760
    %v8562 = vsub.f32 %v8560, %v8561
    %v8563 = vand.u32 %v8562, 4294901760
    %8564 = vmatprep.subr.mxu0 %v8563
    %v8565 = vand.u32 %v64, 4294901760
    %v8566 = vsub.f32 %v64, %v8565
    %v8567 = vand.u32 %v8566, 4294901760
    %v8568 = vsub.f32 %v8566, %v8567
    %v8569 = vand.u32 %v8568, 4294901760
    %8570 = vmatpush1.msra.mxu0 %v8569
    %v8571 = vand.u32 %v57, 4294901760
    %v8572 = vsub.f32 %v57, %v8571
    %v8573 = vand.u32 %v8572, 4294901760
    %v8574 = vsub.f32 %v8572, %v8573
    %v8575 = vand.u32 %v8574, 4294901760
    %8576 = vmatprep.subr.mxu0 %v8575
    %v8577 = vand.u32 %v56, 4294901760
    %v8578 = vsub.f32 %v56, %v8577
    %v8579 = vand.u32 %v8578, 4294901760
    %v8580 = vsub.f32 %v8578, %v8579
    %v8581 = vand.u32 %v8580, 4294901760
    %8582 = vmatpush1.msra.mxu0 %v8581
    %v8583 = vand.u32 %v49, 4294901760
    %v8584 = vsub.f32 %v49, %v8583
    %v8585 = vand.u32 %v8584, 4294901760
    %v8586 = vsub.f32 %v8584, %v8585
    %v8587 = vand.u32 %v8586, 4294901760
    %8588 = vmatprep.subr.mxu0 %v8587
    %v8589 = vand.u32 %v48, 4294901760
    %v8590 = vsub.f32 %v48, %v8589
    %v8591 = vand.u32 %v8590, 4294901760
    %v8592 = vsub.f32 %v8590, %v8591
    %v8593 = vand.u32 %v8592, 4294901760
    %8594 = vmatpush1.msra.mxu0 %v8593
    %v8595 = vand.u32 %v297, 4294901760
    %v8596 = vsub.f32 %v297, %v8595
    %v8597 = vand.u32 %v8596, 4294901760
    %v8598 = vsub.f32 %v8596, %v8597
    %v8599 = vand.u32 %v8598, 4294901760
    %8600 = vmatprep.subr.mxu0 %v8599
    %v8601 = vand.u32 %v296, 4294901760
    %v8602 = vsub.f32 %v296, %v8601
    %v8603 = vand.u32 %v8602, 4294901760
    %v8604 = vsub.f32 %v8602, %v8603
    %v8605 = vand.u32 %v8604, 4294901760
    %8606 = vmatpush2.msra.mxu0 %v8605
    %v8607 = vand.u32 %v289, 4294901760
    %v8608 = vsub.f32 %v289, %v8607
    %v8609 = vand.u32 %v8608, 4294901760
    %v8610 = vsub.f32 %v8608, %v8609
    %v8611 = vand.u32 %v8610, 4294901760
    %8612 = vmatprep.subr.mxu0 %v8611
    %v8613 = vand.u32 %v288, 4294901760
    %v8614 = vsub.f32 %v288, %v8613
    %v8615 = vand.u32 %v8614, 4294901760
    %v8616 = vsub.f32 %v8614, %v8615
    %v8617 = vand.u32 %v8616, 4294901760
    %8618 = vmatpush2.msra.mxu0 %v8617
    %v8619 = vand.u32 %v281, 4294901760
    %v8620 = vsub.f32 %v281, %v8619
    %v8621 = vand.u32 %v8620, 4294901760
    %v8622 = vsub.f32 %v8620, %v8621
    %v8623 = vand.u32 %v8622, 4294901760
    %8624 = vmatprep.subr.mxu0 %v8623
    %v8625 = vand.u32 %v280, 4294901760
    %v8626 = vsub.f32 %v280, %v8625
    %v8627 = vand.u32 %v8626, 4294901760
    %v8628 = vsub.f32 %v8626, %v8627
    %v8629 = vand.u32 %v8628, 4294901760
    %8630 = vmatpush2.msra.mxu0 %v8629
    %v8631 = vand.u32 %v273, 4294901760
    %v8632 = vsub.f32 %v273, %v8631
    %v8633 = vand.u32 %v8632, 4294901760
    %v8634 = vsub.f32 %v8632, %v8633
    %v8635 = vand.u32 %v8634, 4294901760
    %8636 = vmatprep.subr.mxu0 %v8635
    %v8637 = vand.u32 %v272, 4294901760
    %v8638 = vsub.f32 %v272, %v8637
    %v8639 = vand.u32 %v8638, 4294901760
    %v8640 = vsub.f32 %v8638, %v8639
    %v8641 = vand.u32 %v8640, 4294901760
    %8642 = vmatpush2.msra.mxu0 %v8641
    %v8643 = vand.u32 %v265, 4294901760
    %v8644 = vsub.f32 %v265, %v8643
    %v8645 = vand.u32 %v8644, 4294901760
    %v8646 = vsub.f32 %v8644, %v8645
    %v8647 = vand.u32 %v8646, 4294901760
    %8648 = vmatprep.subr.mxu0 %v8647
    %v8649 = vand.u32 %v264, 4294901760
    %v8650 = vsub.f32 %v264, %v8649
    %v8651 = vand.u32 %v8650, 4294901760
    %v8652 = vsub.f32 %v8650, %v8651
    %v8653 = vand.u32 %v8652, 4294901760
    %8654 = vmatpush2.msra.mxu0 %v8653
    %v8655 = vand.u32 %v257, 4294901760
    %v8656 = vsub.f32 %v257, %v8655
    %v8657 = vand.u32 %v8656, 4294901760
    %v8658 = vsub.f32 %v8656, %v8657
    %v8659 = vand.u32 %v8658, 4294901760
    %8660 = vmatprep.subr.mxu0 %v8659
    %v8661 = vand.u32 %v256, 4294901760
    %v8662 = vsub.f32 %v256, %v8661
    %v8663 = vand.u32 %v8662, 4294901760
    %v8664 = vsub.f32 %v8662, %v8663
    %v8665 = vand.u32 %v8664, 4294901760
    %8666 = vmatpush2.msra.mxu0 %v8665
    %v8667 = vand.u32 %v249, 4294901760
    %v8668 = vsub.f32 %v249, %v8667
    %v8669 = vand.u32 %v8668, 4294901760
    %v8670 = vsub.f32 %v8668, %v8669
    %v8671 = vand.u32 %v8670, 4294901760
    %8672 = vmatprep.subr.mxu0 %v8671
    %v8673 = vand.u32 %v248, 4294901760
    %v8674 = vsub.f32 %v248, %v8673
    %v8675 = vand.u32 %v8674, 4294901760
    %v8676 = vsub.f32 %v8674, %v8675
    %v8677 = vand.u32 %v8676, 4294901760
    %8678 = vmatpush2.msra.mxu0 %v8677
    %v8679 = vand.u32 %v241, 4294901760
    %v8680 = vsub.f32 %v241, %v8679
    %v8681 = vand.u32 %v8680, 4294901760
    %v8682 = vsub.f32 %v8680, %v8681
    %v8683 = vand.u32 %v8682, 4294901760
    %8684 = vmatprep.subr.mxu0 %v8683
    %v8685 = vand.u32 %v240, 4294901760
    %v8686 = vsub.f32 %v240, %v8685
    %v8687 = vand.u32 %v8686, 4294901760
    %v8688 = vsub.f32 %v8686, %v8687
    %v8689 = vand.u32 %v8688, 4294901760
    %8690 = vmatpush2.msra.mxu0 %v8689
    %v8691 = vand.u32 %v233, 4294901760
    %v8692 = vsub.f32 %v233, %v8691
    %v8693 = vand.u32 %v8692, 4294901760
    %v8694 = vsub.f32 %v8692, %v8693
    %v8695 = vand.u32 %v8694, 4294901760
    %8696 = vmatprep.subr.mxu0 %v8695
    %v8697 = vand.u32 %v232, 4294901760
    %v8698 = vsub.f32 %v232, %v8697
    %v8699 = vand.u32 %v8698, 4294901760
    %v8700 = vsub.f32 %v8698, %v8699
    %v8701 = vand.u32 %v8700, 4294901760
    %8702 = vmatpush2.msra.mxu0 %v8701
    %v8703 = vand.u32 %v225, 4294901760
    %v8704 = vsub.f32 %v225, %v8703
    %v8705 = vand.u32 %v8704, 4294901760
    %v8706 = vsub.f32 %v8704, %v8705
    %v8707 = vand.u32 %v8706, 4294901760
    %8708 = vmatprep.subr.mxu0 %v8707
    %v8709 = vand.u32 %v224, 4294901760
    %v8710 = vsub.f32 %v224, %v8709
    %v8711 = vand.u32 %v8710, 4294901760
    %v8712 = vsub.f32 %v8710, %v8711
    %v8713 = vand.u32 %v8712, 4294901760
    %8714 = vmatpush2.msra.mxu0 %v8713
    %v8715 = vand.u32 %v217, 4294901760
    %v8716 = vsub.f32 %v217, %v8715
    %v8717 = vand.u32 %v8716, 4294901760
    %v8718 = vsub.f32 %v8716, %v8717
    %v8719 = vand.u32 %v8718, 4294901760
    %8720 = vmatprep.subr.mxu0 %v8719
    %v8721 = vand.u32 %v216, 4294901760
    %v8722 = vsub.f32 %v216, %v8721
    %v8723 = vand.u32 %v8722, 4294901760
    %v8724 = vsub.f32 %v8722, %v8723
    %v8725 = vand.u32 %v8724, 4294901760
    %8726 = vmatpush2.msra.mxu0 %v8725
    %v8727 = vand.u32 %v209, 4294901760
    %v8728 = vsub.f32 %v209, %v8727
    %v8729 = vand.u32 %v8728, 4294901760
    %v8730 = vsub.f32 %v8728, %v8729
    %v8731 = vand.u32 %v8730, 4294901760
    %8732 = vmatprep.subr.mxu0 %v8731
    %v8733 = vand.u32 %v208, 4294901760
    %v8734 = vsub.f32 %v208, %v8733
    %v8735 = vand.u32 %v8734, 4294901760
    %v8736 = vsub.f32 %v8734, %v8735
    %v8737 = vand.u32 %v8736, 4294901760
    %8738 = vmatpush2.msra.mxu0 %v8737
    %v8739 = vand.u32 %v201, 4294901760
    %v8740 = vsub.f32 %v201, %v8739
    %v8741 = vand.u32 %v8740, 4294901760
    %v8742 = vsub.f32 %v8740, %v8741
    %v8743 = vand.u32 %v8742, 4294901760
    %8744 = vmatprep.subr.mxu0 %v8743
    %v8745 = vand.u32 %v200, 4294901760
    %v8746 = vsub.f32 %v200, %v8745
    %v8747 = vand.u32 %v8746, 4294901760
    %v8748 = vsub.f32 %v8746, %v8747
    %v8749 = vand.u32 %v8748, 4294901760
    %8750 = vmatpush2.msra.mxu0 %v8749
    %v8751 = vand.u32 %v193, 4294901760
    %v8752 = vsub.f32 %v193, %v8751
    %v8753 = vand.u32 %v8752, 4294901760
    %v8754 = vsub.f32 %v8752, %v8753
    %v8755 = vand.u32 %v8754, 4294901760
    %8756 = vmatprep.subr.mxu0 %v8755
    %v8757 = vand.u32 %v192, 4294901760
    %v8758 = vsub.f32 %v192, %v8757
    %v8759 = vand.u32 %v8758, 4294901760
    %v8760 = vsub.f32 %v8758, %v8759
    %v8761 = vand.u32 %v8760, 4294901760
    %8762 = vmatpush2.msra.mxu0 %v8761
    %v8763 = vand.u32 %v185, 4294901760
    %v8764 = vsub.f32 %v185, %v8763
    %v8765 = vand.u32 %v8764, 4294901760
    %v8766 = vsub.f32 %v8764, %v8765
    %v8767 = vand.u32 %v8766, 4294901760
    %8768 = vmatprep.subr.mxu0 %v8767
    %v8769 = vand.u32 %v184, 4294901760
    %v8770 = vsub.f32 %v184, %v8769
    %v8771 = vand.u32 %v8770, 4294901760
    %v8772 = vsub.f32 %v8770, %v8771
    %v8773 = vand.u32 %v8772, 4294901760
    %8774 = vmatpush2.msra.mxu0 %v8773
    %v8775 = vand.u32 %v177, 4294901760
    %v8776 = vsub.f32 %v177, %v8775
    %v8777 = vand.u32 %v8776, 4294901760
    %v8778 = vsub.f32 %v8776, %v8777
    %v8779 = vand.u32 %v8778, 4294901760
    %8780 = vmatprep.subr.mxu0 %v8779
    %v8781 = vand.u32 %v176, 4294901760
    %v8782 = vsub.f32 %v176, %v8781
    %v8783 = vand.u32 %v8782, 4294901760
    %v8784 = vsub.f32 %v8782, %v8783
    %v8785 = vand.u32 %v8784, 4294901760
    %8786 = vmatpush2.msra.mxu0 %v8785
    %v8787 = vand.u32 %v39, 4294901760
    %8788 = vmatprep.mubr.f32.mxu0 %v8787
    %v8789 = vand.u32 %v38, 4294901760
    %8790 = vmatmul.mubr.f32.gmra.mxu0 %v8789
    %v8791 = vpop.f32.mrf.mxu0
    %v8792 = vadd.f32 %v8399, %v8791
    %v8793 = vpop.f32.mrf.mxu0
    %v8794 = vadd.f32 %v8401, %v8793
    %8795 = vdwg.mxu0
    %v8796 = vand.u32 %v169, 4294901760
    %v8797 = vsub.f32 %v169, %v8796
    %8798 = vmatprep.subr.mxu0 %v8797
    %v8799 = vand.u32 %v168, 4294901760
    %v8800 = vsub.f32 %v168, %v8799
    %8801 = vmatpush1.msra.mxu0 %v8800
    %v8802 = vand.u32 %v161, 4294901760
    %v8803 = vsub.f32 %v161, %v8802
    %8804 = vmatprep.subr.mxu0 %v8803
    %v8805 = vand.u32 %v160, 4294901760
    %v8806 = vsub.f32 %v160, %v8805
    %8807 = vmatpush1.msra.mxu0 %v8806
    %v8808 = vand.u32 %v153, 4294901760
    %v8809 = vsub.f32 %v153, %v8808
    %8810 = vmatprep.subr.mxu0 %v8809
    %v8811 = vand.u32 %v152, 4294901760
    %v8812 = vsub.f32 %v152, %v8811
    %8813 = vmatpush1.msra.mxu0 %v8812
    %v8814 = vand.u32 %v145, 4294901760
    %v8815 = vsub.f32 %v145, %v8814
    %8816 = vmatprep.subr.mxu0 %v8815
    %v8817 = vand.u32 %v144, 4294901760
    %v8818 = vsub.f32 %v144, %v8817
    %8819 = vmatpush1.msra.mxu0 %v8818
    %v8820 = vand.u32 %v137, 4294901760
    %v8821 = vsub.f32 %v137, %v8820
    %8822 = vmatprep.subr.mxu0 %v8821
    %v8823 = vand.u32 %v136, 4294901760
    %v8824 = vsub.f32 %v136, %v8823
    %8825 = vmatpush1.msra.mxu0 %v8824
    %v8826 = vand.u32 %v129, 4294901760
    %v8827 = vsub.f32 %v129, %v8826
    %8828 = vmatprep.subr.mxu0 %v8827
    %v8829 = vand.u32 %v128, 4294901760
    %v8830 = vsub.f32 %v128, %v8829
    %8831 = vmatpush1.msra.mxu0 %v8830
    %v8832 = vand.u32 %v121, 4294901760
    %v8833 = vsub.f32 %v121, %v8832
    %8834 = vmatprep.subr.mxu0 %v8833
    %v8835 = vand.u32 %v120, 4294901760
    %v8836 = vsub.f32 %v120, %v8835
    %8837 = vmatpush1.msra.mxu0 %v8836
    %v8838 = vand.u32 %v113, 4294901760
    %v8839 = vsub.f32 %v113, %v8838
    %8840 = vmatprep.subr.mxu0 %v8839
    %v8841 = vand.u32 %v112, 4294901760
    %v8842 = vsub.f32 %v112, %v8841
    %8843 = vmatpush1.msra.mxu0 %v8842
    %v8844 = vand.u32 %v105, 4294901760
    %v8845 = vsub.f32 %v105, %v8844
    %8846 = vmatprep.subr.mxu0 %v8845
    %v8847 = vand.u32 %v104, 4294901760
    %v8848 = vsub.f32 %v104, %v8847
    %8849 = vmatpush1.msra.mxu0 %v8848
    %v8850 = vand.u32 %v97, 4294901760
    %v8851 = vsub.f32 %v97, %v8850
    %8852 = vmatprep.subr.mxu0 %v8851
    %v8853 = vand.u32 %v96, 4294901760
    %v8854 = vsub.f32 %v96, %v8853
    %8855 = vmatpush1.msra.mxu0 %v8854
    %v8856 = vand.u32 %v89, 4294901760
    %v8857 = vsub.f32 %v89, %v8856
    %8858 = vmatprep.subr.mxu0 %v8857
    %v8859 = vand.u32 %v88, 4294901760
    %v8860 = vsub.f32 %v88, %v8859
    %8861 = vmatpush1.msra.mxu0 %v8860
    %v8862 = vand.u32 %v81, 4294901760
    %v8863 = vsub.f32 %v81, %v8862
    %8864 = vmatprep.subr.mxu0 %v8863
    %v8865 = vand.u32 %v80, 4294901760
    %v8866 = vsub.f32 %v80, %v8865
    %8867 = vmatpush1.msra.mxu0 %v8866
    %v8868 = vand.u32 %v73, 4294901760
    %v8869 = vsub.f32 %v73, %v8868
    %8870 = vmatprep.subr.mxu0 %v8869
    %v8871 = vand.u32 %v72, 4294901760
    %v8872 = vsub.f32 %v72, %v8871
    %8873 = vmatpush1.msra.mxu0 %v8872
    %v8874 = vand.u32 %v65, 4294901760
    %v8875 = vsub.f32 %v65, %v8874
    %8876 = vmatprep.subr.mxu0 %v8875
    %v8877 = vand.u32 %v64, 4294901760
    %v8878 = vsub.f32 %v64, %v8877
    %8879 = vmatpush1.msra.mxu0 %v8878
    %v8880 = vand.u32 %v57, 4294901760
    %v8881 = vsub.f32 %v57, %v8880
    %8882 = vmatprep.subr.mxu0 %v8881
    %v8883 = vand.u32 %v56, 4294901760
    %v8884 = vsub.f32 %v56, %v8883
    %8885 = vmatpush1.msra.mxu0 %v8884
    %v8886 = vand.u32 %v49, 4294901760
    %v8887 = vsub.f32 %v49, %v8886
    %8888 = vmatprep.subr.mxu0 %v8887
    %v8889 = vand.u32 %v48, 4294901760
    %v8890 = vsub.f32 %v48, %v8889
    %8891 = vmatpush1.msra.mxu0 %v8890
    %v8892 = vand.u32 %v297, 4294901760
    %v8893 = vsub.f32 %v297, %v8892
    %8894 = vmatprep.subr.mxu0 %v8893
    %v8895 = vand.u32 %v296, 4294901760
    %v8896 = vsub.f32 %v296, %v8895
    %8897 = vmatpush2.msra.mxu0 %v8896
    %v8898 = vand.u32 %v289, 4294901760
    %v8899 = vsub.f32 %v289, %v8898
    %8900 = vmatprep.subr.mxu0 %v8899
    %v8901 = vand.u32 %v288, 4294901760
    %v8902 = vsub.f32 %v288, %v8901
    %8903 = vmatpush2.msra.mxu0 %v8902
    %v8904 = vand.u32 %v281, 4294901760
    %v8905 = vsub.f32 %v281, %v8904
    %8906 = vmatprep.subr.mxu0 %v8905
    %v8907 = vand.u32 %v280, 4294901760
    %v8908 = vsub.f32 %v280, %v8907
    %8909 = vmatpush2.msra.mxu0 %v8908
    %v8910 = vand.u32 %v273, 4294901760
    %v8911 = vsub.f32 %v273, %v8910
    %8912 = vmatprep.subr.mxu0 %v8911
    %v8913 = vand.u32 %v272, 4294901760
    %v8914 = vsub.f32 %v272, %v8913
    %8915 = vmatpush2.msra.mxu0 %v8914
    %v8916 = vand.u32 %v265, 4294901760
    %v8917 = vsub.f32 %v265, %v8916
    %8918 = vmatprep.subr.mxu0 %v8917
    %v8919 = vand.u32 %v264, 4294901760
    %v8920 = vsub.f32 %v264, %v8919
    %8921 = vmatpush2.msra.mxu0 %v8920
    %v8922 = vand.u32 %v257, 4294901760
    %v8923 = vsub.f32 %v257, %v8922
    %8924 = vmatprep.subr.mxu0 %v8923
    %v8925 = vand.u32 %v256, 4294901760
    %v8926 = vsub.f32 %v256, %v8925
    %8927 = vmatpush2.msra.mxu0 %v8926
    %v8928 = vand.u32 %v249, 4294901760
    %v8929 = vsub.f32 %v249, %v8928
    %8930 = vmatprep.subr.mxu0 %v8929
    %v8931 = vand.u32 %v248, 4294901760
    %v8932 = vsub.f32 %v248, %v8931
    %8933 = vmatpush2.msra.mxu0 %v8932
    %v8934 = vand.u32 %v241, 4294901760
    %v8935 = vsub.f32 %v241, %v8934
    %8936 = vmatprep.subr.mxu0 %v8935
    %v8937 = vand.u32 %v240, 4294901760
    %v8938 = vsub.f32 %v240, %v8937
    %8939 = vmatpush2.msra.mxu0 %v8938
    %v8940 = vand.u32 %v233, 4294901760
    %v8941 = vsub.f32 %v233, %v8940
    %8942 = vmatprep.subr.mxu0 %v8941
    %v8943 = vand.u32 %v232, 4294901760
    %v8944 = vsub.f32 %v232, %v8943
    %8945 = vmatpush2.msra.mxu0 %v8944
    %v8946 = vand.u32 %v225, 4294901760
    %v8947 = vsub.f32 %v225, %v8946
    %8948 = vmatprep.subr.mxu0 %v8947
    %v8949 = vand.u32 %v224, 4294901760
    %v8950 = vsub.f32 %v224, %v8949
    %8951 = vmatpush2.msra.mxu0 %v8950
    %v8952 = vand.u32 %v217, 4294901760
    %v8953 = vsub.f32 %v217, %v8952
    %8954 = vmatprep.subr.mxu0 %v8953
    %v8955 = vand.u32 %v216, 4294901760
    %v8956 = vsub.f32 %v216, %v8955
    %8957 = vmatpush2.msra.mxu0 %v8956
    %v8958 = vand.u32 %v209, 4294901760
    %v8959 = vsub.f32 %v209, %v8958
    %8960 = vmatprep.subr.mxu0 %v8959
    %v8961 = vand.u32 %v208, 4294901760
    %v8962 = vsub.f32 %v208, %v8961
    %8963 = vmatpush2.msra.mxu0 %v8962
    %v8964 = vand.u32 %v201, 4294901760
    %v8965 = vsub.f32 %v201, %v8964
    %8966 = vmatprep.subr.mxu0 %v8965
    %v8967 = vand.u32 %v200, 4294901760
    %v8968 = vsub.f32 %v200, %v8967
    %8969 = vmatpush2.msra.mxu0 %v8968
    %v8970 = vand.u32 %v193, 4294901760
    %v8971 = vsub.f32 %v193, %v8970
    %8972 = vmatprep.subr.mxu0 %v8971
    %v8973 = vand.u32 %v192, 4294901760
    %v8974 = vsub.f32 %v192, %v8973
    %8975 = vmatpush2.msra.mxu0 %v8974
    %v8976 = vand.u32 %v185, 4294901760
    %v8977 = vsub.f32 %v185, %v8976
    %8978 = vmatprep.subr.mxu0 %v8977
    %v8979 = vand.u32 %v184, 4294901760
    %v8980 = vsub.f32 %v184, %v8979
    %8981 = vmatpush2.msra.mxu0 %v8980
    %v8982 = vand.u32 %v177, 4294901760
    %v8983 = vsub.f32 %v177, %v8982
    %8984 = vmatprep.subr.mxu0 %v8983
    %v8985 = vand.u32 %v176, 4294901760
    %v8986 = vsub.f32 %v176, %v8985
    %8987 = vmatpush2.msra.mxu0 %v8986
    %v8988 = vand.u32 %v39, 4294901760
    %v8989 = vsub.f32 %v39, %v8988
    %8990 = vmatprep.mubr.f32.mxu0 %v8989
    %v8991 = vand.u32 %v38, 4294901760
    %v8992 = vsub.f32 %v38, %v8991
    %8993 = vmatmul.mubr.f32.gmra.mxu0 %v8992
    %v8994 = vpop.f32.mrf.mxu0
    %v8995 = vadd.f32 %v8792, %v8994
    %v8996 = vpop.f32.mrf.mxu0
    %v8997 = vadd.f32 %v8794, %v8996
    %8998 = vdwg.mxu0
    %v8999 = vand.u32 %v169, 4294901760
    %9000 = vmatprep.subr.mxu0 %v8999
    %v9001 = vand.u32 %v168, 4294901760
    %9002 = vmatpush1.msra.mxu0 %v9001
    %v9003 = vand.u32 %v161, 4294901760
    %9004 = vmatprep.subr.mxu0 %v9003
    %v9005 = vand.u32 %v160, 4294901760
    %9006 = vmatpush1.msra.mxu0 %v9005
    %v9007 = vand.u32 %v153, 4294901760
    %9008 = vmatprep.subr.mxu0 %v9007
    %v9009 = vand.u32 %v152, 4294901760
    %9010 = vmatpush1.msra.mxu0 %v9009
    %v9011 = vand.u32 %v145, 4294901760
    %9012 = vmatprep.subr.mxu0 %v9011
    %v9013 = vand.u32 %v144, 4294901760
    %9014 = vmatpush1.msra.mxu0 %v9013
    %v9015 = vand.u32 %v137, 4294901760
    %9016 = vmatprep.subr.mxu0 %v9015
    %v9017 = vand.u32 %v136, 4294901760
    %9018 = vmatpush1.msra.mxu0 %v9017
    %v9019 = vand.u32 %v129, 4294901760
    %9020 = vmatprep.subr.mxu0 %v9019
    %v9021 = vand.u32 %v128, 4294901760
    %9022 = vmatpush1.msra.mxu0 %v9021
    %v9023 = vand.u32 %v121, 4294901760
    %9024 = vmatprep.subr.mxu0 %v9023
    %v9025 = vand.u32 %v120, 4294901760
    %9026 = vmatpush1.msra.mxu0 %v9025
    %v9027 = vand.u32 %v113, 4294901760
    %9028 = vmatprep.subr.mxu0 %v9027
    %v9029 = vand.u32 %v112, 4294901760
    %9030 = vmatpush1.msra.mxu0 %v9029
    %v9031 = vand.u32 %v105, 4294901760
    %9032 = vmatprep.subr.mxu0 %v9031
    %v9033 = vand.u32 %v104, 4294901760
    %9034 = vmatpush1.msra.mxu0 %v9033
    %v9035 = vand.u32 %v97, 4294901760
    %9036 = vmatprep.subr.mxu0 %v9035
    %v9037 = vand.u32 %v96, 4294901760
    %9038 = vmatpush1.msra.mxu0 %v9037
    %v9039 = vand.u32 %v89, 4294901760
    %9040 = vmatprep.subr.mxu0 %v9039
    %v9041 = vand.u32 %v88, 4294901760
    %9042 = vmatpush1.msra.mxu0 %v9041
    %v9043 = vand.u32 %v81, 4294901760
    %9044 = vmatprep.subr.mxu0 %v9043
    %v9045 = vand.u32 %v80, 4294901760
    %9046 = vmatpush1.msra.mxu0 %v9045
    %v9047 = vand.u32 %v73, 4294901760
    %9048 = vmatprep.subr.mxu0 %v9047
    %v9049 = vand.u32 %v72, 4294901760
    %9050 = vmatpush1.msra.mxu0 %v9049
    %v9051 = vand.u32 %v65, 4294901760
    %9052 = vmatprep.subr.mxu0 %v9051
    %v9053 = vand.u32 %v64, 4294901760
    %9054 = vmatpush1.msra.mxu0 %v9053
    %v9055 = vand.u32 %v57, 4294901760
    %9056 = vmatprep.subr.mxu0 %v9055
    %v9057 = vand.u32 %v56, 4294901760
    %9058 = vmatpush1.msra.mxu0 %v9057
    %v9059 = vand.u32 %v49, 4294901760
    %9060 = vmatprep.subr.mxu0 %v9059
    %v9061 = vand.u32 %v48, 4294901760
    %9062 = vmatpush1.msra.mxu0 %v9061
    %v9063 = vand.u32 %v297, 4294901760
    %9064 = vmatprep.subr.mxu0 %v9063
    %v9065 = vand.u32 %v296, 4294901760
    %9066 = vmatpush2.msra.mxu0 %v9065
    %v9067 = vand.u32 %v289, 4294901760
    %9068 = vmatprep.subr.mxu0 %v9067
    %v9069 = vand.u32 %v288, 4294901760
    %9070 = vmatpush2.msra.mxu0 %v9069
    %v9071 = vand.u32 %v281, 4294901760
    %9072 = vmatprep.subr.mxu0 %v9071
    %v9073 = vand.u32 %v280, 4294901760
    %9074 = vmatpush2.msra.mxu0 %v9073
    %v9075 = vand.u32 %v273, 4294901760
    %9076 = vmatprep.subr.mxu0 %v9075
    %v9077 = vand.u32 %v272, 4294901760
    %9078 = vmatpush2.msra.mxu0 %v9077
    %v9079 = vand.u32 %v265, 4294901760
    %9080 = vmatprep.subr.mxu0 %v9079
    %v9081 = vand.u32 %v264, 4294901760
    %9082 = vmatpush2.msra.mxu0 %v9081
    %v9083 = vand.u32 %v257, 4294901760
    %9084 = vmatprep.subr.mxu0 %v9083
    %v9085 = vand.u32 %v256, 4294901760
    %9086 = vmatpush2.msra.mxu0 %v9085
    %v9087 = vand.u32 %v249, 4294901760
    %9088 = vmatprep.subr.mxu0 %v9087
    %v9089 = vand.u32 %v248, 4294901760
    %9090 = vmatpush2.msra.mxu0 %v9089
    %v9091 = vand.u32 %v241, 4294901760
    %9092 = vmatprep.subr.mxu0 %v9091
    %v9093 = vand.u32 %v240, 4294901760
    %9094 = vmatpush2.msra.mxu0 %v9093
    %v9095 = vand.u32 %v233, 4294901760
    %9096 = vmatprep.subr.mxu0 %v9095
    %v9097 = vand.u32 %v232, 4294901760
    %9098 = vmatpush2.msra.mxu0 %v9097
    %v9099 = vand.u32 %v225, 4294901760
    %9100 = vmatprep.subr.mxu0 %v9099
    %v9101 = vand.u32 %v224, 4294901760
    %9102 = vmatpush2.msra.mxu0 %v9101
    %v9103 = vand.u32 %v217, 4294901760
    %9104 = vmatprep.subr.mxu0 %v9103
    %v9105 = vand.u32 %v216, 4294901760
    %9106 = vmatpush2.msra.mxu0 %v9105
    %v9107 = vand.u32 %v209, 4294901760
    %9108 = vmatprep.subr.mxu0 %v9107
    %v9109 = vand.u32 %v208, 4294901760
    %9110 = vmatpush2.msra.mxu0 %v9109
    %v9111 = vand.u32 %v201, 4294901760
    %9112 = vmatprep.subr.mxu0 %v9111
    %v9113 = vand.u32 %v200, 4294901760
    %9114 = vmatpush2.msra.mxu0 %v9113
    %v9115 = vand.u32 %v193, 4294901760
    %9116 = vmatprep.subr.mxu0 %v9115
    %v9117 = vand.u32 %v192, 4294901760
    %9118 = vmatpush2.msra.mxu0 %v9117
    %v9119 = vand.u32 %v185, 4294901760
    %9120 = vmatprep.subr.mxu0 %v9119
    %v9121 = vand.u32 %v184, 4294901760
    %9122 = vmatpush2.msra.mxu0 %v9121
    %v9123 = vand.u32 %v177, 4294901760
    %9124 = vmatprep.subr.mxu0 %v9123
    %v9125 = vand.u32 %v176, 4294901760
    %9126 = vmatpush2.msra.mxu0 %v9125
    %v9127 = vand.u32 %v39, 4294901760
    %v9128 = vsub.f32 %v39, %v9127
    %v9129 = vand.u32 %v9128, 4294901760
    %9130 = vmatprep.mubr.f32.mxu0 %v9129
    %v9131 = vand.u32 %v38, 4294901760
    %v9132 = vsub.f32 %v38, %v9131
    %v9133 = vand.u32 %v9132, 4294901760
    %9134 = vmatmul.mubr.f32.gmra.mxu0 %v9133
    %v9135 = vpop.f32.mrf.mxu0
    %v9136 = vadd.f32 %v8995, %v9135
    %v9137 = vpop.f32.mrf.mxu0
    %v9138 = vadd.f32 %v8997, %v9137
    %9139 = vdwg.mxu0
    %v9140 = vand.u32 %v169, 4294901760
    %v9141 = vsub.f32 %v169, %v9140
    %v9142 = vand.u32 %v9141, 4294901760
    %9143 = vmatprep.subr.mxu0 %v9142
    %v9144 = vand.u32 %v168, 4294901760
    %v9145 = vsub.f32 %v168, %v9144
    %v9146 = vand.u32 %v9145, 4294901760
    %9147 = vmatpush1.msra.mxu0 %v9146
    %v9148 = vand.u32 %v161, 4294901760
    %v9149 = vsub.f32 %v161, %v9148
    %v9150 = vand.u32 %v9149, 4294901760
    %9151 = vmatprep.subr.mxu0 %v9150
    %v9152 = vand.u32 %v160, 4294901760
    %v9153 = vsub.f32 %v160, %v9152
    %v9154 = vand.u32 %v9153, 4294901760
    %9155 = vmatpush1.msra.mxu0 %v9154
    %v9156 = vand.u32 %v153, 4294901760
    %v9157 = vsub.f32 %v153, %v9156
    %v9158 = vand.u32 %v9157, 4294901760
    %9159 = vmatprep.subr.mxu0 %v9158
    %v9160 = vand.u32 %v152, 4294901760
    %v9161 = vsub.f32 %v152, %v9160
    %v9162 = vand.u32 %v9161, 4294901760
    %9163 = vmatpush1.msra.mxu0 %v9162
    %v9164 = vand.u32 %v145, 4294901760
    %v9165 = vsub.f32 %v145, %v9164
    %v9166 = vand.u32 %v9165, 4294901760
    %9167 = vmatprep.subr.mxu0 %v9166
    %v9168 = vand.u32 %v144, 4294901760
    %v9169 = vsub.f32 %v144, %v9168
    %v9170 = vand.u32 %v9169, 4294901760
    %9171 = vmatpush1.msra.mxu0 %v9170
    %v9172 = vand.u32 %v137, 4294901760
    %v9173 = vsub.f32 %v137, %v9172
    %v9174 = vand.u32 %v9173, 4294901760
    %9175 = vmatprep.subr.mxu0 %v9174
    %v9176 = vand.u32 %v136, 4294901760
    %v9177 = vsub.f32 %v136, %v9176
    %v9178 = vand.u32 %v9177, 4294901760
    %9179 = vmatpush1.msra.mxu0 %v9178
    %v9180 = vand.u32 %v129, 4294901760
    %v9181 = vsub.f32 %v129, %v9180
    %v9182 = vand.u32 %v9181, 4294901760
    %9183 = vmatprep.subr.mxu0 %v9182
    %v9184 = vand.u32 %v128, 4294901760
    %v9185 = vsub.f32 %v128, %v9184
    %v9186 = vand.u32 %v9185, 4294901760
    %9187 = vmatpush1.msra.mxu0 %v9186
    %v9188 = vand.u32 %v121, 4294901760
    %v9189 = vsub.f32 %v121, %v9188
    %v9190 = vand.u32 %v9189, 4294901760
    %9191 = vmatprep.subr.mxu0 %v9190
    %v9192 = vand.u32 %v120, 4294901760
    %v9193 = vsub.f32 %v120, %v9192
    %v9194 = vand.u32 %v9193, 4294901760
    %9195 = vmatpush1.msra.mxu0 %v9194
    %v9196 = vand.u32 %v113, 4294901760
    %v9197 = vsub.f32 %v113, %v9196
    %v9198 = vand.u32 %v9197, 4294901760
    %9199 = vmatprep.subr.mxu0 %v9198
    %v9200 = vand.u32 %v112, 4294901760
    %v9201 = vsub.f32 %v112, %v9200
    %v9202 = vand.u32 %v9201, 4294901760
    %9203 = vmatpush1.msra.mxu0 %v9202
    %v9204 = vand.u32 %v105, 4294901760
    %v9205 = vsub.f32 %v105, %v9204
    %v9206 = vand.u32 %v9205, 4294901760
    %9207 = vmatprep.subr.mxu0 %v9206
    %v9208 = vand.u32 %v104, 4294901760
    %v9209 = vsub.f32 %v104, %v9208
    %v9210 = vand.u32 %v9209, 4294901760
    %9211 = vmatpush1.msra.mxu0 %v9210
    %v9212 = vand.u32 %v97, 4294901760
    %v9213 = vsub.f32 %v97, %v9212
    %v9214 = vand.u32 %v9213, 4294901760
    %9215 = vmatprep.subr.mxu0 %v9214
    %v9216 = vand.u32 %v96, 4294901760
    %v9217 = vsub.f32 %v96, %v9216
    %v9218 = vand.u32 %v9217, 4294901760
    %9219 = vmatpush1.msra.mxu0 %v9218
    %v9220 = vand.u32 %v89, 4294901760
    %v9221 = vsub.f32 %v89, %v9220
    %v9222 = vand.u32 %v9221, 4294901760
    %9223 = vmatprep.subr.mxu0 %v9222
    %v9224 = vand.u32 %v88, 4294901760
    %v9225 = vsub.f32 %v88, %v9224
    %v9226 = vand.u32 %v9225, 4294901760
    %9227 = vmatpush1.msra.mxu0 %v9226
    %v9228 = vand.u32 %v81, 4294901760
    %v9229 = vsub.f32 %v81, %v9228
    %v9230 = vand.u32 %v9229, 4294901760
    %9231 = vmatprep.subr.mxu0 %v9230
    %v9232 = vand.u32 %v80, 4294901760
    %v9233 = vsub.f32 %v80, %v9232
    %v9234 = vand.u32 %v9233, 4294901760
    %9235 = vmatpush1.msra.mxu0 %v9234
    %v9236 = vand.u32 %v73, 4294901760
    %v9237 = vsub.f32 %v73, %v9236
    %v9238 = vand.u32 %v9237, 4294901760
    %9239 = vmatprep.subr.mxu0 %v9238
    %v9240 = vand.u32 %v72, 4294901760
    %v9241 = vsub.f32 %v72, %v9240
    %v9242 = vand.u32 %v9241, 4294901760
    %9243 = vmatpush1.msra.mxu0 %v9242
    %v9244 = vand.u32 %v65, 4294901760
    %v9245 = vsub.f32 %v65, %v9244
    %v9246 = vand.u32 %v9245, 4294901760
    %9247 = vmatprep.subr.mxu0 %v9246
    %v9248 = vand.u32 %v64, 4294901760
    %v9249 = vsub.f32 %v64, %v9248
    %v9250 = vand.u32 %v9249, 4294901760
    %9251 = vmatpush1.msra.mxu0 %v9250
    %v9252 = vand.u32 %v57, 4294901760
    %v9253 = vsub.f32 %v57, %v9252
    %v9254 = vand.u32 %v9253, 4294901760
    %9255 = vmatprep.subr.mxu0 %v9254
    %v9256 = vand.u32 %v56, 4294901760
    %v9257 = vsub.f32 %v56, %v9256
    %v9258 = vand.u32 %v9257, 4294901760
    %9259 = vmatpush1.msra.mxu0 %v9258
    %v9260 = vand.u32 %v49, 4294901760
    %v9261 = vsub.f32 %v49, %v9260
    %v9262 = vand.u32 %v9261, 4294901760
    %9263 = vmatprep.subr.mxu0 %v9262
    %v9264 = vand.u32 %v48, 4294901760
    %v9265 = vsub.f32 %v48, %v9264
    %v9266 = vand.u32 %v9265, 4294901760
    %9267 = vmatpush1.msra.mxu0 %v9266
    %v9268 = vand.u32 %v297, 4294901760
    %v9269 = vsub.f32 %v297, %v9268
    %v9270 = vand.u32 %v9269, 4294901760
    %9271 = vmatprep.subr.mxu0 %v9270
    %v9272 = vand.u32 %v296, 4294901760
    %v9273 = vsub.f32 %v296, %v9272
    %v9274 = vand.u32 %v9273, 4294901760
    %9275 = vmatpush2.msra.mxu0 %v9274
    %v9276 = vand.u32 %v289, 4294901760
    %v9277 = vsub.f32 %v289, %v9276
    %v9278 = vand.u32 %v9277, 4294901760
    %9279 = vmatprep.subr.mxu0 %v9278
    %v9280 = vand.u32 %v288, 4294901760
    %v9281 = vsub.f32 %v288, %v9280
    %v9282 = vand.u32 %v9281, 4294901760
    %9283 = vmatpush2.msra.mxu0 %v9282
    %v9284 = vand.u32 %v281, 4294901760
    %v9285 = vsub.f32 %v281, %v9284
    %v9286 = vand.u32 %v9285, 4294901760
    %9287 = vmatprep.subr.mxu0 %v9286
    %v9288 = vand.u32 %v280, 4294901760
    %v9289 = vsub.f32 %v280, %v9288
    %v9290 = vand.u32 %v9289, 4294901760
    %9291 = vmatpush2.msra.mxu0 %v9290
    %v9292 = vand.u32 %v273, 4294901760
    %v9293 = vsub.f32 %v273, %v9292
    %v9294 = vand.u32 %v9293, 4294901760
    %9295 = vmatprep.subr.mxu0 %v9294
    %v9296 = vand.u32 %v272, 4294901760
    %v9297 = vsub.f32 %v272, %v9296
    %v9298 = vand.u32 %v9297, 4294901760
    %9299 = vmatpush2.msra.mxu0 %v9298
    %v9300 = vand.u32 %v265, 4294901760
    %v9301 = vsub.f32 %v265, %v9300
    %v9302 = vand.u32 %v9301, 4294901760
    %9303 = vmatprep.subr.mxu0 %v9302
    %v9304 = vand.u32 %v264, 4294901760
    %v9305 = vsub.f32 %v264, %v9304
    %v9306 = vand.u32 %v9305, 4294901760
    %9307 = vmatpush2.msra.mxu0 %v9306
    %v9308 = vand.u32 %v257, 4294901760
    %v9309 = vsub.f32 %v257, %v9308
    %v9310 = vand.u32 %v9309, 4294901760
    %9311 = vmatprep.subr.mxu0 %v9310
    %v9312 = vand.u32 %v256, 4294901760
    %v9313 = vsub.f32 %v256, %v9312
    %v9314 = vand.u32 %v9313, 4294901760
    %9315 = vmatpush2.msra.mxu0 %v9314
    %v9316 = vand.u32 %v249, 4294901760
    %v9317 = vsub.f32 %v249, %v9316
    %v9318 = vand.u32 %v9317, 4294901760
    %9319 = vmatprep.subr.mxu0 %v9318
    %v9320 = vand.u32 %v248, 4294901760
    %v9321 = vsub.f32 %v248, %v9320
    %v9322 = vand.u32 %v9321, 4294901760
    %9323 = vmatpush2.msra.mxu0 %v9322
    %v9324 = vand.u32 %v241, 4294901760
    %v9325 = vsub.f32 %v241, %v9324
    %v9326 = vand.u32 %v9325, 4294901760
    %9327 = vmatprep.subr.mxu0 %v9326
    %v9328 = vand.u32 %v240, 4294901760
    %v9329 = vsub.f32 %v240, %v9328
    %v9330 = vand.u32 %v9329, 4294901760
    %9331 = vmatpush2.msra.mxu0 %v9330
    %v9332 = vand.u32 %v233, 4294901760
    %v9333 = vsub.f32 %v233, %v9332
    %v9334 = vand.u32 %v9333, 4294901760
    %9335 = vmatprep.subr.mxu0 %v9334
    %v9336 = vand.u32 %v232, 4294901760
    %v9337 = vsub.f32 %v232, %v9336
    %v9338 = vand.u32 %v9337, 4294901760
    %9339 = vmatpush2.msra.mxu0 %v9338
    %v9340 = vand.u32 %v225, 4294901760
    %v9341 = vsub.f32 %v225, %v9340
    %v9342 = vand.u32 %v9341, 4294901760
    %9343 = vmatprep.subr.mxu0 %v9342
    %v9344 = vand.u32 %v224, 4294901760
    %v9345 = vsub.f32 %v224, %v9344
    %v9346 = vand.u32 %v9345, 4294901760
    %9347 = vmatpush2.msra.mxu0 %v9346
    %v9348 = vand.u32 %v217, 4294901760
    %v9349 = vsub.f32 %v217, %v9348
    %v9350 = vand.u32 %v9349, 4294901760
    %9351 = vmatprep.subr.mxu0 %v9350
    %v9352 = vand.u32 %v216, 4294901760
    %v9353 = vsub.f32 %v216, %v9352
    %v9354 = vand.u32 %v9353, 4294901760
    %9355 = vmatpush2.msra.mxu0 %v9354
    %v9356 = vand.u32 %v209, 4294901760
    %v9357 = vsub.f32 %v209, %v9356
    %v9358 = vand.u32 %v9357, 4294901760
    %9359 = vmatprep.subr.mxu0 %v9358
    %v9360 = vand.u32 %v208, 4294901760
    %v9361 = vsub.f32 %v208, %v9360
    %v9362 = vand.u32 %v9361, 4294901760
    %9363 = vmatpush2.msra.mxu0 %v9362
    %v9364 = vand.u32 %v201, 4294901760
    %v9365 = vsub.f32 %v201, %v9364
    %v9366 = vand.u32 %v9365, 4294901760
    %9367 = vmatprep.subr.mxu0 %v9366
    %v9368 = vand.u32 %v200, 4294901760
    %v9369 = vsub.f32 %v200, %v9368
    %v9370 = vand.u32 %v9369, 4294901760
    %9371 = vmatpush2.msra.mxu0 %v9370
    %v9372 = vand.u32 %v193, 4294901760
    %v9373 = vsub.f32 %v193, %v9372
    %v9374 = vand.u32 %v9373, 4294901760
    %9375 = vmatprep.subr.mxu0 %v9374
    %v9376 = vand.u32 %v192, 4294901760
    %v9377 = vsub.f32 %v192, %v9376
    %v9378 = vand.u32 %v9377, 4294901760
    %9379 = vmatpush2.msra.mxu0 %v9378
    %v9380 = vand.u32 %v185, 4294901760
    %v9381 = vsub.f32 %v185, %v9380
    %v9382 = vand.u32 %v9381, 4294901760
    %9383 = vmatprep.subr.mxu0 %v9382
    %v9384 = vand.u32 %v184, 4294901760
    %v9385 = vsub.f32 %v184, %v9384
    %v9386 = vand.u32 %v9385, 4294901760
    %9387 = vmatpush2.msra.mxu0 %v9386
    %v9388 = vand.u32 %v177, 4294901760
    %v9389 = vsub.f32 %v177, %v9388
    %v9390 = vand.u32 %v9389, 4294901760
    %9391 = vmatprep.subr.mxu0 %v9390
    %v9392 = vand.u32 %v176, 4294901760
    %v9393 = vsub.f32 %v176, %v9392
    %v9394 = vand.u32 %v9393, 4294901760
    %9395 = vmatpush2.msra.mxu0 %v9394
    %v9396 = vand.u32 %v39, 4294901760
    %9397 = vmatprep.mubr.f32.mxu0 %v9396
    %v9398 = vand.u32 %v38, 4294901760
    %9399 = vmatmul.mubr.f32.gmra.mxu0 %v9398
    %v9400 = vpop.f32.mrf.mxu0
    %v9401 = vadd.f32 %v9136, %v9400
    %v9402 = vpop.f32.mrf.mxu0
    %v9403 = vadd.f32 %v9138, %v9402
    %9404 = vdwg.mxu0
    %v9405 = vand.u32 %v169, 4294901760
    %9406 = vmatprep.subr.mxu0 %v9405
    %v9407 = vand.u32 %v168, 4294901760
    %9408 = vmatpush1.msra.mxu0 %v9407
    %v9409 = vand.u32 %v161, 4294901760
    %9410 = vmatprep.subr.mxu0 %v9409
    %v9411 = vand.u32 %v160, 4294901760
    %9412 = vmatpush1.msra.mxu0 %v9411
    %v9413 = vand.u32 %v153, 4294901760
    %9414 = vmatprep.subr.mxu0 %v9413
    %v9415 = vand.u32 %v152, 4294901760
    %9416 = vmatpush1.msra.mxu0 %v9415
    %v9417 = vand.u32 %v145, 4294901760
    %9418 = vmatprep.subr.mxu0 %v9417
    %v9419 = vand.u32 %v144, 4294901760
    %9420 = vmatpush1.msra.mxu0 %v9419
    %v9421 = vand.u32 %v137, 4294901760
    %9422 = vmatprep.subr.mxu0 %v9421
    %v9423 = vand.u32 %v136, 4294901760
    %9424 = vmatpush1.msra.mxu0 %v9423
    %v9425 = vand.u32 %v129, 4294901760
    %9426 = vmatprep.subr.mxu0 %v9425
    %v9427 = vand.u32 %v128, 4294901760
    %9428 = vmatpush1.msra.mxu0 %v9427
    %v9429 = vand.u32 %v121, 4294901760
    %9430 = vmatprep.subr.mxu0 %v9429
    %v9431 = vand.u32 %v120, 4294901760
    %9432 = vmatpush1.msra.mxu0 %v9431
    %v9433 = vand.u32 %v113, 4294901760
    %9434 = vmatprep.subr.mxu0 %v9433
    %v9435 = vand.u32 %v112, 4294901760
    %9436 = vmatpush1.msra.mxu0 %v9435
    %v9437 = vand.u32 %v105, 4294901760
    %9438 = vmatprep.subr.mxu0 %v9437
    %v9439 = vand.u32 %v104, 4294901760
    %9440 = vmatpush1.msra.mxu0 %v9439
    %v9441 = vand.u32 %v97, 4294901760
    %9442 = vmatprep.subr.mxu0 %v9441
    %v9443 = vand.u32 %v96, 4294901760
    %9444 = vmatpush1.msra.mxu0 %v9443
    %v9445 = vand.u32 %v89, 4294901760
    %9446 = vmatprep.subr.mxu0 %v9445
    %v9447 = vand.u32 %v88, 4294901760
    %9448 = vmatpush1.msra.mxu0 %v9447
    %v9449 = vand.u32 %v81, 4294901760
    %9450 = vmatprep.subr.mxu0 %v9449
    %v9451 = vand.u32 %v80, 4294901760
    %9452 = vmatpush1.msra.mxu0 %v9451
    %v9453 = vand.u32 %v73, 4294901760
    %9454 = vmatprep.subr.mxu0 %v9453
    %v9455 = vand.u32 %v72, 4294901760
    %9456 = vmatpush1.msra.mxu0 %v9455
    %v9457 = vand.u32 %v65, 4294901760
    %9458 = vmatprep.subr.mxu0 %v9457
    %v9459 = vand.u32 %v64, 4294901760
    %9460 = vmatpush1.msra.mxu0 %v9459
    %v9461 = vand.u32 %v57, 4294901760
    %9462 = vmatprep.subr.mxu0 %v9461
    %v9463 = vand.u32 %v56, 4294901760
    %9464 = vmatpush1.msra.mxu0 %v9463
    %v9465 = vand.u32 %v49, 4294901760
    %9466 = vmatprep.subr.mxu0 %v9465
    %v9467 = vand.u32 %v48, 4294901760
    %9468 = vmatpush1.msra.mxu0 %v9467
    %v9469 = vand.u32 %v297, 4294901760
    %9470 = vmatprep.subr.mxu0 %v9469
    %v9471 = vand.u32 %v296, 4294901760
    %9472 = vmatpush2.msra.mxu0 %v9471
    %v9473 = vand.u32 %v289, 4294901760
    %9474 = vmatprep.subr.mxu0 %v9473
    %v9475 = vand.u32 %v288, 4294901760
    %9476 = vmatpush2.msra.mxu0 %v9475
    %v9477 = vand.u32 %v281, 4294901760
    %9478 = vmatprep.subr.mxu0 %v9477
    %v9479 = vand.u32 %v280, 4294901760
    %9480 = vmatpush2.msra.mxu0 %v9479
    %v9481 = vand.u32 %v273, 4294901760
    %9482 = vmatprep.subr.mxu0 %v9481
    %v9483 = vand.u32 %v272, 4294901760
    %9484 = vmatpush2.msra.mxu0 %v9483
    %v9485 = vand.u32 %v265, 4294901760
    %9486 = vmatprep.subr.mxu0 %v9485
    %v9487 = vand.u32 %v264, 4294901760
    %9488 = vmatpush2.msra.mxu0 %v9487
    %v9489 = vand.u32 %v257, 4294901760
    %9490 = vmatprep.subr.mxu0 %v9489
    %v9491 = vand.u32 %v256, 4294901760
    %9492 = vmatpush2.msra.mxu0 %v9491
    %v9493 = vand.u32 %v249, 4294901760
    %9494 = vmatprep.subr.mxu0 %v9493
    %v9495 = vand.u32 %v248, 4294901760
    %9496 = vmatpush2.msra.mxu0 %v9495
    %v9497 = vand.u32 %v241, 4294901760
    %9498 = vmatprep.subr.mxu0 %v9497
    %v9499 = vand.u32 %v240, 4294901760
    %9500 = vmatpush2.msra.mxu0 %v9499
    %v9501 = vand.u32 %v233, 4294901760
    %9502 = vmatprep.subr.mxu0 %v9501
    %v9503 = vand.u32 %v232, 4294901760
    %9504 = vmatpush2.msra.mxu0 %v9503
    %v9505 = vand.u32 %v225, 4294901760
    %9506 = vmatprep.subr.mxu0 %v9505
    %v9507 = vand.u32 %v224, 4294901760
    %9508 = vmatpush2.msra.mxu0 %v9507
    %v9509 = vand.u32 %v217, 4294901760
    %9510 = vmatprep.subr.mxu0 %v9509
    %v9511 = vand.u32 %v216, 4294901760
    %9512 = vmatpush2.msra.mxu0 %v9511
    %v9513 = vand.u32 %v209, 4294901760
    %9514 = vmatprep.subr.mxu0 %v9513
    %v9515 = vand.u32 %v208, 4294901760
    %9516 = vmatpush2.msra.mxu0 %v9515
    %v9517 = vand.u32 %v201, 4294901760
    %9518 = vmatprep.subr.mxu0 %v9517
    %v9519 = vand.u32 %v200, 4294901760
    %9520 = vmatpush2.msra.mxu0 %v9519
    %v9521 = vand.u32 %v193, 4294901760
    %9522 = vmatprep.subr.mxu0 %v9521
    %v9523 = vand.u32 %v192, 4294901760
    %9524 = vmatpush2.msra.mxu0 %v9523
    %v9525 = vand.u32 %v185, 4294901760
    %9526 = vmatprep.subr.mxu0 %v9525
    %v9527 = vand.u32 %v184, 4294901760
    %9528 = vmatpush2.msra.mxu0 %v9527
    %v9529 = vand.u32 %v177, 4294901760
    %9530 = vmatprep.subr.mxu0 %v9529
    %v9531 = vand.u32 %v176, 4294901760
    %9532 = vmatpush2.msra.mxu0 %v9531
    %v9533 = vand.u32 %v39, 4294901760
    %9534 = vmatprep.mubr.f32.mxu0 %v9533
    %v9535 = vand.u32 %v38, 4294901760
    %9536 = vmatmul.mubr.f32.gmra.mxu0 %v9535
    %v9537 = vpop.f32.mrf.mxu0
    %v9538 = vadd.f32 %v9401, %v9537
    %v9539 = vpop.f32.mrf.mxu0
    %v9540 = vadd.f32 %v9403, %v9539
    %9541 = vdwg.mxu0
    %v9542 = vand.u32 %v425, 4294901760
    %9543 = vmatprep.subr.mxu0 %v9542
    %v9544 = vand.u32 %v424, 4294901760
    %9545 = vmatpush1.msra.mxu0 %v9544
    %v9546 = vand.u32 %v417, 4294901760
    %9547 = vmatprep.subr.mxu0 %v9546
    %v9548 = vand.u32 %v416, 4294901760
    %9549 = vmatpush1.msra.mxu0 %v9548
    %v9550 = vand.u32 %v409, 4294901760
    %9551 = vmatprep.subr.mxu0 %v9550
    %v9552 = vand.u32 %v408, 4294901760
    %9553 = vmatpush1.msra.mxu0 %v9552
    %v9554 = vand.u32 %v401, 4294901760
    %9555 = vmatprep.subr.mxu0 %v9554
    %v9556 = vand.u32 %v400, 4294901760
    %9557 = vmatpush1.msra.mxu0 %v9556
    %v9558 = vand.u32 %v393, 4294901760
    %9559 = vmatprep.subr.mxu0 %v9558
    %v9560 = vand.u32 %v392, 4294901760
    %9561 = vmatpush1.msra.mxu0 %v9560
    %v9562 = vand.u32 %v385, 4294901760
    %9563 = vmatprep.subr.mxu0 %v9562
    %v9564 = vand.u32 %v384, 4294901760
    %9565 = vmatpush1.msra.mxu0 %v9564
    %v9566 = vand.u32 %v377, 4294901760
    %9567 = vmatprep.subr.mxu0 %v9566
    %v9568 = vand.u32 %v376, 4294901760
    %9569 = vmatpush1.msra.mxu0 %v9568
    %v9570 = vand.u32 %v369, 4294901760
    %9571 = vmatprep.subr.mxu0 %v9570
    %v9572 = vand.u32 %v368, 4294901760
    %9573 = vmatpush1.msra.mxu0 %v9572
    %v9574 = vand.u32 %v361, 4294901760
    %9575 = vmatprep.subr.mxu0 %v9574
    %v9576 = vand.u32 %v360, 4294901760
    %9577 = vmatpush1.msra.mxu0 %v9576
    %v9578 = vand.u32 %v353, 4294901760
    %9579 = vmatprep.subr.mxu0 %v9578
    %v9580 = vand.u32 %v352, 4294901760
    %9581 = vmatpush1.msra.mxu0 %v9580
    %v9582 = vand.u32 %v345, 4294901760
    %9583 = vmatprep.subr.mxu0 %v9582
    %v9584 = vand.u32 %v344, 4294901760
    %9585 = vmatpush1.msra.mxu0 %v9584
    %v9586 = vand.u32 %v337, 4294901760
    %9587 = vmatprep.subr.mxu0 %v9586
    %v9588 = vand.u32 %v336, 4294901760
    %9589 = vmatpush1.msra.mxu0 %v9588
    %v9590 = vand.u32 %v329, 4294901760
    %9591 = vmatprep.subr.mxu0 %v9590
    %v9592 = vand.u32 %v328, 4294901760
    %9593 = vmatpush1.msra.mxu0 %v9592
    %v9594 = vand.u32 %v321, 4294901760
    %9595 = vmatprep.subr.mxu0 %v9594
    %v9596 = vand.u32 %v320, 4294901760
    %9597 = vmatpush1.msra.mxu0 %v9596
    %v9598 = vand.u32 %v313, 4294901760
    %9599 = vmatprep.subr.mxu0 %v9598
    %v9600 = vand.u32 %v312, 4294901760
    %9601 = vmatpush1.msra.mxu0 %v9600
    %v9602 = vand.u32 %v305, 4294901760
    %9603 = vmatprep.subr.mxu0 %v9602
    %v9604 = vand.u32 %v304, 4294901760
    %9605 = vmatpush1.msra.mxu0 %v9604
    %v9606 = vand.u32 %v553, 4294901760
    %9607 = vmatprep.subr.mxu0 %v9606
    %v9608 = vand.u32 %v552, 4294901760
    %9609 = vmatpush2.msra.mxu0 %v9608
    %v9610 = vand.u32 %v545, 4294901760
    %9611 = vmatprep.subr.mxu0 %v9610
    %v9612 = vand.u32 %v544, 4294901760
    %9613 = vmatpush2.msra.mxu0 %v9612
    %v9614 = vand.u32 %v537, 4294901760
    %9615 = vmatprep.subr.mxu0 %v9614
    %v9616 = vand.u32 %v536, 4294901760
    %9617 = vmatpush2.msra.mxu0 %v9616
    %v9618 = vand.u32 %v529, 4294901760
    %9619 = vmatprep.subr.mxu0 %v9618
    %v9620 = vand.u32 %v528, 4294901760
    %9621 = vmatpush2.msra.mxu0 %v9620
    %v9622 = vand.u32 %v521, 4294901760
    %9623 = vmatprep.subr.mxu0 %v9622
    %v9624 = vand.u32 %v520, 4294901760
    %9625 = vmatpush2.msra.mxu0 %v9624
    %v9626 = vand.u32 %v513, 4294901760
    %9627 = vmatprep.subr.mxu0 %v9626
    %v9628 = vand.u32 %v512, 4294901760
    %9629 = vmatpush2.msra.mxu0 %v9628
    %v9630 = vand.u32 %v505, 4294901760
    %9631 = vmatprep.subr.mxu0 %v9630
    %v9632 = vand.u32 %v504, 4294901760
    %9633 = vmatpush2.msra.mxu0 %v9632
    %v9634 = vand.u32 %v497, 4294901760
    %9635 = vmatprep.subr.mxu0 %v9634
    %v9636 = vand.u32 %v496, 4294901760
    %9637 = vmatpush2.msra.mxu0 %v9636
    %v9638 = vand.u32 %v489, 4294901760
    %9639 = vmatprep.subr.mxu0 %v9638
    %v9640 = vand.u32 %v488, 4294901760
    %9641 = vmatpush2.msra.mxu0 %v9640
    %v9642 = vand.u32 %v481, 4294901760
    %9643 = vmatprep.subr.mxu0 %v9642
    %v9644 = vand.u32 %v480, 4294901760
    %9645 = vmatpush2.msra.mxu0 %v9644
    %v9646 = vand.u32 %v473, 4294901760
    %9647 = vmatprep.subr.mxu0 %v9646
    %v9648 = vand.u32 %v472, 4294901760
    %9649 = vmatpush2.msra.mxu0 %v9648
    %v9650 = vand.u32 %v465, 4294901760
    %9651 = vmatprep.subr.mxu0 %v9650
    %v9652 = vand.u32 %v464, 4294901760
    %9653 = vmatpush2.msra.mxu0 %v9652
    %v9654 = vand.u32 %v457, 4294901760
    %9655 = vmatprep.subr.mxu0 %v9654
    %v9656 = vand.u32 %v456, 4294901760
    %9657 = vmatpush2.msra.mxu0 %v9656
    %v9658 = vand.u32 %v449, 4294901760
    %9659 = vmatprep.subr.mxu0 %v9658
    %v9660 = vand.u32 %v448, 4294901760
    %9661 = vmatpush2.msra.mxu0 %v9660
    %v9662 = vand.u32 %v441, 4294901760
    %9663 = vmatprep.subr.mxu0 %v9662
    %v9664 = vand.u32 %v440, 4294901760
    %9665 = vmatpush2.msra.mxu0 %v9664
    %v9666 = vand.u32 %v433, 4294901760
    %9667 = vmatprep.subr.mxu0 %v9666
    %v9668 = vand.u32 %v432, 4294901760
    %9669 = vmatpush2.msra.mxu0 %v9668
    %v9670 = vand.u32 %v41, 4294901760
    %v9671 = vsub.f32 %v41, %v9670
    %v9672 = vand.u32 %v9671, 4294901760
    %v9673 = vsub.f32 %v9671, %v9672
    %v9674 = vand.u32 %v9673, 4294901760
    %9675 = vmatprep.mubr.f32.mxu0 %v9674
    %v9676 = vand.u32 %v40, 4294901760
    %v9677 = vsub.f32 %v40, %v9676
    %v9678 = vand.u32 %v9677, 4294901760
    %v9679 = vsub.f32 %v9677, %v9678
    %v9680 = vand.u32 %v9679, 4294901760
    %9681 = vmatmul.mubr.f32.gmra.mxu0 %v9680
    %v9682 = vpop.f32.mrf.mxu0
    %v9683 = vadd.f32 %v9538, %v9682
    %v9684 = vpop.f32.mrf.mxu0
    %v9685 = vadd.f32 %v9540, %v9684
    %9686 = vdwg.mxu0
    %v9687 = vand.u32 %v425, 4294901760
    %v9688 = vsub.f32 %v425, %v9687
    %v9689 = vand.u32 %v9688, 4294901760
    %v9690 = vsub.f32 %v9688, %v9689
    %v9691 = vand.u32 %v9690, 4294901760
    %9692 = vmatprep.subr.mxu0 %v9691
    %v9693 = vand.u32 %v424, 4294901760
    %v9694 = vsub.f32 %v424, %v9693
    %v9695 = vand.u32 %v9694, 4294901760
    %v9696 = vsub.f32 %v9694, %v9695
    %v9697 = vand.u32 %v9696, 4294901760
    %9698 = vmatpush1.msra.mxu0 %v9697
    %v9699 = vand.u32 %v417, 4294901760
    %v9700 = vsub.f32 %v417, %v9699
    %v9701 = vand.u32 %v9700, 4294901760
    %v9702 = vsub.f32 %v9700, %v9701
    %v9703 = vand.u32 %v9702, 4294901760
    %9704 = vmatprep.subr.mxu0 %v9703
    %v9705 = vand.u32 %v416, 4294901760
    %v9706 = vsub.f32 %v416, %v9705
    %v9707 = vand.u32 %v9706, 4294901760
    %v9708 = vsub.f32 %v9706, %v9707
    %v9709 = vand.u32 %v9708, 4294901760
    %9710 = vmatpush1.msra.mxu0 %v9709
    %v9711 = vand.u32 %v409, 4294901760
    %v9712 = vsub.f32 %v409, %v9711
    %v9713 = vand.u32 %v9712, 4294901760
    %v9714 = vsub.f32 %v9712, %v9713
    %v9715 = vand.u32 %v9714, 4294901760
    %9716 = vmatprep.subr.mxu0 %v9715
    %v9717 = vand.u32 %v408, 4294901760
    %v9718 = vsub.f32 %v408, %v9717
    %v9719 = vand.u32 %v9718, 4294901760
    %v9720 = vsub.f32 %v9718, %v9719
    %v9721 = vand.u32 %v9720, 4294901760
    %9722 = vmatpush1.msra.mxu0 %v9721
    %v9723 = vand.u32 %v401, 4294901760
    %v9724 = vsub.f32 %v401, %v9723
    %v9725 = vand.u32 %v9724, 4294901760
    %v9726 = vsub.f32 %v9724, %v9725
    %v9727 = vand.u32 %v9726, 4294901760
    %9728 = vmatprep.subr.mxu0 %v9727
    %v9729 = vand.u32 %v400, 4294901760
    %v9730 = vsub.f32 %v400, %v9729
    %v9731 = vand.u32 %v9730, 4294901760
    %v9732 = vsub.f32 %v9730, %v9731
    %v9733 = vand.u32 %v9732, 4294901760
    %9734 = vmatpush1.msra.mxu0 %v9733
    %v9735 = vand.u32 %v393, 4294901760
    %v9736 = vsub.f32 %v393, %v9735
    %v9737 = vand.u32 %v9736, 4294901760
    %v9738 = vsub.f32 %v9736, %v9737
    %v9739 = vand.u32 %v9738, 4294901760
    %9740 = vmatprep.subr.mxu0 %v9739
    %v9741 = vand.u32 %v392, 4294901760
    %v9742 = vsub.f32 %v392, %v9741
    %v9743 = vand.u32 %v9742, 4294901760
    %v9744 = vsub.f32 %v9742, %v9743
    %v9745 = vand.u32 %v9744, 4294901760
    %9746 = vmatpush1.msra.mxu0 %v9745
    %v9747 = vand.u32 %v385, 4294901760
    %v9748 = vsub.f32 %v385, %v9747
    %v9749 = vand.u32 %v9748, 4294901760
    %v9750 = vsub.f32 %v9748, %v9749
    %v9751 = vand.u32 %v9750, 4294901760
    %9752 = vmatprep.subr.mxu0 %v9751
    %v9753 = vand.u32 %v384, 4294901760
    %v9754 = vsub.f32 %v384, %v9753
    %v9755 = vand.u32 %v9754, 4294901760
    %v9756 = vsub.f32 %v9754, %v9755
    %v9757 = vand.u32 %v9756, 4294901760
    %9758 = vmatpush1.msra.mxu0 %v9757
    %v9759 = vand.u32 %v377, 4294901760
    %v9760 = vsub.f32 %v377, %v9759
    %v9761 = vand.u32 %v9760, 4294901760
    %v9762 = vsub.f32 %v9760, %v9761
    %v9763 = vand.u32 %v9762, 4294901760
    %9764 = vmatprep.subr.mxu0 %v9763
    %v9765 = vand.u32 %v376, 4294901760
    %v9766 = vsub.f32 %v376, %v9765
    %v9767 = vand.u32 %v9766, 4294901760
    %v9768 = vsub.f32 %v9766, %v9767
    %v9769 = vand.u32 %v9768, 4294901760
    %9770 = vmatpush1.msra.mxu0 %v9769
    %v9771 = vand.u32 %v369, 4294901760
    %v9772 = vsub.f32 %v369, %v9771
    %v9773 = vand.u32 %v9772, 4294901760
    %v9774 = vsub.f32 %v9772, %v9773
    %v9775 = vand.u32 %v9774, 4294901760
    %9776 = vmatprep.subr.mxu0 %v9775
    %v9777 = vand.u32 %v368, 4294901760
    %v9778 = vsub.f32 %v368, %v9777
    %v9779 = vand.u32 %v9778, 4294901760
    %v9780 = vsub.f32 %v9778, %v9779
    %v9781 = vand.u32 %v9780, 4294901760
    %9782 = vmatpush1.msra.mxu0 %v9781
    %v9783 = vand.u32 %v361, 4294901760
    %v9784 = vsub.f32 %v361, %v9783
    %v9785 = vand.u32 %v9784, 4294901760
    %v9786 = vsub.f32 %v9784, %v9785
    %v9787 = vand.u32 %v9786, 4294901760
    %9788 = vmatprep.subr.mxu0 %v9787
    %v9789 = vand.u32 %v360, 4294901760
    %v9790 = vsub.f32 %v360, %v9789
    %v9791 = vand.u32 %v9790, 4294901760
    %v9792 = vsub.f32 %v9790, %v9791
    %v9793 = vand.u32 %v9792, 4294901760
    %9794 = vmatpush1.msra.mxu0 %v9793
    %v9795 = vand.u32 %v353, 4294901760
    %v9796 = vsub.f32 %v353, %v9795
    %v9797 = vand.u32 %v9796, 4294901760
    %v9798 = vsub.f32 %v9796, %v9797
    %v9799 = vand.u32 %v9798, 4294901760
    %9800 = vmatprep.subr.mxu0 %v9799
    %v9801 = vand.u32 %v352, 4294901760
    %v9802 = vsub.f32 %v352, %v9801
    %v9803 = vand.u32 %v9802, 4294901760
    %v9804 = vsub.f32 %v9802, %v9803
    %v9805 = vand.u32 %v9804, 4294901760
    %9806 = vmatpush1.msra.mxu0 %v9805
    %v9807 = vand.u32 %v345, 4294901760
    %v9808 = vsub.f32 %v345, %v9807
    %v9809 = vand.u32 %v9808, 4294901760
    %v9810 = vsub.f32 %v9808, %v9809
    %v9811 = vand.u32 %v9810, 4294901760
    %9812 = vmatprep.subr.mxu0 %v9811
    %v9813 = vand.u32 %v344, 4294901760
    %v9814 = vsub.f32 %v344, %v9813
    %v9815 = vand.u32 %v9814, 4294901760
    %v9816 = vsub.f32 %v9814, %v9815
    %v9817 = vand.u32 %v9816, 4294901760
    %9818 = vmatpush1.msra.mxu0 %v9817
    %v9819 = vand.u32 %v337, 4294901760
    %v9820 = vsub.f32 %v337, %v9819
    %v9821 = vand.u32 %v9820, 4294901760
    %v9822 = vsub.f32 %v9820, %v9821
    %v9823 = vand.u32 %v9822, 4294901760
    %9824 = vmatprep.subr.mxu0 %v9823
    %v9825 = vand.u32 %v336, 4294901760
    %v9826 = vsub.f32 %v336, %v9825
    %v9827 = vand.u32 %v9826, 4294901760
    %v9828 = vsub.f32 %v9826, %v9827
    %v9829 = vand.u32 %v9828, 4294901760
    %9830 = vmatpush1.msra.mxu0 %v9829
    %v9831 = vand.u32 %v329, 4294901760
    %v9832 = vsub.f32 %v329, %v9831
    %v9833 = vand.u32 %v9832, 4294901760
    %v9834 = vsub.f32 %v9832, %v9833
    %v9835 = vand.u32 %v9834, 4294901760
    %9836 = vmatprep.subr.mxu0 %v9835
    %v9837 = vand.u32 %v328, 4294901760
    %v9838 = vsub.f32 %v328, %v9837
    %v9839 = vand.u32 %v9838, 4294901760
    %v9840 = vsub.f32 %v9838, %v9839
    %v9841 = vand.u32 %v9840, 4294901760
    %9842 = vmatpush1.msra.mxu0 %v9841
    %v9843 = vand.u32 %v321, 4294901760
    %v9844 = vsub.f32 %v321, %v9843
    %v9845 = vand.u32 %v9844, 4294901760
    %v9846 = vsub.f32 %v9844, %v9845
    %v9847 = vand.u32 %v9846, 4294901760
    %9848 = vmatprep.subr.mxu0 %v9847
    %v9849 = vand.u32 %v320, 4294901760
    %v9850 = vsub.f32 %v320, %v9849
    %v9851 = vand.u32 %v9850, 4294901760
    %v9852 = vsub.f32 %v9850, %v9851
    %v9853 = vand.u32 %v9852, 4294901760
    %9854 = vmatpush1.msra.mxu0 %v9853
    %v9855 = vand.u32 %v313, 4294901760
    %v9856 = vsub.f32 %v313, %v9855
    %v9857 = vand.u32 %v9856, 4294901760
    %v9858 = vsub.f32 %v9856, %v9857
    %v9859 = vand.u32 %v9858, 4294901760
    %9860 = vmatprep.subr.mxu0 %v9859
    %v9861 = vand.u32 %v312, 4294901760
    %v9862 = vsub.f32 %v312, %v9861
    %v9863 = vand.u32 %v9862, 4294901760
    %v9864 = vsub.f32 %v9862, %v9863
    %v9865 = vand.u32 %v9864, 4294901760
    %9866 = vmatpush1.msra.mxu0 %v9865
    %v9867 = vand.u32 %v305, 4294901760
    %v9868 = vsub.f32 %v305, %v9867
    %v9869 = vand.u32 %v9868, 4294901760
    %v9870 = vsub.f32 %v9868, %v9869
    %v9871 = vand.u32 %v9870, 4294901760
    %9872 = vmatprep.subr.mxu0 %v9871
    %v9873 = vand.u32 %v304, 4294901760
    %v9874 = vsub.f32 %v304, %v9873
    %v9875 = vand.u32 %v9874, 4294901760
    %v9876 = vsub.f32 %v9874, %v9875
    %v9877 = vand.u32 %v9876, 4294901760
    %9878 = vmatpush1.msra.mxu0 %v9877
    %v9879 = vand.u32 %v553, 4294901760
    %v9880 = vsub.f32 %v553, %v9879
    %v9881 = vand.u32 %v9880, 4294901760
    %v9882 = vsub.f32 %v9880, %v9881
    %v9883 = vand.u32 %v9882, 4294901760
    %9884 = vmatprep.subr.mxu0 %v9883
    %v9885 = vand.u32 %v552, 4294901760
    %v9886 = vsub.f32 %v552, %v9885
    %v9887 = vand.u32 %v9886, 4294901760
    %v9888 = vsub.f32 %v9886, %v9887
    %v9889 = vand.u32 %v9888, 4294901760
    %9890 = vmatpush2.msra.mxu0 %v9889
    %v9891 = vand.u32 %v545, 4294901760
    %v9892 = vsub.f32 %v545, %v9891
    %v9893 = vand.u32 %v9892, 4294901760
    %v9894 = vsub.f32 %v9892, %v9893
    %v9895 = vand.u32 %v9894, 4294901760
    %9896 = vmatprep.subr.mxu0 %v9895
    %v9897 = vand.u32 %v544, 4294901760
    %v9898 = vsub.f32 %v544, %v9897
    %v9899 = vand.u32 %v9898, 4294901760
    %v9900 = vsub.f32 %v9898, %v9899
    %v9901 = vand.u32 %v9900, 4294901760
    %9902 = vmatpush2.msra.mxu0 %v9901
    %v9903 = vand.u32 %v537, 4294901760
    %v9904 = vsub.f32 %v537, %v9903
    %v9905 = vand.u32 %v9904, 4294901760
    %v9906 = vsub.f32 %v9904, %v9905
    %v9907 = vand.u32 %v9906, 4294901760
    %9908 = vmatprep.subr.mxu0 %v9907
    %v9909 = vand.u32 %v536, 4294901760
    %v9910 = vsub.f32 %v536, %v9909
    %v9911 = vand.u32 %v9910, 4294901760
    %v9912 = vsub.f32 %v9910, %v9911
    %v9913 = vand.u32 %v9912, 4294901760
    %9914 = vmatpush2.msra.mxu0 %v9913
    %v9915 = vand.u32 %v529, 4294901760
    %v9916 = vsub.f32 %v529, %v9915
    %v9917 = vand.u32 %v9916, 4294901760
    %v9918 = vsub.f32 %v9916, %v9917
    %v9919 = vand.u32 %v9918, 4294901760
    %9920 = vmatprep.subr.mxu0 %v9919
    %v9921 = vand.u32 %v528, 4294901760
    %v9922 = vsub.f32 %v528, %v9921
    %v9923 = vand.u32 %v9922, 4294901760
    %v9924 = vsub.f32 %v9922, %v9923
    %v9925 = vand.u32 %v9924, 4294901760
    %9926 = vmatpush2.msra.mxu0 %v9925
    %v9927 = vand.u32 %v521, 4294901760
    %v9928 = vsub.f32 %v521, %v9927
    %v9929 = vand.u32 %v9928, 4294901760
    %v9930 = vsub.f32 %v9928, %v9929
    %v9931 = vand.u32 %v9930, 4294901760
    %9932 = vmatprep.subr.mxu0 %v9931
    %v9933 = vand.u32 %v520, 4294901760
    %v9934 = vsub.f32 %v520, %v9933
    %v9935 = vand.u32 %v9934, 4294901760
    %v9936 = vsub.f32 %v9934, %v9935
    %v9937 = vand.u32 %v9936, 4294901760
    %9938 = vmatpush2.msra.mxu0 %v9937
    %v9939 = vand.u32 %v513, 4294901760
    %v9940 = vsub.f32 %v513, %v9939
    %v9941 = vand.u32 %v9940, 4294901760
    %v9942 = vsub.f32 %v9940, %v9941
    %v9943 = vand.u32 %v9942, 4294901760
    %9944 = vmatprep.subr.mxu0 %v9943
    %v9945 = vand.u32 %v512, 4294901760
    %v9946 = vsub.f32 %v512, %v9945
    %v9947 = vand.u32 %v9946, 4294901760
    %v9948 = vsub.f32 %v9946, %v9947
    %v9949 = vand.u32 %v9948, 4294901760
    %9950 = vmatpush2.msra.mxu0 %v9949
    %v9951 = vand.u32 %v505, 4294901760
    %v9952 = vsub.f32 %v505, %v9951
    %v9953 = vand.u32 %v9952, 4294901760
    %v9954 = vsub.f32 %v9952, %v9953
    %v9955 = vand.u32 %v9954, 4294901760
    %9956 = vmatprep.subr.mxu0 %v9955
    %v9957 = vand.u32 %v504, 4294901760
    %v9958 = vsub.f32 %v504, %v9957
    %v9959 = vand.u32 %v9958, 4294901760
    %v9960 = vsub.f32 %v9958, %v9959
    %v9961 = vand.u32 %v9960, 4294901760
    %9962 = vmatpush2.msra.mxu0 %v9961
    %v9963 = vand.u32 %v497, 4294901760
    %v9964 = vsub.f32 %v497, %v9963
    %v9965 = vand.u32 %v9964, 4294901760
    %v9966 = vsub.f32 %v9964, %v9965
    %v9967 = vand.u32 %v9966, 4294901760
    %9968 = vmatprep.subr.mxu0 %v9967
    %v9969 = vand.u32 %v496, 4294901760
    %v9970 = vsub.f32 %v496, %v9969
    %v9971 = vand.u32 %v9970, 4294901760
    %v9972 = vsub.f32 %v9970, %v9971
    %v9973 = vand.u32 %v9972, 4294901760
    %9974 = vmatpush2.msra.mxu0 %v9973
    %v9975 = vand.u32 %v489, 4294901760
    %v9976 = vsub.f32 %v489, %v9975
    %v9977 = vand.u32 %v9976, 4294901760
    %v9978 = vsub.f32 %v9976, %v9977
    %v9979 = vand.u32 %v9978, 4294901760
    %9980 = vmatprep.subr.mxu0 %v9979
    %v9981 = vand.u32 %v488, 4294901760
    %v9982 = vsub.f32 %v488, %v9981
    %v9983 = vand.u32 %v9982, 4294901760
    %v9984 = vsub.f32 %v9982, %v9983
    %v9985 = vand.u32 %v9984, 4294901760
    %9986 = vmatpush2.msra.mxu0 %v9985
    %v9987 = vand.u32 %v481, 4294901760
    %v9988 = vsub.f32 %v481, %v9987
    %v9989 = vand.u32 %v9988, 4294901760
    %v9990 = vsub.f32 %v9988, %v9989
    %v9991 = vand.u32 %v9990, 4294901760
    %9992 = vmatprep.subr.mxu0 %v9991
    %v9993 = vand.u32 %v480, 4294901760
    %v9994 = vsub.f32 %v480, %v9993
    %v9995 = vand.u32 %v9994, 4294901760
    %v9996 = vsub.f32 %v9994, %v9995
    %v9997 = vand.u32 %v9996, 4294901760
    %9998 = vmatpush2.msra.mxu0 %v9997
    %v9999 = vand.u32 %v473, 4294901760
    %v10000 = vsub.f32 %v473, %v9999
    %v10001 = vand.u32 %v10000, 4294901760
    %v10002 = vsub.f32 %v10000, %v10001
    %v10003 = vand.u32 %v10002, 4294901760
    %10004 = vmatprep.subr.mxu0 %v10003
    %v10005 = vand.u32 %v472, 4294901760
    %v10006 = vsub.f32 %v472, %v10005
    %v10007 = vand.u32 %v10006, 4294901760
    %v10008 = vsub.f32 %v10006, %v10007
    %v10009 = vand.u32 %v10008, 4294901760
    %10010 = vmatpush2.msra.mxu0 %v10009
    %v10011 = vand.u32 %v465, 4294901760
    %v10012 = vsub.f32 %v465, %v10011
    %v10013 = vand.u32 %v10012, 4294901760
    %v10014 = vsub.f32 %v10012, %v10013
    %v10015 = vand.u32 %v10014, 4294901760
    %10016 = vmatprep.subr.mxu0 %v10015
    %v10017 = vand.u32 %v464, 4294901760
    %v10018 = vsub.f32 %v464, %v10017
    %v10019 = vand.u32 %v10018, 4294901760
    %v10020 = vsub.f32 %v10018, %v10019
    %v10021 = vand.u32 %v10020, 4294901760
    %10022 = vmatpush2.msra.mxu0 %v10021
    %v10023 = vand.u32 %v457, 4294901760
    %v10024 = vsub.f32 %v457, %v10023
    %v10025 = vand.u32 %v10024, 4294901760
    %v10026 = vsub.f32 %v10024, %v10025
    %v10027 = vand.u32 %v10026, 4294901760
    %10028 = vmatprep.subr.mxu0 %v10027
    %v10029 = vand.u32 %v456, 4294901760
    %v10030 = vsub.f32 %v456, %v10029
    %v10031 = vand.u32 %v10030, 4294901760
    %v10032 = vsub.f32 %v10030, %v10031
    %v10033 = vand.u32 %v10032, 4294901760
    %10034 = vmatpush2.msra.mxu0 %v10033
    %v10035 = vand.u32 %v449, 4294901760
    %v10036 = vsub.f32 %v449, %v10035
    %v10037 = vand.u32 %v10036, 4294901760
    %v10038 = vsub.f32 %v10036, %v10037
    %v10039 = vand.u32 %v10038, 4294901760
    %10040 = vmatprep.subr.mxu0 %v10039
    %v10041 = vand.u32 %v448, 4294901760
    %v10042 = vsub.f32 %v448, %v10041
    %v10043 = vand.u32 %v10042, 4294901760
    %v10044 = vsub.f32 %v10042, %v10043
    %v10045 = vand.u32 %v10044, 4294901760
    %10046 = vmatpush2.msra.mxu0 %v10045
    %v10047 = vand.u32 %v441, 4294901760
    %v10048 = vsub.f32 %v441, %v10047
    %v10049 = vand.u32 %v10048, 4294901760
    %v10050 = vsub.f32 %v10048, %v10049
    %v10051 = vand.u32 %v10050, 4294901760
    %10052 = vmatprep.subr.mxu0 %v10051
    %v10053 = vand.u32 %v440, 4294901760
    %v10054 = vsub.f32 %v440, %v10053
    %v10055 = vand.u32 %v10054, 4294901760
    %v10056 = vsub.f32 %v10054, %v10055
    %v10057 = vand.u32 %v10056, 4294901760
    %10058 = vmatpush2.msra.mxu0 %v10057
    %v10059 = vand.u32 %v433, 4294901760
    %v10060 = vsub.f32 %v433, %v10059
    %v10061 = vand.u32 %v10060, 4294901760
    %v10062 = vsub.f32 %v10060, %v10061
    %v10063 = vand.u32 %v10062, 4294901760
    %10064 = vmatprep.subr.mxu0 %v10063
    %v10065 = vand.u32 %v432, 4294901760
    %v10066 = vsub.f32 %v432, %v10065
    %v10067 = vand.u32 %v10066, 4294901760
    %v10068 = vsub.f32 %v10066, %v10067
    %v10069 = vand.u32 %v10068, 4294901760
    %10070 = vmatpush2.msra.mxu0 %v10069
    %v10071 = vand.u32 %v41, 4294901760
    %10072 = vmatprep.mubr.f32.mxu0 %v10071
    %v10073 = vand.u32 %v40, 4294901760
    %10074 = vmatmul.mubr.f32.gmra.mxu0 %v10073
    %v10075 = vpop.f32.mrf.mxu0
    %v10076 = vadd.f32 %v9683, %v10075
    %v10077 = vpop.f32.mrf.mxu0
    %v10078 = vadd.f32 %v9685, %v10077
    %10079 = vdwg.mxu0
    %v10080 = vand.u32 %v425, 4294901760
    %v10081 = vsub.f32 %v425, %v10080
    %10082 = vmatprep.subr.mxu0 %v10081
    %v10083 = vand.u32 %v424, 4294901760
    %v10084 = vsub.f32 %v424, %v10083
    %10085 = vmatpush1.msra.mxu0 %v10084
    %v10086 = vand.u32 %v417, 4294901760
    %v10087 = vsub.f32 %v417, %v10086
    %10088 = vmatprep.subr.mxu0 %v10087
    %v10089 = vand.u32 %v416, 4294901760
    %v10090 = vsub.f32 %v416, %v10089
    %10091 = vmatpush1.msra.mxu0 %v10090
    %v10092 = vand.u32 %v409, 4294901760
    %v10093 = vsub.f32 %v409, %v10092
    %10094 = vmatprep.subr.mxu0 %v10093
    %v10095 = vand.u32 %v408, 4294901760
    %v10096 = vsub.f32 %v408, %v10095
    %10097 = vmatpush1.msra.mxu0 %v10096
    %v10098 = vand.u32 %v401, 4294901760
    %v10099 = vsub.f32 %v401, %v10098
    %10100 = vmatprep.subr.mxu0 %v10099
    %v10101 = vand.u32 %v400, 4294901760
    %v10102 = vsub.f32 %v400, %v10101
    %10103 = vmatpush1.msra.mxu0 %v10102
    %v10104 = vand.u32 %v393, 4294901760
    %v10105 = vsub.f32 %v393, %v10104
    %10106 = vmatprep.subr.mxu0 %v10105
    %v10107 = vand.u32 %v392, 4294901760
    %v10108 = vsub.f32 %v392, %v10107
    %10109 = vmatpush1.msra.mxu0 %v10108
    %v10110 = vand.u32 %v385, 4294901760
    %v10111 = vsub.f32 %v385, %v10110
    %10112 = vmatprep.subr.mxu0 %v10111
    %v10113 = vand.u32 %v384, 4294901760
    %v10114 = vsub.f32 %v384, %v10113
    %10115 = vmatpush1.msra.mxu0 %v10114
    %v10116 = vand.u32 %v377, 4294901760
    %v10117 = vsub.f32 %v377, %v10116
    %10118 = vmatprep.subr.mxu0 %v10117
    %v10119 = vand.u32 %v376, 4294901760
    %v10120 = vsub.f32 %v376, %v10119
    %10121 = vmatpush1.msra.mxu0 %v10120
    %v10122 = vand.u32 %v369, 4294901760
    %v10123 = vsub.f32 %v369, %v10122
    %10124 = vmatprep.subr.mxu0 %v10123
    %v10125 = vand.u32 %v368, 4294901760
    %v10126 = vsub.f32 %v368, %v10125
    %10127 = vmatpush1.msra.mxu0 %v10126
    %v10128 = vand.u32 %v361, 4294901760
    %v10129 = vsub.f32 %v361, %v10128
    %10130 = vmatprep.subr.mxu0 %v10129
    %v10131 = vand.u32 %v360, 4294901760
    %v10132 = vsub.f32 %v360, %v10131
    %10133 = vmatpush1.msra.mxu0 %v10132
    %v10134 = vand.u32 %v353, 4294901760
    %v10135 = vsub.f32 %v353, %v10134
    %10136 = vmatprep.subr.mxu0 %v10135
    %v10137 = vand.u32 %v352, 4294901760
    %v10138 = vsub.f32 %v352, %v10137
    %10139 = vmatpush1.msra.mxu0 %v10138
    %v10140 = vand.u32 %v345, 4294901760
    %v10141 = vsub.f32 %v345, %v10140
    %10142 = vmatprep.subr.mxu0 %v10141
    %v10143 = vand.u32 %v344, 4294901760
    %v10144 = vsub.f32 %v344, %v10143
    %10145 = vmatpush1.msra.mxu0 %v10144
    %v10146 = vand.u32 %v337, 4294901760
    %v10147 = vsub.f32 %v337, %v10146
    %10148 = vmatprep.subr.mxu0 %v10147
    %v10149 = vand.u32 %v336, 4294901760
    %v10150 = vsub.f32 %v336, %v10149
    %10151 = vmatpush1.msra.mxu0 %v10150
    %v10152 = vand.u32 %v329, 4294901760
    %v10153 = vsub.f32 %v329, %v10152
    %10154 = vmatprep.subr.mxu0 %v10153
    %v10155 = vand.u32 %v328, 4294901760
    %v10156 = vsub.f32 %v328, %v10155
    %10157 = vmatpush1.msra.mxu0 %v10156
    %v10158 = vand.u32 %v321, 4294901760
    %v10159 = vsub.f32 %v321, %v10158
    %10160 = vmatprep.subr.mxu0 %v10159
    %v10161 = vand.u32 %v320, 4294901760
    %v10162 = vsub.f32 %v320, %v10161
    %10163 = vmatpush1.msra.mxu0 %v10162
    %v10164 = vand.u32 %v313, 4294901760
    %v10165 = vsub.f32 %v313, %v10164
    %10166 = vmatprep.subr.mxu0 %v10165
    %v10167 = vand.u32 %v312, 4294901760
    %v10168 = vsub.f32 %v312, %v10167
    %10169 = vmatpush1.msra.mxu0 %v10168
    %v10170 = vand.u32 %v305, 4294901760
    %v10171 = vsub.f32 %v305, %v10170
    %10172 = vmatprep.subr.mxu0 %v10171
    %v10173 = vand.u32 %v304, 4294901760
    %v10174 = vsub.f32 %v304, %v10173
    %10175 = vmatpush1.msra.mxu0 %v10174
    %v10176 = vand.u32 %v553, 4294901760
    %v10177 = vsub.f32 %v553, %v10176
    %10178 = vmatprep.subr.mxu0 %v10177
    %v10179 = vand.u32 %v552, 4294901760
    %v10180 = vsub.f32 %v552, %v10179
    %10181 = vmatpush2.msra.mxu0 %v10180
    %v10182 = vand.u32 %v545, 4294901760
    %v10183 = vsub.f32 %v545, %v10182
    %10184 = vmatprep.subr.mxu0 %v10183
    %v10185 = vand.u32 %v544, 4294901760
    %v10186 = vsub.f32 %v544, %v10185
    %10187 = vmatpush2.msra.mxu0 %v10186
    %v10188 = vand.u32 %v537, 4294901760
    %v10189 = vsub.f32 %v537, %v10188
    %10190 = vmatprep.subr.mxu0 %v10189
    %v10191 = vand.u32 %v536, 4294901760
    %v10192 = vsub.f32 %v536, %v10191
    %10193 = vmatpush2.msra.mxu0 %v10192
    %v10194 = vand.u32 %v529, 4294901760
    %v10195 = vsub.f32 %v529, %v10194
    %10196 = vmatprep.subr.mxu0 %v10195
    %v10197 = vand.u32 %v528, 4294901760
    %v10198 = vsub.f32 %v528, %v10197
    %10199 = vmatpush2.msra.mxu0 %v10198
    %v10200 = vand.u32 %v521, 4294901760
    %v10201 = vsub.f32 %v521, %v10200
    %10202 = vmatprep.subr.mxu0 %v10201
    %v10203 = vand.u32 %v520, 4294901760
    %v10204 = vsub.f32 %v520, %v10203
    %10205 = vmatpush2.msra.mxu0 %v10204
    %v10206 = vand.u32 %v513, 4294901760
    %v10207 = vsub.f32 %v513, %v10206
    %10208 = vmatprep.subr.mxu0 %v10207
    %v10209 = vand.u32 %v512, 4294901760
    %v10210 = vsub.f32 %v512, %v10209
    %10211 = vmatpush2.msra.mxu0 %v10210
    %v10212 = vand.u32 %v505, 4294901760
    %v10213 = vsub.f32 %v505, %v10212
    %10214 = vmatprep.subr.mxu0 %v10213
    %v10215 = vand.u32 %v504, 4294901760
    %v10216 = vsub.f32 %v504, %v10215
    %10217 = vmatpush2.msra.mxu0 %v10216
    %v10218 = vand.u32 %v497, 4294901760
    %v10219 = vsub.f32 %v497, %v10218
    %10220 = vmatprep.subr.mxu0 %v10219
    %v10221 = vand.u32 %v496, 4294901760
    %v10222 = vsub.f32 %v496, %v10221
    %10223 = vmatpush2.msra.mxu0 %v10222
    %v10224 = vand.u32 %v489, 4294901760
    %v10225 = vsub.f32 %v489, %v10224
    %10226 = vmatprep.subr.mxu0 %v10225
    %v10227 = vand.u32 %v488, 4294901760
    %v10228 = vsub.f32 %v488, %v10227
    %10229 = vmatpush2.msra.mxu0 %v10228
    %v10230 = vand.u32 %v481, 4294901760
    %v10231 = vsub.f32 %v481, %v10230
    %10232 = vmatprep.subr.mxu0 %v10231
    %v10233 = vand.u32 %v480, 4294901760
    %v10234 = vsub.f32 %v480, %v10233
    %10235 = vmatpush2.msra.mxu0 %v10234
    %v10236 = vand.u32 %v473, 4294901760
    %v10237 = vsub.f32 %v473, %v10236
    %10238 = vmatprep.subr.mxu0 %v10237
    %v10239 = vand.u32 %v472, 4294901760
    %v10240 = vsub.f32 %v472, %v10239
    %10241 = vmatpush2.msra.mxu0 %v10240
    %v10242 = vand.u32 %v465, 4294901760
    %v10243 = vsub.f32 %v465, %v10242
    %10244 = vmatprep.subr.mxu0 %v10243
    %v10245 = vand.u32 %v464, 4294901760
    %v10246 = vsub.f32 %v464, %v10245
    %10247 = vmatpush2.msra.mxu0 %v10246
    %v10248 = vand.u32 %v457, 4294901760
    %v10249 = vsub.f32 %v457, %v10248
    %10250 = vmatprep.subr.mxu0 %v10249
    %v10251 = vand.u32 %v456, 4294901760
    %v10252 = vsub.f32 %v456, %v10251
    %10253 = vmatpush2.msra.mxu0 %v10252
    %v10254 = vand.u32 %v449, 4294901760
    %v10255 = vsub.f32 %v449, %v10254
    %10256 = vmatprep.subr.mxu0 %v10255
    %v10257 = vand.u32 %v448, 4294901760
    %v10258 = vsub.f32 %v448, %v10257
    %10259 = vmatpush2.msra.mxu0 %v10258
    %v10260 = vand.u32 %v441, 4294901760
    %v10261 = vsub.f32 %v441, %v10260
    %10262 = vmatprep.subr.mxu0 %v10261
    %v10263 = vand.u32 %v440, 4294901760
    %v10264 = vsub.f32 %v440, %v10263
    %10265 = vmatpush2.msra.mxu0 %v10264
    %v10266 = vand.u32 %v433, 4294901760
    %v10267 = vsub.f32 %v433, %v10266
    %10268 = vmatprep.subr.mxu0 %v10267
    %v10269 = vand.u32 %v432, 4294901760
    %v10270 = vsub.f32 %v432, %v10269
    %10271 = vmatpush2.msra.mxu0 %v10270
    %v10272 = vand.u32 %v41, 4294901760
    %v10273 = vsub.f32 %v41, %v10272
    %10274 = vmatprep.mubr.f32.mxu0 %v10273
    %v10275 = vand.u32 %v40, 4294901760
    %v10276 = vsub.f32 %v40, %v10275
    %10277 = vmatmul.mubr.f32.gmra.mxu0 %v10276
    %v10278 = vpop.f32.mrf.mxu0
    %v10279 = vadd.f32 %v10076, %v10278
    %v10280 = vpop.f32.mrf.mxu0
    %v10281 = vadd.f32 %v10078, %v10280
    %10282 = vdwg.mxu0
    %v10283 = vand.u32 %v425, 4294901760
    %10284 = vmatprep.subr.mxu0 %v10283
    %v10285 = vand.u32 %v424, 4294901760
    %10286 = vmatpush1.msra.mxu0 %v10285
    %v10287 = vand.u32 %v417, 4294901760
    %10288 = vmatprep.subr.mxu0 %v10287
    %v10289 = vand.u32 %v416, 4294901760
    %10290 = vmatpush1.msra.mxu0 %v10289
    %v10291 = vand.u32 %v409, 4294901760
    %10292 = vmatprep.subr.mxu0 %v10291
    %v10293 = vand.u32 %v408, 4294901760
    %10294 = vmatpush1.msra.mxu0 %v10293
    %v10295 = vand.u32 %v401, 4294901760
    %10296 = vmatprep.subr.mxu0 %v10295
    %v10297 = vand.u32 %v400, 4294901760
    %10298 = vmatpush1.msra.mxu0 %v10297
    %v10299 = vand.u32 %v393, 4294901760
    %10300 = vmatprep.subr.mxu0 %v10299
    %v10301 = vand.u32 %v392, 4294901760
    %10302 = vmatpush1.msra.mxu0 %v10301
    %v10303 = vand.u32 %v385, 4294901760
    %10304 = vmatprep.subr.mxu0 %v10303
    %v10305 = vand.u32 %v384, 4294901760
    %10306 = vmatpush1.msra.mxu0 %v10305
    %v10307 = vand.u32 %v377, 4294901760
    %10308 = vmatprep.subr.mxu0 %v10307
    %v10309 = vand.u32 %v376, 4294901760
    %10310 = vmatpush1.msra.mxu0 %v10309
    %v10311 = vand.u32 %v369, 4294901760
    %10312 = vmatprep.subr.mxu0 %v10311
    %v10313 = vand.u32 %v368, 4294901760
    %10314 = vmatpush1.msra.mxu0 %v10313
    %v10315 = vand.u32 %v361, 4294901760
    %10316 = vmatprep.subr.mxu0 %v10315
    %v10317 = vand.u32 %v360, 4294901760
    %10318 = vmatpush1.msra.mxu0 %v10317
    %v10319 = vand.u32 %v353, 4294901760
    %10320 = vmatprep.subr.mxu0 %v10319
    %v10321 = vand.u32 %v352, 4294901760
    %10322 = vmatpush1.msra.mxu0 %v10321
    %v10323 = vand.u32 %v345, 4294901760
    %10324 = vmatprep.subr.mxu0 %v10323
    %v10325 = vand.u32 %v344, 4294901760
    %10326 = vmatpush1.msra.mxu0 %v10325
    %v10327 = vand.u32 %v337, 4294901760
    %10328 = vmatprep.subr.mxu0 %v10327
    %v10329 = vand.u32 %v336, 4294901760
    %10330 = vmatpush1.msra.mxu0 %v10329
    %v10331 = vand.u32 %v329, 4294901760
    %10332 = vmatprep.subr.mxu0 %v10331
    %v10333 = vand.u32 %v328, 4294901760
    %10334 = vmatpush1.msra.mxu0 %v10333
    %v10335 = vand.u32 %v321, 4294901760
    %10336 = vmatprep.subr.mxu0 %v10335
    %v10337 = vand.u32 %v320, 4294901760
    %10338 = vmatpush1.msra.mxu0 %v10337
    %v10339 = vand.u32 %v313, 4294901760
    %10340 = vmatprep.subr.mxu0 %v10339
    %v10341 = vand.u32 %v312, 4294901760
    %10342 = vmatpush1.msra.mxu0 %v10341
    %v10343 = vand.u32 %v305, 4294901760
    %10344 = vmatprep.subr.mxu0 %v10343
    %v10345 = vand.u32 %v304, 4294901760
    %10346 = vmatpush1.msra.mxu0 %v10345
    %v10347 = vand.u32 %v553, 4294901760
    %10348 = vmatprep.subr.mxu0 %v10347
    %v10349 = vand.u32 %v552, 4294901760
    %10350 = vmatpush2.msra.mxu0 %v10349
    %v10351 = vand.u32 %v545, 4294901760
    %10352 = vmatprep.subr.mxu0 %v10351
    %v10353 = vand.u32 %v544, 4294901760
    %10354 = vmatpush2.msra.mxu0 %v10353
    %v10355 = vand.u32 %v537, 4294901760
    %10356 = vmatprep.subr.mxu0 %v10355
    %v10357 = vand.u32 %v536, 4294901760
    %10358 = vmatpush2.msra.mxu0 %v10357
    %v10359 = vand.u32 %v529, 4294901760
    %10360 = vmatprep.subr.mxu0 %v10359
    %v10361 = vand.u32 %v528, 4294901760
    %10362 = vmatpush2.msra.mxu0 %v10361
    %v10363 = vand.u32 %v521, 4294901760
    %10364 = vmatprep.subr.mxu0 %v10363
    %v10365 = vand.u32 %v520, 4294901760
    %10366 = vmatpush2.msra.mxu0 %v10365
    %v10367 = vand.u32 %v513, 4294901760
    %10368 = vmatprep.subr.mxu0 %v10367
    %v10369 = vand.u32 %v512, 4294901760
    %10370 = vmatpush2.msra.mxu0 %v10369
    %v10371 = vand.u32 %v505, 4294901760
    %10372 = vmatprep.subr.mxu0 %v10371
    %v10373 = vand.u32 %v504, 4294901760
    %10374 = vmatpush2.msra.mxu0 %v10373
    %v10375 = vand.u32 %v497, 4294901760
    %10376 = vmatprep.subr.mxu0 %v10375
    %v10377 = vand.u32 %v496, 4294901760
    %10378 = vmatpush2.msra.mxu0 %v10377
    %v10379 = vand.u32 %v489, 4294901760
    %10380 = vmatprep.subr.mxu0 %v10379
    %v10381 = vand.u32 %v488, 4294901760
    %10382 = vmatpush2.msra.mxu0 %v10381
    %v10383 = vand.u32 %v481, 4294901760
    %10384 = vmatprep.subr.mxu0 %v10383
    %v10385 = vand.u32 %v480, 4294901760
    %10386 = vmatpush2.msra.mxu0 %v10385
    %v10387 = vand.u32 %v473, 4294901760
    %10388 = vmatprep.subr.mxu0 %v10387
    %v10389 = vand.u32 %v472, 4294901760
    %10390 = vmatpush2.msra.mxu0 %v10389
    %v10391 = vand.u32 %v465, 4294901760
    %10392 = vmatprep.subr.mxu0 %v10391
    %v10393 = vand.u32 %v464, 4294901760
    %10394 = vmatpush2.msra.mxu0 %v10393
    %v10395 = vand.u32 %v457, 4294901760
    %10396 = vmatprep.subr.mxu0 %v10395
    %v10397 = vand.u32 %v456, 4294901760
    %10398 = vmatpush2.msra.mxu0 %v10397
    %v10399 = vand.u32 %v449, 4294901760
    %10400 = vmatprep.subr.mxu0 %v10399
    %v10401 = vand.u32 %v448, 4294901760
    %10402 = vmatpush2.msra.mxu0 %v10401
    %v10403 = vand.u32 %v441, 4294901760
    %10404 = vmatprep.subr.mxu0 %v10403
    %v10405 = vand.u32 %v440, 4294901760
    %10406 = vmatpush2.msra.mxu0 %v10405
    %v10407 = vand.u32 %v433, 4294901760
    %10408 = vmatprep.subr.mxu0 %v10407
    %v10409 = vand.u32 %v432, 4294901760
    %10410 = vmatpush2.msra.mxu0 %v10409
    %v10411 = vand.u32 %v41, 4294901760
    %v10412 = vsub.f32 %v41, %v10411
    %v10413 = vand.u32 %v10412, 4294901760
    %10414 = vmatprep.mubr.f32.mxu0 %v10413
    %v10415 = vand.u32 %v40, 4294901760
    %v10416 = vsub.f32 %v40, %v10415
    %v10417 = vand.u32 %v10416, 4294901760
    %10418 = vmatmul.mubr.f32.gmra.mxu0 %v10417
    %v10419 = vpop.f32.mrf.mxu0
    %v10420 = vadd.f32 %v10279, %v10419
    %v10421 = vpop.f32.mrf.mxu0
    %v10422 = vadd.f32 %v10281, %v10421
    %10423 = vdwg.mxu0
    %v10424 = vand.u32 %v425, 4294901760
    %v10425 = vsub.f32 %v425, %v10424
    %v10426 = vand.u32 %v10425, 4294901760
    %10427 = vmatprep.subr.mxu0 %v10426
    %v10428 = vand.u32 %v424, 4294901760
    %v10429 = vsub.f32 %v424, %v10428
    %v10430 = vand.u32 %v10429, 4294901760
    %10431 = vmatpush1.msra.mxu0 %v10430
    %v10432 = vand.u32 %v417, 4294901760
    %v10433 = vsub.f32 %v417, %v10432
    %v10434 = vand.u32 %v10433, 4294901760
    %10435 = vmatprep.subr.mxu0 %v10434
    %v10436 = vand.u32 %v416, 4294901760
    %v10437 = vsub.f32 %v416, %v10436
    %v10438 = vand.u32 %v10437, 4294901760
    %10439 = vmatpush1.msra.mxu0 %v10438
    %v10440 = vand.u32 %v409, 4294901760
    %v10441 = vsub.f32 %v409, %v10440
    %v10442 = vand.u32 %v10441, 4294901760
    %10443 = vmatprep.subr.mxu0 %v10442
    %v10444 = vand.u32 %v408, 4294901760
    %v10445 = vsub.f32 %v408, %v10444
    %v10446 = vand.u32 %v10445, 4294901760
    %10447 = vmatpush1.msra.mxu0 %v10446
    %v10448 = vand.u32 %v401, 4294901760
    %v10449 = vsub.f32 %v401, %v10448
    %v10450 = vand.u32 %v10449, 4294901760
    %10451 = vmatprep.subr.mxu0 %v10450
    %v10452 = vand.u32 %v400, 4294901760
    %v10453 = vsub.f32 %v400, %v10452
    %v10454 = vand.u32 %v10453, 4294901760
    %10455 = vmatpush1.msra.mxu0 %v10454
    %v10456 = vand.u32 %v393, 4294901760
    %v10457 = vsub.f32 %v393, %v10456
    %v10458 = vand.u32 %v10457, 4294901760
    %10459 = vmatprep.subr.mxu0 %v10458
    %v10460 = vand.u32 %v392, 4294901760
    %v10461 = vsub.f32 %v392, %v10460
    %v10462 = vand.u32 %v10461, 4294901760
    %10463 = vmatpush1.msra.mxu0 %v10462
    %v10464 = vand.u32 %v385, 4294901760
    %v10465 = vsub.f32 %v385, %v10464
    %v10466 = vand.u32 %v10465, 4294901760
    %10467 = vmatprep.subr.mxu0 %v10466
    %v10468 = vand.u32 %v384, 4294901760
    %v10469 = vsub.f32 %v384, %v10468
    %v10470 = vand.u32 %v10469, 4294901760
    %10471 = vmatpush1.msra.mxu0 %v10470
    %v10472 = vand.u32 %v377, 4294901760
    %v10473 = vsub.f32 %v377, %v10472
    %v10474 = vand.u32 %v10473, 4294901760
    %10475 = vmatprep.subr.mxu0 %v10474
    %v10476 = vand.u32 %v376, 4294901760
    %v10477 = vsub.f32 %v376, %v10476
    %v10478 = vand.u32 %v10477, 4294901760
    %10479 = vmatpush1.msra.mxu0 %v10478
    %v10480 = vand.u32 %v369, 4294901760
    %v10481 = vsub.f32 %v369, %v10480
    %v10482 = vand.u32 %v10481, 4294901760
    %10483 = vmatprep.subr.mxu0 %v10482
    %v10484 = vand.u32 %v368, 4294901760
    %v10485 = vsub.f32 %v368, %v10484
    %v10486 = vand.u32 %v10485, 4294901760
    %10487 = vmatpush1.msra.mxu0 %v10486
    %v10488 = vand.u32 %v361, 4294901760
    %v10489 = vsub.f32 %v361, %v10488
    %v10490 = vand.u32 %v10489, 4294901760
    %10491 = vmatprep.subr.mxu0 %v10490
    %v10492 = vand.u32 %v360, 4294901760
    %v10493 = vsub.f32 %v360, %v10492
    %v10494 = vand.u32 %v10493, 4294901760
    %10495 = vmatpush1.msra.mxu0 %v10494
    %v10496 = vand.u32 %v353, 4294901760
    %v10497 = vsub.f32 %v353, %v10496
    %v10498 = vand.u32 %v10497, 4294901760
    %10499 = vmatprep.subr.mxu0 %v10498
    %v10500 = vand.u32 %v352, 4294901760
    %v10501 = vsub.f32 %v352, %v10500
    %v10502 = vand.u32 %v10501, 4294901760
    %10503 = vmatpush1.msra.mxu0 %v10502
    %v10504 = vand.u32 %v345, 4294901760
    %v10505 = vsub.f32 %v345, %v10504
    %v10506 = vand.u32 %v10505, 4294901760
    %10507 = vmatprep.subr.mxu0 %v10506
    %v10508 = vand.u32 %v344, 4294901760
    %v10509 = vsub.f32 %v344, %v10508
    %v10510 = vand.u32 %v10509, 4294901760
    %10511 = vmatpush1.msra.mxu0 %v10510
    %v10512 = vand.u32 %v337, 4294901760
    %v10513 = vsub.f32 %v337, %v10512
    %v10514 = vand.u32 %v10513, 4294901760
    %10515 = vmatprep.subr.mxu0 %v10514
    %v10516 = vand.u32 %v336, 4294901760
    %v10517 = vsub.f32 %v336, %v10516
    %v10518 = vand.u32 %v10517, 4294901760
    %10519 = vmatpush1.msra.mxu0 %v10518
    %v10520 = vand.u32 %v329, 4294901760
    %v10521 = vsub.f32 %v329, %v10520
    %v10522 = vand.u32 %v10521, 4294901760
    %10523 = vmatprep.subr.mxu0 %v10522
    %v10524 = vand.u32 %v328, 4294901760
    %v10525 = vsub.f32 %v328, %v10524
    %v10526 = vand.u32 %v10525, 4294901760
    %10527 = vmatpush1.msra.mxu0 %v10526
    %v10528 = vand.u32 %v321, 4294901760
    %v10529 = vsub.f32 %v321, %v10528
    %v10530 = vand.u32 %v10529, 4294901760
    %10531 = vmatprep.subr.mxu0 %v10530
    %v10532 = vand.u32 %v320, 4294901760
    %v10533 = vsub.f32 %v320, %v10532
    %v10534 = vand.u32 %v10533, 4294901760
    %10535 = vmatpush1.msra.mxu0 %v10534
    %v10536 = vand.u32 %v313, 4294901760
    %v10537 = vsub.f32 %v313, %v10536
    %v10538 = vand.u32 %v10537, 4294901760
    %10539 = vmatprep.subr.mxu0 %v10538
    %v10540 = vand.u32 %v312, 4294901760
    %v10541 = vsub.f32 %v312, %v10540
    %v10542 = vand.u32 %v10541, 4294901760
    %10543 = vmatpush1.msra.mxu0 %v10542
    %v10544 = vand.u32 %v305, 4294901760
    %v10545 = vsub.f32 %v305, %v10544
    %v10546 = vand.u32 %v10545, 4294901760
    %10547 = vmatprep.subr.mxu0 %v10546
    %v10548 = vand.u32 %v304, 4294901760
    %v10549 = vsub.f32 %v304, %v10548
    %v10550 = vand.u32 %v10549, 4294901760
    %10551 = vmatpush1.msra.mxu0 %v10550
    %v10552 = vand.u32 %v553, 4294901760
    %v10553 = vsub.f32 %v553, %v10552
    %v10554 = vand.u32 %v10553, 4294901760
    %10555 = vmatprep.subr.mxu0 %v10554
    %v10556 = vand.u32 %v552, 4294901760
    %v10557 = vsub.f32 %v552, %v10556
    %v10558 = vand.u32 %v10557, 4294901760
    %10559 = vmatpush2.msra.mxu0 %v10558
    %v10560 = vand.u32 %v545, 4294901760
    %v10561 = vsub.f32 %v545, %v10560
    %v10562 = vand.u32 %v10561, 4294901760
    %10563 = vmatprep.subr.mxu0 %v10562
    %v10564 = vand.u32 %v544, 4294901760
    %v10565 = vsub.f32 %v544, %v10564
    %v10566 = vand.u32 %v10565, 4294901760
    %10567 = vmatpush2.msra.mxu0 %v10566
    %v10568 = vand.u32 %v537, 4294901760
    %v10569 = vsub.f32 %v537, %v10568
    %v10570 = vand.u32 %v10569, 4294901760
    %10571 = vmatprep.subr.mxu0 %v10570
    %v10572 = vand.u32 %v536, 4294901760
    %v10573 = vsub.f32 %v536, %v10572
    %v10574 = vand.u32 %v10573, 4294901760
    %10575 = vmatpush2.msra.mxu0 %v10574
    %v10576 = vand.u32 %v529, 4294901760
    %v10577 = vsub.f32 %v529, %v10576
    %v10578 = vand.u32 %v10577, 4294901760
    %10579 = vmatprep.subr.mxu0 %v10578
    %v10580 = vand.u32 %v528, 4294901760
    %v10581 = vsub.f32 %v528, %v10580
    %v10582 = vand.u32 %v10581, 4294901760
    %10583 = vmatpush2.msra.mxu0 %v10582
    %v10584 = vand.u32 %v521, 4294901760
    %v10585 = vsub.f32 %v521, %v10584
    %v10586 = vand.u32 %v10585, 4294901760
    %10587 = vmatprep.subr.mxu0 %v10586
    %v10588 = vand.u32 %v520, 4294901760
    %v10589 = vsub.f32 %v520, %v10588
    %v10590 = vand.u32 %v10589, 4294901760
    %10591 = vmatpush2.msra.mxu0 %v10590
    %v10592 = vand.u32 %v513, 4294901760
    %v10593 = vsub.f32 %v513, %v10592
    %v10594 = vand.u32 %v10593, 4294901760
    %10595 = vmatprep.subr.mxu0 %v10594
    %v10596 = vand.u32 %v512, 4294901760
    %v10597 = vsub.f32 %v512, %v10596
    %v10598 = vand.u32 %v10597, 4294901760
    %10599 = vmatpush2.msra.mxu0 %v10598
    %v10600 = vand.u32 %v505, 4294901760
    %v10601 = vsub.f32 %v505, %v10600
    %v10602 = vand.u32 %v10601, 4294901760
    %10603 = vmatprep.subr.mxu0 %v10602
    %v10604 = vand.u32 %v504, 4294901760
    %v10605 = vsub.f32 %v504, %v10604
    %v10606 = vand.u32 %v10605, 4294901760
    %10607 = vmatpush2.msra.mxu0 %v10606
    %v10608 = vand.u32 %v497, 4294901760
    %v10609 = vsub.f32 %v497, %v10608
    %v10610 = vand.u32 %v10609, 4294901760
    %10611 = vmatprep.subr.mxu0 %v10610
    %v10612 = vand.u32 %v496, 4294901760
    %v10613 = vsub.f32 %v496, %v10612
    %v10614 = vand.u32 %v10613, 4294901760
    %10615 = vmatpush2.msra.mxu0 %v10614
    %v10616 = vand.u32 %v489, 4294901760
    %v10617 = vsub.f32 %v489, %v10616
    %v10618 = vand.u32 %v10617, 4294901760
    %10619 = vmatprep.subr.mxu0 %v10618
    %v10620 = vand.u32 %v488, 4294901760
    %v10621 = vsub.f32 %v488, %v10620
    %v10622 = vand.u32 %v10621, 4294901760
    %10623 = vmatpush2.msra.mxu0 %v10622
    %v10624 = vand.u32 %v481, 4294901760
    %v10625 = vsub.f32 %v481, %v10624
    %v10626 = vand.u32 %v10625, 4294901760
    %10627 = vmatprep.subr.mxu0 %v10626
    %v10628 = vand.u32 %v480, 4294901760
    %v10629 = vsub.f32 %v480, %v10628
    %v10630 = vand.u32 %v10629, 4294901760
    %10631 = vmatpush2.msra.mxu0 %v10630
    %v10632 = vand.u32 %v473, 4294901760
    %v10633 = vsub.f32 %v473, %v10632
    %v10634 = vand.u32 %v10633, 4294901760
    %10635 = vmatprep.subr.mxu0 %v10634
    %v10636 = vand.u32 %v472, 4294901760
    %v10637 = vsub.f32 %v472, %v10636
    %v10638 = vand.u32 %v10637, 4294901760
    %10639 = vmatpush2.msra.mxu0 %v10638
    %v10640 = vand.u32 %v465, 4294901760
    %v10641 = vsub.f32 %v465, %v10640
    %v10642 = vand.u32 %v10641, 4294901760
    %10643 = vmatprep.subr.mxu0 %v10642
    %v10644 = vand.u32 %v464, 4294901760
    %v10645 = vsub.f32 %v464, %v10644
    %v10646 = vand.u32 %v10645, 4294901760
    %10647 = vmatpush2.msra.mxu0 %v10646
    %v10648 = vand.u32 %v457, 4294901760
    %v10649 = vsub.f32 %v457, %v10648
    %v10650 = vand.u32 %v10649, 4294901760
    %10651 = vmatprep.subr.mxu0 %v10650
    %v10652 = vand.u32 %v456, 4294901760
    %v10653 = vsub.f32 %v456, %v10652
    %v10654 = vand.u32 %v10653, 4294901760
    %10655 = vmatpush2.msra.mxu0 %v10654
    %v10656 = vand.u32 %v449, 4294901760
    %v10657 = vsub.f32 %v449, %v10656
    %v10658 = vand.u32 %v10657, 4294901760
    %10659 = vmatprep.subr.mxu0 %v10658
    %v10660 = vand.u32 %v448, 4294901760
    %v10661 = vsub.f32 %v448, %v10660
    %v10662 = vand.u32 %v10661, 4294901760
    %10663 = vmatpush2.msra.mxu0 %v10662
    %v10664 = vand.u32 %v441, 4294901760
    %v10665 = vsub.f32 %v441, %v10664
    %v10666 = vand.u32 %v10665, 4294901760
    %10667 = vmatprep.subr.mxu0 %v10666
    %v10668 = vand.u32 %v440, 4294901760
    %v10669 = vsub.f32 %v440, %v10668
    %v10670 = vand.u32 %v10669, 4294901760
    %10671 = vmatpush2.msra.mxu0 %v10670
    %v10672 = vand.u32 %v433, 4294901760
    %v10673 = vsub.f32 %v433, %v10672
    %v10674 = vand.u32 %v10673, 4294901760
    %10675 = vmatprep.subr.mxu0 %v10674
    %v10676 = vand.u32 %v432, 4294901760
    %v10677 = vsub.f32 %v432, %v10676
    %v10678 = vand.u32 %v10677, 4294901760
    %10679 = vmatpush2.msra.mxu0 %v10678
    %v10680 = vand.u32 %v41, 4294901760
    %10681 = vmatprep.mubr.f32.mxu0 %v10680
    %v10682 = vand.u32 %v40, 4294901760
    %10683 = vmatmul.mubr.f32.gmra.mxu0 %v10682
    %v10684 = vpop.f32.mrf.mxu0
    %v10685 = vadd.f32 %v10420, %v10684
    %v10686 = vpop.f32.mrf.mxu0
    %v10687 = vadd.f32 %v10422, %v10686
    %10688 = vdwg.mxu0
    %v10689 = vand.u32 %v425, 4294901760
    %10690 = vmatprep.subr.mxu0 %v10689
    %v10691 = vand.u32 %v424, 4294901760
    %10692 = vmatpush1.msra.mxu0 %v10691
    %v10693 = vand.u32 %v417, 4294901760
    %10694 = vmatprep.subr.mxu0 %v10693
    %v10695 = vand.u32 %v416, 4294901760
    %10696 = vmatpush1.msra.mxu0 %v10695
    %v10697 = vand.u32 %v409, 4294901760
    %10698 = vmatprep.subr.mxu0 %v10697
    %v10699 = vand.u32 %v408, 4294901760
    %10700 = vmatpush1.msra.mxu0 %v10699
    %v10701 = vand.u32 %v401, 4294901760
    %10702 = vmatprep.subr.mxu0 %v10701
    %v10703 = vand.u32 %v400, 4294901760
    %10704 = vmatpush1.msra.mxu0 %v10703
    %v10705 = vand.u32 %v393, 4294901760
    %10706 = vmatprep.subr.mxu0 %v10705
    %v10707 = vand.u32 %v392, 4294901760
    %10708 = vmatpush1.msra.mxu0 %v10707
    %v10709 = vand.u32 %v385, 4294901760
    %10710 = vmatprep.subr.mxu0 %v10709
    %v10711 = vand.u32 %v384, 4294901760
    %10712 = vmatpush1.msra.mxu0 %v10711
    %v10713 = vand.u32 %v377, 4294901760
    %10714 = vmatprep.subr.mxu0 %v10713
    %v10715 = vand.u32 %v376, 4294901760
    %10716 = vmatpush1.msra.mxu0 %v10715
    %v10717 = vand.u32 %v369, 4294901760
    %10718 = vmatprep.subr.mxu0 %v10717
    %v10719 = vand.u32 %v368, 4294901760
    %10720 = vmatpush1.msra.mxu0 %v10719
    %v10721 = vand.u32 %v361, 4294901760
    %10722 = vmatprep.subr.mxu0 %v10721
    %v10723 = vand.u32 %v360, 4294901760
    %10724 = vmatpush1.msra.mxu0 %v10723
    %v10725 = vand.u32 %v353, 4294901760
    %10726 = vmatprep.subr.mxu0 %v10725
    %v10727 = vand.u32 %v352, 4294901760
    %10728 = vmatpush1.msra.mxu0 %v10727
    %v10729 = vand.u32 %v345, 4294901760
    %10730 = vmatprep.subr.mxu0 %v10729
    %v10731 = vand.u32 %v344, 4294901760
    %10732 = vmatpush1.msra.mxu0 %v10731
    %v10733 = vand.u32 %v337, 4294901760
    %10734 = vmatprep.subr.mxu0 %v10733
    %v10735 = vand.u32 %v336, 4294901760
    %10736 = vmatpush1.msra.mxu0 %v10735
    %v10737 = vand.u32 %v329, 4294901760
    %10738 = vmatprep.subr.mxu0 %v10737
    %v10739 = vand.u32 %v328, 4294901760
    %10740 = vmatpush1.msra.mxu0 %v10739
    %v10741 = vand.u32 %v321, 4294901760
    %10742 = vmatprep.subr.mxu0 %v10741
    %v10743 = vand.u32 %v320, 4294901760
    %10744 = vmatpush1.msra.mxu0 %v10743
    %v10745 = vand.u32 %v313, 4294901760
    %10746 = vmatprep.subr.mxu0 %v10745
    %v10747 = vand.u32 %v312, 4294901760
    %10748 = vmatpush1.msra.mxu0 %v10747
    %v10749 = vand.u32 %v305, 4294901760
    %10750 = vmatprep.subr.mxu0 %v10749
    %v10751 = vand.u32 %v304, 4294901760
    %10752 = vmatpush1.msra.mxu0 %v10751
    %v10753 = vand.u32 %v553, 4294901760
    %10754 = vmatprep.subr.mxu0 %v10753
    %v10755 = vand.u32 %v552, 4294901760
    %10756 = vmatpush2.msra.mxu0 %v10755
    %v10757 = vand.u32 %v545, 4294901760
    %10758 = vmatprep.subr.mxu0 %v10757
    %v10759 = vand.u32 %v544, 4294901760
    %10760 = vmatpush2.msra.mxu0 %v10759
    %v10761 = vand.u32 %v537, 4294901760
    %10762 = vmatprep.subr.mxu0 %v10761
    %v10763 = vand.u32 %v536, 4294901760
    %10764 = vmatpush2.msra.mxu0 %v10763
    %v10765 = vand.u32 %v529, 4294901760
    %10766 = vmatprep.subr.mxu0 %v10765
    %v10767 = vand.u32 %v528, 4294901760
    %10768 = vmatpush2.msra.mxu0 %v10767
    %v10769 = vand.u32 %v521, 4294901760
    %10770 = vmatprep.subr.mxu0 %v10769
    %v10771 = vand.u32 %v520, 4294901760
    %10772 = vmatpush2.msra.mxu0 %v10771
    %v10773 = vand.u32 %v513, 4294901760
    %10774 = vmatprep.subr.mxu0 %v10773
    %v10775 = vand.u32 %v512, 4294901760
    %10776 = vmatpush2.msra.mxu0 %v10775
    %v10777 = vand.u32 %v505, 4294901760
    %10778 = vmatprep.subr.mxu0 %v10777
    %v10779 = vand.u32 %v504, 4294901760
    %10780 = vmatpush2.msra.mxu0 %v10779
    %v10781 = vand.u32 %v497, 4294901760
    %10782 = vmatprep.subr.mxu0 %v10781
    %v10783 = vand.u32 %v496, 4294901760
    %10784 = vmatpush2.msra.mxu0 %v10783
    %v10785 = vand.u32 %v489, 4294901760
    %10786 = vmatprep.subr.mxu0 %v10785
    %v10787 = vand.u32 %v488, 4294901760
    %10788 = vmatpush2.msra.mxu0 %v10787
    %v10789 = vand.u32 %v481, 4294901760
    %10790 = vmatprep.subr.mxu0 %v10789
    %v10791 = vand.u32 %v480, 4294901760
    %10792 = vmatpush2.msra.mxu0 %v10791
    %v10793 = vand.u32 %v473, 4294901760
    %10794 = vmatprep.subr.mxu0 %v10793
    %v10795 = vand.u32 %v472, 4294901760
    %10796 = vmatpush2.msra.mxu0 %v10795
    %v10797 = vand.u32 %v465, 4294901760
    %10798 = vmatprep.subr.mxu0 %v10797
    %v10799 = vand.u32 %v464, 4294901760
    %10800 = vmatpush2.msra.mxu0 %v10799
    %v10801 = vand.u32 %v457, 4294901760
    %10802 = vmatprep.subr.mxu0 %v10801
    %v10803 = vand.u32 %v456, 4294901760
    %10804 = vmatpush2.msra.mxu0 %v10803
    %v10805 = vand.u32 %v449, 4294901760
    %10806 = vmatprep.subr.mxu0 %v10805
    %v10807 = vand.u32 %v448, 4294901760
    %10808 = vmatpush2.msra.mxu0 %v10807
    %v10809 = vand.u32 %v441, 4294901760
    %10810 = vmatprep.subr.mxu0 %v10809
    %v10811 = vand.u32 %v440, 4294901760
    %10812 = vmatpush2.msra.mxu0 %v10811
    %v10813 = vand.u32 %v433, 4294901760
    %10814 = vmatprep.subr.mxu0 %v10813
    %v10815 = vand.u32 %v432, 4294901760
    %10816 = vmatpush2.msra.mxu0 %v10815
    %v10817 = vand.u32 %v41, 4294901760
    %10818 = vmatprep.mubr.f32.mxu0 %v10817
    %v10819 = vand.u32 %v40, 4294901760
    %10820 = vmatmul.mubr.f32.gmra.mxu0 %v10819
    %v10821 = vpop.f32.mrf.mxu0
    %v10822 = vadd.f32 %v10685, %v10821
    %v10823 = vpop.f32.mrf.mxu0
    %v10824 = vadd.f32 %v10687, %v10823
    %10825 = vdwg.mxu0
    %v10826 = vmax.f32 %v3118, 0.0
    %v10827 = vmax.f32 %v3120, 0.0
    %v10828 = vmax.f32 %v5686, 0.0
    %v10829 = vmax.f32 %v5688, 0.0
    %v10830 = vmax.f32 %v8254, 0.0
    %v10831 = vmax.f32 %v8256, 0.0
    %v10832 = vmax.f32 %v10822, 0.0
    %v10833 = vmax.f32 %v10824, 0.0
    %10834 = vst [vmem:[#allocation7] sm:$0xff] %v10826
    %10835 = vst [vmem:[#allocation7 + $0x8] sm:$0xff] %v10827
    %10836 = vst [vmem:[#allocation7 + $0x10] sm:$0xff] %v10828
    %10837 = vst [vmem:[#allocation7 + $0x18] sm:$0xff] %v10829
    %10838 = vst [vmem:[#allocation7 + $0x20] sm:$0xff] %v10830
    %10839 = vst [vmem:[#allocation7 + $0x28] sm:$0xff] %v10831
    %10840 = vst [vmem:[#allocation7 + $0x30] sm:$0xff] %v10832
    %10841 = vst [vmem:[#allocation7 + $0x38] sm:$0xff] %v10833
    // Predicated region
    $region18: #{tpu_custom_call.1} parent=1 // pred_check
      _
    $region19: #{tpu_custom_call.1} parent=1 // pred_check_branch
      %10843 = sbr.rel (0) target = $region21
    $region20: #{tpu_custom_call.1} parent=1 // pred_region
      %s10845 = ssub.s32 1024, 1024
      %10846 = vsyncadd [#allocation4], %s10845
      %s10848 = sshll.u32 [#allocation7], 4
      %s10849 = int_to_ptr.vmem [resolvable:$true] %s10848
      %10851 = dma.vmem_to_hbm [thread:$0]  %s10849, 1024, %s2, [#allocation4]
    $region21: #{tpu_custom_call.1} parent=1 // pred_fallthru
      _
    // Predicated region
    $region22: #{tpu_custom_call.1} parent=1 // pred_check
      _
    $region23: #{tpu_custom_call.1} parent=1 // pred_check_branch
      %10853 = sbr.rel (0) target = $region25
    $region24: #{tpu_custom_call.1} parent=1 // pred_region
      %10854 = dma.done [#allocation4], 1024
    $region25: #{tpu_custom_call.1} parent=1 // pred_fallthru
      _
    %10855 = vsyncpa [#allocation3], 1
    %10856 = vsyncpa [#allocation6], 1
    %10857 = vsyncpa [#allocation4], 1

</llo_original>
